<compile_context>
chip_gen: v7x
topology: tpu7x:2x2x1
jax: 0.10.0
libtpu: 0.0.40
codegen_flags: <defaults>
</compile_context>

<pallas_src>
import functools
import numpy as np
import jax
import jax.numpy as jnp
from jax import lax
from jax.experimental import pallas as pl
from jax.experimental.pallas import tpu as pltpu

REPEAT = 10
SCALE_FACTOR = 4          # unused in forward (kept for parity with the module)
PRELU_ALPHA = 0.25        # nn.PReLU() default (single shared parameter)
BN_EPS = 1e-5
LANE = 128                # TPU lane width; output channels padded to this
TM = 512                  # max row tile of the fused im2col-matmul kernel
MIN_PALLAS_M = 256        # below this, a pallas_call is pure launch overhead
MXU_DTYPE = jnp.bfloat16  # MXU operand / activation storage dtype (f32 accum)


def _round_up(x, m):
    return ((x + m - 1) // m) * m


# ----------------------------------------------------------------------------
# Pallas fused kernel: (M,K)@(K,Npad) [+ addend] -> + shift -> act [-> +res]
# ----------------------------------------------------------------------------
def _make_kernel(act, alpha, has_addend, has_residual):
    def kernel(*refs):
        a_ref, b_ref, shift_ref = refs[0], refs[1], refs[2]
        pos = 3
        add_ref = None
        res_ref = None
        if has_addend:
            add_ref = refs[pos]; pos += 1
        if has_residual:
            res_ref = refs[pos]; pos += 1
        o_ref = refs[pos]

        acc = jnp.dot(a_ref[...], b_ref[...], preferred_element_type=jnp.float32)
        y = acc + shift_ref[...]                    # f32 epilogue (v5e-safe)
        if add_ref is not None:
            y = y + add_ref[...]                    # hoisted one-hot term
        if act == "relu":
            y = jnp.maximum(y, 0.0)
        elif act == "prelu":
            y = jnp.where(y >= 0.0, y, alpha * y)
        if res_ref is not None:
            # final 32->1 conv: keep only channel 0 and fuse the residual add
            y = y[:, :1] + res_ref[...]
        o_ref[...] = y.astype(o_ref.dtype)
    return kernel


def _pick_tm(M):
    """Row tile: at least 2 M-blocks when possible (v7x megacore), mult of 8."""
    tm = min(TM, _round_up((M + 1) // 2, 8))
    return max(8, min(tm, _round_up(M, 8)))


def fused_matmul(a, b, shift, act, *, addend=None, residual=None,
                 out_dtype=MXU_DTYPE, alpha=PRELU_ALPHA):
    """A @ B with fused per-output-channel shift + activation (Pallas).

    `b`/`shift` lane dim is pre-padded to a multiple of 128 so MXU lanes are
    full.  `addend` (M,Np f32) is added before the activation; `residual`
    (M,1 f32) switches the kernel to "take channel 0 + residual" mode with a
    (M,1) f32 output.  Activation outputs are stored bf16.
    """
    a = a.astype(MXU_DTYPE)
    M, K = a.shape
    K2, Np = b.shape
    assert K == K2 and Np % LANE == 0
    tm = _pick_tm(M)
    grid_m = pl.cdiv(M, tm)

    kernel = _make_kernel(act, float(alpha), addend is not None,
                          residual is not None)

    in_specs = [
        pl.BlockSpec((tm, K), lambda i: (i, 0)),   # row tile of im2col patches
        pl.BlockSpec((K, Np), lambda i: (0, 0)),   # full (scale-folded) weights
        pl.BlockSpec((1, Np), lambda i: (0, 0)),   # per-channel shift (bias/BN)
    ]
    args = [a, b, shift]
    if addend is not None:
        in_specs.append(pl.BlockSpec((tm, Np), lambda i: (i, 0)))
        args.append(addend)
    if residual is not None:
        in_specs.append(pl.BlockSpec((tm, 1), lambda i: (i, 0)))
        args.append(residual)

    n_out = 1 if residual is not None else Np
    o_dtype = jnp.float32 if residual is not None else out_dtype

    cost = pl.CostEstimate(
        flops=2 * M * K * Np,
        transcendentals=0,
        bytes_accessed=(M * K * 2 + K * Np * 2 + Np * 4
                        + M * n_out * jnp.dtype(o_dtype).itemsize
                        + (M * Np * 4 if addend is not None else 0)
                        + (M * 4 if residual is not None else 0)),
    )
    return pl.pallas_call(
        kernel,
        out_shape=jax.ShapeDtypeStruct((M, n_out), o_dtype),
        grid=(grid_m,),
        in_specs=in_specs,
        out_specs=pl.BlockSpec((tm, n_out), lambda i: (i, 0)),
        compiler_params=pltpu.CompilerParams(dimension_semantics=("parallel",)),
        cost_estimate=cost,
    )(*args)


def _activate(y, act, alpha=PRELU_ALPHA):
    if act == "relu":
        return jnp.maximum(y, 0.0)
    if act == "prelu":
        return jnp.where(y >= 0.0, y, alpha * y)
    return y


def dense_matmul(a, b, shift, act, alpha=PRELU_ALPHA):
    """Plain-XLA path for tiny-M layers (scale-regressor tail)."""
    y = jnp.dot(a.astype(jnp.float32), b.astype(jnp.float32),
                preferred_element_type=jnp.float32) + shift
    return _activate(y, act, alpha)


# ----------------------------------------------------------------------------
# im2col glue (runs inside the outer jit; XLA fuses the slices/concat)
# ----------------------------------------------------------------------------
def _im2col(x, kh, kw, stride, pad):
    """x: NHWC -> (N*oh*ow, kh*kw*C) patches, column order = (i, j, c)."""
    N, H, W, C = x.shape
    xp = jnp.pad(x, ((0, 0), (pad, pad), (pad, pad), (0, 0)))
    Hp, Wp = H + 2 * pad, W + 2 * pad
    oh = (Hp - kh) // stride + 1
    ow = (Wp - kw) // stride + 1
    cols = []
    for i in range(kh):
        for j in range(kw):
            cols.append(
                xp[:, i:i + stride * (oh - 1) + 1:stride,
                      j:j + stride * (ow - 1) + 1:stride, :]
            )
    patches = jnp.concatenate(cols, axis=-1)          # (N, oh, ow, kh*kw*C)
    return patches.reshape(N * oh * ow, kh * kw * C), oh, ow


def apply_layer(x, wd, md):
    """Apply one packed conv / polyphase-deconv layer.  x: NHWC."""
    N = x.shape[0]
    if md["kind"] == "conv":
        A, oh, ow = _im2col(x, md["k"], md["k"], md["stride"], md["pad"])
    else:  # polyphase deconv: 4 stride-1 3x3 phase convs in one matmul
        A, oh, ow = _im2col(x, 3, 3, 1, 1)
    M = A.shape[0]
    if M >= MIN_PALLAS_M:
        out = fused_matmul(A, wd["B"], wd["shift"], md["act"])
    else:
        out = dense_matmul(A, wd["B"], wd["shift"], md["act"])
    cout = md["cout"]
    if md["kind"] == "conv":
        return out[:, :cout].reshape(N, oh, ow, cout)
    y = out[:, :4 * cout].reshape(N, oh, ow, 2, 2, cout)       # [..., r, s, c]
    # TODO(synk): fold the polyphase interleave into the next layer's weight
    #             packing (or a fused multi-layer kernel) to avoid this small
    #             strided HBM relayout.
    y = jnp.transpose(y, (0, 1, 3, 2, 4, 5)).reshape(N, 2 * oh, 2 * ow, cout)
    return y


def maxpool2(x):
    N, H, W, C = x.shape
    x = x[:, :(H // 2) * 2, :(W // 2) * 2, :]
    return x.reshape(N, H // 2, 2, W // 2, 2, C).max(axis=(2, 4))


# ----------------------------------------------------------------------------
# Parameter init + packing into matmul-ready (K, Npad) bf16 weights
# ----------------------------------------------------------------------------
def _bn_fold(b, cout, norm):
    if norm == "bn":  # eval-mode BN on a fresh module: gamma=1, beta=0, mean=0, var=1
        s = np.float32(1.0 / np.sqrt(1.0 + BN_EPS))
        return jnp.full((cout,), s, jnp.float32), b * s
    return jnp.ones((cout,), jnp.float32), b


def _pack_conv(key, cin, cout, k, stride, pad, act, norm,
               cin_used=None, split_first=0):
    kw_, kb_ = jax.random.split(key)
    w = jax.random.normal(kw_, (cout, cin, k, k), jnp.float32) / np.sqrt(cin * k * k)
    b = jax.random.normal(kb_, (cout,), jnp.float32) * 0.01
    scale, shift = _bn_fold(b, cout, norm)
    cu = cin if cin_used is None else cin_used
    if split_first:
        # Row order: [k*k rows for the first `split_first` channels (grouped),
        #             then k*k*(cu-split_first) rows for the remaining ones]
        # to match A = concat([im2col(x[..., :sf]), im2col(x[..., sf:cu])], -1).
        B0 = jnp.transpose(w[:, :split_first], (2, 3, 1, 0)).reshape(
            k * k * split_first, cout)
        B1 = jnp.transpose(w[:, split_first:cu], (2, 3, 1, 0)).reshape(
            k * k * (cu - split_first), cout)
        Bm = jnp.concatenate([B0, B1], axis=0)
    else:
        Bm = jnp.transpose(w[:, :cu], (2, 3, 1, 0)).reshape(k * k * cu, cout)
    Bm = Bm * scale[None, :]                               # fold scale into weights
    npad = _round_up(cout, LANE)
    Bm = jnp.pad(Bm, ((0, 0), (0, npad - cout))).astype(MXU_DTYPE)
    shift = jnp.pad(shift, (0, npad - cout)).reshape(1, npad).astype(jnp.float32)
    wd = dict(B=Bm, shift=shift)
    md = dict(kind="conv", k=k, stride=stride, pad=pad, act=act, cout=cout)
    return wd, md


def _pack_deconv(key, cin, cout, k, stride, pad, act):
    """ConvTranspose2d(cin,cout,6,stride=2,pad=2) -> 4 polyphase 3x3 convs,
    packed along the output-column dimension of one matmul (N = 4*cout)."""
    assert k == 6 and stride == 2 and pad == 2
    kw_, kb_ = jax.random.split(key)
    w = jax.random.normal(kw_, (cin, cout, k, k), jnp.float32) / np.sqrt(cin * k * k)
    b = jax.random.normal(kb_, (cout,), jnp.float32) * 0.01
    w_t = jnp.transpose(w, (1, 0, 2, 3))                  # (cout, cin, 6, 6)
    cols = []
    for r in range(2):
        for s in range(2):
            # phase (r,s): out[2m+r, 2n+s] = conv3x3_pad1(x, k_rs)[m, n]
            k_rs = w_t[:, :, r::2, s::2][:, :, ::-1, ::-1]     # (cout, cin, 3, 3)
            cols.append(jnp.transpose(k_rs, (2, 3, 1, 0)).reshape(9 * cin, cout))
    Bm = jnp.concatenate(cols, axis=1)                    # (9*cin, 4*cout)
    shift = jnp.tile(b, 4)                                # bias per phase column block
    n = 4 * cout
    npad = _round_up(n, LANE)
    Bm = jnp.pad(Bm, ((0, 0), (0, npad - n))).astype(MXU_DTYPE)
    shift = jnp.pad(shift, (0, npad - n)).reshape(1, npad).astype(jnp.float32)
    wd = dict(B=Bm, shift=shift)
    md = dict(kind="deconv", k=3, stride=1, pad=1, act=act, cout=cout)
    return wd, md


def init_params(seed=0):
    keys = jax.random.split(jax.random.PRNGKey(seed), 32)
    ki = iter(keys)
    # Reconstructor layer 0: 27 input channels in the module; the last 10
    # (upscaled_stage_base) are always zero in forward(), so only 17 are used
    # (exact).  Split into the lr part (K=9, per-iteration) and the one-hot
    # part (K=144, hoisted out of the REPEAT loop).
    wd0, md0 = _pack_conv(next(ki), 1 + REPEAT + 16, 128, 3, 1, 1, "prelu", None,
                          cin_used=17, split_first=1)
    wd0 = dict(B_lr=wd0["B"][:9], B_oh=wd0["B"][9:], shift=wd0["shift"])
    recon = [
        (wd0, md0),
        _pack_conv(next(ki), 128, 32, 3, 1, 1, "prelu", None),
        _pack_conv(next(ki), 32, 32, 3, 2, 1, "prelu", None),
        _pack_deconv(next(ki), 32, 32, 6, 2, 2, "prelu"),
        _pack_conv(next(ki), 32, 32, 3, 2, 1, "prelu", None),
        _pack_deconv(next(ki), 32, 32, 6, 2, 2, "prelu"),
        _pack_conv(next(ki), 32, 32, 3, 2, 1, "prelu", None),
        _pack_deconv(next(ki), 32, 32, 6, 2, 2, "prelu"),
        _pack_conv(next(ki), 32, 1, 3, 1, 1, None, None),
    ]
    sreg = [
        _pack_conv(next(ki), 1, 16, 3, 1, 1, "relu", "bn"),
        _pack_conv(next(ki), 16, 32, 3, 2, 1, "relu", "bn"),
        _pack_conv(next(ki), 32, 64, 3, 2, 1, "relu", "bn"),
        _pack_conv(next(ki), 64, 128, 3, 2, 1, "relu", "bn"),
        _pack_conv(next(ki), 128, 64, 1, 1, 0, "relu", None),
        _pack_conv(next(ki), 64, 16, 1, 1, 0, "relu", None),
        _pack_conv(next(ki), 16, 16, 1, 1, 0, None, None),
    ]
    weights = {"reconstructor": [w for w, _ in recon],
               "scale_regressor": [w for w, _ in sreg]}
    meta = {"reconstructor": [m for _, m in recon],
            "scale_regressor": [m for _, m in sreg]}
    return weights, meta


# ----------------------------------------------------------------------------
# Jitted core forward: scale regressor + REPEAT x reconstructor (lax.scan)
# ----------------------------------------------------------------------------
def make_forward(meta):
    recon_meta = meta["reconstructor"]
    sr_meta = meta["scale_regressor"]

    @jax.jit
    def forward_core(weights, lr, one_hot):
        recon_w = weights["reconstructor"]
        sr_w = weights["scale_regressor"]
        Bb, H, W, _ = lr.shape

        # ----- scale regressor (Dropout = identity in eval) -----
        x = apply_layer(lr, sr_w[0], sr_meta[0])
        x = maxpool2(x)
        x = apply_layer(x, sr_w[1], sr_meta[1])     # tiny M -> plain XLA inside
        x = maxpool2(x)
        x = apply_layer(x, sr_w[2], sr_meta[2])
        x = maxpool2(x)
        x = apply_layer(x, sr_w[3], sr_meta[3])
        x = jnp.mean(x.astype(jnp.float32), axis=(1, 2), keepdims=True)  # AdaptiveAvgPool2d(1)
        x = apply_layer(x, sr_w[4], sr_meta[4])
        x = apply_layer(x, sr_w[5], sr_meta[5])
        x = apply_layer(x, sr_w[6], sr_meta[6])
        pred_scale = jax.nn.softmax(x.reshape(Bb, -1), axis=1)

        # ----- constant one-hot contribution (hoisted out of the REPEAT loop) -
        oh_map = jnp.broadcast_to(one_hot[:, None, None, :], (Bb, H, W, 16))
        A_oh, _, _ = _im2col(oh_map, 3, 3, 1, 1)          # (B*H*W, 144)
        zero_shift = jnp.zeros((1, LANE), jnp.float32)
        C_oh = fused_matmul(A_oh, recon_w[0]["B_oh"], zero_shift, None,
                            out_dtype=jnp.float32)        # (B*H*W, 128) f32

        md0 = recon_meta[0]
        mdL = recon_meta[-1]
        wdL = recon_w[-1]

        # ----- reconstructor, REPEAT iterations -----
        def body(lr_c, _):
            # layer 0: K=9 lr matmul; one-hot term + bias added in the epilogue
            A_lr, _, _ = _im2col(lr_c, 3, 3, 1, 1)        # (B*H*W, 9)
            h = fused_matmul(A_lr, recon_w[0]["B_lr"], recon_w[0]["shift"],
                             md0["act"], addend=C_oh)
            h = h[:, :md0["cout"]].reshape(Bb, H, W, md0["cout"])
            # layers 1..7
            for wd, md in zip(recon_w[1:-1], recon_meta[1:-1]):
                h = apply_layer(h, wd, md)
            # final 32->1 conv with the residual add (output + lr) fused in
            A8, oh8, ow8 = _im2col(h, mdL["k"], mdL["k"], mdL["stride"], mdL["pad"])
            new_lr = fused_matmul(A8, wdL["B"], wdL["shift"], mdL["act"],
                                  residual=lr_c.reshape(-1, 1))
            new_lr = new_lr.reshape(Bb, oh8, ow8, 1)      # f32
            return new_lr, new_lr

        _, stacked = lax.scan(body, lr, xs=None, length=REPEAT)
        stacked = jnp.transpose(stacked, (0, 1, 4, 2, 3))  # (REPEAT, B, 1, H, W)
        return stacked, pred_scale

    return forward_core


# ----------------------------------------------------------------------------
# down_and_up_sample (outside jit: output shapes depend on the scale values)
# ----------------------------------------------------------------------------
def down_and_up_sample(x_nchw, scales):
    # TODO(synk): MATLAB-style `imresize` (antialiased bicubic) has no exact JAX
    # equivalent; jax.image.resize bicubic (no antialias) is used instead.
    B, _, H, W = x_nchw.shape
    outs = []
    for i, s in enumerate(scales):
        s = max(float(s), 0.1)
        dh = max(int(np.ceil(H * s)), 1)
        dw = max(int(np.ceil(W * s)), 1)
        img = x_nchw[i, 0]
        small = jax.image.resize(img, (dh, dw), method="bicubic")
        back = jax.image.resize(small, (H, W), method="bicubic")
        outs.append(back[None, None])
    return jnp.concatenate(outs, axis=0)                  # (B, 1, H, W)


# ----------------------------------------------------------------------------
# USRN_NCS.forward
# ----------------------------------------------------------------------------
def usrn_ncs_forward(forward_core, weights, input_x_nchw, target_scales):
    target_scales = np.asarray(target_scales, dtype=np.float64)
    inv_scales = 1.0 / target_scales                      # `target_scales = 1/target_scales`
    lr_nchw = down_and_up_sample(input_x_nchw, inv_scales)
    lr = jnp.transpose(lr_nchw, (0, 2, 3, 1)).astype(jnp.float32)   # -> NHWC

    # Note: values outside [0,16) give an all-zero one-hot row here (PyTorch's
    # F.one_hot would raise instead).
    tt = np.trunc(1.0 / inv_scales * 5.0 - 5.0).astype(np.int32)    # .long() truncation
    one_hot = jax.nn.one_hot(jnp.asarray(tt), 16, dtype=jnp.float32)

    stacked, pred_scale = forward_core(weights, lr, one_hot)
    out = [stacked[i] for i in range(REPEAT)]             # list of (B,1,H,W)
    return out, pred_scale


# ----------------------------------------------------------------------------
if __name__ == "__main__":
    key = jax.random.PRNGKey(0)
    B, H, W = 2, 32, 32
    input_x = jax.random.normal(key, (B, 1, H, W), jnp.float32)   # NCHW like PyTorch
    target_scales = np.array([2.0, 4.0], dtype=np.float32)        # tt in [0, 15]

    weights, meta = init_params(seed=0)
    forward_core = make_forward(meta)

    out_list, pred_scale = usrn_ncs_forward(forward_core, weights, input_x,
                                            target_scales)

    for o in out_list:
        jax.block_until_ready(o)
    jax.block_until_ready(pred_scale)

    assert len(out_list) == REPEAT
    assert out_list[0].shape == (B, 1, H, W)
    assert pred_scale.shape == (B, 16)
    print("KERNEL_OK")
</pallas_src>

<mosaic_0001>
module attributes {stable_mosaic.version = 11 : i64} {
  func.func @kernel(%arg0: i32, %arg1: memref<512x144xbf16, #tpu.memory_space<vmem>>, %arg2: memref<144x128xbf16, #tpu.memory_space<vmem>>, %arg3: memref<1x128xf32, #tpu.memory_space<vmem>>, %arg4: memref<512x128xf32, #tpu.memory_space<vmem>>) attributes {dimension_semantics = [#tpu.dimension_semantics<parallel>], iteration_bounds = array<i64: 4>, scalar_prefetch = 0 : i64, scratch_operands = 0 : i64, tpu.core_type = #tpu.core_type<tc>, window_params = [{transform_indices = @transform_0, window_bounds = array<i64: 512, 144>}, {pipeline_mode = #tpu.pipeline_mode<synchronous>, transform_indices = @transform_1, window_bounds = array<i64: 144, 128>}, {pipeline_mode = #tpu.pipeline_mode<synchronous>, transform_indices = @transform_2, window_bounds = array<i64: 1, 128>}, {transform_indices = @transform_3, window_bounds = array<i64: 512, 128>}]} {
    %c0 = arith.constant 0 : index
    %c0_0 = arith.constant 0 : index
    %0 = vector.load %arg1[%c0, %c0_0] : memref<512x144xbf16, #tpu.memory_space<vmem>>, vector<512x144xbf16>
    %c0_1 = arith.constant 0 : index
    %c0_2 = arith.constant 0 : index
    %1 = vector.load %arg2[%c0_1, %c0_2] : memref<144x128xbf16, #tpu.memory_space<vmem>>, vector<144x128xbf16>
    %cst = arith.constant dense<0.000000e+00> : vector<512x128xf32>
    %2 = tpu.matmul %0, %1, %cst {dimension_numbers = #tpu.dot_dimension_numbers<[1], [0], [0], [1], [0, 0, 1, 1], [], []>} : vector<512x144xbf16>, vector<144x128xbf16>, vector<512x128xf32> -> vector<512x128xf32>
    %c0_3 = arith.constant 0 : index
    %c0_4 = arith.constant 0 : index
    %3 = vector.load %arg3[%c0_3, %c0_4] : memref<1x128xf32, #tpu.memory_space<vmem>>, vector<1x128xf32>
    %4 = vector.broadcast %3 : vector<1x128xf32> to vector<512x128xf32>
    %5 = arith.addf %2, %4 : vector<512x128xf32>
    %c0_5 = arith.constant 0 : index
    %c0_6 = arith.constant 0 : index
    %6 = vector.load %arg4[%c0_5, %c0_6] : memref<512x128xf32, #tpu.memory_space<vmem>>, vector<512x128xf32>
    tpu.vector_store %arg4[%c0_5, %c0_6], %5 {strides = array<i32>} : memref<512x128xf32, #tpu.memory_space<vmem>>, vector<512x128xf32>,
    return
  }
  func.func @transform_0(%arg0: i32) -> (i32, i32) {
    %c0_i32 = arith.constant 0 : i32
    %c0_i32_0 = arith.constant 0 : i32
    return %arg0, %c0_i32 : i32, i32
  }
  func.func @transform_1(%arg0: i32) -> (i32, i32) {
    %c0_i32 = arith.constant 0 : i32
    %c0_i32_0 = arith.constant 0 : i32
    %c0_i32_1 = arith.constant 0 : i32
    return %c0_i32, %c0_i32_0 : i32, i32
  }
  func.func @transform_2(%arg0: i32) -> (i32, i32) {
    %c0_i32 = arith.constant 0 : i32
    %c0_i32_0 = arith.constant 0 : i32
    %c0_i32_1 = arith.constant 0 : i32
    return %c0_i32, %c0_i32_0 : i32, i32
  }
  func.func @transform_3(%arg0: i32) -> (i32, i32) {
    %c0_i32 = arith.constant 0 : i32
    %c0_i32_0 = arith.constant 0 : i32
    return %arg0, %c0_i32 : i32, i32
  }
}

module attributes {stable_mosaic.version = 11 : i64} {
  func.func @kernel(%arg0: i32, %arg1: memref<512x9xbf16, #tpu.memory_space<vmem>>, %arg2: memref<9x128xbf16, #tpu.memory_space<vmem>>, %arg3: memref<1x128xf32, #tpu.memory_space<vmem>>, %arg4: memref<512x128xf32, #tpu.memory_space<vmem>>, %arg5: memref<512x128xbf16, #tpu.memory_space<vmem>>) attributes {dimension_semantics = [#tpu.dimension_semantics<parallel>], iteration_bounds = array<i64: 4>, scalar_prefetch = 0 : i64, scratch_operands = 0 : i64, tpu.core_type = #tpu.core_type<tc>, window_params = [{transform_indices = @transform_0, window_bounds = array<i64: 512, 9>}, {pipeline_mode = #tpu.pipeline_mode<synchronous>, transform_indices = @transform_1, window_bounds = array<i64: 9, 128>}, {pipeline_mode = #tpu.pipeline_mode<synchronous>, transform_indices = @transform_2, window_bounds = array<i64: 1, 128>}, {transform_indices = @transform_3, window_bounds = array<i64: 512, 128>}, {transform_indices = @transform_4, window_bounds = array<i64: 512, 128>}]} {
    %c0 = arith.constant 0 : index
    %c0_0 = arith.constant 0 : index
    %0 = vector.load %arg1[%c0, %c0_0] : memref<512x9xbf16, #tpu.memory_space<vmem>>, vector<512x9xbf16>
    %c0_1 = arith.constant 0 : index
    %c0_2 = arith.constant 0 : index
    %1 = vector.load %arg2[%c0_1, %c0_2] : memref<9x128xbf16, #tpu.memory_space<vmem>>, vector<9x128xbf16>
    %cst = arith.constant dense<0.000000e+00> : vector<512x128xf32>
    %2 = tpu.matmul %0, %1, %cst {dimension_numbers = #tpu.dot_dimension_numbers<[1], [0], [0], [1], [0, 0, 1, 1], [], []>} : vector<512x9xbf16>, vector<9x128xbf16>, vector<512x128xf32> -> vector<512x128xf32>
    %c0_3 = arith.constant 0 : index
    %c0_4 = arith.constant 0 : index
    %3 = vector.load %arg3[%c0_3, %c0_4] : memref<1x128xf32, #tpu.memory_space<vmem>>, vector<1x128xf32>
    %4 = vector.broadcast %3 : vector<1x128xf32> to vector<512x128xf32>
    %5 = arith.addf %2, %4 : vector<512x128xf32>
    %c0_5 = arith.constant 0 : index
    %c0_6 = arith.constant 0 : index
    %6 = vector.load %arg4[%c0_5, %c0_6] : memref<512x128xf32, #tpu.memory_space<vmem>>, vector<512x128xf32>
    %7 = arith.addf %5, %6 : vector<512x128xf32>
    %cst_7 = arith.constant 0.000000e+00 : f32
    %8 = vector.broadcast %cst_7 : f32 to vector<512x128xf32>
    %9 = arith.cmpf oge, %7, %8 : vector<512x128xf32>
    %cst_8 = arith.constant 2.500000e-01 : f32
    %10 = vector.broadcast %cst_8 : f32 to vector<512x128xf32>
    %11 = arith.mulf %10, %7 : vector<512x128xf32>
    %12 = arith.select %9, %7, %11 : vector<512x128xi1>, vector<512x128xf32>
    %13 = arith.truncf %12 : vector<512x128xf32> to vector<512x128xbf16>
    %c0_9 = arith.constant 0 : index
    %c0_10 = arith.constant 0 : index
    %14 = vector.load %arg5[%c0_9, %c0_10] : memref<512x128xbf16, #tpu.memory_space<vmem>>, vector<512x128xbf16>
    tpu.vector_store %arg5[%c0_9, %c0_10], %13 {strides = array<i32>} : memref<512x128xbf16, #tpu.memory_space<vmem>>, vector<512x128xbf16>,
    return
  }
  func.func @transform_0(%arg0: i32) -> (i32, i32) {
    %c0_i32 = arith.constant 0 : i32
    %c0_i32_0 = arith.constant 0 : i32
    return %arg0, %c0_i32 : i32, i32
  }
  func.func @transform_1(%arg0: i32) -> (i32, i32) {
    %c0_i32 = arith.constant 0 : i32
    %c0_i32_0 = arith.constant 0 : i32
    %c0_i32_1 = arith.constant 0 : i32
    return %c0_i32, %c0_i32_0 : i32, i32
  }
  func.func @transform_2(%arg0: i32) -> (i32, i32) {
    %c0_i32 = arith.constant 0 : i32
    %c0_i32_0 = arith.constant 0 : i32
    %c0_i32_1 = arith.constant 0 : i32
    return %c0_i32, %c0_i32_0 : i32, i32
  }
  func.func @transform_3(%arg0: i32) -> (i32, i32) {
    %c0_i32 = arith.constant 0 : i32
    %c0_i32_0 = arith.constant 0 : i32
    return %arg0, %c0_i32 : i32, i32
  }
  func.func @transform_4(%arg0: i32) -> (i32, i32) {
    %c0_i32 = arith.constant 0 : i32
    %c0_i32_0 = arith.constant 0 : i32
    return %arg0, %c0_i32 : i32, i32
  }
}

module attributes {stable_mosaic.version = 11 : i64} {
  func.func @kernel(%arg0: i32, %arg1: memref<512x1152xbf16, #tpu.memory_space<vmem>>, %arg2: memref<1152x128xbf16, #tpu.memory_space<vmem>>, %arg3: memref<1x128xf32, #tpu.memory_space<vmem>>, %arg4: memref<512x128xbf16, #tpu.memory_space<vmem>>) attributes {dimension_semantics = [#tpu.dimension_semantics<parallel>], iteration_bounds = array<i64: 4>, scalar_prefetch = 0 : i64, scratch_operands = 0 : i64, tpu.core_type = #tpu.core_type<tc>, window_params = [{transform_indices = @transform_0, window_bounds = array<i64: 512, 1152>}, {pipeline_mode = #tpu.pipeline_mode<synchronous>, transform_indices = @transform_1, window_bounds = array<i64: 1152, 128>}, {pipeline_mode = #tpu.pipeline_mode<synchronous>, transform_indices = @transform_2, window_bounds = array<i64: 1, 128>}, {transform_indices = @transform_3, window_bounds = array<i64: 512, 128>}]} {
    %c0 = arith.constant 0 : index
    %c0_0 = arith.constant 0 : index
    %0 = vector.load %arg1[%c0, %c0_0] : memref<512x1152xbf16, #tpu.memory_space<vmem>>, vector<512x1152xbf16>
    %c0_1 = arith.constant 0 : index
    %c0_2 = arith.constant 0 : index
    %1 = vector.load %arg2[%c0_1, %c0_2] : memref<1152x128xbf16, #tpu.memory_space<vmem>>, vector<1152x128xbf16>
    %cst = arith.constant dense<0.000000e+00> : vector<512x128xf32>
    %2 = tpu.matmul %0, %1, %cst {dimension_numbers = #tpu.dot_dimension_numbers<[1], [0], [0], [1], [0, 0, 1, 1], [], []>} : vector<512x1152xbf16>, vector<1152x128xbf16>, vector<512x128xf32> -> vector<512x128xf32>
    %c0_3 = arith.constant 0 : index
    %c0_4 = arith.constant 0 : index
    %3 = vector.load %arg3[%c0_3, %c0_4] : memref<1x128xf32, #tpu.memory_space<vmem>>, vector<1x128xf32>
    %4 = vector.broadcast %3 : vector<1x128xf32> to vector<512x128xf32>
    %5 = arith.addf %2, %4 : vector<512x128xf32>
    %cst_5 = arith.constant 0.000000e+00 : f32
    %6 = vector.broadcast %cst_5 : f32 to vector<512x128xf32>
    %7 = arith.cmpf oge, %5, %6 : vector<512x128xf32>
    %cst_6 = arith.constant 2.500000e-01 : f32
    %8 = vector.broadcast %cst_6 : f32 to vector<512x128xf32>
    %9 = arith.mulf %8, %5 : vector<512x128xf32>
    %10 = arith.select %7, %5, %9 : vector<512x128xi1>, vector<512x128xf32>
    %11 = arith.truncf %10 : vector<512x128xf32> to vector<512x128xbf16>
    %c0_7 = arith.constant 0 : index
    %c0_8 = arith.constant 0 : index
    %12 = vector.load %arg4[%c0_7, %c0_8] : memref<512x128xbf16, #tpu.memory_space<vmem>>, vector<512x128xbf16>
    tpu.vector_store %arg4[%c0_7, %c0_8], %11 {strides = array<i32>} : memref<512x128xbf16, #tpu.memory_space<vmem>>, vector<512x128xbf16>,
    return
  }
  func.func @transform_0(%arg0: i32) -> (i32, i32) {
    %c0_i32 = arith.constant 0 : i32
    %c0_i32_0 = arith.constant 0 : i32
    return %arg0, %c0_i32 : i32, i32
  }
  func.func @transform_1(%arg0: i32) -> (i32, i32) {
    %c0_i32 = arith.constant 0 : i32
    %c0_i32_0 = arith.constant 0 : i32
    %c0_i32_1 = arith.constant 0 : i32
    return %c0_i32, %c0_i32_0 : i32, i32
  }
  func.func @transform_2(%arg0: i32) -> (i32, i32) {
    %c0_i32 = arith.constant 0 : i32
    %c0_i32_0 = arith.constant 0 : i32
    %c0_i32_1 = arith.constant 0 : i32
    return %c0_i32, %c0_i32_0 : i32, i32
  }
  func.func @transform_3(%arg0: i32) -> (i32, i32) {
    %c0_i32 = arith.constant 0 : i32
    %c0_i32_0 = arith.constant 0 : i32
    return %arg0, %c0_i32 : i32, i32
  }
}

module attributes {stable_mosaic.version = 11 : i64} {
  func.func @kernel(%arg0: i32, %arg1: memref<256x288xbf16, #tpu.memory_space<vmem>>, %arg2: memref<288x128xbf16, #tpu.memory_space<vmem>>, %arg3: memref<1x128xf32, #tpu.memory_space<vmem>>, %arg4: memref<256x128xbf16, #tpu.memory_space<vmem>>) attributes {dimension_semantics = [#tpu.dimension_semantics<parallel>], iteration_bounds = array<i64: 2>, scalar_prefetch = 0 : i64, scratch_operands = 0 : i64, tpu.core_type = #tpu.core_type<tc>, window_params = [{transform_indices = @transform_0, window_bounds = array<i64: 256, 288>}, {pipeline_mode = #tpu.pipeline_mode<synchronous>, transform_indices = @transform_1, window_bounds = array<i64: 288, 128>}, {pipeline_mode = #tpu.pipeline_mode<synchronous>, transform_indices = @transform_2, window_bounds = array<i64: 1, 128>}, {transform_indices = @transform_3, window_bounds = array<i64: 256, 128>}]} {
    %c0 = arith.constant 0 : index
    %c0_0 = arith.constant 0 : index
    %0 = vector.load %arg1[%c0, %c0_0] : memref<256x288xbf16, #tpu.memory_space<vmem>>, vector<256x288xbf16>
    %c0_1 = arith.constant 0 : index
    %c0_2 = arith.constant 0 : index
    %1 = vector.load %arg2[%c0_1, %c0_2] : memref<288x128xbf16, #tpu.memory_space<vmem>>, vector<288x128xbf16>
    %cst = arith.constant dense<0.000000e+00> : vector<256x128xf32>
    %2 = tpu.matmul %0, %1, %cst {dimension_numbers = #tpu.dot_dimension_numbers<[1], [0], [0], [1], [0, 0, 1, 1], [], []>} : vector<256x288xbf16>, vector<288x128xbf16>, vector<256x128xf32> -> vector<256x128xf32>
    %c0_3 = arith.constant 0 : index
    %c0_4 = arith.constant 0 : index
    %3 = vector.load %arg3[%c0_3, %c0_4] : memref<1x128xf32, #tpu.memory_space<vmem>>, vector<1x128xf32>
    %4 = vector.broadcast %3 : vector<1x128xf32> to vector<256x128xf32>
    %5 = arith.addf %2, %4 : vector<256x128xf32>
    %cst_5 = arith.constant 0.000000e+00 : f32
    %6 = vector.broadcast %cst_5 : f32 to vector<256x128xf32>
    %7 = arith.cmpf oge, %5, %6 : vector<256x128xf32>
    %cst_6 = arith.constant 2.500000e-01 : f32
    %8 = vector.broadcast %cst_6 : f32 to vector<256x128xf32>
    %9 = arith.mulf %8, %5 : vector<256x128xf32>
    %10 = arith.select %7, %5, %9 : vector<256x128xi1>, vector<256x128xf32>
    %11 = arith.truncf %10 : vector<256x128xf32> to vector<256x128xbf16>
    %c0_7 = arith.constant 0 : index
    %c0_8 = arith.constant 0 : index
    %12 = vector.load %arg4[%c0_7, %c0_8] : memref<256x128xbf16, #tpu.memory_space<vmem>>, vector<256x128xbf16>
    tpu.vector_store %arg4[%c0_7, %c0_8], %11 {strides = array<i32>} : memref<256x128xbf16, #tpu.memory_space<vmem>>, vector<256x128xbf16>,
    return
  }
  func.func @transform_0(%arg0: i32) -> (i32, i32) {
    %c0_i32 = arith.constant 0 : i32
    %c0_i32_0 = arith.constant 0 : i32
    return %arg0, %c0_i32 : i32, i32
  }
  func.func @transform_1(%arg0: i32) -> (i32, i32) {
    %c0_i32 = arith.constant 0 : i32
    %c0_i32_0 = arith.constant 0 : i32
    %c0_i32_1 = arith.constant 0 : i32
    return %c0_i32, %c0_i32_0 : i32, i32
  }
  func.func @transform_2(%arg0: i32) -> (i32, i32) {
    %c0_i32 = arith.constant 0 : i32
    %c0_i32_0 = arith.constant 0 : i32
    %c0_i32_1 = arith.constant 0 : i32
    return %c0_i32, %c0_i32_0 : i32, i32
  }
  func.func @transform_3(%arg0: i32) -> (i32, i32) {
    %c0_i32 = arith.constant 0 : i32
    %c0_i32_0 = arith.constant 0 : i32
    return %arg0, %c0_i32 : i32, i32
  }
}

module attributes {stable_mosaic.version = 11 : i64} {
  func.func @kernel(%arg0: i32, %arg1: memref<512x288xbf16, #tpu.memory_space<vmem>>, %arg2: memref<288x128xbf16, #tpu.memory_space<vmem>>, %arg3: memref<1x128xf32, #tpu.memory_space<vmem>>, %arg4: memref<512x1xf32, #tpu.memory_space<vmem>>, %arg5: memref<512x1xf32, #tpu.memory_space<vmem>>) attributes {dimension_semantics = [#tpu.dimension_semantics<parallel>], iteration_bounds = array<i64: 4>, scalar_prefetch = 0 : i64, scratch_operands = 0 : i64, tpu.core_type = #tpu.core_type<tc>, window_params = [{transform_indices = @transform_0, window_bounds = array<i64: 512, 288>}, {pipeline_mode = #tpu.pipeline_mode<synchronous>, transform_indices = @transform_1, window_bounds = array<i64: 288, 128>}, {pipeline_mode = #tpu.pipeline_mode<synchronous>, transform_indices = @transform_2, window_bounds = array<i64: 1, 128>}, {transform_indices = @transform_3, window_bounds = array<i64: 512, 1>}, {transform_indices = @transform_4, window_bounds = array<i64: 512, 1>}]} {
    %c0 = arith.constant 0 : index
    %c0_0 = arith.constant 0 : index
    %0 = vector.load %arg1[%c0, %c0_0] : memref<512x288xbf16, #tpu.memory_space<vmem>>, vector<512x288xbf16>
    %c0_1 = arith.constant 0 : index
    %c0_2 = arith.constant 0 : index
    %1 = vector.load %arg2[%c0_1, %c0_2] : memref<288x128xbf16, #tpu.memory_space<vmem>>, vector<288x128xbf16>
    %cst = arith.constant dense<0.000000e+00> : vector<512x128xf32>
    %2 = tpu.matmul %0, %1, %cst {dimension_numbers = #tpu.dot_dimension_numbers<[1], [0], [0], [1], [0, 0, 1, 1], [], []>} : vector<512x288xbf16>, vector<288x128xbf16>, vector<512x128xf32> -> vector<512x128xf32>
    %c0_3 = arith.constant 0 : index
    %c0_4 = arith.constant 0 : index
    %3 = vector.load %arg3[%c0_3, %c0_4] : memref<1x128xf32, #tpu.memory_space<vmem>>, vector<1x128xf32>
    %4 = vector.broadcast %3 : vector<1x128xf32> to vector<512x128xf32>
    %5 = arith.addf %2, %4 : vector<512x128xf32>
    %6 = vector.extract_strided_slice %5 {offsets = [0, 0], sizes = [512, 1], strides = [1, 1]} : vector<512x128xf32> to vector<512x1xf32>
    %c0_5 = arith.constant 0 : index
    %c0_6 = arith.constant 0 : index
    %7 = vector.load %arg4[%c0_5, %c0_6] : memref<512x1xf32, #tpu.memory_space<vmem>>, vector<512x1xf32>
    %8 = arith.addf %6, %7 : vector<512x1xf32>
    %c0_7 = arith.constant 0 : index
    %c0_8 = arith.constant 0 : index
    %9 = vector.load %arg5[%c0_7, %c0_8] : memref<512x1xf32, #tpu.memory_space<vmem>>, vector<512x1xf32>
    tpu.vector_store %arg5[%c0_7, %c0_8], %8 {strides = array<i32>} : memref<512x1xf32, #tpu.memory_space<vmem>>, vector<512x1xf32>,
    return
  }
  func.func @transform_0(%arg0: i32) -> (i32, i32) {
    %c0_i32 = arith.constant 0 : i32
    %c0_i32_0 = arith.constant 0 : i32
    return %arg0, %c0_i32 : i32, i32
  }
  func.func @transform_1(%arg0: i32) -> (i32, i32) {
    %c0_i32 = arith.constant 0 : i32
    %c0_i32_0 = arith.constant 0 : i32
    %c0_i32_1 = arith.constant 0 : i32
    return %c0_i32, %c0_i32_0 : i32, i32
  }
  func.func @transform_2(%arg0: i32) -> (i32, i32) {
    %c0_i32 = arith.constant 0 : i32
    %c0_i32_0 = arith.constant 0 : i32
    %c0_i32_1 = arith.constant 0 : i32
    return %c0_i32, %c0_i32_0 : i32, i32
  }
  func.func @transform_3(%arg0: i32) -> (i32, i32) {
    %c0_i32 = arith.constant 0 : i32
    %c0_i32_0 = arith.constant 0 : i32
    return %arg0, %c0_i32 : i32, i32
  }
  func.func @transform_4(%arg0: i32) -> (i32, i32) {
    %c0_i32 = arith.constant 0 : i32
    %c0_i32_0 = arith.constant 0 : i32
    return %arg0, %c0_i32 : i32, i32
  }
}

module attributes {stable_mosaic.version = 11 : i64} {
  func.func @kernel(%arg0: i32, %arg1: memref<512x9xbf16, #tpu.memory_space<vmem>>, %arg2: memref<9x128xbf16, #tpu.memory_space<vmem>>, %arg3: memref<1x128xf32, #tpu.memory_space<vmem>>, %arg4: memref<512x128xbf16, #tpu.memory_space<vmem>>) attributes {dimension_semantics = [#tpu.dimension_semantics<parallel>], iteration_bounds = array<i64: 4>, scalar_prefetch = 0 : i64, scratch_operands = 0 : i64, tpu.core_type = #tpu.core_type<tc>, window_params = [{transform_indices = @transform_0, window_bounds = array<i64: 512, 9>}, {pipeline_mode = #tpu.pipeline_mode<synchronous>, transform_indices = @transform_1, window_bounds = array<i64: 9, 128>}, {pipeline_mode = #tpu.pipeline_mode<synchronous>, transform_indices = @transform_2, window_bounds = array<i64: 1, 128>}, {transform_indices = @transform_3, window_bounds = array<i64: 512, 128>}]} {
    %c0 = arith.constant 0 : index
    %c0_0 = arith.constant 0 : index
    %0 = vector.load %arg1[%c0, %c0_0] : memref<512x9xbf16, #tpu.memory_space<vmem>>, vector<512x9xbf16>
    %c0_1 = arith.constant 0 : index
    %c0_2 = arith.constant 0 : index
    %1 = vector.load %arg2[%c0_1, %c0_2] : memref<9x128xbf16, #tpu.memory_space<vmem>>, vector<9x128xbf16>
    %cst = arith.constant dense<0.000000e+00> : vector<512x128xf32>
    %2 = tpu.matmul %0, %1, %cst {dimension_numbers = #tpu.dot_dimension_numbers<[1], [0], [0], [1], [0, 0, 1, 1], [], []>} : vector<512x9xbf16>, vector<9x128xbf16>, vector<512x128xf32> -> vector<512x128xf32>
    %c0_3 = arith.constant 0 : index
    %c0_4 = arith.constant 0 : index
    %3 = vector.load %arg3[%c0_3, %c0_4] : memref<1x128xf32, #tpu.memory_space<vmem>>, vector<1x128xf32>
    %4 = vector.broadcast %3 : vector<1x128xf32> to vector<512x128xf32>
    %5 = arith.addf %2, %4 : vector<512x128xf32>
    %cst_5 = arith.constant 0.000000e+00 : f32
    %6 = vector.broadcast %cst_5 : f32 to vector<512x128xf32>
    %7 = arith.maximumf %5, %6 : vector<512x128xf32>
    %8 = arith.truncf %7 : vector<512x128xf32> to vector<512x128xbf16>
    %c0_6 = arith.constant 0 : index
    %c0_7 = arith.constant 0 : index
    %9 = vector.load %arg4[%c0_6, %c0_7] : memref<512x128xbf16, #tpu.memory_space<vmem>>, vector<512x128xbf16>
    tpu.vector_store %arg4[%c0_6, %c0_7], %8 {strides = array<i32>} : memref<512x128xbf16, #tpu.memory_space<vmem>>, vector<512x128xbf16>,
    return
  }
  func.func @transform_0(%arg0: i32) -> (i32, i32) {
    %c0_i32 = arith.constant 0 : i32
    %c0_i32_0 = arith.constant 0 : i32
    return %arg0, %c0_i32 : i32, i32
  }
  func.func @transform_1(%arg0: i32) -> (i32, i32) {
    %c0_i32 = arith.constant 0 : i32
    %c0_i32_0 = arith.constant 0 : i32
    %c0_i32_1 = arith.constant 0 : i32
    return %c0_i32, %c0_i32_0 : i32, i32
  }
  func.func @transform_2(%arg0: i32) -> (i32, i32) {
    %c0_i32 = arith.constant 0 : i32
    %c0_i32_0 = arith.constant 0 : i32
    %c0_i32_1 = arith.constant 0 : i32
    return %c0_i32, %c0_i32_0 : i32, i32
  }
  func.func @transform_3(%arg0: i32) -> (i32, i32) {
    %c0_i32 = arith.constant 0 : i32
    %c0_i32_0 = arith.constant 0 : i32
    return %arg0, %c0_i32 : i32, i32
  }
}

</mosaic_0001>

<llo_original>
// kernel: custom-call.2
$region0: #{custom-call.2}
  %s0 = inlined_call_operand.vmem [shape: f32[10,2,32,32,1], index: 0, kind: output, shape index: {}]

// kernel: forward_core.3
$region0: #{forward_core.3}
  #allocation0 [shape = 'u32[]', space=smem, size = 0x4, offset = 0x4, fixed_abs, tag = 'smem constant byte address 0x4 - core index']
  #allocation1 [shape = 'u32[144,128]{1,0:T(1,128)}', space=vmem, size = 0x12000, scoped, tag = 'internal scratch']
  %s0 = inlined_call_operand.vmem [shape: bf16[2048,144], index: 0, kind: input, shape index: {}]
  %s1 = inlined_call_operand.vmem [shape: bf16[144,128], index: 1, kind: input, shape index: {}]
  %s2 = inlined_call_operand.vmem [shape: f32[1,128], index: 2, kind: input, shape index: {}]
  %s3 = inlined_call_operand.vmem [shape: f32[2048,128], index: 3, kind: output, shape index: {}]
  %s4 = sld [smem:[#allocation0]]
  $region45: #{forward_core.3} parent=0
    _
  %s6 = ssub.s32 1, %s4
  %s7 = scalar_select 0, %s6, %s4
  loop: start=0, step=1, limit=6
  $region2: #{forward_core.3} parent=0 // loop_pre_header
    _
  $region3: #{forward_core.3} parent=0 // loop_header
    %s9 = sphi 0, %s13
    %p10 = scmp.ge.s32.totalorder %s9, 6
    %s19 = sphi 0, %s21
    %s22 = sphi 0, %s19
    %s23 = sphi 0, %s22
    %s39 = sphi 0, %s23
    %s43 = sphi 0, %s43
    %s45 = sphi 0, %s43
    %s46 = sphi 0, %s45
    %s60 = sphi 0, %s46
    %s64 = sphi 0, %s64
    %s66 = sphi 0, %s64
    %s67 = sphi 0, %s66
    %s81 = sphi 0, %s67
    %s87 = sphi 0, %s89
    %s90 = sphi 0, %s87
    %s91 = sphi 0, %s90
    %s107 = sphi 0, %s91
  $region4: #{forward_core.3} parent=0 // loop_header_branch
    %12 = sbr.rel (%p10) target = $region8
  $region5: #{forward_core.3} parent=0 // loop_body
    %s14 = ssub.s32 %s9, 1
    %s15 = ssub.s32 %s9, 2
    %s16 = sadd.s32 %s9, 1
    %s17 = ssub.s32 %s9, %s16
    %p18 = scmp.eq.s32.totalorder %s17, 0
    %s20 = sadd.s32 %s19, 1
    %s21 = scalar_select %p18, %s19, %s20
    %p24 = pneg %p18
    %p25 = scmp.eq.s32.totalorder %s9, 3
    %p26 = por %p24, %p25
    %p27 = scmp.ne.s32.totalorder %s19, %s22
    %p28 = scmp.eq.s32.totalorder %s9, 0
    %p29 = por %p27, %p28
    %p30 = scmp.ne.s32.totalorder %s19, %s22
    %p31 = scmp.eq.s32.totalorder %s14, 3
    %p32 = por %p30, %p31
    %p33 = scmp.ne.s32.totalorder %s22, %s23
    %p34 = scmp.eq.s32.totalorder %s14, 0
    %p35 = por %p33, %p34
    %p36 = scmp.ne.s32.totalorder %s22, %s23
    %p37 = scmp.eq.s32.totalorder %s15, 3
    %p38 = por %p36, %p37
    %p40 = scmp.ne.s32.totalorder %s23, %s39
    %p41 = scmp.eq.s32.totalorder %s15, 0
    %p42 = por %p40, %p41
    %s44 = sadd.s32 %s43, 1
    %p47 = scmp.eq.s32.totalorder %s9, 3
    %p48 = scmp.ne.s32.totalorder %s43, %s45
    %p49 = scmp.eq.s32.totalorder %s9, 0
    %p50 = por %p48, %p49
    %p51 = scmp.ne.s32.totalorder %s43, %s45
    %p52 = scmp.eq.s32.totalorder %s14, 3
    %p53 = por %p51, %p52
    %p54 = scmp.ne.s32.totalorder %s45, %s46
    %p55 = scmp.eq.s32.totalorder %s14, 0
    %p56 = por %p54, %p55
    %p57 = scmp.ne.s32.totalorder %s45, %s46
    %p58 = scmp.eq.s32.totalorder %s15, 3
    %p59 = por %p57, %p58
    %p61 = scmp.ne.s32.totalorder %s46, %s60
    %p62 = scmp.eq.s32.totalorder %s15, 0
    %p63 = por %p61, %p62
    %s65 = sadd.s32 %s64, 1
    %p68 = scmp.eq.s32.totalorder %s9, 3
    %p69 = scmp.ne.s32.totalorder %s64, %s66
    %p70 = scmp.eq.s32.totalorder %s9, 0
    %p71 = por %p69, %p70
    %p72 = scmp.ne.s32.totalorder %s64, %s66
    %p73 = scmp.eq.s32.totalorder %s14, 3
    %p74 = por %p72, %p73
    %p75 = scmp.ne.s32.totalorder %s66, %s67
    %p76 = scmp.eq.s32.totalorder %s14, 0
    %p77 = por %p75, %p76
    %p78 = scmp.ne.s32.totalorder %s66, %s67
    %p79 = scmp.eq.s32.totalorder %s15, 3
    %p80 = por %p78, %p79
    %p82 = scmp.ne.s32.totalorder %s67, %s81
    %p83 = scmp.eq.s32.totalorder %s15, 0
    %p84 = por %p82, %p83
    %s85 = ssub.s32 %s9, %s16
    %p86 = scmp.eq.s32.totalorder %s85, 0
    %s88 = sadd.s32 %s87, 1
    %s89 = scalar_select %p86, %s87, %s88
    %p92 = pneg %p86
    %p93 = scmp.eq.s32.totalorder %s9, 3
    %p94 = por %p92, %p93
    %p95 = scmp.ne.s32.totalorder %s87, %s90
    %p96 = scmp.eq.s32.totalorder %s9, 0
    %p97 = por %p95, %p96
    %p98 = scmp.ne.s32.totalorder %s87, %s90
    %p99 = scmp.eq.s32.totalorder %s14, 3
    %p100 = por %p98, %p99
    %p101 = scmp.ne.s32.totalorder %s90, %s91
    %p102 = scmp.eq.s32.totalorder %s14, 0
    %p103 = por %p101, %p102
    %p104 = scmp.ne.s32.totalorder %s90, %s91
    %p105 = scmp.eq.s32.totalorder %s15, 3
    %p106 = por %p104, %p105
    %p108 = scmp.ne.s32.totalorder %s91, %s107
    %p109 = scmp.eq.s32.totalorder %s15, 0
    %p110 = por %p108, %p109
    %p111 = scmp.le.s32.totalorder 1, %s9
    %p112 = scmp.lt.s32.totalorder %s9, 5
    %p113 = pnand %p111, %p112
    %p114 = pneg %p113
    // Predicated region
    $region9: #{forward_core.3} parent=5 // pred_check
      _
    $region10: #{forward_core.3} parent=5 // pred_check_branch
      %116 = sbr.rel (%p113) target = $region12
    $region11: #{forward_core.3} parent=5 // pred_region
      %s117 = ssub.s32 %s9, 1
      // Predicated region
      $region13: #{forward_core.3} parent=11 // pred_check
        %p118 = pneg %p56
      $region14: #{forward_core.3} parent=11 // pred_check_branch
        %120 = sbr.rel (%p118) target = $region16
      $region15: #{forward_core.3} parent=11 // pred_region
        _
      $region16: #{forward_core.3} parent=11 // pred_fallthru
        _
      // Predicated region
      $region17: #{forward_core.3} parent=11 // pred_check
        %p121 = pneg %p77
      $region18: #{forward_core.3} parent=11 // pred_check_branch
        %123 = sbr.rel (%p121) target = $region20
      $region19: #{forward_core.3} parent=11 // pred_region
        _
      $region20: #{forward_core.3} parent=11 // pred_fallthru
        _
    $region12: #{forward_core.3} parent=5 // pred_fallthru
      _
    %p124 = scmp.lt.s32.totalorder %s9, 4
    // Predicated region
    $region21: #{forward_core.3} parent=5 // pred_check
      %p125 = pneg %p124
    $region22: #{forward_core.3} parent=5 // pred_check_branch
      %127 = sbr.rel (%p125) target = $region24
    $region23: #{forward_core.3} parent=5 // pred_region
      // Predicated region
      $region25: #{forward_core.3} parent=23 // pred_check
        %p128 = pneg %p29
      $region26: #{forward_core.3} parent=23 // pred_check_branch
        %130 = sbr.rel (%p128) target = $region28
      $region27: #{forward_core.3} parent=23 // pred_region
        %s131 = smul.u32 64, %s9
        %p132 = scmp.lt.s32.totalorder %s131, 255
        %s133 = scalar_select %p132, %s131, 255
        %s134 = smul.addr %s133, 2
        %s135 = smul.addr %s134, 4
        %s136 = scalar_lea.vmem %s0, %s135
        %s137 = smul.u32 64, %s9
      $region28: #{forward_core.3} parent=23 // pred_fallthru
        _
    $region24: #{forward_core.3} parent=5 // pred_fallthru
      _
    %p138 = scmp.le.s32.totalorder 1, %s9
    %p139 = scmp.lt.s32.totalorder %s9, 5
    %p140 = pnand %p138, %p139
    %p141 = pneg %p140
    // Predicated region
    $region29: #{forward_core.3} parent=5 // pred_check
      _
    $region30: #{forward_core.3} parent=5 // pred_check_branch
      %143 = sbr.rel (%p140) target = $region32
    $region31: #{forward_core.3} parent=5 // pred_region
      %s144 = ssub.s32 %s9, 1
      %s145 = smul.u32 64, %s14
      %p146 = scmp.lt.s32.totalorder %s145, 255
      %s147 = scalar_select %p146, %s145, 255
      %s148 = smul.addr %s147, 2
      %s149 = smul.addr %s148, 4
      %s150 = scalar_lea.vmem %s0, %s149
      %p151 = pneg %p35
      %p152 = pneg %p32
      %p153 = pneg %p56
      %p154 = pneg %p53
      %p155 = pneg %p77
      %p156 = pneg %p74
      %p157 = pneg %p103
      %p158 = pneg %p100
      %s159 = smul.u32 64, %s14
      %p160 = scmp.lt.s32.totalorder %s159, 255
      %s161 = scalar_select %p160, %s159, 255
      %s162 = smul.addr %s161, 8
      %s163 = scalar_lea.vmem %s3, %s162
      %s164 = smul.u32 64, %s14
      %p165 = scmp.lt.s32.totalorder %s164, 255
      %s166 = scalar_select %p165, %s164, 255
      %s167 = smul.addr %s166, 2
      %s168 = smul.addr %s167, 4
      %s169 = scalar_lea.vmem %s0, %s168
      %s170 = smul.u32 64, %s14
      %s171 = smul.u32 64, %s14
      %p172 = scmp.lt.s32.totalorder %s171, 255
      %s173 = scalar_select %p172, %s171, 255
      %s174 = smul.addr %s173, 8
      %s175 = scalar_lea.vmem %s3, %s174
      %s176 = smul.u32 64, %s14
      %v178 = vld [vmem:[%s169] sm:$0xff]
      %v179 = vld [vmem:[%s169 + $0x8] sm:$0xff]
      %v180 = vld [vmem:[%s169 + $0x10] sm:$0xff]
      %v181 = vld [vmem:[%s169 + $0x18] sm:$0xff]
      %v182 = vld [vmem:[%s169 + $0x20] sm:$0xff]
      %v183 = vld [vmem:[%s169 + $0x28] sm:$0xff]
      %v184 = vld [vmem:[%s169 + $0x30] sm:$0xff]
      %v185 = vld [vmem:[%s169 + $0x38] sm:$0xff]
      %v186 = vld [vmem:[%s169 + $0x40] sm:$0xff]
      %v187 = vld [vmem:[%s169 + $0x48] sm:$0xff]
      %v188 = vld [vmem:[%s169 + $0x50] sm:$0xff]
      %v189 = vld [vmem:[%s169 + $0x58] sm:$0xff]
      %v190 = vld [vmem:[%s169 + $0x60] sm:$0xff]
      %v191 = vld [vmem:[%s169 + $0x68] sm:$0xff]
      %v192 = vld [vmem:[%s169 + $0x70] sm:$0xff]
      %v193 = vld [vmem:[%s169 + $0x78] sm:$0xff]
      %v194 = vld [vmem:[%s169 + $0x80] sm:$0xff]
      %v195 = vld [vmem:[%s169 + $0x88] sm:$0xff]
      %v196 = vld [vmem:[%s169 + $0x90] sm:$0xff]
      %v197 = vld [vmem:[%s169 + $0x98] sm:$0xff]
      %v198 = vld [vmem:[%s169 + $0xa0] sm:$0xff]
      %v199 = vld [vmem:[%s169 + $0xa8] sm:$0xff]
      %v200 = vld [vmem:[%s169 + $0xb0] sm:$0xff]
      %v201 = vld [vmem:[%s169 + $0xb8] sm:$0xff]
      %v202 = vld [vmem:[%s169 + $0xc0] sm:$0xff]
      %v203 = vld [vmem:[%s169 + $0xc8] sm:$0xff]
      %v204 = vld [vmem:[%s169 + $0xd0] sm:$0xff]
      %v205 = vld [vmem:[%s169 + $0xd8] sm:$0xff]
      %v206 = vld [vmem:[%s169 + $0xe0] sm:$0xff]
      %v207 = vld [vmem:[%s169 + $0xe8] sm:$0xff]
      %v208 = vld [vmem:[%s169 + $0xf0] sm:$0xff]
      %v209 = vld [vmem:[%s169 + $0xf8] sm:$0xff]
      %v210 = vld [vmem:[%s169 + $0x100] sm:$0xff]
      %v211 = vld [vmem:[%s169 + $0x108] sm:$0xff]
      %v212 = vld [vmem:[%s169 + $0x110] sm:$0xff]
      %v213 = vld [vmem:[%s169 + $0x118] sm:$0xff]
      %v214 = vld [vmem:[%s169 + $0x120] sm:$0xff]
      %v215 = vld [vmem:[%s169 + $0x128] sm:$0xff]
      %v216 = vld [vmem:[%s169 + $0x130] sm:$0xff]
      %v217 = vld [vmem:[%s169 + $0x138] sm:$0xff]
      %v218 = vld [vmem:[%s169 + $0x140] sm:$0xff]
      %v219 = vld [vmem:[%s169 + $0x148] sm:$0xff]
      %v220 = vld [vmem:[%s169 + $0x150] sm:$0xff]
      %v221 = vld [vmem:[%s169 + $0x158] sm:$0xff]
      %v222 = vld [vmem:[%s169 + $0x160] sm:$0xff]
      %v223 = vld [vmem:[%s169 + $0x168] sm:$0xff]
      %v224 = vld [vmem:[%s169 + $0x170] sm:$0xff]
      %v225 = vld [vmem:[%s169 + $0x178] sm:$0xff]
      %v226 = vld [vmem:[%s169 + $0x180] sm:$0xff]
      %v227 = vld [vmem:[%s169 + $0x188] sm:$0xff]
      %v228 = vld [vmem:[%s169 + $0x190] sm:$0xff]
      %v229 = vld [vmem:[%s169 + $0x198] sm:$0xff]
      %v230 = vld [vmem:[%s169 + $0x1a0] sm:$0xff]
      %v231 = vld [vmem:[%s169 + $0x1a8] sm:$0xff]
      %v232 = vld [vmem:[%s169 + $0x1b0] sm:$0xff]
      %v233 = vld [vmem:[%s169 + $0x1b8] sm:$0xff]
      %v234 = vld [vmem:[%s169 + $0x1c0] sm:$0xff]
      %v235 = vld [vmem:[%s169 + $0x1c8] sm:$0xff]
      %v236 = vld [vmem:[%s169 + $0x1d0] sm:$0xff]
      %v237 = vld [vmem:[%s169 + $0x1d8] sm:$0xff]
      %v238 = vld [vmem:[%s169 + $0x1e0] sm:$0xff]
      %v239 = vld [vmem:[%s169 + $0x1e8] sm:$0xff]
      %v240 = vld [vmem:[%s169 + $0x1f0] sm:$0xff]
      %v241 = vld [vmem:[%s169 + $0x1f8] sm:$0xff]
      %v242 = vld [vmem:[%s1] sm:$0xf]
      %v243 = vld [vmem:[%s1 + $0x4] sm:$0xf]
      %v244 = vld [vmem:[%s1 + $0x8] sm:$0xf]
      %v245 = vld [vmem:[%s1 + $0xc] sm:$0xf]
      %v246 = vld [vmem:[%s1 + $0x10] sm:$0xf]
      %v247 = vld [vmem:[%s1 + $0x14] sm:$0xf]
      %v248 = vld [vmem:[%s1 + $0x18] sm:$0xf]
      %v249 = vld [vmem:[%s1 + $0x1c] sm:$0xf]
      %v250 = vld [vmem:[%s1 + $0x20] sm:$0xf]
      %v251 = vld [vmem:[%s1 + $0x24] sm:$0xf]
      %v252 = vld [vmem:[%s1 + $0x28] sm:$0xf]
      %v253 = vld [vmem:[%s1 + $0x2c] sm:$0xf]
      %v254 = vld [vmem:[%s1 + $0x30] sm:$0xf]
      %v255 = vld [vmem:[%s1 + $0x34] sm:$0xf]
      %v256 = vld [vmem:[%s1 + $0x38] sm:$0xf]
      %v257 = vld [vmem:[%s1 + $0x3c] sm:$0xf]
      %v258 = vld [vmem:[%s1 + $0x40] sm:$0xf]
      %v259 = vld [vmem:[%s1 + $0x44] sm:$0xf]
      %v260 = vld [vmem:[%s2] sm:$0x1]
      %v262 = vlaneseq
      %v263 = vshrl.u32 %v262, 7
      %v264 = vsub.s32 0, %v263
      %v265 = vrot.slane %v260, %v264
      %v331 = vunpack.c.l.b16 %v178
      %v332 = vunpack.c.h.b16 %v178
      %v333 = vunpack.c.l.b16 %v179
      %v334 = vunpack.c.h.b16 %v179
      %v335 = vunpack.c.l.b16 %v180
      %v336 = vunpack.c.h.b16 %v180
      %v337 = vunpack.c.l.b16 %v181
      %v338 = vunpack.c.h.b16 %v181
      %v339 = vunpack.c.l.b16 %v182
      %v340 = vunpack.c.h.b16 %v182
      %v341 = vunpack.c.l.b16 %v183
      %v342 = vunpack.c.h.b16 %v183
      %v343 = vunpack.c.l.b16 %v184
      %v344 = vunpack.c.h.b16 %v184
      %v345 = vunpack.c.l.b16 %v185
      %v346 = vunpack.c.h.b16 %v185
      %v347 = vunpack.c.l.b16 %v186
      %v348 = vunpack.c.h.b16 %v186
      %v349 = vunpack.c.l.b16 %v187
      %v350 = vunpack.c.h.b16 %v187
      %v351 = vunpack.c.l.b16 %v188
      %v352 = vunpack.c.h.b16 %v188
      %v353 = vunpack.c.l.b16 %v189
      %v354 = vunpack.c.h.b16 %v189
      %v355 = vunpack.c.l.b16 %v190
      %v356 = vunpack.c.h.b16 %v190
      %v357 = vunpack.c.l.b16 %v191
      %v358 = vunpack.c.h.b16 %v191
      %v359 = vunpack.c.l.b16 %v192
      %v360 = vunpack.c.h.b16 %v192
      %v361 = vunpack.c.l.b16 %v193
      %v362 = vunpack.c.h.b16 %v193
      %v363 = vunpack.c.l.b16 %v194
      %v364 = vunpack.c.h.b16 %v194
      %v365 = vunpack.c.l.b16 %v195
      %v366 = vunpack.c.h.b16 %v195
      %v367 = vunpack.c.l.b16 %v196
      %v368 = vunpack.c.h.b16 %v196
      %v369 = vunpack.c.l.b16 %v197
      %v370 = vunpack.c.h.b16 %v197
      %v371 = vunpack.c.l.b16 %v198
      %v372 = vunpack.c.h.b16 %v198
      %v373 = vunpack.c.l.b16 %v199
      %v374 = vunpack.c.h.b16 %v199
      %v375 = vunpack.c.l.b16 %v200
      %v376 = vunpack.c.h.b16 %v200
      %v377 = vunpack.c.l.b16 %v201
      %v378 = vunpack.c.h.b16 %v201
      %v379 = vunpack.c.l.b16 %v202
      %v380 = vunpack.c.h.b16 %v202
      %v381 = vunpack.c.l.b16 %v203
      %v382 = vunpack.c.h.b16 %v203
      %v383 = vunpack.c.l.b16 %v204
      %v384 = vunpack.c.h.b16 %v204
      %v385 = vunpack.c.l.b16 %v205
      %v386 = vunpack.c.h.b16 %v205
      %v387 = vunpack.c.l.b16 %v206
      %v388 = vunpack.c.h.b16 %v206
      %v389 = vunpack.c.l.b16 %v207
      %v390 = vunpack.c.h.b16 %v207
      %v391 = vunpack.c.l.b16 %v208
      %v392 = vunpack.c.h.b16 %v208
      %v393 = vunpack.c.l.b16 %v209
      %v394 = vunpack.c.h.b16 %v209
      %v395 = vunpack.c.l.b16 %v210
      %v396 = vunpack.c.h.b16 %v210
      %v397 = vunpack.c.l.b16 %v211
      %v398 = vunpack.c.h.b16 %v211
      %v399 = vunpack.c.l.b16 %v212
      %v400 = vunpack.c.h.b16 %v212
      %v401 = vunpack.c.l.b16 %v213
      %v402 = vunpack.c.h.b16 %v213
      %v403 = vunpack.c.l.b16 %v214
      %v404 = vunpack.c.h.b16 %v214
      %v405 = vunpack.c.l.b16 %v215
      %v406 = vunpack.c.h.b16 %v215
      %v407 = vunpack.c.l.b16 %v216
      %v408 = vunpack.c.h.b16 %v216
      %v409 = vunpack.c.l.b16 %v217
      %v410 = vunpack.c.h.b16 %v217
      %v411 = vunpack.c.l.b16 %v218
      %v412 = vunpack.c.h.b16 %v218
      %v413 = vunpack.c.l.b16 %v219
      %v414 = vunpack.c.h.b16 %v219
      %v415 = vunpack.c.l.b16 %v220
      %v416 = vunpack.c.h.b16 %v220
      %v417 = vunpack.c.l.b16 %v221
      %v418 = vunpack.c.h.b16 %v221
      %v419 = vunpack.c.l.b16 %v222
      %v420 = vunpack.c.h.b16 %v222
      %v421 = vunpack.c.l.b16 %v223
      %v422 = vunpack.c.h.b16 %v223
      %v423 = vunpack.c.l.b16 %v224
      %v424 = vunpack.c.h.b16 %v224
      %v425 = vunpack.c.l.b16 %v225
      %v426 = vunpack.c.h.b16 %v225
      %v427 = vunpack.c.l.b16 %v226
      %v428 = vunpack.c.h.b16 %v226
      %v429 = vunpack.c.l.b16 %v227
      %v430 = vunpack.c.h.b16 %v227
      %v431 = vunpack.c.l.b16 %v228
      %v432 = vunpack.c.h.b16 %v228
      %v433 = vunpack.c.l.b16 %v229
      %v434 = vunpack.c.h.b16 %v229
      %v435 = vunpack.c.l.b16 %v230
      %v436 = vunpack.c.h.b16 %v230
      %v437 = vunpack.c.l.b16 %v231
      %v438 = vunpack.c.h.b16 %v231
      %v439 = vunpack.c.l.b16 %v232
      %v440 = vunpack.c.h.b16 %v232
      %v441 = vunpack.c.l.b16 %v233
      %v442 = vunpack.c.h.b16 %v233
      %v443 = vunpack.c.l.b16 %v234
      %v444 = vunpack.c.h.b16 %v234
      %v445 = vunpack.c.l.b16 %v235
      %v446 = vunpack.c.h.b16 %v235
      %v447 = vunpack.c.l.b16 %v236
      %v448 = vunpack.c.h.b16 %v236
      %v449 = vunpack.c.l.b16 %v237
      %v450 = vunpack.c.h.b16 %v237
      %v451 = vunpack.c.l.b16 %v238
      %v452 = vunpack.c.h.b16 %v238
      %v453 = vunpack.c.l.b16 %v239
      %v454 = vunpack.c.h.b16 %v239
      %v455 = vunpack.c.l.b16 %v240
      %v456 = vunpack.c.h.b16 %v240
      %v457 = vunpack.c.l.b16 %v241
      %v458 = vunpack.c.h.b16 %v241
      %v459 = vpack.c.b16 %v333, %v331
      %v460 = vpack.c.b16 %v334, %v332
      %v461 = vpack.c.b16 %v337, %v335
      %v462 = vpack.c.b16 %v338, %v336
      %v463 = vpack.c.b16 %v341, %v339
      %v464 = vpack.c.b16 %v342, %v340
      %v465 = vpack.c.b16 %v345, %v343
      %v466 = vpack.c.b16 %v346, %v344
      %v467 = vpack.c.b16 %v349, %v347
      %v468 = vpack.c.b16 %v350, %v348
      %v469 = vpack.c.b16 %v353, %v351
      %v470 = vpack.c.b16 %v354, %v352
      %v471 = vpack.c.b16 %v357, %v355
      %v472 = vpack.c.b16 %v358, %v356
      %v473 = vpack.c.b16 %v361, %v359
      %v474 = vpack.c.b16 %v362, %v360
      %v475 = vpack.c.b16 %v365, %v363
      %v476 = vpack.c.b16 %v366, %v364
      %v477 = vpack.c.b16 %v369, %v367
      %v478 = vpack.c.b16 %v370, %v368
      %v479 = vpack.c.b16 %v373, %v371
      %v480 = vpack.c.b16 %v374, %v372
      %v481 = vpack.c.b16 %v377, %v375
      %v482 = vpack.c.b16 %v378, %v376
      %v483 = vpack.c.b16 %v381, %v379
      %v484 = vpack.c.b16 %v382, %v380
      %v485 = vpack.c.b16 %v385, %v383
      %v486 = vpack.c.b16 %v386, %v384
      %v487 = vpack.c.b16 %v389, %v387
      %v488 = vpack.c.b16 %v390, %v388
      %v489 = vpack.c.b16 %v393, %v391
      %v490 = vpack.c.b16 %v394, %v392
      %v491 = vpack.c.b16 %v397, %v395
      %v492 = vpack.c.b16 %v398, %v396
      %v493 = vpack.c.b16 %v401, %v399
      %v494 = vpack.c.b16 %v402, %v400
      %v495 = vpack.c.b16 %v405, %v403
      %v496 = vpack.c.b16 %v406, %v404
      %v497 = vpack.c.b16 %v409, %v407
      %v498 = vpack.c.b16 %v410, %v408
      %v499 = vpack.c.b16 %v413, %v411
      %v500 = vpack.c.b16 %v414, %v412
      %v501 = vpack.c.b16 %v417, %v415
      %v502 = vpack.c.b16 %v418, %v416
      %v503 = vpack.c.b16 %v421, %v419
      %v504 = vpack.c.b16 %v422, %v420
      %v505 = vpack.c.b16 %v425, %v423
      %v506 = vpack.c.b16 %v426, %v424
      %v507 = vpack.c.b16 %v429, %v427
      %v508 = vpack.c.b16 %v430, %v428
      %v509 = vpack.c.b16 %v433, %v431
      %v510 = vpack.c.b16 %v434, %v432
      %v511 = vpack.c.b16 %v437, %v435
      %v512 = vpack.c.b16 %v438, %v436
      %v513 = vpack.c.b16 %v441, %v439
      %v514 = vpack.c.b16 %v442, %v440
      %v515 = vpack.c.b16 %v445, %v443
      %v516 = vpack.c.b16 %v446, %v444
      %v517 = vpack.c.b16 %v449, %v447
      %v518 = vpack.c.b16 %v450, %v448
      %v519 = vpack.c.b16 %v453, %v451
      %v520 = vpack.c.b16 %v454, %v452
      %v521 = vpack.c.b16 %v457, %v455
      %v522 = vpack.c.b16 %v458, %v456
      %v573 = vunpack.c.l.b16 %v242
      %v574 = vunpack.c.l.b16 %v243
      %v575 = vunpack.c.l.b16 %v244
      %v576 = vunpack.c.l.b16 %v245
      %v577 = vunpack.c.l.b16 %v246
      %v578 = vunpack.c.l.b16 %v247
      %v579 = vunpack.c.l.b16 %v248
      %v580 = vunpack.c.l.b16 %v249
      %v581 = vunpack.c.l.b16 %v250
      %v582 = vunpack.c.l.b16 %v251
      %v583 = vunpack.c.l.b16 %v252
      %v584 = vunpack.c.l.b16 %v253
      %v585 = vunpack.c.l.b16 %v254
      %v586 = vunpack.c.l.b16 %v255
      %v587 = vunpack.c.l.b16 %v256
      %v588 = vunpack.c.l.b16 %v257
      %v589 = vunpack.c.l.b16 %v258
      %v590 = vunpack.c.l.b16 %v259
      %v591 = vpack.c.b16 %v574, %v573
      %v592 = vpack.c.b16 %v576, %v575
      %v593 = vpack.c.b16 %v578, %v577
      %v594 = vpack.c.b16 %v580, %v579
      %v595 = vpack.c.b16 %v582, %v581
      %v596 = vpack.c.b16 %v584, %v583
      %v597 = vpack.c.b16 %v586, %v585
      %v598 = vpack.c.b16 %v588, %v587
      %v599 = vpack.c.b16 %v590, %v589
      %vm609 = vcmask 130048
      %v611 = vsel %vm609, %v460, 0
      %v614 = vsel %vm609, %v462, 0
      %v617 = vsel %vm609, %v464, 0
      %v620 = vsel %vm609, %v466, 0
      %v623 = vsel %vm609, %v468, 0
      %v626 = vsel %vm609, %v470, 0
      %v629 = vsel %vm609, %v472, 0
      %v632 = vsel %vm609, %v474, 0
      %v635 = vsel %vm609, %v476, 0
      %v638 = vsel %vm609, %v478, 0
      %v641 = vsel %vm609, %v480, 0
      %v644 = vsel %vm609, %v482, 0
      %v647 = vsel %vm609, %v484, 0
      %v650 = vsel %vm609, %v486, 0
      %v653 = vsel %vm609, %v488, 0
      %v656 = vsel %vm609, %v490, 0
      %v659 = vsel %vm609, %v492, 0
      %v662 = vsel %vm609, %v494, 0
      %v665 = vsel %vm609, %v496, 0
      %v668 = vsel %vm609, %v498, 0
      %v671 = vsel %vm609, %v500, 0
      %v674 = vsel %vm609, %v502, 0
      %v677 = vsel %vm609, %v504, 0
      %v680 = vsel %vm609, %v506, 0
      %v683 = vsel %vm609, %v508, 0
      %v686 = vsel %vm609, %v510, 0
      %v689 = vsel %vm609, %v512, 0
      %v692 = vsel %vm609, %v514, 0
      %v695 = vsel %vm609, %v516, 0
      %v698 = vsel %vm609, %v518, 0
      %v701 = vsel %vm609, %v520, 0
      %v704 = vsel %vm609, %v522, 0
      %706 = vmatprep.subr.bf16.mxu0 0
      %707 = vmatpush1.bf16.msra.mxu0 %v591
      %708 = vmatprep.subr.bf16.mxu0 0
      %709 = vmatpush1.bf16.msra.mxu0 %v592
      %710 = vmatprep.subr.bf16.mxu0 0
      %711 = vmatpush1.bf16.msra.mxu0 %v593
      %712 = vmatprep.subr.bf16.mxu0 0
      %713 = vmatpush1.bf16.msra.mxu0 %v594
      %714 = vmatprep.subr.bf16.mxu0 0
      %715 = vmatpush1.bf16.msra.mxu0 %v595
      %716 = vmatprep.subr.bf16.mxu0 0
      %717 = vmatpush1.bf16.msra.mxu0 %v596
      %718 = vmatprep.subr.bf16.mxu0 0
      %719 = vmatpush1.bf16.msra.mxu0 %v597
      %720 = vmatprep.subr.bf16.mxu0 0
      %721 = vmatpush1.bf16.msra.mxu0 %v598
      %722 = vmatprep.subr.bf16.mxu0 0
      %723 = vmatpush1.bf16.msra.mxu0 %v599
      %724 = vmatprep.subr.bf16.mxu0 0
      %725 = vmatpush1.bf16.msra.mxu0 0
      %726 = vmatprep.subr.bf16.mxu0 0
      %727 = vmatpush1.bf16.msra.mxu0 0
      %728 = vmatprep.subr.bf16.mxu0 0
      %729 = vmatpush1.bf16.msra.mxu0 0
      %730 = vmatprep.subr.bf16.mxu0 0
      %731 = vmatpush1.bf16.msra.mxu0 0
      %732 = vmatprep.subr.bf16.mxu0 0
      %733 = vmatpush1.bf16.msra.mxu0 0
      %734 = vmatprep.subr.bf16.mxu0 0
      %735 = vmatpush1.bf16.msra.mxu0 0
      %736 = vmatprep.subr.bf16.mxu0 0
      %737 = vmatpush1.bf16.msra.mxu0 0
      %738 = vmatprep.mubr.bf16.mxu0 %v611
      %739 = vmatmul.mubr.bf16.gmra.mrb[0].mxu0 %v459
      %v740 = vpop.f32.mrb[0].mxu0
      %v741 = vadd.f32 %v265, %v740
      %v742 = vpop.f32.mrb[0].mxu0
      %v743 = vpop.f32.mrb[0].mxu0
      %v744 = vadd.f32 %v265, %v743
      %v745 = vpop.f32.mrb[0].mxu0
      %746 = vmatprep.mubr.bf16.mxu0 %v614
      %747 = vmatmul.mubr.bf16.gmra.mrb[0].mxu0 %v461
      %v748 = vpop.f32.mrb[0].mxu0
      %v749 = vadd.f32 %v265, %v748
      %v750 = vpop.f32.mrb[0].mxu0
      %v751 = vpop.f32.mrb[0].mxu0
      %v752 = vadd.f32 %v265, %v751
      %v753 = vpop.f32.mrb[0].mxu0
      %754 = vmatprep.mubr.bf16.mxu0 %v617
      %755 = vmatmul.mubr.bf16.gmra.mrb[0].mxu0 %v463
      %v756 = vpop.f32.mrb[0].mxu0
      %v757 = vadd.f32 %v265, %v756
      %v758 = vpop.f32.mrb[0].mxu0
      %v759 = vpop.f32.mrb[0].mxu0
      %v760 = vadd.f32 %v265, %v759
      %v761 = vpop.f32.mrb[0].mxu0
      %762 = vmatprep.mubr.bf16.mxu0 %v620
      %763 = vmatmul.mubr.bf16.gmra.mrb[0].mxu0 %v465
      %v764 = vpop.f32.mrb[0].mxu0
      %v765 = vadd.f32 %v265, %v764
      %v766 = vpop.f32.mrb[0].mxu0
      %v767 = vpop.f32.mrb[0].mxu0
      %v768 = vadd.f32 %v265, %v767
      %v769 = vpop.f32.mrb[0].mxu0
      %770 = vmatprep.mubr.bf16.mxu0 %v623
      %771 = vmatmul.mubr.bf16.gmra.mrb[0].mxu0 %v467
      %v772 = vpop.f32.mrb[0].mxu0
      %v773 = vadd.f32 %v265, %v772
      %v774 = vpop.f32.mrb[0].mxu0
      %v775 = vpop.f32.mrb[0].mxu0
      %v776 = vadd.f32 %v265, %v775
      %v777 = vpop.f32.mrb[0].mxu0
      %778 = vmatprep.mubr.bf16.mxu0 %v626
      %779 = vmatmul.mubr.bf16.gmra.mrb[0].mxu0 %v469
      %v780 = vpop.f32.mrb[0].mxu0
      %v781 = vadd.f32 %v265, %v780
      %v782 = vpop.f32.mrb[0].mxu0
      %v783 = vpop.f32.mrb[0].mxu0
      %v784 = vadd.f32 %v265, %v783
      %v785 = vpop.f32.mrb[0].mxu0
      %786 = vmatprep.mubr.bf16.mxu0 %v629
      %787 = vmatmul.mubr.bf16.gmra.mrb[0].mxu0 %v471
      %v788 = vpop.f32.mrb[0].mxu0
      %v789 = vadd.f32 %v265, %v788
      %v790 = vpop.f32.mrb[0].mxu0
      %v791 = vpop.f32.mrb[0].mxu0
      %v792 = vadd.f32 %v265, %v791
      %v793 = vpop.f32.mrb[0].mxu0
      %794 = vmatprep.mubr.bf16.mxu0 %v632
      %795 = vmatmul.mubr.bf16.gmra.mrb[0].mxu0 %v473
      %v796 = vpop.f32.mrb[0].mxu0
      %v797 = vadd.f32 %v265, %v796
      %v798 = vpop.f32.mrb[0].mxu0
      %v799 = vpop.f32.mrb[0].mxu0
      %v800 = vadd.f32 %v265, %v799
      %v801 = vpop.f32.mrb[0].mxu0
      %802 = vmatprep.mubr.bf16.mxu0 %v635
      %803 = vmatmul.mubr.bf16.gmra.mrb[0].mxu0 %v475
      %v804 = vpop.f32.mrb[0].mxu0
      %v805 = vadd.f32 %v265, %v804
      %v806 = vpop.f32.mrb[0].mxu0
      %v807 = vpop.f32.mrb[0].mxu0
      %v808 = vadd.f32 %v265, %v807
      %v809 = vpop.f32.mrb[0].mxu0
      %810 = vmatprep.mubr.bf16.mxu0 %v638
      %811 = vmatmul.mubr.bf16.gmra.mrb[0].mxu0 %v477
      %v812 = vpop.f32.mrb[0].mxu0
      %v813 = vadd.f32 %v265, %v812
      %v814 = vpop.f32.mrb[0].mxu0
      %v815 = vpop.f32.mrb[0].mxu0
      %v816 = vadd.f32 %v265, %v815
      %v817 = vpop.f32.mrb[0].mxu0
      %818 = vmatprep.mubr.bf16.mxu0 %v641
      %819 = vmatmul.mubr.bf16.gmra.mrb[0].mxu0 %v479
      %v820 = vpop.f32.mrb[0].mxu0
      %v821 = vadd.f32 %v265, %v820
      %v822 = vpop.f32.mrb[0].mxu0
      %v823 = vpop.f32.mrb[0].mxu0
      %v824 = vadd.f32 %v265, %v823
      %v825 = vpop.f32.mrb[0].mxu0
      %826 = vmatprep.mubr.bf16.mxu0 %v644
      %827 = vmatmul.mubr.bf16.gmra.mrb[0].mxu0 %v481
      %v828 = vpop.f32.mrb[0].mxu0
      %v829 = vadd.f32 %v265, %v828
      %v830 = vpop.f32.mrb[0].mxu0
      %v831 = vpop.f32.mrb[0].mxu0
      %v832 = vadd.f32 %v265, %v831
      %v833 = vpop.f32.mrb[0].mxu0
      %834 = vmatprep.mubr.bf16.mxu0 %v647
      %835 = vmatmul.mubr.bf16.gmra.mrb[0].mxu0 %v483
      %v836 = vpop.f32.mrb[0].mxu0
      %v837 = vadd.f32 %v265, %v836
      %v838 = vpop.f32.mrb[0].mxu0
      %v839 = vpop.f32.mrb[0].mxu0
      %v840 = vadd.f32 %v265, %v839
      %v841 = vpop.f32.mrb[0].mxu0
      %842 = vmatprep.mubr.bf16.mxu0 %v650
      %843 = vmatmul.mubr.bf16.gmra.mrb[0].mxu0 %v485
      %v844 = vpop.f32.mrb[0].mxu0
      %v845 = vadd.f32 %v265, %v844
      %v846 = vpop.f32.mrb[0].mxu0
      %v847 = vpop.f32.mrb[0].mxu0
      %v848 = vadd.f32 %v265, %v847
      %v849 = vpop.f32.mrb[0].mxu0
      %850 = vmatprep.mubr.bf16.mxu0 %v653
      %851 = vmatmul.mubr.bf16.gmra.mrb[0].mxu0 %v487
      %v852 = vpop.f32.mrb[0].mxu0
      %v853 = vadd.f32 %v265, %v852
      %v854 = vpop.f32.mrb[0].mxu0
      %v855 = vpop.f32.mrb[0].mxu0
      %v856 = vadd.f32 %v265, %v855
      %v857 = vpop.f32.mrb[0].mxu0
      %858 = vmatprep.mubr.bf16.mxu0 %v656
      %859 = vmatmul.mubr.bf16.gmra.mrb[0].mxu0 %v489
      %v860 = vpop.f32.mrb[0].mxu0
      %v861 = vadd.f32 %v265, %v860
      %v862 = vpop.f32.mrb[0].mxu0
      %v863 = vpop.f32.mrb[0].mxu0
      %v864 = vadd.f32 %v265, %v863
      %v865 = vpop.f32.mrb[0].mxu0
      %866 = vmatprep.mubr.bf16.mxu0 %v659
      %867 = vmatmul.mubr.bf16.gmra.mrb[0].mxu0 %v491
      %v868 = vpop.f32.mrb[0].mxu0
      %v869 = vadd.f32 %v265, %v868
      %v870 = vpop.f32.mrb[0].mxu0
      %v871 = vpop.f32.mrb[0].mxu0
      %v872 = vadd.f32 %v265, %v871
      %v873 = vpop.f32.mrb[0].mxu0
      %874 = vmatprep.mubr.bf16.mxu0 %v662
      %875 = vmatmul.mubr.bf16.gmra.mrb[0].mxu0 %v493
      %v876 = vpop.f32.mrb[0].mxu0
      %v877 = vadd.f32 %v265, %v876
      %v878 = vpop.f32.mrb[0].mxu0
      %v879 = vpop.f32.mrb[0].mxu0
      %v880 = vadd.f32 %v265, %v879
      %v881 = vpop.f32.mrb[0].mxu0
      %882 = vmatprep.mubr.bf16.mxu0 %v665
      %883 = vmatmul.mubr.bf16.gmra.mrb[0].mxu0 %v495
      %v884 = vpop.f32.mrb[0].mxu0
      %v885 = vadd.f32 %v265, %v884
      %v886 = vpop.f32.mrb[0].mxu0
      %v887 = vpop.f32.mrb[0].mxu0
      %v888 = vadd.f32 %v265, %v887
      %v889 = vpop.f32.mrb[0].mxu0
      %890 = vmatprep.mubr.bf16.mxu0 %v668
      %891 = vmatmul.mubr.bf16.gmra.mrb[0].mxu0 %v497
      %v892 = vpop.f32.mrb[0].mxu0
      %v893 = vadd.f32 %v265, %v892
      %v894 = vpop.f32.mrb[0].mxu0
      %v895 = vpop.f32.mrb[0].mxu0
      %v896 = vadd.f32 %v265, %v895
      %v897 = vpop.f32.mrb[0].mxu0
      %898 = vmatprep.mubr.bf16.mxu0 %v671
      %899 = vmatmul.mubr.bf16.gmra.mrb[0].mxu0 %v499
      %v900 = vpop.f32.mrb[0].mxu0
      %v901 = vadd.f32 %v265, %v900
      %v902 = vpop.f32.mrb[0].mxu0
      %v903 = vpop.f32.mrb[0].mxu0
      %v904 = vadd.f32 %v265, %v903
      %v905 = vpop.f32.mrb[0].mxu0
      %906 = vmatprep.mubr.bf16.mxu0 %v674
      %907 = vmatmul.mubr.bf16.gmra.mrb[0].mxu0 %v501
      %v908 = vpop.f32.mrb[0].mxu0
      %v909 = vadd.f32 %v265, %v908
      %v910 = vpop.f32.mrb[0].mxu0
      %v911 = vpop.f32.mrb[0].mxu0
      %v912 = vadd.f32 %v265, %v911
      %v913 = vpop.f32.mrb[0].mxu0
      %914 = vmatprep.mubr.bf16.mxu0 %v677
      %915 = vmatmul.mubr.bf16.gmra.mrb[0].mxu0 %v503
      %v916 = vpop.f32.mrb[0].mxu0
      %v917 = vadd.f32 %v265, %v916
      %v918 = vpop.f32.mrb[0].mxu0
      %v919 = vpop.f32.mrb[0].mxu0
      %v920 = vadd.f32 %v265, %v919
      %v921 = vpop.f32.mrb[0].mxu0
      %922 = vmatprep.mubr.bf16.mxu0 %v680
      %923 = vmatmul.mubr.bf16.gmra.mrb[0].mxu0 %v505
      %v924 = vpop.f32.mrb[0].mxu0
      %v925 = vadd.f32 %v265, %v924
      %v926 = vpop.f32.mrb[0].mxu0
      %v927 = vpop.f32.mrb[0].mxu0
      %v928 = vadd.f32 %v265, %v927
      %v929 = vpop.f32.mrb[0].mxu0
      %930 = vmatprep.mubr.bf16.mxu0 %v683
      %931 = vmatmul.mubr.bf16.gmra.mrb[0].mxu0 %v507
      %v932 = vpop.f32.mrb[0].mxu0
      %v933 = vadd.f32 %v265, %v932
      %v934 = vpop.f32.mrb[0].mxu0
      %v935 = vpop.f32.mrb[0].mxu0
      %v936 = vadd.f32 %v265, %v935
      %v937 = vpop.f32.mrb[0].mxu0
      %938 = vmatprep.mubr.bf16.mxu0 %v686
      %939 = vmatmul.mubr.bf16.gmra.mrb[0].mxu0 %v509
      %v940 = vpop.f32.mrb[0].mxu0
      %v941 = vadd.f32 %v265, %v940
      %v942 = vpop.f32.mrb[0].mxu0
      %v943 = vpop.f32.mrb[0].mxu0
      %v944 = vadd.f32 %v265, %v943
      %v945 = vpop.f32.mrb[0].mxu0
      %946 = vmatprep.mubr.bf16.mxu0 %v689
      %947 = vmatmul.mubr.bf16.gmra.mrb[0].mxu0 %v511
      %v948 = vpop.f32.mrb[0].mxu0
      %v949 = vadd.f32 %v265, %v948
      %v950 = vpop.f32.mrb[0].mxu0
      %v951 = vpop.f32.mrb[0].mxu0
      %v952 = vadd.f32 %v265, %v951
      %v953 = vpop.f32.mrb[0].mxu0
      %954 = vmatprep.mubr.bf16.mxu0 %v692
      %955 = vmatmul.mubr.bf16.gmra.mrb[0].mxu0 %v513
      %v956 = vpop.f32.mrb[0].mxu0
      %v957 = vadd.f32 %v265, %v956
      %v958 = vpop.f32.mrb[0].mxu0
      %v959 = vpop.f32.mrb[0].mxu0
      %v960 = vadd.f32 %v265, %v959
      %v961 = vpop.f32.mrb[0].mxu0
      %962 = vmatprep.mubr.bf16.mxu0 %v695
      %963 = vmatmul.mubr.bf16.gmra.mrb[0].mxu0 %v515
      %v964 = vpop.f32.mrb[0].mxu0
      %v965 = vadd.f32 %v265, %v964
      %v966 = vpop.f32.mrb[0].mxu0
      %v967 = vpop.f32.mrb[0].mxu0
      %v968 = vadd.f32 %v265, %v967
      %v969 = vpop.f32.mrb[0].mxu0
      %970 = vmatprep.mubr.bf16.mxu0 %v698
      %971 = vmatmul.mubr.bf16.gmra.mrb[0].mxu0 %v517
      %v972 = vpop.f32.mrb[0].mxu0
      %v973 = vadd.f32 %v265, %v972
      %v974 = vpop.f32.mrb[0].mxu0
      %v975 = vpop.f32.mrb[0].mxu0
      %v976 = vadd.f32 %v265, %v975
      %v977 = vpop.f32.mrb[0].mxu0
      %978 = vmatprep.mubr.bf16.mxu0 %v701
      %979 = vmatmul.mubr.bf16.gmra.mrb[0].mxu0 %v519
      %v980 = vpop.f32.mrb[0].mxu0
      %v981 = vadd.f32 %v265, %v980
      %v982 = vpop.f32.mrb[0].mxu0
      %v983 = vpop.f32.mrb[0].mxu0
      %v984 = vadd.f32 %v265, %v983
      %v985 = vpop.f32.mrb[0].mxu0
      %986 = vmatprep.mubr.bf16.mxu0 %v704
      %987 = vmatmul.mubr.bf16.gmra.mrb[0].mxu0 %v521
      %v988 = vpop.f32.mrb[0].mxu0
      %v989 = vadd.f32 %v265, %v988
      %v990 = vpop.f32.mrb[0].mxu0
      %v991 = vpop.f32.mrb[0].mxu0
      %v992 = vadd.f32 %v265, %v991
      %v993 = vpop.f32.mrb[0].mxu0
      %994 = vdwg.mxu0
      %995 = vst [vmem:[%s175] sm:$0xff] %v741
      %996 = vst [vmem:[%s175 + $0x8] sm:$0xff] %v744
      %997 = vst [vmem:[%s175 + $0x10] sm:$0xff] %v749
      %998 = vst [vmem:[%s175 + $0x18] sm:$0xff] %v752
      %999 = vst [vmem:[%s175 + $0x20] sm:$0xff] %v757
      %1000 = vst [vmem:[%s175 + $0x28] sm:$0xff] %v760
      %1001 = vst [vmem:[%s175 + $0x30] sm:$0xff] %v765
      %1002 = vst [vmem:[%s175 + $0x38] sm:$0xff] %v768
      %1003 = vst [vmem:[%s175 + $0x40] sm:$0xff] %v773
      %1004 = vst [vmem:[%s175 + $0x48] sm:$0xff] %v776
      %1005 = vst [vmem:[%s175 + $0x50] sm:$0xff] %v781
      %1006 = vst [vmem:[%s175 + $0x58] sm:$0xff] %v784
      %1007 = vst [vmem:[%s175 + $0x60] sm:$0xff] %v789
      %1008 = vst [vmem:[%s175 + $0x68] sm:$0xff] %v792
      %1009 = vst [vmem:[%s175 + $0x70] sm:$0xff] %v797
      %1010 = vst [vmem:[%s175 + $0x78] sm:$0xff] %v800
      %1011 = vst [vmem:[%s175 + $0x80] sm:$0xff] %v805
      %1012 = vst [vmem:[%s175 + $0x88] sm:$0xff] %v808
      %1013 = vst [vmem:[%s175 + $0x90] sm:$0xff] %v813
      %1014 = vst [vmem:[%s175 + $0x98] sm:$0xff] %v816
      %1015 = vst [vmem:[%s175 + $0xa0] sm:$0xff] %v821
      %1016 = vst [vmem:[%s175 + $0xa8] sm:$0xff] %v824
      %1017 = vst [vmem:[%s175 + $0xb0] sm:$0xff] %v829
      %1018 = vst [vmem:[%s175 + $0xb8] sm:$0xff] %v832
      %1019 = vst [vmem:[%s175 + $0xc0] sm:$0xff] %v837
      %1020 = vst [vmem:[%s175 + $0xc8] sm:$0xff] %v840
      %1021 = vst [vmem:[%s175 + $0xd0] sm:$0xff] %v845
      %1022 = vst [vmem:[%s175 + $0xd8] sm:$0xff] %v848
      %1023 = vst [vmem:[%s175 + $0xe0] sm:$0xff] %v853
      %1024 = vst [vmem:[%s175 + $0xe8] sm:$0xff] %v856
      %1025 = vst [vmem:[%s175 + $0xf0] sm:$0xff] %v861
      %1026 = vst [vmem:[%s175 + $0xf8] sm:$0xff] %v864
      %1027 = vst [vmem:[%s175 + $0x100] sm:$0xff] %v869
      %1028 = vst [vmem:[%s175 + $0x108] sm:$0xff] %v872
      %1029 = vst [vmem:[%s175 + $0x110] sm:$0xff] %v877
      %1030 = vst [vmem:[%s175 + $0x118] sm:$0xff] %v880
      %1031 = vst [vmem:[%s175 + $0x120] sm:$0xff] %v885
      %1032 = vst [vmem:[%s175 + $0x128] sm:$0xff] %v888
      %1033 = vst [vmem:[%s175 + $0x130] sm:$0xff] %v893
      %1034 = vst [vmem:[%s175 + $0x138] sm:$0xff] %v896
      %1035 = vst [vmem:[%s175 + $0x140] sm:$0xff] %v901
      %1036 = vst [vmem:[%s175 + $0x148] sm:$0xff] %v904
      %1037 = vst [vmem:[%s175 + $0x150] sm:$0xff] %v909
      %1038 = vst [vmem:[%s175 + $0x158] sm:$0xff] %v912
      %1039 = vst [vmem:[%s175 + $0x160] sm:$0xff] %v917
      %1040 = vst [vmem:[%s175 + $0x168] sm:$0xff] %v920
      %1041 = vst [vmem:[%s175 + $0x170] sm:$0xff] %v925
      %1042 = vst [vmem:[%s175 + $0x178] sm:$0xff] %v928
      %1043 = vst [vmem:[%s175 + $0x180] sm:$0xff] %v933
      %1044 = vst [vmem:[%s175 + $0x188] sm:$0xff] %v936
      %1045 = vst [vmem:[%s175 + $0x190] sm:$0xff] %v941
      %1046 = vst [vmem:[%s175 + $0x198] sm:$0xff] %v944
      %1047 = vst [vmem:[%s175 + $0x1a0] sm:$0xff] %v949
      %1048 = vst [vmem:[%s175 + $0x1a8] sm:$0xff] %v952
      %1049 = vst [vmem:[%s175 + $0x1b0] sm:$0xff] %v957
      %1050 = vst [vmem:[%s175 + $0x1b8] sm:$0xff] %v960
      %1051 = vst [vmem:[%s175 + $0x1c0] sm:$0xff] %v965
      %1052 = vst [vmem:[%s175 + $0x1c8] sm:$0xff] %v968
      %1053 = vst [vmem:[%s175 + $0x1d0] sm:$0xff] %v973
      %1054 = vst [vmem:[%s175 + $0x1d8] sm:$0xff] %v976
      %1055 = vst [vmem:[%s175 + $0x1e0] sm:$0xff] %v981
      %1056 = vst [vmem:[%s175 + $0x1e8] sm:$0xff] %v984
      %1057 = vst [vmem:[%s175 + $0x1f0] sm:$0xff] %v989
      %1058 = vst [vmem:[%s175 + $0x1f8] sm:$0xff] %v992
      %s1059 = smul.u32 64, %s14
      %p1060 = scmp.lt.s32.totalorder %s1059, 255
      %s1061 = scalar_select %p1060, %s1059, 255
      %s1062 = smul.addr %s1061, 8
      %s1063 = scalar_lea.vmem %s3, %s1062
      // Predicated region
      $region33: #{forward_core.3} parent=31 // pred_check
        %p1064 = pneg %p100
      $region34: #{forward_core.3} parent=31 // pred_check_branch
        %1066 = sbr.rel (%p1064) target = $region36
      $region35: #{forward_core.3} parent=31 // pred_region
        %s1067 = smul.u32 64, %s14
      $region36: #{forward_core.3} parent=31 // pred_fallthru
        _
    $region32: #{forward_core.3} parent=5 // pred_fallthru
      _
    %p1068 = scmp.le.s32.totalorder 2, %s9
    // Predicated region
    $region37: #{forward_core.3} parent=5 // pred_check
      %p1069 = pneg %p1068
    $region38: #{forward_core.3} parent=5 // pred_check_branch
      %1071 = sbr.rel (%p1069) target = $region40
    $region39: #{forward_core.3} parent=5 // pred_region
      %s1072 = ssub.s32 %s9, 2
      // Predicated region
      $region41: #{forward_core.3} parent=39 // pred_check
        %p1073 = pneg %p106
      $region42: #{forward_core.3} parent=39 // pred_check_branch
        %1075 = sbr.rel (%p1073) target = $region44
      $region43: #{forward_core.3} parent=39 // pred_region
        %s1076 = smul.u32 64, %s15
        %p1077 = scmp.lt.s32.totalorder %s1076, 255
        %s1078 = scalar_select %p1077, %s1076, 255
        %s1079 = smul.addr %s1078, 8
        %s1080 = scalar_lea.vmem %s3, %s1079
      $region44: #{forward_core.3} parent=39 // pred_fallthru
        _
    $region40: #{forward_core.3} parent=5 // pred_fallthru
      _
  $region6: #{forward_core.3} parent=0 // loop_footer
    %s13 = sadd.s32 1, %s9
  $region7: #{forward_core.3} parent=0 // loop_footer_branch
    %8 = sbr.rel target = $region3
  $region8: #{forward_core.3} parent=0 // loop_exit
    _

// kernel: closed_call.57
$region0: #{closed_call.57}
  #allocation0 [shape = 'u32[]', space=smem, size = 0x4, offset = 0x4, fixed_abs, tag = 'smem constant byte address 0x4 - core index']
  #allocation1 [shape = 'u32[144,128]{1,0:T(1,128)}', space=vmem, size = 0x12000, scoped, tag = 'internal scratch']
  %s0 = inlined_call_operand.vmem [shape: bf16[2048,9], index: 0, kind: input, shape index: {}]
  %s1 = inlined_call_operand.vmem [shape: bf16[9,128], index: 1, kind: input, shape index: {}]
  %s2 = inlined_call_operand.vmem [shape: f32[1,128], index: 2, kind: input, shape index: {}]
  %s3 = inlined_call_operand.vmem [shape: f32[2048,128], index: 3, kind: input, shape index: {}]
  %s4 = inlined_call_operand.vmem [shape: bf16[2048,128], index: 4, kind: output, shape index: {}]
  %s5 = sld [smem:[#allocation0]]
  $region49: #{closed_call.57} parent=0
    _
  %s7 = ssub.s32 1, %s5
  %s8 = scalar_select 0, %s7, %s5
  loop: start=0, step=1, limit=6
  $region2: #{closed_call.57} parent=0 // loop_pre_header
    _
  $region3: #{closed_call.57} parent=0 // loop_header
    %s10 = sphi 0, %s14
    %p11 = scmp.ge.s32.totalorder %s10, 6
    %s20 = sphi 0, %s22
    %s23 = sphi 0, %s20
    %s24 = sphi 0, %s23
    %s40 = sphi 0, %s24
    %s44 = sphi 0, %s44
    %s46 = sphi 0, %s44
    %s47 = sphi 0, %s46
    %s61 = sphi 0, %s47
    %s65 = sphi 0, %s65
    %s67 = sphi 0, %s65
    %s68 = sphi 0, %s67
    %s82 = sphi 0, %s68
    %s88 = sphi 0, %s90
    %s91 = sphi 0, %s88
    %s92 = sphi 0, %s91
    %s108 = sphi 0, %s92
    %s114 = sphi 0, %s116
    %s117 = sphi 0, %s114
    %s118 = sphi 0, %s117
    %s134 = sphi 0, %s118
  $region4: #{closed_call.57} parent=0 // loop_header_branch
    %13 = sbr.rel (%p11) target = $region8
  $region5: #{closed_call.57} parent=0 // loop_body
    %s15 = ssub.s32 %s10, 1
    %s16 = ssub.s32 %s10, 2
    %s17 = sadd.s32 %s10, 1
    %s18 = ssub.s32 %s10, %s17
    %p19 = scmp.eq.s32.totalorder %s18, 0
    %s21 = sadd.s32 %s20, 1
    %s22 = scalar_select %p19, %s20, %s21
    %p25 = pneg %p19
    %p26 = scmp.eq.s32.totalorder %s10, 3
    %p27 = por %p25, %p26
    %p28 = scmp.ne.s32.totalorder %s20, %s23
    %p29 = scmp.eq.s32.totalorder %s10, 0
    %p30 = por %p28, %p29
    %p31 = scmp.ne.s32.totalorder %s20, %s23
    %p32 = scmp.eq.s32.totalorder %s15, 3
    %p33 = por %p31, %p32
    %p34 = scmp.ne.s32.totalorder %s23, %s24
    %p35 = scmp.eq.s32.totalorder %s15, 0
    %p36 = por %p34, %p35
    %p37 = scmp.ne.s32.totalorder %s23, %s24
    %p38 = scmp.eq.s32.totalorder %s16, 3
    %p39 = por %p37, %p38
    %p41 = scmp.ne.s32.totalorder %s24, %s40
    %p42 = scmp.eq.s32.totalorder %s16, 0
    %p43 = por %p41, %p42
    %s45 = sadd.s32 %s44, 1
    %p48 = scmp.eq.s32.totalorder %s10, 3
    %p49 = scmp.ne.s32.totalorder %s44, %s46
    %p50 = scmp.eq.s32.totalorder %s10, 0
    %p51 = por %p49, %p50
    %p52 = scmp.ne.s32.totalorder %s44, %s46
    %p53 = scmp.eq.s32.totalorder %s15, 3
    %p54 = por %p52, %p53
    %p55 = scmp.ne.s32.totalorder %s46, %s47
    %p56 = scmp.eq.s32.totalorder %s15, 0
    %p57 = por %p55, %p56
    %p58 = scmp.ne.s32.totalorder %s46, %s47
    %p59 = scmp.eq.s32.totalorder %s16, 3
    %p60 = por %p58, %p59
    %p62 = scmp.ne.s32.totalorder %s47, %s61
    %p63 = scmp.eq.s32.totalorder %s16, 0
    %p64 = por %p62, %p63
    %s66 = sadd.s32 %s65, 1
    %p69 = scmp.eq.s32.totalorder %s10, 3
    %p70 = scmp.ne.s32.totalorder %s65, %s67
    %p71 = scmp.eq.s32.totalorder %s10, 0
    %p72 = por %p70, %p71
    %p73 = scmp.ne.s32.totalorder %s65, %s67
    %p74 = scmp.eq.s32.totalorder %s15, 3
    %p75 = por %p73, %p74
    %p76 = scmp.ne.s32.totalorder %s67, %s68
    %p77 = scmp.eq.s32.totalorder %s15, 0
    %p78 = por %p76, %p77
    %p79 = scmp.ne.s32.totalorder %s67, %s68
    %p80 = scmp.eq.s32.totalorder %s16, 3
    %p81 = por %p79, %p80
    %p83 = scmp.ne.s32.totalorder %s68, %s82
    %p84 = scmp.eq.s32.totalorder %s16, 0
    %p85 = por %p83, %p84
    %s86 = ssub.s32 %s10, %s17
    %p87 = scmp.eq.s32.totalorder %s86, 0
    %s89 = sadd.s32 %s88, 1
    %s90 = scalar_select %p87, %s88, %s89
    %p93 = pneg %p87
    %p94 = scmp.eq.s32.totalorder %s10, 3
    %p95 = por %p93, %p94
    %p96 = scmp.ne.s32.totalorder %s88, %s91
    %p97 = scmp.eq.s32.totalorder %s10, 0
    %p98 = por %p96, %p97
    %p99 = scmp.ne.s32.totalorder %s88, %s91
    %p100 = scmp.eq.s32.totalorder %s15, 3
    %p101 = por %p99, %p100
    %p102 = scmp.ne.s32.totalorder %s91, %s92
    %p103 = scmp.eq.s32.totalorder %s15, 0
    %p104 = por %p102, %p103
    %p105 = scmp.ne.s32.totalorder %s91, %s92
    %p106 = scmp.eq.s32.totalorder %s16, 3
    %p107 = por %p105, %p106
    %p109 = scmp.ne.s32.totalorder %s92, %s108
    %p110 = scmp.eq.s32.totalorder %s16, 0
    %p111 = por %p109, %p110
    %s112 = ssub.s32 %s10, %s17
    %p113 = scmp.eq.s32.totalorder %s112, 0
    %s115 = sadd.s32 %s114, 1
    %s116 = scalar_select %p113, %s114, %s115
    %p119 = pneg %p113
    %p120 = scmp.eq.s32.totalorder %s10, 3
    %p121 = por %p119, %p120
    %p122 = scmp.ne.s32.totalorder %s114, %s117
    %p123 = scmp.eq.s32.totalorder %s10, 0
    %p124 = por %p122, %p123
    %p125 = scmp.ne.s32.totalorder %s114, %s117
    %p126 = scmp.eq.s32.totalorder %s15, 3
    %p127 = por %p125, %p126
    %p128 = scmp.ne.s32.totalorder %s117, %s118
    %p129 = scmp.eq.s32.totalorder %s15, 0
    %p130 = por %p128, %p129
    %p131 = scmp.ne.s32.totalorder %s117, %s118
    %p132 = scmp.eq.s32.totalorder %s16, 3
    %p133 = por %p131, %p132
    %p135 = scmp.ne.s32.totalorder %s118, %s134
    %p136 = scmp.eq.s32.totalorder %s16, 0
    %p137 = por %p135, %p136
    %p138 = scmp.le.s32.totalorder 1, %s10
    %p139 = scmp.lt.s32.totalorder %s10, 5
    %p140 = pnand %p138, %p139
    %p141 = pneg %p140
    // Predicated region
    $region9: #{closed_call.57} parent=5 // pred_check
      _
    $region10: #{closed_call.57} parent=5 // pred_check_branch
      %143 = sbr.rel (%p140) target = $region12
    $region11: #{closed_call.57} parent=5 // pred_region
      %s144 = ssub.s32 %s10, 1
      // Predicated region
      $region13: #{closed_call.57} parent=11 // pred_check
        %p145 = pneg %p57
      $region14: #{closed_call.57} parent=11 // pred_check_branch
        %147 = sbr.rel (%p145) target = $region16
      $region15: #{closed_call.57} parent=11 // pred_region
        _
      $region16: #{closed_call.57} parent=11 // pred_fallthru
        _
      // Predicated region
      $region17: #{closed_call.57} parent=11 // pred_check
        %p148 = pneg %p78
      $region18: #{closed_call.57} parent=11 // pred_check_branch
        %150 = sbr.rel (%p148) target = $region20
      $region19: #{closed_call.57} parent=11 // pred_region
        _
      $region20: #{closed_call.57} parent=11 // pred_fallthru
        _
    $region12: #{closed_call.57} parent=5 // pred_fallthru
      _
    %p151 = scmp.lt.s32.totalorder %s10, 4
    // Predicated region
    $region21: #{closed_call.57} parent=5 // pred_check
      %p152 = pneg %p151
    $region22: #{closed_call.57} parent=5 // pred_check_branch
      %154 = sbr.rel (%p152) target = $region24
    $region23: #{closed_call.57} parent=5 // pred_region
      // Predicated region
      $region25: #{closed_call.57} parent=23 // pred_check
        %p155 = pneg %p30
      $region26: #{closed_call.57} parent=23 // pred_check_branch
        %157 = sbr.rel (%p155) target = $region28
      $region27: #{closed_call.57} parent=23 // pred_region
        %s158 = smul.u32 64, %s10
        %p159 = scmp.lt.s32.totalorder %s158, 255
        %s160 = scalar_select %p159, %s158, 255
        %s161 = smul.addr %s160, 4
        %s162 = scalar_lea.vmem %s0, %s161
        %s163 = smul.u32 64, %s10
      $region28: #{closed_call.57} parent=23 // pred_fallthru
        _
      // Predicated region
      $region29: #{closed_call.57} parent=23 // pred_check
        %p164 = pneg %p98
      $region30: #{closed_call.57} parent=23 // pred_check_branch
        %166 = sbr.rel (%p164) target = $region32
      $region31: #{closed_call.57} parent=23 // pred_region
        %s167 = smul.u32 64, %s10
        %p168 = scmp.lt.s32.totalorder %s167, 255
        %s169 = scalar_select %p168, %s167, 255
        %s170 = smul.addr %s169, 8
        %s171 = scalar_lea.vmem %s3, %s170
        %s172 = smul.u32 64, %s10
      $region32: #{closed_call.57} parent=23 // pred_fallthru
        _
    $region24: #{closed_call.57} parent=5 // pred_fallthru
      _
    %p173 = scmp.le.s32.totalorder 1, %s10
    %p174 = scmp.lt.s32.totalorder %s10, 5
    %p175 = pnand %p173, %p174
    %p176 = pneg %p175
    // Predicated region
    $region33: #{closed_call.57} parent=5 // pred_check
      _
    $region34: #{closed_call.57} parent=5 // pred_check_branch
      %178 = sbr.rel (%p175) target = $region36
    $region35: #{closed_call.57} parent=5 // pred_region
      %s179 = ssub.s32 %s10, 1
      %s180 = smul.u32 64, %s15
      %p181 = scmp.lt.s32.totalorder %s180, 255
      %s182 = scalar_select %p181, %s180, 255
      %s183 = smul.addr %s182, 4
      %s184 = scalar_lea.vmem %s0, %s183
      %p185 = pneg %p36
      %p186 = pneg %p33
      %p187 = pneg %p57
      %p188 = pneg %p54
      %p189 = pneg %p78
      %p190 = pneg %p75
      %s191 = smul.u32 64, %s15
      %p192 = scmp.lt.s32.totalorder %s191, 255
      %s193 = scalar_select %p192, %s191, 255
      %s194 = smul.addr %s193, 8
      %s195 = scalar_lea.vmem %s3, %s194
      %p196 = pneg %p104
      %p197 = pneg %p101
      %p198 = pneg %p130
      %p199 = pneg %p127
      %s200 = smul.u32 64, %s15
      %p201 = scmp.lt.s32.totalorder %s200, 255
      %s202 = scalar_select %p201, %s200, 255
      %s203 = smul.addr %s202, 4
      %s204 = scalar_lea.vmem %s4, %s203
      %s205 = smul.u32 64, %s15
      %p206 = scmp.lt.s32.totalorder %s205, 255
      %s207 = scalar_select %p206, %s205, 255
      %s208 = smul.addr %s207, 4
      %s209 = scalar_lea.vmem %s0, %s208
      %s210 = smul.u32 64, %s15
      %s211 = smul.u32 64, %s15
      %p212 = scmp.lt.s32.totalorder %s211, 255
      %s213 = scalar_select %p212, %s211, 255
      %s214 = smul.addr %s213, 8
      %s215 = scalar_lea.vmem %s3, %s214
      %s216 = smul.u32 64, %s15
      %s217 = smul.u32 64, %s15
      %p218 = scmp.lt.s32.totalorder %s217, 255
      %s219 = scalar_select %p218, %s217, 255
      %s220 = smul.addr %s219, 4
      %s221 = scalar_lea.vmem %s4, %s220
      %s222 = smul.u32 64, %s15
      %v224 = vld [vmem:[%s209] sm:$0xf]
      %v225 = vld [vmem:[%s209 + $0x4] sm:$0xf]
      %v226 = vld [vmem:[%s209 + $0x8] sm:$0xf]
      %v227 = vld [vmem:[%s209 + $0xc] sm:$0xf]
      %v228 = vld [vmem:[%s209 + $0x10] sm:$0xf]
      %v229 = vld [vmem:[%s209 + $0x14] sm:$0xf]
      %v230 = vld [vmem:[%s209 + $0x18] sm:$0xf]
      %v231 = vld [vmem:[%s209 + $0x1c] sm:$0xf]
      %v232 = vld [vmem:[%s209 + $0x20] sm:$0xf]
      %v233 = vld [vmem:[%s209 + $0x24] sm:$0xf]
      %v234 = vld [vmem:[%s209 + $0x28] sm:$0xf]
      %v235 = vld [vmem:[%s209 + $0x2c] sm:$0xf]
      %v236 = vld [vmem:[%s209 + $0x30] sm:$0xf]
      %v237 = vld [vmem:[%s209 + $0x34] sm:$0xf]
      %v238 = vld [vmem:[%s209 + $0x38] sm:$0xf]
      %v239 = vld [vmem:[%s209 + $0x3c] sm:$0xf]
      %v240 = vld [vmem:[%s209 + $0x40] sm:$0xf]
      %v241 = vld [vmem:[%s209 + $0x44] sm:$0xf]
      %v242 = vld [vmem:[%s209 + $0x48] sm:$0xf]
      %v243 = vld [vmem:[%s209 + $0x4c] sm:$0xf]
      %v244 = vld [vmem:[%s209 + $0x50] sm:$0xf]
      %v245 = vld [vmem:[%s209 + $0x54] sm:$0xf]
      %v246 = vld [vmem:[%s209 + $0x58] sm:$0xf]
      %v247 = vld [vmem:[%s209 + $0x5c] sm:$0xf]
      %v248 = vld [vmem:[%s209 + $0x60] sm:$0xf]
      %v249 = vld [vmem:[%s209 + $0x64] sm:$0xf]
      %v250 = vld [vmem:[%s209 + $0x68] sm:$0xf]
      %v251 = vld [vmem:[%s209 + $0x6c] sm:$0xf]
      %v252 = vld [vmem:[%s209 + $0x70] sm:$0xf]
      %v253 = vld [vmem:[%s209 + $0x74] sm:$0xf]
      %v254 = vld [vmem:[%s209 + $0x78] sm:$0xf]
      %v255 = vld [vmem:[%s209 + $0x7c] sm:$0xf]
      %v256 = vld [vmem:[%s209 + $0x80] sm:$0xf]
      %v257 = vld [vmem:[%s209 + $0x84] sm:$0xf]
      %v258 = vld [vmem:[%s209 + $0x88] sm:$0xf]
      %v259 = vld [vmem:[%s209 + $0x8c] sm:$0xf]
      %v260 = vld [vmem:[%s209 + $0x90] sm:$0xf]
      %v261 = vld [vmem:[%s209 + $0x94] sm:$0xf]
      %v262 = vld [vmem:[%s209 + $0x98] sm:$0xf]
      %v263 = vld [vmem:[%s209 + $0x9c] sm:$0xf]
      %v264 = vld [vmem:[%s209 + $0xa0] sm:$0xf]
      %v265 = vld [vmem:[%s209 + $0xa4] sm:$0xf]
      %v266 = vld [vmem:[%s209 + $0xa8] sm:$0xf]
      %v267 = vld [vmem:[%s209 + $0xac] sm:$0xf]
      %v268 = vld [vmem:[%s209 + $0xb0] sm:$0xf]
      %v269 = vld [vmem:[%s209 + $0xb4] sm:$0xf]
      %v270 = vld [vmem:[%s209 + $0xb8] sm:$0xf]
      %v271 = vld [vmem:[%s209 + $0xbc] sm:$0xf]
      %v272 = vld [vmem:[%s209 + $0xc0] sm:$0xf]
      %v273 = vld [vmem:[%s209 + $0xc4] sm:$0xf]
      %v274 = vld [vmem:[%s209 + $0xc8] sm:$0xf]
      %v275 = vld [vmem:[%s209 + $0xcc] sm:$0xf]
      %v276 = vld [vmem:[%s209 + $0xd0] sm:$0xf]
      %v277 = vld [vmem:[%s209 + $0xd4] sm:$0xf]
      %v278 = vld [vmem:[%s209 + $0xd8] sm:$0xf]
      %v279 = vld [vmem:[%s209 + $0xdc] sm:$0xf]
      %v280 = vld [vmem:[%s209 + $0xe0] sm:$0xf]
      %v281 = vld [vmem:[%s209 + $0xe4] sm:$0xf]
      %v282 = vld [vmem:[%s209 + $0xe8] sm:$0xf]
      %v283 = vld [vmem:[%s209 + $0xec] sm:$0xf]
      %v284 = vld [vmem:[%s209 + $0xf0] sm:$0xf]
      %v285 = vld [vmem:[%s209 + $0xf4] sm:$0xf]
      %v286 = vld [vmem:[%s209 + $0xf8] sm:$0xf]
      %v287 = vld [vmem:[%s209 + $0xfc] sm:$0xf]
      %v288 = vld [vmem:[%s1] sm:$0xf]
      %v289 = vld [vmem:[%s1 + $0x4] sm:$0x1]
      %v290 = vld [vmem:[%s2] sm:$0x1]
      %v292 = vlaneseq
      %v293 = vshrl.u32 %v292, 7
      %v294 = vsub.s32 0, %v293
      %v295 = vrot.slane %v290, %v294
      %v361 = vunpack.c.l.b16 %v224
      %v362 = vunpack.c.l.b16 %v225
      %v363 = vunpack.c.l.b16 %v226
      %v364 = vunpack.c.l.b16 %v227
      %v365 = vunpack.c.l.b16 %v228
      %v366 = vunpack.c.l.b16 %v229
      %v367 = vunpack.c.l.b16 %v230
      %v368 = vunpack.c.l.b16 %v231
      %v369 = vunpack.c.l.b16 %v232
      %v370 = vunpack.c.l.b16 %v233
      %v371 = vunpack.c.l.b16 %v234
      %v372 = vunpack.c.l.b16 %v235
      %v373 = vunpack.c.l.b16 %v236
      %v374 = vunpack.c.l.b16 %v237
      %v375 = vunpack.c.l.b16 %v238
      %v376 = vunpack.c.l.b16 %v239
      %v377 = vunpack.c.l.b16 %v240
      %v378 = vunpack.c.l.b16 %v241
      %v379 = vunpack.c.l.b16 %v242
      %v380 = vunpack.c.l.b16 %v243
      %v381 = vunpack.c.l.b16 %v244
      %v382 = vunpack.c.l.b16 %v245
      %v383 = vunpack.c.l.b16 %v246
      %v384 = vunpack.c.l.b16 %v247
      %v385 = vunpack.c.l.b16 %v248
      %v386 = vunpack.c.l.b16 %v249
      %v387 = vunpack.c.l.b16 %v250
      %v388 = vunpack.c.l.b16 %v251
      %v389 = vunpack.c.l.b16 %v252
      %v390 = vunpack.c.l.b16 %v253
      %v391 = vunpack.c.l.b16 %v254
      %v392 = vunpack.c.l.b16 %v255
      %v393 = vunpack.c.l.b16 %v256
      %v394 = vunpack.c.l.b16 %v257
      %v395 = vunpack.c.l.b16 %v258
      %v396 = vunpack.c.l.b16 %v259
      %v397 = vunpack.c.l.b16 %v260
      %v398 = vunpack.c.l.b16 %v261
      %v399 = vunpack.c.l.b16 %v262
      %v400 = vunpack.c.l.b16 %v263
      %v401 = vunpack.c.l.b16 %v264
      %v402 = vunpack.c.l.b16 %v265
      %v403 = vunpack.c.l.b16 %v266
      %v404 = vunpack.c.l.b16 %v267
      %v405 = vunpack.c.l.b16 %v268
      %v406 = vunpack.c.l.b16 %v269
      %v407 = vunpack.c.l.b16 %v270
      %v408 = vunpack.c.l.b16 %v271
      %v409 = vunpack.c.l.b16 %v272
      %v410 = vunpack.c.l.b16 %v273
      %v411 = vunpack.c.l.b16 %v274
      %v412 = vunpack.c.l.b16 %v275
      %v413 = vunpack.c.l.b16 %v276
      %v414 = vunpack.c.l.b16 %v277
      %v415 = vunpack.c.l.b16 %v278
      %v416 = vunpack.c.l.b16 %v279
      %v417 = vunpack.c.l.b16 %v280
      %v418 = vunpack.c.l.b16 %v281
      %v419 = vunpack.c.l.b16 %v282
      %v420 = vunpack.c.l.b16 %v283
      %v421 = vunpack.c.l.b16 %v284
      %v422 = vunpack.c.l.b16 %v285
      %v423 = vunpack.c.l.b16 %v286
      %v424 = vunpack.c.l.b16 %v287
      %v425 = vpack.c.b16 %v362, %v361
      %v426 = vpack.c.b16 %v364, %v363
      %v427 = vpack.c.b16 %v366, %v365
      %v428 = vpack.c.b16 %v368, %v367
      %v429 = vpack.c.b16 %v370, %v369
      %v430 = vpack.c.b16 %v372, %v371
      %v431 = vpack.c.b16 %v374, %v373
      %v432 = vpack.c.b16 %v376, %v375
      %v433 = vpack.c.b16 %v378, %v377
      %v434 = vpack.c.b16 %v380, %v379
      %v435 = vpack.c.b16 %v382, %v381
      %v436 = vpack.c.b16 %v384, %v383
      %v437 = vpack.c.b16 %v386, %v385
      %v438 = vpack.c.b16 %v388, %v387
      %v439 = vpack.c.b16 %v390, %v389
      %v440 = vpack.c.b16 %v392, %v391
      %v441 = vpack.c.b16 %v394, %v393
      %v442 = vpack.c.b16 %v396, %v395
      %v443 = vpack.c.b16 %v398, %v397
      %v444 = vpack.c.b16 %v400, %v399
      %v445 = vpack.c.b16 %v402, %v401
      %v446 = vpack.c.b16 %v404, %v403
      %v447 = vpack.c.b16 %v406, %v405
      %v448 = vpack.c.b16 %v408, %v407
      %v449 = vpack.c.b16 %v410, %v409
      %v450 = vpack.c.b16 %v412, %v411
      %v451 = vpack.c.b16 %v414, %v413
      %v452 = vpack.c.b16 %v416, %v415
      %v453 = vpack.c.b16 %v418, %v417
      %v454 = vpack.c.b16 %v420, %v419
      %v455 = vpack.c.b16 %v422, %v421
      %v456 = vpack.c.b16 %v424, %v423
      %v459 = vunpack.c.l.b16 %v288
      %v460 = vunpack.c.l.b16 %v289
      %v461 = vpack.c.b16 %v460, %v459
      %vm462 = vcmask 72704
      %v464 = vsel %vm462, %v425, 0
      %v467 = vsel %vm462, %v426, 0
      %v470 = vsel %vm462, %v427, 0
      %v473 = vsel %vm462, %v428, 0
      %v476 = vsel %vm462, %v429, 0
      %v479 = vsel %vm462, %v430, 0
      %v482 = vsel %vm462, %v431, 0
      %v485 = vsel %vm462, %v432, 0
      %v488 = vsel %vm462, %v433, 0
      %v491 = vsel %vm462, %v434, 0
      %v494 = vsel %vm462, %v435, 0
      %v497 = vsel %vm462, %v436, 0
      %v500 = vsel %vm462, %v437, 0
      %v503 = vsel %vm462, %v438, 0
      %v506 = vsel %vm462, %v439, 0
      %v509 = vsel %vm462, %v440, 0
      %v512 = vsel %vm462, %v441, 0
      %v515 = vsel %vm462, %v442, 0
      %v518 = vsel %vm462, %v443, 0
      %v521 = vsel %vm462, %v444, 0
      %v524 = vsel %vm462, %v445, 0
      %v527 = vsel %vm462, %v446, 0
      %v530 = vsel %vm462, %v447, 0
      %v533 = vsel %vm462, %v448, 0
      %v536 = vsel %vm462, %v449, 0
      %v539 = vsel %vm462, %v450, 0
      %v542 = vsel %vm462, %v451, 0
      %v545 = vsel %vm462, %v452, 0
      %v548 = vsel %vm462, %v453, 0
      %v551 = vsel %vm462, %v454, 0
      %v554 = vsel %vm462, %v455, 0
      %v557 = vsel %vm462, %v456, 0
      %vm559 = vcmask 1043456
      %vm560 = vcmask 1044480
      %v561 = vsel %vm559, 4294967295, 65535
      %v562 = vsel %vm560, %v561, 0
      %v564 = vand.u32 %v461, %v562
      %566 = vmatprep.subr.bf16.mxu0 0
      %567 = vmatpush1.bf16.msra.mxu0 %v564
      %568 = vmatprep.subr.bf16.mxu0 0
      %569 = vmatpush1.bf16.msra.mxu0 0
      %570 = vmatprep.subr.bf16.mxu0 0
      %571 = vmatpush1.bf16.msra.mxu0 0
      %572 = vmatprep.subr.bf16.mxu0 0
      %573 = vmatpush1.bf16.msra.mxu0 0
      %574 = vmatprep.subr.bf16.mxu0 0
      %575 = vmatpush1.bf16.msra.mxu0 0
      %576 = vmatprep.subr.bf16.mxu0 0
      %577 = vmatpush1.bf16.msra.mxu0 0
      %578 = vmatprep.subr.bf16.mxu0 0
      %579 = vmatpush1.bf16.msra.mxu0 0
      %580 = vmatprep.subr.bf16.mxu0 0
      %581 = vmatpush1.bf16.msra.mxu0 0
      %582 = vmatprep.subr.bf16.mxu0 0
      %583 = vmatpush1.bf16.msra.mxu0 0
      %584 = vmatprep.subr.bf16.mxu0 0
      %585 = vmatpush1.bf16.msra.mxu0 0
      %586 = vmatprep.subr.bf16.mxu0 0
      %587 = vmatpush1.bf16.msra.mxu0 0
      %588 = vmatprep.subr.bf16.mxu0 0
      %589 = vmatpush1.bf16.msra.mxu0 0
      %590 = vmatprep.subr.bf16.mxu0 0
      %591 = vmatpush1.bf16.msra.mxu0 0
      %592 = vmatprep.subr.bf16.mxu0 0
      %593 = vmatpush1.bf16.msra.mxu0 0
      %594 = vmatprep.subr.bf16.mxu0 0
      %595 = vmatpush1.bf16.msra.mxu0 0
      %596 = vmatprep.subr.bf16.mxu0 0
      %597 = vmatpush1.bf16.msra.mxu0 0
      %598 = vmatprep.mubr.bf16.mxu0 0
      %599 = vmatmul.mubr.bf16.gmra.mrb[0].mxu0 %v464
      %v600 = vpop.f32.mrb[0].mxu0
      %v601 = vadd.f32 %v295, %v600
      %v602 = vpop.f32.mrb[0].mxu0
      %v603 = vpop.f32.mrb[0].mxu0
      %v604 = vadd.f32 %v295, %v603
      %v605 = vpop.f32.mrb[0].mxu0
      %606 = vmatprep.mubr.bf16.mxu0 0
      %607 = vmatmul.mubr.bf16.gmra.mrb[0].mxu0 %v467
      %v608 = vpop.f32.mrb[0].mxu0
      %v609 = vadd.f32 %v295, %v608
      %v610 = vpop.f32.mrb[0].mxu0
      %v611 = vpop.f32.mrb[0].mxu0
      %v612 = vadd.f32 %v295, %v611
      %v613 = vpop.f32.mrb[0].mxu0
      %614 = vmatprep.mubr.bf16.mxu0 0
      %615 = vmatmul.mubr.bf16.gmra.mrb[0].mxu0 %v470
      %v616 = vpop.f32.mrb[0].mxu0
      %v617 = vadd.f32 %v295, %v616
      %v618 = vpop.f32.mrb[0].mxu0
      %v619 = vpop.f32.mrb[0].mxu0
      %v620 = vadd.f32 %v295, %v619
      %v621 = vpop.f32.mrb[0].mxu0
      %622 = vmatprep.mubr.bf16.mxu0 0
      %623 = vmatmul.mubr.bf16.gmra.mrb[0].mxu0 %v473
      %v624 = vpop.f32.mrb[0].mxu0
      %v625 = vadd.f32 %v295, %v624
      %v626 = vpop.f32.mrb[0].mxu0
      %v627 = vpop.f32.mrb[0].mxu0
      %v628 = vadd.f32 %v295, %v627
      %v629 = vpop.f32.mrb[0].mxu0
      %630 = vmatprep.mubr.bf16.mxu0 0
      %631 = vmatmul.mubr.bf16.gmra.mrb[0].mxu0 %v476
      %v632 = vpop.f32.mrb[0].mxu0
      %v633 = vadd.f32 %v295, %v632
      %v634 = vpop.f32.mrb[0].mxu0
      %v635 = vpop.f32.mrb[0].mxu0
      %v636 = vadd.f32 %v295, %v635
      %v637 = vpop.f32.mrb[0].mxu0
      %638 = vmatprep.mubr.bf16.mxu0 0
      %639 = vmatmul.mubr.bf16.gmra.mrb[0].mxu0 %v479
      %v640 = vpop.f32.mrb[0].mxu0
      %v641 = vadd.f32 %v295, %v640
      %v642 = vpop.f32.mrb[0].mxu0
      %v643 = vpop.f32.mrb[0].mxu0
      %v644 = vadd.f32 %v295, %v643
      %v645 = vpop.f32.mrb[0].mxu0
      %646 = vmatprep.mubr.bf16.mxu0 0
      %647 = vmatmul.mubr.bf16.gmra.mrb[0].mxu0 %v482
      %v648 = vpop.f32.mrb[0].mxu0
      %v649 = vadd.f32 %v295, %v648
      %v650 = vpop.f32.mrb[0].mxu0
      %v651 = vpop.f32.mrb[0].mxu0
      %v652 = vadd.f32 %v295, %v651
      %v653 = vpop.f32.mrb[0].mxu0
      %654 = vmatprep.mubr.bf16.mxu0 0
      %655 = vmatmul.mubr.bf16.gmra.mrb[0].mxu0 %v485
      %v656 = vpop.f32.mrb[0].mxu0
      %v657 = vadd.f32 %v295, %v656
      %v658 = vpop.f32.mrb[0].mxu0
      %v659 = vpop.f32.mrb[0].mxu0
      %v660 = vadd.f32 %v295, %v659
      %v661 = vpop.f32.mrb[0].mxu0
      %662 = vmatprep.mubr.bf16.mxu0 0
      %663 = vmatmul.mubr.bf16.gmra.mrb[0].mxu0 %v488
      %v664 = vpop.f32.mrb[0].mxu0
      %v665 = vadd.f32 %v295, %v664
      %v666 = vpop.f32.mrb[0].mxu0
      %v667 = vpop.f32.mrb[0].mxu0
      %v668 = vadd.f32 %v295, %v667
      %v669 = vpop.f32.mrb[0].mxu0
      %670 = vmatprep.mubr.bf16.mxu0 0
      %671 = vmatmul.mubr.bf16.gmra.mrb[0].mxu0 %v491
      %v672 = vpop.f32.mrb[0].mxu0
      %v673 = vadd.f32 %v295, %v672
      %v674 = vpop.f32.mrb[0].mxu0
      %v675 = vpop.f32.mrb[0].mxu0
      %v676 = vadd.f32 %v295, %v675
      %v677 = vpop.f32.mrb[0].mxu0
      %678 = vmatprep.mubr.bf16.mxu0 0
      %679 = vmatmul.mubr.bf16.gmra.mrb[0].mxu0 %v494
      %v680 = vpop.f32.mrb[0].mxu0
      %v681 = vadd.f32 %v295, %v680
      %v682 = vpop.f32.mrb[0].mxu0
      %v683 = vpop.f32.mrb[0].mxu0
      %v684 = vadd.f32 %v295, %v683
      %v685 = vpop.f32.mrb[0].mxu0
      %686 = vmatprep.mubr.bf16.mxu0 0
      %687 = vmatmul.mubr.bf16.gmra.mrb[0].mxu0 %v497
      %v688 = vpop.f32.mrb[0].mxu0
      %v689 = vadd.f32 %v295, %v688
      %v690 = vpop.f32.mrb[0].mxu0
      %v691 = vpop.f32.mrb[0].mxu0
      %v692 = vadd.f32 %v295, %v691
      %v693 = vpop.f32.mrb[0].mxu0
      %694 = vmatprep.mubr.bf16.mxu0 0
      %695 = vmatmul.mubr.bf16.gmra.mrb[0].mxu0 %v500
      %v696 = vpop.f32.mrb[0].mxu0
      %v697 = vadd.f32 %v295, %v696
      %v698 = vpop.f32.mrb[0].mxu0
      %v699 = vpop.f32.mrb[0].mxu0
      %v700 = vadd.f32 %v295, %v699
      %v701 = vpop.f32.mrb[0].mxu0
      %702 = vmatprep.mubr.bf16.mxu0 0
      %703 = vmatmul.mubr.bf16.gmra.mrb[0].mxu0 %v503
      %v704 = vpop.f32.mrb[0].mxu0
      %v705 = vadd.f32 %v295, %v704
      %v706 = vpop.f32.mrb[0].mxu0
      %v707 = vpop.f32.mrb[0].mxu0
      %v708 = vadd.f32 %v295, %v707
      %v709 = vpop.f32.mrb[0].mxu0
      %710 = vmatprep.mubr.bf16.mxu0 0
      %711 = vmatmul.mubr.bf16.gmra.mrb[0].mxu0 %v506
      %v712 = vpop.f32.mrb[0].mxu0
      %v713 = vadd.f32 %v295, %v712
      %v714 = vpop.f32.mrb[0].mxu0
      %v715 = vpop.f32.mrb[0].mxu0
      %v716 = vadd.f32 %v295, %v715
      %v717 = vpop.f32.mrb[0].mxu0
      %718 = vmatprep.mubr.bf16.mxu0 0
      %719 = vmatmul.mubr.bf16.gmra.mrb[0].mxu0 %v509
      %v720 = vpop.f32.mrb[0].mxu0
      %v721 = vadd.f32 %v295, %v720
      %v722 = vpop.f32.mrb[0].mxu0
      %v723 = vpop.f32.mrb[0].mxu0
      %v724 = vadd.f32 %v295, %v723
      %v725 = vpop.f32.mrb[0].mxu0
      %726 = vmatprep.mubr.bf16.mxu0 0
      %727 = vmatmul.mubr.bf16.gmra.mrb[0].mxu0 %v512
      %v728 = vpop.f32.mrb[0].mxu0
      %v729 = vadd.f32 %v295, %v728
      %v730 = vpop.f32.mrb[0].mxu0
      %v731 = vpop.f32.mrb[0].mxu0
      %v732 = vadd.f32 %v295, %v731
      %v733 = vpop.f32.mrb[0].mxu0
      %734 = vmatprep.mubr.bf16.mxu0 0
      %735 = vmatmul.mubr.bf16.gmra.mrb[0].mxu0 %v515
      %v736 = vpop.f32.mrb[0].mxu0
      %v737 = vadd.f32 %v295, %v736
      %v738 = vpop.f32.mrb[0].mxu0
      %v739 = vpop.f32.mrb[0].mxu0
      %v740 = vadd.f32 %v295, %v739
      %v741 = vpop.f32.mrb[0].mxu0
      %742 = vmatprep.mubr.bf16.mxu0 0
      %743 = vmatmul.mubr.bf16.gmra.mrb[0].mxu0 %v518
      %v744 = vpop.f32.mrb[0].mxu0
      %v745 = vadd.f32 %v295, %v744
      %v746 = vpop.f32.mrb[0].mxu0
      %v747 = vpop.f32.mrb[0].mxu0
      %v748 = vadd.f32 %v295, %v747
      %v749 = vpop.f32.mrb[0].mxu0
      %750 = vmatprep.mubr.bf16.mxu0 0
      %751 = vmatmul.mubr.bf16.gmra.mrb[0].mxu0 %v521
      %v752 = vpop.f32.mrb[0].mxu0
      %v753 = vadd.f32 %v295, %v752
      %v754 = vpop.f32.mrb[0].mxu0
      %v755 = vpop.f32.mrb[0].mxu0
      %v756 = vadd.f32 %v295, %v755
      %v757 = vpop.f32.mrb[0].mxu0
      %758 = vmatprep.mubr.bf16.mxu0 0
      %759 = vmatmul.mubr.bf16.gmra.mrb[0].mxu0 %v524
      %v760 = vpop.f32.mrb[0].mxu0
      %v761 = vadd.f32 %v295, %v760
      %v762 = vpop.f32.mrb[0].mxu0
      %v763 = vpop.f32.mrb[0].mxu0
      %v764 = vadd.f32 %v295, %v763
      %v765 = vpop.f32.mrb[0].mxu0
      %766 = vmatprep.mubr.bf16.mxu0 0
      %767 = vmatmul.mubr.bf16.gmra.mrb[0].mxu0 %v527
      %v768 = vpop.f32.mrb[0].mxu0
      %v769 = vadd.f32 %v295, %v768
      %v770 = vpop.f32.mrb[0].mxu0
      %v771 = vpop.f32.mrb[0].mxu0
      %v772 = vadd.f32 %v295, %v771
      %v773 = vpop.f32.mrb[0].mxu0
      %774 = vmatprep.mubr.bf16.mxu0 0
      %775 = vmatmul.mubr.bf16.gmra.mrb[0].mxu0 %v530
      %v776 = vpop.f32.mrb[0].mxu0
      %v777 = vadd.f32 %v295, %v776
      %v778 = vpop.f32.mrb[0].mxu0
      %v779 = vpop.f32.mrb[0].mxu0
      %v780 = vadd.f32 %v295, %v779
      %v781 = vpop.f32.mrb[0].mxu0
      %782 = vmatprep.mubr.bf16.mxu0 0
      %783 = vmatmul.mubr.bf16.gmra.mrb[0].mxu0 %v533
      %v784 = vpop.f32.mrb[0].mxu0
      %v785 = vadd.f32 %v295, %v784
      %v786 = vpop.f32.mrb[0].mxu0
      %v787 = vpop.f32.mrb[0].mxu0
      %v788 = vadd.f32 %v295, %v787
      %v789 = vpop.f32.mrb[0].mxu0
      %790 = vmatprep.mubr.bf16.mxu0 0
      %791 = vmatmul.mubr.bf16.gmra.mrb[0].mxu0 %v536
      %v792 = vpop.f32.mrb[0].mxu0
      %v793 = vadd.f32 %v295, %v792
      %v794 = vpop.f32.mrb[0].mxu0
      %v795 = vpop.f32.mrb[0].mxu0
      %v796 = vadd.f32 %v295, %v795
      %v797 = vpop.f32.mrb[0].mxu0
      %798 = vmatprep.mubr.bf16.mxu0 0
      %799 = vmatmul.mubr.bf16.gmra.mrb[0].mxu0 %v539
      %v800 = vpop.f32.mrb[0].mxu0
      %v801 = vadd.f32 %v295, %v800
      %v802 = vpop.f32.mrb[0].mxu0
      %v803 = vpop.f32.mrb[0].mxu0
      %v804 = vadd.f32 %v295, %v803
      %v805 = vpop.f32.mrb[0].mxu0
      %806 = vmatprep.mubr.bf16.mxu0 0
      %807 = vmatmul.mubr.bf16.gmra.mrb[0].mxu0 %v542
      %v808 = vpop.f32.mrb[0].mxu0
      %v809 = vadd.f32 %v295, %v808
      %v810 = vpop.f32.mrb[0].mxu0
      %v811 = vpop.f32.mrb[0].mxu0
      %v812 = vadd.f32 %v295, %v811
      %v813 = vpop.f32.mrb[0].mxu0
      %814 = vmatprep.mubr.bf16.mxu0 0
      %815 = vmatmul.mubr.bf16.gmra.mrb[0].mxu0 %v545
      %v816 = vpop.f32.mrb[0].mxu0
      %v817 = vadd.f32 %v295, %v816
      %v818 = vpop.f32.mrb[0].mxu0
      %v819 = vpop.f32.mrb[0].mxu0
      %v820 = vadd.f32 %v295, %v819
      %v821 = vpop.f32.mrb[0].mxu0
      %822 = vmatprep.mubr.bf16.mxu0 0
      %823 = vmatmul.mubr.bf16.gmra.mrb[0].mxu0 %v548
      %v824 = vpop.f32.mrb[0].mxu0
      %v825 = vadd.f32 %v295, %v824
      %v826 = vpop.f32.mrb[0].mxu0
      %v827 = vpop.f32.mrb[0].mxu0
      %v828 = vadd.f32 %v295, %v827
      %v829 = vpop.f32.mrb[0].mxu0
      %830 = vmatprep.mubr.bf16.mxu0 0
      %831 = vmatmul.mubr.bf16.gmra.mrb[0].mxu0 %v551
      %v832 = vpop.f32.mrb[0].mxu0
      %v833 = vadd.f32 %v295, %v832
      %v834 = vpop.f32.mrb[0].mxu0
      %v835 = vpop.f32.mrb[0].mxu0
      %v836 = vadd.f32 %v295, %v835
      %v837 = vpop.f32.mrb[0].mxu0
      %838 = vmatprep.mubr.bf16.mxu0 0
      %839 = vmatmul.mubr.bf16.gmra.mrb[0].mxu0 %v554
      %v840 = vpop.f32.mrb[0].mxu0
      %v841 = vadd.f32 %v295, %v840
      %v842 = vpop.f32.mrb[0].mxu0
      %v843 = vpop.f32.mrb[0].mxu0
      %v844 = vadd.f32 %v295, %v843
      %v845 = vpop.f32.mrb[0].mxu0
      %846 = vmatprep.mubr.bf16.mxu0 0
      %847 = vmatmul.mubr.bf16.gmra.mrb[0].mxu0 %v557
      %v848 = vpop.f32.mrb[0].mxu0
      %v849 = vadd.f32 %v295, %v848
      %v850 = vpop.f32.mrb[0].mxu0
      %v851 = vpop.f32.mrb[0].mxu0
      %v852 = vadd.f32 %v295, %v851
      %v853 = vpop.f32.mrb[0].mxu0
      %854 = vdwg.mxu0
      %v855 = vld [vmem:[%s215] sm:$0xff]
      %v856 = vld [vmem:[%s215 + $0x8] sm:$0xff]
      %v857 = vld [vmem:[%s215 + $0x10] sm:$0xff]
      %v858 = vld [vmem:[%s215 + $0x18] sm:$0xff]
      %v859 = vld [vmem:[%s215 + $0x20] sm:$0xff]
      %v860 = vld [vmem:[%s215 + $0x28] sm:$0xff]
      %v861 = vld [vmem:[%s215 + $0x30] sm:$0xff]
      %v862 = vld [vmem:[%s215 + $0x38] sm:$0xff]
      %v863 = vld [vmem:[%s215 + $0x40] sm:$0xff]
      %v864 = vld [vmem:[%s215 + $0x48] sm:$0xff]
      %v865 = vld [vmem:[%s215 + $0x50] sm:$0xff]
      %v866 = vld [vmem:[%s215 + $0x58] sm:$0xff]
      %v867 = vld [vmem:[%s215 + $0x60] sm:$0xff]
      %v868 = vld [vmem:[%s215 + $0x68] sm:$0xff]
      %v869 = vld [vmem:[%s215 + $0x70] sm:$0xff]
      %v870 = vld [vmem:[%s215 + $0x78] sm:$0xff]
      %v871 = vld [vmem:[%s215 + $0x80] sm:$0xff]
      %v872 = vld [vmem:[%s215 + $0x88] sm:$0xff]
      %v873 = vld [vmem:[%s215 + $0x90] sm:$0xff]
      %v874 = vld [vmem:[%s215 + $0x98] sm:$0xff]
      %v875 = vld [vmem:[%s215 + $0xa0] sm:$0xff]
      %v876 = vld [vmem:[%s215 + $0xa8] sm:$0xff]
      %v877 = vld [vmem:[%s215 + $0xb0] sm:$0xff]
      %v878 = vld [vmem:[%s215 + $0xb8] sm:$0xff]
      %v879 = vld [vmem:[%s215 + $0xc0] sm:$0xff]
      %v880 = vld [vmem:[%s215 + $0xc8] sm:$0xff]
      %v881 = vld [vmem:[%s215 + $0xd0] sm:$0xff]
      %v882 = vld [vmem:[%s215 + $0xd8] sm:$0xff]
      %v883 = vld [vmem:[%s215 + $0xe0] sm:$0xff]
      %v884 = vld [vmem:[%s215 + $0xe8] sm:$0xff]
      %v885 = vld [vmem:[%s215 + $0xf0] sm:$0xff]
      %v886 = vld [vmem:[%s215 + $0xf8] sm:$0xff]
      %v887 = vld [vmem:[%s215 + $0x100] sm:$0xff]
      %v888 = vld [vmem:[%s215 + $0x108] sm:$0xff]
      %v889 = vld [vmem:[%s215 + $0x110] sm:$0xff]
      %v890 = vld [vmem:[%s215 + $0x118] sm:$0xff]
      %v891 = vld [vmem:[%s215 + $0x120] sm:$0xff]
      %v892 = vld [vmem:[%s215 + $0x128] sm:$0xff]
      %v893 = vld [vmem:[%s215 + $0x130] sm:$0xff]
      %v894 = vld [vmem:[%s215 + $0x138] sm:$0xff]
      %v895 = vld [vmem:[%s215 + $0x140] sm:$0xff]
      %v896 = vld [vmem:[%s215 + $0x148] sm:$0xff]
      %v897 = vld [vmem:[%s215 + $0x150] sm:$0xff]
      %v898 = vld [vmem:[%s215 + $0x158] sm:$0xff]
      %v899 = vld [vmem:[%s215 + $0x160] sm:$0xff]
      %v900 = vld [vmem:[%s215 + $0x168] sm:$0xff]
      %v901 = vld [vmem:[%s215 + $0x170] sm:$0xff]
      %v902 = vld [vmem:[%s215 + $0x178] sm:$0xff]
      %v903 = vld [vmem:[%s215 + $0x180] sm:$0xff]
      %v904 = vld [vmem:[%s215 + $0x188] sm:$0xff]
      %v905 = vld [vmem:[%s215 + $0x190] sm:$0xff]
      %v906 = vld [vmem:[%s215 + $0x198] sm:$0xff]
      %v907 = vld [vmem:[%s215 + $0x1a0] sm:$0xff]
      %v908 = vld [vmem:[%s215 + $0x1a8] sm:$0xff]
      %v909 = vld [vmem:[%s215 + $0x1b0] sm:$0xff]
      %v910 = vld [vmem:[%s215 + $0x1b8] sm:$0xff]
      %v911 = vld [vmem:[%s215 + $0x1c0] sm:$0xff]
      %v912 = vld [vmem:[%s215 + $0x1c8] sm:$0xff]
      %v913 = vld [vmem:[%s215 + $0x1d0] sm:$0xff]
      %v914 = vld [vmem:[%s215 + $0x1d8] sm:$0xff]
      %v915 = vld [vmem:[%s215 + $0x1e0] sm:$0xff]
      %v916 = vld [vmem:[%s215 + $0x1e8] sm:$0xff]
      %v917 = vld [vmem:[%s215 + $0x1f0] sm:$0xff]
      %v918 = vld [vmem:[%s215 + $0x1f8] sm:$0xff]
      %v919 = vadd.f32 %v601, %v855
      %v920 = vadd.f32 %v604, %v856
      %v921 = vadd.f32 %v609, %v857
      %v922 = vadd.f32 %v612, %v858
      %v923 = vadd.f32 %v617, %v859
      %v924 = vadd.f32 %v620, %v860
      %v925 = vadd.f32 %v625, %v861
      %v926 = vadd.f32 %v628, %v862
      %v927 = vadd.f32 %v633, %v863
      %v928 = vadd.f32 %v636, %v864
      %v929 = vadd.f32 %v641, %v865
      %v930 = vadd.f32 %v644, %v866
      %v931 = vadd.f32 %v649, %v867
      %v932 = vadd.f32 %v652, %v868
      %v933 = vadd.f32 %v657, %v869
      %v934 = vadd.f32 %v660, %v870
      %v935 = vadd.f32 %v665, %v871
      %v936 = vadd.f32 %v668, %v872
      %v937 = vadd.f32 %v673, %v873
      %v938 = vadd.f32 %v676, %v874
      %v939 = vadd.f32 %v681, %v875
      %v940 = vadd.f32 %v684, %v876
      %v941 = vadd.f32 %v689, %v877
      %v942 = vadd.f32 %v692, %v878
      %v943 = vadd.f32 %v697, %v879
      %v944 = vadd.f32 %v700, %v880
      %v945 = vadd.f32 %v705, %v881
      %v946 = vadd.f32 %v708, %v882
      %v947 = vadd.f32 %v713, %v883
      %v948 = vadd.f32 %v716, %v884
      %v949 = vadd.f32 %v721, %v885
      %v950 = vadd.f32 %v724, %v886
      %v951 = vadd.f32 %v729, %v887
      %v952 = vadd.f32 %v732, %v888
      %v953 = vadd.f32 %v737, %v889
      %v954 = vadd.f32 %v740, %v890
      %v955 = vadd.f32 %v745, %v891
      %v956 = vadd.f32 %v748, %v892
      %v957 = vadd.f32 %v753, %v893
      %v958 = vadd.f32 %v756, %v894
      %v959 = vadd.f32 %v761, %v895
      %v960 = vadd.f32 %v764, %v896
      %v961 = vadd.f32 %v769, %v897
      %v962 = vadd.f32 %v772, %v898
      %v963 = vadd.f32 %v777, %v899
      %v964 = vadd.f32 %v780, %v900
      %v965 = vadd.f32 %v785, %v901
      %v966 = vadd.f32 %v788, %v902
      %v967 = vadd.f32 %v793, %v903
      %v968 = vadd.f32 %v796, %v904
      %v969 = vadd.f32 %v801, %v905
      %v970 = vadd.f32 %v804, %v906
      %v971 = vadd.f32 %v809, %v907
      %v972 = vadd.f32 %v812, %v908
      %v973 = vadd.f32 %v817, %v909
      %v974 = vadd.f32 %v820, %v910
      %v975 = vadd.f32 %v825, %v911
      %v976 = vadd.f32 %v828, %v912
      %v977 = vadd.f32 %v833, %v913
      %v978 = vadd.f32 %v836, %v914
      %v979 = vadd.f32 %v841, %v915
      %v980 = vadd.f32 %v844, %v916
      %v981 = vadd.f32 %v849, %v917
      %v982 = vadd.f32 %v852, %v918
      %vm983 = vcmp.ge.f32.partialorder %v919, 0.0
      %vm984 = vcmp.ge.f32.partialorder %v920, 0.0
      %vm985 = vcmp.ge.f32.partialorder %v921, 0.0
      %vm986 = vcmp.ge.f32.partialorder %v922, 0.0
      %vm987 = vcmp.ge.f32.partialorder %v923, 0.0
      %vm988 = vcmp.ge.f32.partialorder %v924, 0.0
      %vm989 = vcmp.ge.f32.partialorder %v925, 0.0
      %vm990 = vcmp.ge.f32.partialorder %v926, 0.0
      %vm991 = vcmp.ge.f32.partialorder %v927, 0.0
      %vm992 = vcmp.ge.f32.partialorder %v928, 0.0
      %vm993 = vcmp.ge.f32.partialorder %v929, 0.0
      %vm994 = vcmp.ge.f32.partialorder %v930, 0.0
      %vm995 = vcmp.ge.f32.partialorder %v931, 0.0
      %vm996 = vcmp.ge.f32.partialorder %v932, 0.0
      %vm997 = vcmp.ge.f32.partialorder %v933, 0.0
      %vm998 = vcmp.ge.f32.partialorder %v934, 0.0
      %vm999 = vcmp.ge.f32.partialorder %v935, 0.0
      %vm1000 = vcmp.ge.f32.partialorder %v936, 0.0
      %vm1001 = vcmp.ge.f32.partialorder %v937, 0.0
      %vm1002 = vcmp.ge.f32.partialorder %v938, 0.0
      %vm1003 = vcmp.ge.f32.partialorder %v939, 0.0
      %vm1004 = vcmp.ge.f32.partialorder %v940, 0.0
      %vm1005 = vcmp.ge.f32.partialorder %v941, 0.0
      %vm1006 = vcmp.ge.f32.partialorder %v942, 0.0
      %vm1007 = vcmp.ge.f32.partialorder %v943, 0.0
      %vm1008 = vcmp.ge.f32.partialorder %v944, 0.0
      %vm1009 = vcmp.ge.f32.partialorder %v945, 0.0
      %vm1010 = vcmp.ge.f32.partialorder %v946, 0.0
      %vm1011 = vcmp.ge.f32.partialorder %v947, 0.0
      %vm1012 = vcmp.ge.f32.partialorder %v948, 0.0
      %vm1013 = vcmp.ge.f32.partialorder %v949, 0.0
      %vm1014 = vcmp.ge.f32.partialorder %v950, 0.0
      %vm1015 = vcmp.ge.f32.partialorder %v951, 0.0
      %vm1016 = vcmp.ge.f32.partialorder %v952, 0.0
      %vm1017 = vcmp.ge.f32.partialorder %v953, 0.0
      %vm1018 = vcmp.ge.f32.partialorder %v954, 0.0
      %vm1019 = vcmp.ge.f32.partialorder %v955, 0.0
      %vm1020 = vcmp.ge.f32.partialorder %v956, 0.0
      %vm1021 = vcmp.ge.f32.partialorder %v957, 0.0
      %vm1022 = vcmp.ge.f32.partialorder %v958, 0.0
      %vm1023 = vcmp.ge.f32.partialorder %v959, 0.0
      %vm1024 = vcmp.ge.f32.partialorder %v960, 0.0
      %vm1025 = vcmp.ge.f32.partialorder %v961, 0.0
      %vm1026 = vcmp.ge.f32.partialorder %v962, 0.0
      %vm1027 = vcmp.ge.f32.partialorder %v963, 0.0
      %vm1028 = vcmp.ge.f32.partialorder %v964, 0.0
      %vm1029 = vcmp.ge.f32.partialorder %v965, 0.0
      %vm1030 = vcmp.ge.f32.partialorder %v966, 0.0
      %vm1031 = vcmp.ge.f32.partialorder %v967, 0.0
      %vm1032 = vcmp.ge.f32.partialorder %v968, 0.0
      %vm1033 = vcmp.ge.f32.partialorder %v969, 0.0
      %vm1034 = vcmp.ge.f32.partialorder %v970, 0.0
      %vm1035 = vcmp.ge.f32.partialorder %v971, 0.0
      %vm1036 = vcmp.ge.f32.partialorder %v972, 0.0
      %vm1037 = vcmp.ge.f32.partialorder %v973, 0.0
      %vm1038 = vcmp.ge.f32.partialorder %v974, 0.0
      %vm1039 = vcmp.ge.f32.partialorder %v975, 0.0
      %vm1040 = vcmp.ge.f32.partialorder %v976, 0.0
      %vm1041 = vcmp.ge.f32.partialorder %v977, 0.0
      %vm1042 = vcmp.ge.f32.partialorder %v978, 0.0
      %vm1043 = vcmp.ge.f32.partialorder %v979, 0.0
      %vm1044 = vcmp.ge.f32.partialorder %v980, 0.0
      %vm1045 = vcmp.ge.f32.partialorder %v981, 0.0
      %vm1046 = vcmp.ge.f32.partialorder %v982, 0.0
      %v1047 = vmul.f32 %v919, 0.25
      %v1048 = vmul.f32 %v920, 0.25
      %v1049 = vmul.f32 %v921, 0.25
      %v1050 = vmul.f32 %v922, 0.25
      %v1051 = vmul.f32 %v923, 0.25
      %v1052 = vmul.f32 %v924, 0.25
      %v1053 = vmul.f32 %v925, 0.25
      %v1054 = vmul.f32 %v926, 0.25
      %v1055 = vmul.f32 %v927, 0.25
      %v1056 = vmul.f32 %v928, 0.25
      %v1057 = vmul.f32 %v929, 0.25
      %v1058 = vmul.f32 %v930, 0.25
      %v1059 = vmul.f32 %v931, 0.25
      %v1060 = vmul.f32 %v932, 0.25
      %v1061 = vmul.f32 %v933, 0.25
      %v1062 = vmul.f32 %v934, 0.25
      %v1063 = vmul.f32 %v935, 0.25
      %v1064 = vmul.f32 %v936, 0.25
      %v1065 = vmul.f32 %v937, 0.25
      %v1066 = vmul.f32 %v938, 0.25
      %v1067 = vmul.f32 %v939, 0.25
      %v1068 = vmul.f32 %v940, 0.25
      %v1069 = vmul.f32 %v941, 0.25
      %v1070 = vmul.f32 %v942, 0.25
      %v1071 = vmul.f32 %v943, 0.25
      %v1072 = vmul.f32 %v944, 0.25
      %v1073 = vmul.f32 %v945, 0.25
      %v1074 = vmul.f32 %v946, 0.25
      %v1075 = vmul.f32 %v947, 0.25
      %v1076 = vmul.f32 %v948, 0.25
      %v1077 = vmul.f32 %v949, 0.25
      %v1078 = vmul.f32 %v950, 0.25
      %v1079 = vmul.f32 %v951, 0.25
      %v1080 = vmul.f32 %v952, 0.25
      %v1081 = vmul.f32 %v953, 0.25
      %v1082 = vmul.f32 %v954, 0.25
      %v1083 = vmul.f32 %v955, 0.25
      %v1084 = vmul.f32 %v956, 0.25
      %v1085 = vmul.f32 %v957, 0.25
      %v1086 = vmul.f32 %v958, 0.25
      %v1087 = vmul.f32 %v959, 0.25
      %v1088 = vmul.f32 %v960, 0.25
      %v1089 = vmul.f32 %v961, 0.25
      %v1090 = vmul.f32 %v962, 0.25
      %v1091 = vmul.f32 %v963, 0.25
      %v1092 = vmul.f32 %v964, 0.25
      %v1093 = vmul.f32 %v965, 0.25
      %v1094 = vmul.f32 %v966, 0.25
      %v1095 = vmul.f32 %v967, 0.25
      %v1096 = vmul.f32 %v968, 0.25
      %v1097 = vmul.f32 %v969, 0.25
      %v1098 = vmul.f32 %v970, 0.25
      %v1099 = vmul.f32 %v971, 0.25
      %v1100 = vmul.f32 %v972, 0.25
      %v1101 = vmul.f32 %v973, 0.25
      %v1102 = vmul.f32 %v974, 0.25
      %v1103 = vmul.f32 %v975, 0.25
      %v1104 = vmul.f32 %v976, 0.25
      %v1105 = vmul.f32 %v977, 0.25
      %v1106 = vmul.f32 %v978, 0.25
      %v1107 = vmul.f32 %v979, 0.25
      %v1108 = vmul.f32 %v980, 0.25
      %v1109 = vmul.f32 %v981, 0.25
      %v1110 = vmul.f32 %v982, 0.25
      %v1111 = vsel %vm983, %v919, %v1047
      %v1112 = vsel %vm984, %v920, %v1048
      %v1113 = vsel %vm985, %v921, %v1049
      %v1114 = vsel %vm986, %v922, %v1050
      %v1115 = vsel %vm987, %v923, %v1051
      %v1116 = vsel %vm988, %v924, %v1052
      %v1117 = vsel %vm989, %v925, %v1053
      %v1118 = vsel %vm990, %v926, %v1054
      %v1119 = vsel %vm991, %v927, %v1055
      %v1120 = vsel %vm992, %v928, %v1056
      %v1121 = vsel %vm993, %v929, %v1057
      %v1122 = vsel %vm994, %v930, %v1058
      %v1123 = vsel %vm995, %v931, %v1059
      %v1124 = vsel %vm996, %v932, %v1060
      %v1125 = vsel %vm997, %v933, %v1061
      %v1126 = vsel %vm998, %v934, %v1062
      %v1127 = vsel %vm999, %v935, %v1063
      %v1128 = vsel %vm1000, %v936, %v1064
      %v1129 = vsel %vm1001, %v937, %v1065
      %v1130 = vsel %vm1002, %v938, %v1066
      %v1131 = vsel %vm1003, %v939, %v1067
      %v1132 = vsel %vm1004, %v940, %v1068
      %v1133 = vsel %vm1005, %v941, %v1069
      %v1134 = vsel %vm1006, %v942, %v1070
      %v1135 = vsel %vm1007, %v943, %v1071
      %v1136 = vsel %vm1008, %v944, %v1072
      %v1137 = vsel %vm1009, %v945, %v1073
      %v1138 = vsel %vm1010, %v946, %v1074
      %v1139 = vsel %vm1011, %v947, %v1075
      %v1140 = vsel %vm1012, %v948, %v1076
      %v1141 = vsel %vm1013, %v949, %v1077
      %v1142 = vsel %vm1014, %v950, %v1078
      %v1143 = vsel %vm1015, %v951, %v1079
      %v1144 = vsel %vm1016, %v952, %v1080
      %v1145 = vsel %vm1017, %v953, %v1081
      %v1146 = vsel %vm1018, %v954, %v1082
      %v1147 = vsel %vm1019, %v955, %v1083
      %v1148 = vsel %vm1020, %v956, %v1084
      %v1149 = vsel %vm1021, %v957, %v1085
      %v1150 = vsel %vm1022, %v958, %v1086
      %v1151 = vsel %vm1023, %v959, %v1087
      %v1152 = vsel %vm1024, %v960, %v1088
      %v1153 = vsel %vm1025, %v961, %v1089
      %v1154 = vsel %vm1026, %v962, %v1090
      %v1155 = vsel %vm1027, %v963, %v1091
      %v1156 = vsel %vm1028, %v964, %v1092
      %v1157 = vsel %vm1029, %v965, %v1093
      %v1158 = vsel %vm1030, %v966, %v1094
      %v1159 = vsel %vm1031, %v967, %v1095
      %v1160 = vsel %vm1032, %v968, %v1096
      %v1161 = vsel %vm1033, %v969, %v1097
      %v1162 = vsel %vm1034, %v970, %v1098
      %v1163 = vsel %vm1035, %v971, %v1099
      %v1164 = vsel %vm1036, %v972, %v1100
      %v1165 = vsel %vm1037, %v973, %v1101
      %v1166 = vsel %vm1038, %v974, %v1102
      %v1167 = vsel %vm1039, %v975, %v1103
      %v1168 = vsel %vm1040, %v976, %v1104
      %v1169 = vsel %vm1041, %v977, %v1105
      %v1170 = vsel %vm1042, %v978, %v1106
      %v1171 = vsel %vm1043, %v979, %v1107
      %v1172 = vsel %vm1044, %v980, %v1108
      %v1173 = vsel %vm1045, %v981, %v1109
      %v1174 = vsel %vm1046, %v982, %v1110
      %v1175 = vpack.c.bf16 %v1112, %v1111
      %v1176 = vpack.c.bf16 %v1114, %v1113
      %v1177 = vpack.c.bf16 %v1116, %v1115
      %v1178 = vpack.c.bf16 %v1118, %v1117
      %v1179 = vpack.c.bf16 %v1120, %v1119
      %v1180 = vpack.c.bf16 %v1122, %v1121
      %v1181 = vpack.c.bf16 %v1124, %v1123
      %v1182 = vpack.c.bf16 %v1126, %v1125
      %v1183 = vpack.c.bf16 %v1128, %v1127
      %v1184 = vpack.c.bf16 %v1130, %v1129
      %v1185 = vpack.c.bf16 %v1132, %v1131
      %v1186 = vpack.c.bf16 %v1134, %v1133
      %v1187 = vpack.c.bf16 %v1136, %v1135
      %v1188 = vpack.c.bf16 %v1138, %v1137
      %v1189 = vpack.c.bf16 %v1140, %v1139
      %v1190 = vpack.c.bf16 %v1142, %v1141
      %v1191 = vpack.c.bf16 %v1144, %v1143
      %v1192 = vpack.c.bf16 %v1146, %v1145
      %v1193 = vpack.c.bf16 %v1148, %v1147
      %v1194 = vpack.c.bf16 %v1150, %v1149
      %v1195 = vpack.c.bf16 %v1152, %v1151
      %v1196 = vpack.c.bf16 %v1154, %v1153
      %v1197 = vpack.c.bf16 %v1156, %v1155
      %v1198 = vpack.c.bf16 %v1158, %v1157
      %v1199 = vpack.c.bf16 %v1160, %v1159
      %v1200 = vpack.c.bf16 %v1162, %v1161
      %v1201 = vpack.c.bf16 %v1164, %v1163
      %v1202 = vpack.c.bf16 %v1166, %v1165
      %v1203 = vpack.c.bf16 %v1168, %v1167
      %v1204 = vpack.c.bf16 %v1170, %v1169
      %v1205 = vpack.c.bf16 %v1172, %v1171
      %v1206 = vpack.c.bf16 %v1174, %v1173
      %v1239 = vunpack.c.l.b16 %v1175
      %v1240 = vunpack.c.h.b16 %v1175
      %v1241 = vunpack.c.l.b16 %v1176
      %v1242 = vunpack.c.h.b16 %v1176
      %v1243 = vunpack.c.l.b16 %v1177
      %v1244 = vunpack.c.h.b16 %v1177
      %v1245 = vunpack.c.l.b16 %v1178
      %v1246 = vunpack.c.h.b16 %v1178
      %v1247 = vunpack.c.l.b16 %v1179
      %v1248 = vunpack.c.h.b16 %v1179
      %v1249 = vunpack.c.l.b16 %v1180
      %v1250 = vunpack.c.h.b16 %v1180
      %v1251 = vunpack.c.l.b16 %v1181
      %v1252 = vunpack.c.h.b16 %v1181
      %v1253 = vunpack.c.l.b16 %v1182
      %v1254 = vunpack.c.h.b16 %v1182
      %v1255 = vunpack.c.l.b16 %v1183
      %v1256 = vunpack.c.h.b16 %v1183
      %v1257 = vunpack.c.l.b16 %v1184
      %v1258 = vunpack.c.h.b16 %v1184
      %v1259 = vunpack.c.l.b16 %v1185
      %v1260 = vunpack.c.h.b16 %v1185
      %v1261 = vunpack.c.l.b16 %v1186
      %v1262 = vunpack.c.h.b16 %v1186
      %v1263 = vunpack.c.l.b16 %v1187
      %v1264 = vunpack.c.h.b16 %v1187
      %v1265 = vunpack.c.l.b16 %v1188
      %v1266 = vunpack.c.h.b16 %v1188
      %v1267 = vunpack.c.l.b16 %v1189
      %v1268 = vunpack.c.h.b16 %v1189
      %v1269 = vunpack.c.l.b16 %v1190
      %v1270 = vunpack.c.h.b16 %v1190
      %v1271 = vunpack.c.l.b16 %v1191
      %v1272 = vunpack.c.h.b16 %v1191
      %v1273 = vunpack.c.l.b16 %v1192
      %v1274 = vunpack.c.h.b16 %v1192
      %v1275 = vunpack.c.l.b16 %v1193
      %v1276 = vunpack.c.h.b16 %v1193
      %v1277 = vunpack.c.l.b16 %v1194
      %v1278 = vunpack.c.h.b16 %v1194
      %v1279 = vunpack.c.l.b16 %v1195
      %v1280 = vunpack.c.h.b16 %v1195
      %v1281 = vunpack.c.l.b16 %v1196
      %v1282 = vunpack.c.h.b16 %v1196
      %v1283 = vunpack.c.l.b16 %v1197
      %v1284 = vunpack.c.h.b16 %v1197
      %v1285 = vunpack.c.l.b16 %v1198
      %v1286 = vunpack.c.h.b16 %v1198
      %v1287 = vunpack.c.l.b16 %v1199
      %v1288 = vunpack.c.h.b16 %v1199
      %v1289 = vunpack.c.l.b16 %v1200
      %v1290 = vunpack.c.h.b16 %v1200
      %v1291 = vunpack.c.l.b16 %v1201
      %v1292 = vunpack.c.h.b16 %v1201
      %v1293 = vunpack.c.l.b16 %v1202
      %v1294 = vunpack.c.h.b16 %v1202
      %v1295 = vunpack.c.l.b16 %v1203
      %v1296 = vunpack.c.h.b16 %v1203
      %v1297 = vunpack.c.l.b16 %v1204
      %v1298 = vunpack.c.h.b16 %v1204
      %v1299 = vunpack.c.l.b16 %v1205
      %v1300 = vunpack.c.h.b16 %v1205
      %v1301 = vunpack.c.l.b16 %v1206
      %v1302 = vunpack.c.h.b16 %v1206
      %v1303 = vpack.c.b16 %v1239, %v1239
      %v1304 = vpack.c.b16 %v1240, %v1240
      %v1305 = vpack.c.b16 %v1241, %v1241
      %v1306 = vpack.c.b16 %v1242, %v1242
      %v1307 = vpack.c.b16 %v1243, %v1243
      %v1308 = vpack.c.b16 %v1244, %v1244
      %v1309 = vpack.c.b16 %v1245, %v1245
      %v1310 = vpack.c.b16 %v1246, %v1246
      %v1311 = vpack.c.b16 %v1247, %v1247
      %v1312 = vpack.c.b16 %v1248, %v1248
      %v1313 = vpack.c.b16 %v1249, %v1249
      %v1314 = vpack.c.b16 %v1250, %v1250
      %v1315 = vpack.c.b16 %v1251, %v1251
      %v1316 = vpack.c.b16 %v1252, %v1252
      %v1317 = vpack.c.b16 %v1253, %v1253
      %v1318 = vpack.c.b16 %v1254, %v1254
      %v1319 = vpack.c.b16 %v1255, %v1255
      %v1320 = vpack.c.b16 %v1256, %v1256
      %v1321 = vpack.c.b16 %v1257, %v1257
      %v1322 = vpack.c.b16 %v1258, %v1258
      %v1323 = vpack.c.b16 %v1259, %v1259
      %v1324 = vpack.c.b16 %v1260, %v1260
      %v1325 = vpack.c.b16 %v1261, %v1261
      %v1326 = vpack.c.b16 %v1262, %v1262
      %v1327 = vpack.c.b16 %v1263, %v1263
      %v1328 = vpack.c.b16 %v1264, %v1264
      %v1329 = vpack.c.b16 %v1265, %v1265
      %v1330 = vpack.c.b16 %v1266, %v1266
      %v1331 = vpack.c.b16 %v1267, %v1267
      %v1332 = vpack.c.b16 %v1268, %v1268
      %v1333 = vpack.c.b16 %v1269, %v1269
      %v1334 = vpack.c.b16 %v1270, %v1270
      %v1335 = vpack.c.b16 %v1271, %v1271
      %v1336 = vpack.c.b16 %v1272, %v1272
      %v1337 = vpack.c.b16 %v1273, %v1273
      %v1338 = vpack.c.b16 %v1274, %v1274
      %v1339 = vpack.c.b16 %v1275, %v1275
      %v1340 = vpack.c.b16 %v1276, %v1276
      %v1341 = vpack.c.b16 %v1277, %v1277
      %v1342 = vpack.c.b16 %v1278, %v1278
      %v1343 = vpack.c.b16 %v1279, %v1279
      %v1344 = vpack.c.b16 %v1280, %v1280
      %v1345 = vpack.c.b16 %v1281, %v1281
      %v1346 = vpack.c.b16 %v1282, %v1282
      %v1347 = vpack.c.b16 %v1283, %v1283
      %v1348 = vpack.c.b16 %v1284, %v1284
      %v1349 = vpack.c.b16 %v1285, %v1285
      %v1350 = vpack.c.b16 %v1286, %v1286
      %v1351 = vpack.c.b16 %v1287, %v1287
      %v1352 = vpack.c.b16 %v1288, %v1288
      %v1353 = vpack.c.b16 %v1289, %v1289
      %v1354 = vpack.c.b16 %v1290, %v1290
      %v1355 = vpack.c.b16 %v1291, %v1291
      %v1356 = vpack.c.b16 %v1292, %v1292
      %v1357 = vpack.c.b16 %v1293, %v1293
      %v1358 = vpack.c.b16 %v1294, %v1294
      %v1359 = vpack.c.b16 %v1295, %v1295
      %v1360 = vpack.c.b16 %v1296, %v1296
      %v1361 = vpack.c.b16 %v1297, %v1297
      %v1362 = vpack.c.b16 %v1298, %v1298
      %v1363 = vpack.c.b16 %v1299, %v1299
      %v1364 = vpack.c.b16 %v1300, %v1300
      %v1365 = vpack.c.b16 %v1301, %v1301
      %v1366 = vpack.c.b16 %v1302, %v1302
      %1431 = vst [vmem:[%s221] sm:$0xf] %v1303
      %1432 = vst [vmem:[%s221 + $0x4] sm:$0xf] %v1304
      %1433 = vst [vmem:[%s221 + $0x8] sm:$0xf] %v1305
      %1434 = vst [vmem:[%s221 + $0xc] sm:$0xf] %v1306
      %1435 = vst [vmem:[%s221 + $0x10] sm:$0xf] %v1307
      %1436 = vst [vmem:[%s221 + $0x14] sm:$0xf] %v1308
      %1437 = vst [vmem:[%s221 + $0x18] sm:$0xf] %v1309
      %1438 = vst [vmem:[%s221 + $0x1c] sm:$0xf] %v1310
      %1439 = vst [vmem:[%s221 + $0x20] sm:$0xf] %v1311
      %1440 = vst [vmem:[%s221 + $0x24] sm:$0xf] %v1312
      %1441 = vst [vmem:[%s221 + $0x28] sm:$0xf] %v1313
      %1442 = vst [vmem:[%s221 + $0x2c] sm:$0xf] %v1314
      %1443 = vst [vmem:[%s221 + $0x30] sm:$0xf] %v1315
      %1444 = vst [vmem:[%s221 + $0x34] sm:$0xf] %v1316
      %1445 = vst [vmem:[%s221 + $0x38] sm:$0xf] %v1317
      %1446 = vst [vmem:[%s221 + $0x3c] sm:$0xf] %v1318
      %1447 = vst [vmem:[%s221 + $0x40] sm:$0xf] %v1319
      %1448 = vst [vmem:[%s221 + $0x44] sm:$0xf] %v1320
      %1449 = vst [vmem:[%s221 + $0x48] sm:$0xf] %v1321
      %1450 = vst [vmem:[%s221 + $0x4c] sm:$0xf] %v1322
      %1451 = vst [vmem:[%s221 + $0x50] sm:$0xf] %v1323
      %1452 = vst [vmem:[%s221 + $0x54] sm:$0xf] %v1324
      %1453 = vst [vmem:[%s221 + $0x58] sm:$0xf] %v1325
      %1454 = vst [vmem:[%s221 + $0x5c] sm:$0xf] %v1326
      %1455 = vst [vmem:[%s221 + $0x60] sm:$0xf] %v1327
      %1456 = vst [vmem:[%s221 + $0x64] sm:$0xf] %v1328
      %1457 = vst [vmem:[%s221 + $0x68] sm:$0xf] %v1329
      %1458 = vst [vmem:[%s221 + $0x6c] sm:$0xf] %v1330
      %1459 = vst [vmem:[%s221 + $0x70] sm:$0xf] %v1331
      %1460 = vst [vmem:[%s221 + $0x74] sm:$0xf] %v1332
      %1461 = vst [vmem:[%s221 + $0x78] sm:$0xf] %v1333
      %1462 = vst [vmem:[%s221 + $0x7c] sm:$0xf] %v1334
      %1463 = vst [vmem:[%s221 + $0x80] sm:$0xf] %v1335
      %1464 = vst [vmem:[%s221 + $0x84] sm:$0xf] %v1336
      %1465 = vst [vmem:[%s221 + $0x88] sm:$0xf] %v1337
      %1466 = vst [vmem:[%s221 + $0x8c] sm:$0xf] %v1338
      %1467 = vst [vmem:[%s221 + $0x90] sm:$0xf] %v1339
      %1468 = vst [vmem:[%s221 + $0x94] sm:$0xf] %v1340
      %1469 = vst [vmem:[%s221 + $0x98] sm:$0xf] %v1341
      %1470 = vst [vmem:[%s221 + $0x9c] sm:$0xf] %v1342
      %1471 = vst [vmem:[%s221 + $0xa0] sm:$0xf] %v1343
      %1472 = vst [vmem:[%s221 + $0xa4] sm:$0xf] %v1344
      %1473 = vst [vmem:[%s221 + $0xa8] sm:$0xf] %v1345
      %1474 = vst [vmem:[%s221 + $0xac] sm:$0xf] %v1346
      %1475 = vst [vmem:[%s221 + $0xb0] sm:$0xf] %v1347
      %1476 = vst [vmem:[%s221 + $0xb4] sm:$0xf] %v1348
      %1477 = vst [vmem:[%s221 + $0xb8] sm:$0xf] %v1349
      %1478 = vst [vmem:[%s221 + $0xbc] sm:$0xf] %v1350
      %1479 = vst [vmem:[%s221 + $0xc0] sm:$0xf] %v1351
      %1480 = vst [vmem:[%s221 + $0xc4] sm:$0xf] %v1352
      %1481 = vst [vmem:[%s221 + $0xc8] sm:$0xf] %v1353
      %1482 = vst [vmem:[%s221 + $0xcc] sm:$0xf] %v1354
      %1483 = vst [vmem:[%s221 + $0xd0] sm:$0xf] %v1355
      %1484 = vst [vmem:[%s221 + $0xd4] sm:$0xf] %v1356
      %1485 = vst [vmem:[%s221 + $0xd8] sm:$0xf] %v1357
      %1486 = vst [vmem:[%s221 + $0xdc] sm:$0xf] %v1358
      %1487 = vst [vmem:[%s221 + $0xe0] sm:$0xf] %v1359
      %1488 = vst [vmem:[%s221 + $0xe4] sm:$0xf] %v1360
      %1489 = vst [vmem:[%s221 + $0xe8] sm:$0xf] %v1361
      %1490 = vst [vmem:[%s221 + $0xec] sm:$0xf] %v1362
      %1491 = vst [vmem:[%s221 + $0xf0] sm:$0xf] %v1363
      %1492 = vst [vmem:[%s221 + $0xf4] sm:$0xf] %v1364
      %1493 = vst [vmem:[%s221 + $0xf8] sm:$0xf] %v1365
      %1494 = vst [vmem:[%s221 + $0xfc] sm:$0xf] %v1366
      %s1495 = smul.u32 64, %s15
      %p1496 = scmp.lt.s32.totalorder %s1495, 255
      %s1497 = scalar_select %p1496, %s1495, 255
      %s1498 = smul.addr %s1497, 4
      %s1499 = scalar_lea.vmem %s4, %s1498
      // Predicated region
      $region37: #{closed_call.57} parent=35 // pred_check
        %p1500 = pneg %p127
      $region38: #{closed_call.57} parent=35 // pred_check_branch
        %1502 = sbr.rel (%p1500) target = $region40
      $region39: #{closed_call.57} parent=35 // pred_region
        %s1503 = smul.u32 64, %s15
      $region40: #{closed_call.57} parent=35 // pred_fallthru
        _
    $region36: #{closed_call.57} parent=5 // pred_fallthru
      _
    %p1504 = scmp.le.s32.totalorder 2, %s10
    // Predicated region
    $region41: #{closed_call.57} parent=5 // pred_check
      %p1505 = pneg %p1504
    $region42: #{closed_call.57} parent=5 // pred_check_branch
      %1507 = sbr.rel (%p1505) target = $region44
    $region43: #{closed_call.57} parent=5 // pred_region
      %s1508 = ssub.s32 %s10, 2
      // Predicated region
      $region45: #{closed_call.57} parent=43 // pred_check
        %p1509 = pneg %p133
      $region46: #{closed_call.57} parent=43 // pred_check_branch
        %1511 = sbr.rel (%p1509) target = $region48
      $region47: #{closed_call.57} parent=43 // pred_region
        %s1512 = smul.u32 64, %s16
        %p1513 = scmp.lt.s32.totalorder %s1512, 255
        %s1514 = scalar_select %p1513, %s1512, 255
        %s1515 = smul.addr %s1514, 4
        %s1516 = scalar_lea.vmem %s4, %s1515
      $region48: #{closed_call.57} parent=43 // pred_fallthru
        _
    $region44: #{closed_call.57} parent=5 // pred_fallthru
      _
  $region6: #{closed_call.57} parent=0 // loop_footer
    %s14 = sadd.s32 1, %s10
  $region7: #{closed_call.57} parent=0 // loop_footer_branch
    %9 = sbr.rel target = $region3
  $region8: #{closed_call.57} parent=0 // loop_exit
    _

// kernel: closed_call.58
$region0: #{closed_call.58}
  #allocation0 [shape = 'u32[]', space=smem, size = 0x4, offset = 0x4, fixed_abs, tag = 'smem constant byte address 0x4 - core index']
  #allocation1 [shape = 'u32[144,128]{1,0:T(1,128)}', space=vmem, size = 0x12000, scoped, tag = 'internal scratch']
  %s0 = inlined_call_operand.vmem [shape: bf16[2048,1152], index: 0, kind: input, shape index: {}]
  %s1 = inlined_call_operand.vmem [shape: bf16[1152,128], index: 1, kind: input, shape index: {}]
  %s2 = inlined_call_operand.vmem [shape: f32[1,128], index: 2, kind: input, shape index: {}]
  %s3 = inlined_call_operand.vmem [shape: bf16[2048,128], index: 3, kind: output, shape index: {}]
  %s4 = sld [smem:[#allocation0]]
  $region45: #{closed_call.58} parent=0
    _
  %s6 = ssub.s32 1, %s4
  %s7 = scalar_select 0, %s6, %s4
  loop: start=0, step=1, limit=6
  $region2: #{closed_call.58} parent=0 // loop_pre_header
    _
  $region3: #{closed_call.58} parent=0 // loop_header
    %s9 = sphi 0, %s13
    %p10 = scmp.ge.s32.totalorder %s9, 6
    %s19 = sphi 0, %s21
    %s22 = sphi 0, %s19
    %s23 = sphi 0, %s22
    %s39 = sphi 0, %s23
    %s43 = sphi 0, %s43
    %s45 = sphi 0, %s43
    %s46 = sphi 0, %s45
    %s60 = sphi 0, %s46
    %s64 = sphi 0, %s64
    %s66 = sphi 0, %s64
    %s67 = sphi 0, %s66
    %s81 = sphi 0, %s67
    %s87 = sphi 0, %s89
    %s90 = sphi 0, %s87
    %s91 = sphi 0, %s90
    %s107 = sphi 0, %s91
  $region4: #{closed_call.58} parent=0 // loop_header_branch
    %12 = sbr.rel (%p10) target = $region8
  $region5: #{closed_call.58} parent=0 // loop_body
    %s14 = ssub.s32 %s9, 1
    %s15 = ssub.s32 %s9, 2
    %s16 = sadd.s32 %s9, 1
    %s17 = ssub.s32 %s9, %s16
    %p18 = scmp.eq.s32.totalorder %s17, 0
    %s20 = sadd.s32 %s19, 1
    %s21 = scalar_select %p18, %s19, %s20
    %p24 = pneg %p18
    %p25 = scmp.eq.s32.totalorder %s9, 3
    %p26 = por %p24, %p25
    %p27 = scmp.ne.s32.totalorder %s19, %s22
    %p28 = scmp.eq.s32.totalorder %s9, 0
    %p29 = por %p27, %p28
    %p30 = scmp.ne.s32.totalorder %s19, %s22
    %p31 = scmp.eq.s32.totalorder %s14, 3
    %p32 = por %p30, %p31
    %p33 = scmp.ne.s32.totalorder %s22, %s23
    %p34 = scmp.eq.s32.totalorder %s14, 0
    %p35 = por %p33, %p34
    %p36 = scmp.ne.s32.totalorder %s22, %s23
    %p37 = scmp.eq.s32.totalorder %s15, 3
    %p38 = por %p36, %p37
    %p40 = scmp.ne.s32.totalorder %s23, %s39
    %p41 = scmp.eq.s32.totalorder %s15, 0
    %p42 = por %p40, %p41
    %s44 = sadd.s32 %s43, 1
    %p47 = scmp.eq.s32.totalorder %s9, 3
    %p48 = scmp.ne.s32.totalorder %s43, %s45
    %p49 = scmp.eq.s32.totalorder %s9, 0
    %p50 = por %p48, %p49
    %p51 = scmp.ne.s32.totalorder %s43, %s45
    %p52 = scmp.eq.s32.totalorder %s14, 3
    %p53 = por %p51, %p52
    %p54 = scmp.ne.s32.totalorder %s45, %s46
    %p55 = scmp.eq.s32.totalorder %s14, 0
    %p56 = por %p54, %p55
    %p57 = scmp.ne.s32.totalorder %s45, %s46
    %p58 = scmp.eq.s32.totalorder %s15, 3
    %p59 = por %p57, %p58
    %p61 = scmp.ne.s32.totalorder %s46, %s60
    %p62 = scmp.eq.s32.totalorder %s15, 0
    %p63 = por %p61, %p62
    %s65 = sadd.s32 %s64, 1
    %p68 = scmp.eq.s32.totalorder %s9, 3
    %p69 = scmp.ne.s32.totalorder %s64, %s66
    %p70 = scmp.eq.s32.totalorder %s9, 0
    %p71 = por %p69, %p70
    %p72 = scmp.ne.s32.totalorder %s64, %s66
    %p73 = scmp.eq.s32.totalorder %s14, 3
    %p74 = por %p72, %p73
    %p75 = scmp.ne.s32.totalorder %s66, %s67
    %p76 = scmp.eq.s32.totalorder %s14, 0
    %p77 = por %p75, %p76
    %p78 = scmp.ne.s32.totalorder %s66, %s67
    %p79 = scmp.eq.s32.totalorder %s15, 3
    %p80 = por %p78, %p79
    %p82 = scmp.ne.s32.totalorder %s67, %s81
    %p83 = scmp.eq.s32.totalorder %s15, 0
    %p84 = por %p82, %p83
    %s85 = ssub.s32 %s9, %s16
    %p86 = scmp.eq.s32.totalorder %s85, 0
    %s88 = sadd.s32 %s87, 1
    %s89 = scalar_select %p86, %s87, %s88
    %p92 = pneg %p86
    %p93 = scmp.eq.s32.totalorder %s9, 3
    %p94 = por %p92, %p93
    %p95 = scmp.ne.s32.totalorder %s87, %s90
    %p96 = scmp.eq.s32.totalorder %s9, 0
    %p97 = por %p95, %p96
    %p98 = scmp.ne.s32.totalorder %s87, %s90
    %p99 = scmp.eq.s32.totalorder %s14, 3
    %p100 = por %p98, %p99
    %p101 = scmp.ne.s32.totalorder %s90, %s91
    %p102 = scmp.eq.s32.totalorder %s14, 0
    %p103 = por %p101, %p102
    %p104 = scmp.ne.s32.totalorder %s90, %s91
    %p105 = scmp.eq.s32.totalorder %s15, 3
    %p106 = por %p104, %p105
    %p108 = scmp.ne.s32.totalorder %s91, %s107
    %p109 = scmp.eq.s32.totalorder %s15, 0
    %p110 = por %p108, %p109
    %p111 = scmp.le.s32.totalorder 1, %s9
    %p112 = scmp.lt.s32.totalorder %s9, 5
    %p113 = pnand %p111, %p112
    %p114 = pneg %p113
    // Predicated region
    $region9: #{closed_call.58} parent=5 // pred_check
      _
    $region10: #{closed_call.58} parent=5 // pred_check_branch
      %116 = sbr.rel (%p113) target = $region12
    $region11: #{closed_call.58} parent=5 // pred_region
      %s117 = ssub.s32 %s9, 1
      // Predicated region
      $region13: #{closed_call.58} parent=11 // pred_check
        %p118 = pneg %p56
      $region14: #{closed_call.58} parent=11 // pred_check_branch
        %120 = sbr.rel (%p118) target = $region16
      $region15: #{closed_call.58} parent=11 // pred_region
        _
      $region16: #{closed_call.58} parent=11 // pred_fallthru
        _
      // Predicated region
      $region17: #{closed_call.58} parent=11 // pred_check
        %p121 = pneg %p77
      $region18: #{closed_call.58} parent=11 // pred_check_branch
        %123 = sbr.rel (%p121) target = $region20
      $region19: #{closed_call.58} parent=11 // pred_region
        _
      $region20: #{closed_call.58} parent=11 // pred_fallthru
        _
    $region12: #{closed_call.58} parent=5 // pred_fallthru
      _
    %p124 = scmp.lt.s32.totalorder %s9, 4
    // Predicated region
    $region21: #{closed_call.58} parent=5 // pred_check
      %p125 = pneg %p124
    $region22: #{closed_call.58} parent=5 // pred_check_branch
      %127 = sbr.rel (%p125) target = $region24
    $region23: #{closed_call.58} parent=5 // pred_region
      // Predicated region
      $region25: #{closed_call.58} parent=23 // pred_check
        %p128 = pneg %p29
      $region26: #{closed_call.58} parent=23 // pred_check_branch
        %130 = sbr.rel (%p128) target = $region28
      $region27: #{closed_call.58} parent=23 // pred_region
        %s131 = smul.u32 64, %s9
        %p132 = scmp.lt.s32.totalorder %s131, 255
        %s133 = scalar_select %p132, %s131, 255
        %s134 = smul.addr %s133, 9
        %s135 = smul.addr %s134, 4
        %s136 = scalar_lea.vmem %s0, %s135
        %s137 = smul.u32 64, %s9
      $region28: #{closed_call.58} parent=23 // pred_fallthru
        _
    $region24: #{closed_call.58} parent=5 // pred_fallthru
      _
    %p138 = scmp.le.s32.totalorder 1, %s9
    %p139 = scmp.lt.s32.totalorder %s9, 5
    %p140 = pnand %p138, %p139
    %p141 = pneg %p140
    // Predicated region
    $region29: #{closed_call.58} parent=5 // pred_check
      _
    $region30: #{closed_call.58} parent=5 // pred_check_branch
      %143 = sbr.rel (%p140) target = $region32
    $region31: #{closed_call.58} parent=5 // pred_region
      %s144 = ssub.s32 %s9, 1
      %s145 = smul.u32 64, %s14
      %p146 = scmp.lt.s32.totalorder %s145, 255
      %s147 = scalar_select %p146, %s145, 255
      %s148 = smul.addr %s147, 9
      %s149 = smul.addr %s148, 4
      %s150 = scalar_lea.vmem %s0, %s149
      %p151 = pneg %p35
      %p152 = pneg %p32
      %p153 = pneg %p56
      %p154 = pneg %p53
      %p155 = pneg %p77
      %p156 = pneg %p74
      %p157 = pneg %p103
      %p158 = pneg %p100
      %s159 = smul.u32 64, %s14
      %p160 = scmp.lt.s32.totalorder %s159, 255
      %s161 = scalar_select %p160, %s159, 255
      %s162 = smul.addr %s161, 4
      %s163 = scalar_lea.vmem %s3, %s162
      %s164 = smul.u32 64, %s14
      %p165 = scmp.lt.s32.totalorder %s164, 255
      %s166 = scalar_select %p165, %s164, 255
      %s167 = smul.addr %s166, 9
      %s168 = smul.addr %s167, 4
      %s169 = scalar_lea.vmem %s0, %s168
      %s170 = smul.u32 64, %s14
      %s171 = smul.u32 64, %s14
      %p172 = scmp.lt.s32.totalorder %s171, 255
      %s173 = scalar_select %p172, %s171, 255
      %s174 = smul.addr %s173, 4
      %s175 = scalar_lea.vmem %s3, %s174
      %s176 = smul.u32 64, %s14
      %v178 = vld [vmem:[%s169] sm:$0xff]
      %v179 = vld [vmem:[%s169 + $0x8] sm:$0xff]
      %v180 = vld [vmem:[%s169 + $0x10] sm:$0xff]
      %v181 = vld [vmem:[%s169 + $0x18] sm:$0xff]
      %v182 = vld [vmem:[%s169 + $0x20] sm:$0xf]
      %v183 = vld [vmem:[%s169 + $0x24] sm:$0xff]
      %v184 = vld [vmem:[%s169 + $0x2c] sm:$0xff]
      %v185 = vld [vmem:[%s169 + $0x34] sm:$0xff]
      %v186 = vld [vmem:[%s169 + $0x3c] sm:$0xff]
      %v187 = vld [vmem:[%s169 + $0x44] sm:$0xf]
      %v188 = vld [vmem:[%s169 + $0x48] sm:$0xff]
      %v189 = vld [vmem:[%s169 + $0x50] sm:$0xff]
      %v190 = vld [vmem:[%s169 + $0x58] sm:$0xff]
      %v191 = vld [vmem:[%s169 + $0x60] sm:$0xff]
      %v192 = vld [vmem:[%s169 + $0x68] sm:$0xf]
      %v193 = vld [vmem:[%s169 + $0x6c] sm:$0xff]
      %v194 = vld [vmem:[%s169 + $0x74] sm:$0xff]
      %v195 = vld [vmem:[%s169 + $0x7c] sm:$0xff]
      %v196 = vld [vmem:[%s169 + $0x84] sm:$0xff]
      %v197 = vld [vmem:[%s169 + $0x8c] sm:$0xf]
      %v198 = vld [vmem:[%s169 + $0x90] sm:$0xff]
      %v199 = vld [vmem:[%s169 + $0x98] sm:$0xff]
      %v200 = vld [vmem:[%s169 + $0xa0] sm:$0xff]
      %v201 = vld [vmem:[%s169 + $0xa8] sm:$0xff]
      %v202 = vld [vmem:[%s169 + $0xb0] sm:$0xf]
      %v203 = vld [vmem:[%s169 + $0xb4] sm:$0xff]
      %v204 = vld [vmem:[%s169 + $0xbc] sm:$0xff]
      %v205 = vld [vmem:[%s169 + $0xc4] sm:$0xff]
      %v206 = vld [vmem:[%s169 + $0xcc] sm:$0xff]
      %v207 = vld [vmem:[%s169 + $0xd4] sm:$0xf]
      %v208 = vld [vmem:[%s169 + $0xd8] sm:$0xff]
      %v209 = vld [vmem:[%s169 + $0xe0] sm:$0xff]
      %v210 = vld [vmem:[%s169 + $0xe8] sm:$0xff]
      %v211 = vld [vmem:[%s169 + $0xf0] sm:$0xff]
      %v212 = vld [vmem:[%s169 + $0xf8] sm:$0xf]
      %v213 = vld [vmem:[%s169 + $0xfc] sm:$0xff]
      %v214 = vld [vmem:[%s169 + $0x104] sm:$0xff]
      %v215 = vld [vmem:[%s169 + $0x10c] sm:$0xff]
      %v216 = vld [vmem:[%s169 + $0x114] sm:$0xff]
      %v217 = vld [vmem:[%s169 + $0x11c] sm:$0xf]
      %v218 = vld [vmem:[%s169 + $0x120] sm:$0xff]
      %v219 = vld [vmem:[%s169 + $0x128] sm:$0xff]
      %v220 = vld [vmem:[%s169 + $0x130] sm:$0xff]
      %v221 = vld [vmem:[%s169 + $0x138] sm:$0xff]
      %v222 = vld [vmem:[%s169 + $0x140] sm:$0xf]
      %v223 = vld [vmem:[%s169 + $0x144] sm:$0xff]
      %v224 = vld [vmem:[%s169 + $0x14c] sm:$0xff]
      %v225 = vld [vmem:[%s169 + $0x154] sm:$0xff]
      %v226 = vld [vmem:[%s169 + $0x15c] sm:$0xff]
      %v227 = vld [vmem:[%s169 + $0x164] sm:$0xf]
      %v228 = vld [vmem:[%s169 + $0x168] sm:$0xff]
      %v229 = vld [vmem:[%s169 + $0x170] sm:$0xff]
      %v230 = vld [vmem:[%s169 + $0x178] sm:$0xff]
      %v231 = vld [vmem:[%s169 + $0x180] sm:$0xff]
      %v232 = vld [vmem:[%s169 + $0x188] sm:$0xf]
      %v233 = vld [vmem:[%s169 + $0x18c] sm:$0xff]
      %v234 = vld [vmem:[%s169 + $0x194] sm:$0xff]
      %v235 = vld [vmem:[%s169 + $0x19c] sm:$0xff]
      %v236 = vld [vmem:[%s169 + $0x1a4] sm:$0xff]
      %v237 = vld [vmem:[%s169 + $0x1ac] sm:$0xf]
      %v238 = vld [vmem:[%s169 + $0x1b0] sm:$0xff]
      %v239 = vld [vmem:[%s169 + $0x1b8] sm:$0xff]
      %v240 = vld [vmem:[%s169 + $0x1c0] sm:$0xff]
      %v241 = vld [vmem:[%s169 + $0x1c8] sm:$0xff]
      %v242 = vld [vmem:[%s169 + $0x1d0] sm:$0xf]
      %v243 = vld [vmem:[%s169 + $0x1d4] sm:$0xff]
      %v244 = vld [vmem:[%s169 + $0x1dc] sm:$0xff]
      %v245 = vld [vmem:[%s169 + $0x1e4] sm:$0xff]
      %v246 = vld [vmem:[%s169 + $0x1ec] sm:$0xff]
      %v247 = vld [vmem:[%s169 + $0x1f4] sm:$0xf]
      %v248 = vld [vmem:[%s169 + $0x1f8] sm:$0xff]
      %v249 = vld [vmem:[%s169 + $0x200] sm:$0xff]
      %v250 = vld [vmem:[%s169 + $0x208] sm:$0xff]
      %v251 = vld [vmem:[%s169 + $0x210] sm:$0xff]
      %v252 = vld [vmem:[%s169 + $0x218] sm:$0xf]
      %v253 = vld [vmem:[%s169 + $0x21c] sm:$0xff]
      %v254 = vld [vmem:[%s169 + $0x224] sm:$0xff]
      %v255 = vld [vmem:[%s169 + $0x22c] sm:$0xff]
      %v256 = vld [vmem:[%s169 + $0x234] sm:$0xff]
      %v257 = vld [vmem:[%s169 + $0x23c] sm:$0xf]
      %v258 = vld [vmem:[%s169 + $0x240] sm:$0xff]
      %v259 = vld [vmem:[%s169 + $0x248] sm:$0xff]
      %v260 = vld [vmem:[%s169 + $0x250] sm:$0xff]
      %v261 = vld [vmem:[%s169 + $0x258] sm:$0xff]
      %v262 = vld [vmem:[%s169 + $0x260] sm:$0xf]
      %v263 = vld [vmem:[%s169 + $0x264] sm:$0xff]
      %v264 = vld [vmem:[%s169 + $0x26c] sm:$0xff]
      %v265 = vld [vmem:[%s169 + $0x274] sm:$0xff]
      %v266 = vld [vmem:[%s169 + $0x27c] sm:$0xff]
      %v267 = vld [vmem:[%s169 + $0x284] sm:$0xf]
      %v268 = vld [vmem:[%s169 + $0x288] sm:$0xff]
      %v269 = vld [vmem:[%s169 + $0x290] sm:$0xff]
      %v270 = vld [vmem:[%s169 + $0x298] sm:$0xff]
      %v271 = vld [vmem:[%s169 + $0x2a0] sm:$0xff]
      %v272 = vld [vmem:[%s169 + $0x2a8] sm:$0xf]
      %v273 = vld [vmem:[%s169 + $0x2ac] sm:$0xff]
      %v274 = vld [vmem:[%s169 + $0x2b4] sm:$0xff]
      %v275 = vld [vmem:[%s169 + $0x2bc] sm:$0xff]
      %v276 = vld [vmem:[%s169 + $0x2c4] sm:$0xff]
      %v277 = vld [vmem:[%s169 + $0x2cc] sm:$0xf]
      %v278 = vld [vmem:[%s169 + $0x2d0] sm:$0xff]
      %v279 = vld [vmem:[%s169 + $0x2d8] sm:$0xff]
      %v280 = vld [vmem:[%s169 + $0x2e0] sm:$0xff]
      %v281 = vld [vmem:[%s169 + $0x2e8] sm:$0xff]
      %v282 = vld [vmem:[%s169 + $0x2f0] sm:$0xf]
      %v283 = vld [vmem:[%s169 + $0x2f4] sm:$0xff]
      %v284 = vld [vmem:[%s169 + $0x2fc] sm:$0xff]
      %v285 = vld [vmem:[%s169 + $0x304] sm:$0xff]
      %v286 = vld [vmem:[%s169 + $0x30c] sm:$0xff]
      %v287 = vld [vmem:[%s169 + $0x314] sm:$0xf]
      %v288 = vld [vmem:[%s169 + $0x318] sm:$0xff]
      %v289 = vld [vmem:[%s169 + $0x320] sm:$0xff]
      %v290 = vld [vmem:[%s169 + $0x328] sm:$0xff]
      %v291 = vld [vmem:[%s169 + $0x330] sm:$0xff]
      %v292 = vld [vmem:[%s169 + $0x338] sm:$0xf]
      %v293 = vld [vmem:[%s169 + $0x33c] sm:$0xff]
      %v294 = vld [vmem:[%s169 + $0x344] sm:$0xff]
      %v295 = vld [vmem:[%s169 + $0x34c] sm:$0xff]
      %v296 = vld [vmem:[%s169 + $0x354] sm:$0xff]
      %v297 = vld [vmem:[%s169 + $0x35c] sm:$0xf]
      %v298 = vld [vmem:[%s169 + $0x360] sm:$0xff]
      %v299 = vld [vmem:[%s169 + $0x368] sm:$0xff]
      %v300 = vld [vmem:[%s169 + $0x370] sm:$0xff]
      %v301 = vld [vmem:[%s169 + $0x378] sm:$0xff]
      %v302 = vld [vmem:[%s169 + $0x380] sm:$0xf]
      %v303 = vld [vmem:[%s169 + $0x384] sm:$0xff]
      %v304 = vld [vmem:[%s169 + $0x38c] sm:$0xff]
      %v305 = vld [vmem:[%s169 + $0x394] sm:$0xff]
      %v306 = vld [vmem:[%s169 + $0x39c] sm:$0xff]
      %v307 = vld [vmem:[%s169 + $0x3a4] sm:$0xf]
      %v308 = vld [vmem:[%s169 + $0x3a8] sm:$0xff]
      %v309 = vld [vmem:[%s169 + $0x3b0] sm:$0xff]
      %v310 = vld [vmem:[%s169 + $0x3b8] sm:$0xff]
      %v311 = vld [vmem:[%s169 + $0x3c0] sm:$0xff]
      %v312 = vld [vmem:[%s169 + $0x3c8] sm:$0xf]
      %v313 = vld [vmem:[%s169 + $0x3cc] sm:$0xff]
      %v314 = vld [vmem:[%s169 + $0x3d4] sm:$0xff]
      %v315 = vld [vmem:[%s169 + $0x3dc] sm:$0xff]
      %v316 = vld [vmem:[%s169 + $0x3e4] sm:$0xff]
      %v317 = vld [vmem:[%s169 + $0x3ec] sm:$0xf]
      %v318 = vld [vmem:[%s169 + $0x3f0] sm:$0xff]
      %v319 = vld [vmem:[%s169 + $0x3f8] sm:$0xff]
      %v320 = vld [vmem:[%s169 + $0x400] sm:$0xff]
      %v321 = vld [vmem:[%s169 + $0x408] sm:$0xff]
      %v322 = vld [vmem:[%s169 + $0x410] sm:$0xf]
      %v323 = vld [vmem:[%s169 + $0x414] sm:$0xff]
      %v324 = vld [vmem:[%s169 + $0x41c] sm:$0xff]
      %v325 = vld [vmem:[%s169 + $0x424] sm:$0xff]
      %v326 = vld [vmem:[%s169 + $0x42c] sm:$0xff]
      %v327 = vld [vmem:[%s169 + $0x434] sm:$0xf]
      %v328 = vld [vmem:[%s169 + $0x438] sm:$0xff]
      %v329 = vld [vmem:[%s169 + $0x440] sm:$0xff]
      %v330 = vld [vmem:[%s169 + $0x448] sm:$0xff]
      %v331 = vld [vmem:[%s169 + $0x450] sm:$0xff]
      %v332 = vld [vmem:[%s169 + $0x458] sm:$0xf]
      %v333 = vld [vmem:[%s169 + $0x45c] sm:$0xff]
      %v334 = vld [vmem:[%s169 + $0x464] sm:$0xff]
      %v335 = vld [vmem:[%s169 + $0x46c] sm:$0xff]
      %v336 = vld [vmem:[%s169 + $0x474] sm:$0xff]
      %v337 = vld [vmem:[%s169 + $0x47c] sm:$0xf]
      %v338 = vld [vmem:[%s169 + $0x480] sm:$0xff]
      %v339 = vld [vmem:[%s169 + $0x488] sm:$0xff]
      %v340 = vld [vmem:[%s169 + $0x490] sm:$0xff]
      %v341 = vld [vmem:[%s169 + $0x498] sm:$0xff]
      %v342 = vld [vmem:[%s169 + $0x4a0] sm:$0xf]
      %v343 = vld [vmem:[%s169 + $0x4a4] sm:$0xff]
      %v344 = vld [vmem:[%s169 + $0x4ac] sm:$0xff]
      %v345 = vld [vmem:[%s169 + $0x4b4] sm:$0xff]
      %v346 = vld [vmem:[%s169 + $0x4bc] sm:$0xff]
      %v347 = vld [vmem:[%s169 + $0x4c4] sm:$0xf]
      %v348 = vld [vmem:[%s169 + $0x4c8] sm:$0xff]
      %v349 = vld [vmem:[%s169 + $0x4d0] sm:$0xff]
      %v350 = vld [vmem:[%s169 + $0x4d8] sm:$0xff]
      %v351 = vld [vmem:[%s169 + $0x4e0] sm:$0xff]
      %v352 = vld [vmem:[%s169 + $0x4e8] sm:$0xf]
      %v353 = vld [vmem:[%s169 + $0x4ec] sm:$0xff]
      %v354 = vld [vmem:[%s169 + $0x4f4] sm:$0xff]
      %v355 = vld [vmem:[%s169 + $0x4fc] sm:$0xff]
      %v356 = vld [vmem:[%s169 + $0x504] sm:$0xff]
      %v357 = vld [vmem:[%s169 + $0x50c] sm:$0xf]
      %v358 = vld [vmem:[%s169 + $0x510] sm:$0xff]
      %v359 = vld [vmem:[%s169 + $0x518] sm:$0xff]
      %v360 = vld [vmem:[%s169 + $0x520] sm:$0xff]
      %v361 = vld [vmem:[%s169 + $0x528] sm:$0xff]
      %v362 = vld [vmem:[%s169 + $0x530] sm:$0xf]
      %v363 = vld [vmem:[%s169 + $0x534] sm:$0xff]
      %v364 = vld [vmem:[%s169 + $0x53c] sm:$0xff]
      %v365 = vld [vmem:[%s169 + $0x544] sm:$0xff]
      %v366 = vld [vmem:[%s169 + $0x54c] sm:$0xff]
      %v367 = vld [vmem:[%s169 + $0x554] sm:$0xf]
      %v368 = vld [vmem:[%s169 + $0x558] sm:$0xff]
      %v369 = vld [vmem:[%s169 + $0x560] sm:$0xff]
      %v370 = vld [vmem:[%s169 + $0x568] sm:$0xff]
      %v371 = vld [vmem:[%s169 + $0x570] sm:$0xff]
      %v372 = vld [vmem:[%s169 + $0x578] sm:$0xf]
      %v373 = vld [vmem:[%s169 + $0x57c] sm:$0xff]
      %v374 = vld [vmem:[%s169 + $0x584] sm:$0xff]
      %v375 = vld [vmem:[%s169 + $0x58c] sm:$0xff]
      %v376 = vld [vmem:[%s169 + $0x594] sm:$0xff]
      %v377 = vld [vmem:[%s169 + $0x59c] sm:$0xf]
      %v378 = vld [vmem:[%s169 + $0x5a0] sm:$0xff]
      %v379 = vld [vmem:[%s169 + $0x5a8] sm:$0xff]
      %v380 = vld [vmem:[%s169 + $0x5b0] sm:$0xff]
      %v381 = vld [vmem:[%s169 + $0x5b8] sm:$0xff]
      %v382 = vld [vmem:[%s169 + $0x5c0] sm:$0xf]
      %v383 = vld [vmem:[%s169 + $0x5c4] sm:$0xff]
      %v384 = vld [vmem:[%s169 + $0x5cc] sm:$0xff]
      %v385 = vld [vmem:[%s169 + $0x5d4] sm:$0xff]
      %v386 = vld [vmem:[%s169 + $0x5dc] sm:$0xff]
      %v387 = vld [vmem:[%s169 + $0x5e4] sm:$0xf]
      %v388 = vld [vmem:[%s169 + $0x5e8] sm:$0xff]
      %v389 = vld [vmem:[%s169 + $0x5f0] sm:$0xff]
      %v390 = vld [vmem:[%s169 + $0x5f8] sm:$0xff]
      %v391 = vld [vmem:[%s169 + $0x600] sm:$0xff]
      %v392 = vld [vmem:[%s169 + $0x608] sm:$0xf]
      %v393 = vld [vmem:[%s169 + $0x60c] sm:$0xff]
      %v394 = vld [vmem:[%s169 + $0x614] sm:$0xff]
      %v395 = vld [vmem:[%s169 + $0x61c] sm:$0xff]
      %v396 = vld [vmem:[%s169 + $0x624] sm:$0xff]
      %v397 = vld [vmem:[%s169 + $0x62c] sm:$0xf]
      %v398 = vld [vmem:[%s169 + $0x630] sm:$0xff]
      %v399 = vld [vmem:[%s169 + $0x638] sm:$0xff]
      %v400 = vld [vmem:[%s169 + $0x640] sm:$0xff]
      %v401 = vld [vmem:[%s169 + $0x648] sm:$0xff]
      %v402 = vld [vmem:[%s169 + $0x650] sm:$0xf]
      %v403 = vld [vmem:[%s169 + $0x654] sm:$0xff]
      %v404 = vld [vmem:[%s169 + $0x65c] sm:$0xff]
      %v405 = vld [vmem:[%s169 + $0x664] sm:$0xff]
      %v406 = vld [vmem:[%s169 + $0x66c] sm:$0xff]
      %v407 = vld [vmem:[%s169 + $0x674] sm:$0xf]
      %v408 = vld [vmem:[%s169 + $0x678] sm:$0xff]
      %v409 = vld [vmem:[%s169 + $0x680] sm:$0xff]
      %v410 = vld [vmem:[%s169 + $0x688] sm:$0xff]
      %v411 = vld [vmem:[%s169 + $0x690] sm:$0xff]
      %v412 = vld [vmem:[%s169 + $0x698] sm:$0xf]
      %v413 = vld [vmem:[%s169 + $0x69c] sm:$0xff]
      %v414 = vld [vmem:[%s169 + $0x6a4] sm:$0xff]
      %v415 = vld [vmem:[%s169 + $0x6ac] sm:$0xff]
      %v416 = vld [vmem:[%s169 + $0x6b4] sm:$0xff]
      %v417 = vld [vmem:[%s169 + $0x6bc] sm:$0xf]
      %v418 = vld [vmem:[%s169 + $0x6c0] sm:$0xff]
      %v419 = vld [vmem:[%s169 + $0x6c8] sm:$0xff]
      %v420 = vld [vmem:[%s169 + $0x6d0] sm:$0xff]
      %v421 = vld [vmem:[%s169 + $0x6d8] sm:$0xff]
      %v422 = vld [vmem:[%s169 + $0x6e0] sm:$0xf]
      %v423 = vld [vmem:[%s169 + $0x6e4] sm:$0xff]
      %v424 = vld [vmem:[%s169 + $0x6ec] sm:$0xff]
      %v425 = vld [vmem:[%s169 + $0x6f4] sm:$0xff]
      %v426 = vld [vmem:[%s169 + $0x6fc] sm:$0xff]
      %v427 = vld [vmem:[%s169 + $0x704] sm:$0xf]
      %v428 = vld [vmem:[%s169 + $0x708] sm:$0xff]
      %v429 = vld [vmem:[%s169 + $0x710] sm:$0xff]
      %v430 = vld [vmem:[%s169 + $0x718] sm:$0xff]
      %v431 = vld [vmem:[%s169 + $0x720] sm:$0xff]
      %v432 = vld [vmem:[%s169 + $0x728] sm:$0xf]
      %v433 = vld [vmem:[%s169 + $0x72c] sm:$0xff]
      %v434 = vld [vmem:[%s169 + $0x734] sm:$0xff]
      %v435 = vld [vmem:[%s169 + $0x73c] sm:$0xff]
      %v436 = vld [vmem:[%s169 + $0x744] sm:$0xff]
      %v437 = vld [vmem:[%s169 + $0x74c] sm:$0xf]
      %v438 = vld [vmem:[%s169 + $0x750] sm:$0xff]
      %v439 = vld [vmem:[%s169 + $0x758] sm:$0xff]
      %v440 = vld [vmem:[%s169 + $0x760] sm:$0xff]
      %v441 = vld [vmem:[%s169 + $0x768] sm:$0xff]
      %v442 = vld [vmem:[%s169 + $0x770] sm:$0xf]
      %v443 = vld [vmem:[%s169 + $0x774] sm:$0xff]
      %v444 = vld [vmem:[%s169 + $0x77c] sm:$0xff]
      %v445 = vld [vmem:[%s169 + $0x784] sm:$0xff]
      %v446 = vld [vmem:[%s169 + $0x78c] sm:$0xff]
      %v447 = vld [vmem:[%s169 + $0x794] sm:$0xf]
      %v448 = vld [vmem:[%s169 + $0x798] sm:$0xff]
      %v449 = vld [vmem:[%s169 + $0x7a0] sm:$0xff]
      %v450 = vld [vmem:[%s169 + $0x7a8] sm:$0xff]
      %v451 = vld [vmem:[%s169 + $0x7b0] sm:$0xff]
      %v452 = vld [vmem:[%s169 + $0x7b8] sm:$0xf]
      %v453 = vld [vmem:[%s169 + $0x7bc] sm:$0xff]
      %v454 = vld [vmem:[%s169 + $0x7c4] sm:$0xff]
      %v455 = vld [vmem:[%s169 + $0x7cc] sm:$0xff]
      %v456 = vld [vmem:[%s169 + $0x7d4] sm:$0xff]
      %v457 = vld [vmem:[%s169 + $0x7dc] sm:$0xf]
      %v458 = vld [vmem:[%s169 + $0x7e0] sm:$0xff]
      %v459 = vld [vmem:[%s169 + $0x7e8] sm:$0xff]
      %v460 = vld [vmem:[%s169 + $0x7f0] sm:$0xff]
      %v461 = vld [vmem:[%s169 + $0x7f8] sm:$0xff]
      %v462 = vld [vmem:[%s169 + $0x800] sm:$0xf]
      %v463 = vld [vmem:[%s169 + $0x804] sm:$0xff]
      %v464 = vld [vmem:[%s169 + $0x80c] sm:$0xff]
      %v465 = vld [vmem:[%s169 + $0x814] sm:$0xff]
      %v466 = vld [vmem:[%s169 + $0x81c] sm:$0xff]
      %v467 = vld [vmem:[%s169 + $0x824] sm:$0xf]
      %v468 = vld [vmem:[%s169 + $0x828] sm:$0xff]
      %v469 = vld [vmem:[%s169 + $0x830] sm:$0xff]
      %v470 = vld [vmem:[%s169 + $0x838] sm:$0xff]
      %v471 = vld [vmem:[%s169 + $0x840] sm:$0xff]
      %v472 = vld [vmem:[%s169 + $0x848] sm:$0xf]
      %v473 = vld [vmem:[%s169 + $0x84c] sm:$0xff]
      %v474 = vld [vmem:[%s169 + $0x854] sm:$0xff]
      %v475 = vld [vmem:[%s169 + $0x85c] sm:$0xff]
      %v476 = vld [vmem:[%s169 + $0x864] sm:$0xff]
      %v477 = vld [vmem:[%s169 + $0x86c] sm:$0xf]
      %v478 = vld [vmem:[%s169 + $0x870] sm:$0xff]
      %v479 = vld [vmem:[%s169 + $0x878] sm:$0xff]
      %v480 = vld [vmem:[%s169 + $0x880] sm:$0xff]
      %v481 = vld [vmem:[%s169 + $0x888] sm:$0xff]
      %v482 = vld [vmem:[%s169 + $0x890] sm:$0xf]
      %v483 = vld [vmem:[%s169 + $0x894] sm:$0xff]
      %v484 = vld [vmem:[%s169 + $0x89c] sm:$0xff]
      %v485 = vld [vmem:[%s169 + $0x8a4] sm:$0xff]
      %v486 = vld [vmem:[%s169 + $0x8ac] sm:$0xff]
      %v487 = vld [vmem:[%s169 + $0x8b4] sm:$0xf]
      %v488 = vld [vmem:[%s169 + $0x8b8] sm:$0xff]
      %v489 = vld [vmem:[%s169 + $0x8c0] sm:$0xff]
      %v490 = vld [vmem:[%s169 + $0x8c8] sm:$0xff]
      %v491 = vld [vmem:[%s169 + $0x8d0] sm:$0xff]
      %v492 = vld [vmem:[%s169 + $0x8d8] sm:$0xf]
      %v493 = vld [vmem:[%s169 + $0x8dc] sm:$0xff]
      %v494 = vld [vmem:[%s169 + $0x8e4] sm:$0xff]
      %v495 = vld [vmem:[%s169 + $0x8ec] sm:$0xff]
      %v496 = vld [vmem:[%s169 + $0x8f4] sm:$0xff]
      %v497 = vld [vmem:[%s169 + $0x8fc] sm:$0xf]
      %v498 = vld [vmem:[%s1] sm:$0xf]
      %v499 = vld [vmem:[%s1 + $0x4] sm:$0xf]
      %v500 = vld [vmem:[%s1 + $0x8] sm:$0xf]
      %v501 = vld [vmem:[%s1 + $0xc] sm:$0xf]
      %v502 = vld [vmem:[%s1 + $0x10] sm:$0xf]
      %v503 = vld [vmem:[%s1 + $0x14] sm:$0xf]
      %v504 = vld [vmem:[%s1 + $0x18] sm:$0xf]
      %v505 = vld [vmem:[%s1 + $0x1c] sm:$0xf]
      %v506 = vld [vmem:[%s1 + $0x20] sm:$0xf]
      %v507 = vld [vmem:[%s1 + $0x24] sm:$0xf]
      %v508 = vld [vmem:[%s1 + $0x28] sm:$0xf]
      %v509 = vld [vmem:[%s1 + $0x2c] sm:$0xf]
      %v510 = vld [vmem:[%s1 + $0x30] sm:$0xf]
      %v511 = vld [vmem:[%s1 + $0x34] sm:$0xf]
      %v512 = vld [vmem:[%s1 + $0x38] sm:$0xf]
      %v513 = vld [vmem:[%s1 + $0x3c] sm:$0xf]
      %v514 = vld [vmem:[%s1 + $0x40] sm:$0xf]
      %v515 = vld [vmem:[%s1 + $0x44] sm:$0xf]
      %v516 = vld [vmem:[%s1 + $0x48] sm:$0xf]
      %v517 = vld [vmem:[%s1 + $0x4c] sm:$0xf]
      %v518 = vld [vmem:[%s1 + $0x50] sm:$0xf]
      %v519 = vld [vmem:[%s1 + $0x54] sm:$0xf]
      %v520 = vld [vmem:[%s1 + $0x58] sm:$0xf]
      %v521 = vld [vmem:[%s1 + $0x5c] sm:$0xf]
      %v522 = vld [vmem:[%s1 + $0x60] sm:$0xf]
      %v523 = vld [vmem:[%s1 + $0x64] sm:$0xf]
      %v524 = vld [vmem:[%s1 + $0x68] sm:$0xf]
      %v525 = vld [vmem:[%s1 + $0x6c] sm:$0xf]
      %v526 = vld [vmem:[%s1 + $0x70] sm:$0xf]
      %v527 = vld [vmem:[%s1 + $0x74] sm:$0xf]
      %v528 = vld [vmem:[%s1 + $0x78] sm:$0xf]
      %v529 = vld [vmem:[%s1 + $0x7c] sm:$0xf]
      %v530 = vld [vmem:[%s1 + $0x80] sm:$0xf]
      %v531 = vld [vmem:[%s1 + $0x84] sm:$0xf]
      %v532 = vld [vmem:[%s1 + $0x88] sm:$0xf]
      %v533 = vld [vmem:[%s1 + $0x8c] sm:$0xf]
      %v534 = vld [vmem:[%s1 + $0x90] sm:$0xf]
      %v535 = vld [vmem:[%s1 + $0x94] sm:$0xf]
      %v536 = vld [vmem:[%s1 + $0x98] sm:$0xf]
      %v537 = vld [vmem:[%s1 + $0x9c] sm:$0xf]
      %v538 = vld [vmem:[%s1 + $0xa0] sm:$0xf]
      %v539 = vld [vmem:[%s1 + $0xa4] sm:$0xf]
      %v540 = vld [vmem:[%s1 + $0xa8] sm:$0xf]
      %v541 = vld [vmem:[%s1 + $0xac] sm:$0xf]
      %v542 = vld [vmem:[%s1 + $0xb0] sm:$0xf]
      %v543 = vld [vmem:[%s1 + $0xb4] sm:$0xf]
      %v544 = vld [vmem:[%s1 + $0xb8] sm:$0xf]
      %v545 = vld [vmem:[%s1 + $0xbc] sm:$0xf]
      %v546 = vld [vmem:[%s1 + $0xc0] sm:$0xf]
      %v547 = vld [vmem:[%s1 + $0xc4] sm:$0xf]
      %v548 = vld [vmem:[%s1 + $0xc8] sm:$0xf]
      %v549 = vld [vmem:[%s1 + $0xcc] sm:$0xf]
      %v550 = vld [vmem:[%s1 + $0xd0] sm:$0xf]
      %v551 = vld [vmem:[%s1 + $0xd4] sm:$0xf]
      %v552 = vld [vmem:[%s1 + $0xd8] sm:$0xf]
      %v553 = vld [vmem:[%s1 + $0xdc] sm:$0xf]
      %v554 = vld [vmem:[%s1 + $0xe0] sm:$0xf]
      %v555 = vld [vmem:[%s1 + $0xe4] sm:$0xf]
      %v556 = vld [vmem:[%s1 + $0xe8] sm:$0xf]
      %v557 = vld [vmem:[%s1 + $0xec] sm:$0xf]
      %v558 = vld [vmem:[%s1 + $0xf0] sm:$0xf]
      %v559 = vld [vmem:[%s1 + $0xf4] sm:$0xf]
      %v560 = vld [vmem:[%s1 + $0xf8] sm:$0xf]
      %v561 = vld [vmem:[%s1 + $0xfc] sm:$0xf]
      %v562 = vld [vmem:[%s1 + $0x100] sm:$0xf]
      %v563 = vld [vmem:[%s1 + $0x104] sm:$0xf]
      %v564 = vld [vmem:[%s1 + $0x108] sm:$0xf]
      %v565 = vld [vmem:[%s1 + $0x10c] sm:$0xf]
      %v566 = vld [vmem:[%s1 + $0x110] sm:$0xf]
      %v567 = vld [vmem:[%s1 + $0x114] sm:$0xf]
      %v568 = vld [vmem:[%s1 + $0x118] sm:$0xf]
      %v569 = vld [vmem:[%s1 + $0x11c] sm:$0xf]
      %v570 = vld [vmem:[%s1 + $0x120] sm:$0xf]
      %v571 = vld [vmem:[%s1 + $0x124] sm:$0xf]
      %v572 = vld [vmem:[%s1 + $0x128] sm:$0xf]
      %v573 = vld [vmem:[%s1 + $0x12c] sm:$0xf]
      %v574 = vld [vmem:[%s1 + $0x130] sm:$0xf]
      %v575 = vld [vmem:[%s1 + $0x134] sm:$0xf]
      %v576 = vld [vmem:[%s1 + $0x138] sm:$0xf]
      %v577 = vld [vmem:[%s1 + $0x13c] sm:$0xf]
      %v578 = vld [vmem:[%s1 + $0x140] sm:$0xf]
      %v579 = vld [vmem:[%s1 + $0x144] sm:$0xf]
      %v580 = vld [vmem:[%s1 + $0x148] sm:$0xf]
      %v581 = vld [vmem:[%s1 + $0x14c] sm:$0xf]
      %v582 = vld [vmem:[%s1 + $0x150] sm:$0xf]
      %v583 = vld [vmem:[%s1 + $0x154] sm:$0xf]
      %v584 = vld [vmem:[%s1 + $0x158] sm:$0xf]
      %v585 = vld [vmem:[%s1 + $0x15c] sm:$0xf]
      %v586 = vld [vmem:[%s1 + $0x160] sm:$0xf]
      %v587 = vld [vmem:[%s1 + $0x164] sm:$0xf]
      %v588 = vld [vmem:[%s1 + $0x168] sm:$0xf]
      %v589 = vld [vmem:[%s1 + $0x16c] sm:$0xf]
      %v590 = vld [vmem:[%s1 + $0x170] sm:$0xf]
      %v591 = vld [vmem:[%s1 + $0x174] sm:$0xf]
      %v592 = vld [vmem:[%s1 + $0x178] sm:$0xf]
      %v593 = vld [vmem:[%s1 + $0x17c] sm:$0xf]
      %v594 = vld [vmem:[%s1 + $0x180] sm:$0xf]
      %v595 = vld [vmem:[%s1 + $0x184] sm:$0xf]
      %v596 = vld [vmem:[%s1 + $0x188] sm:$0xf]
      %v597 = vld [vmem:[%s1 + $0x18c] sm:$0xf]
      %v598 = vld [vmem:[%s1 + $0x190] sm:$0xf]
      %v599 = vld [vmem:[%s1 + $0x194] sm:$0xf]
      %v600 = vld [vmem:[%s1 + $0x198] sm:$0xf]
      %v601 = vld [vmem:[%s1 + $0x19c] sm:$0xf]
      %v602 = vld [vmem:[%s1 + $0x1a0] sm:$0xf]
      %v603 = vld [vmem:[%s1 + $0x1a4] sm:$0xf]
      %v604 = vld [vmem:[%s1 + $0x1a8] sm:$0xf]
      %v605 = vld [vmem:[%s1 + $0x1ac] sm:$0xf]
      %v606 = vld [vmem:[%s1 + $0x1b0] sm:$0xf]
      %v607 = vld [vmem:[%s1 + $0x1b4] sm:$0xf]
      %v608 = vld [vmem:[%s1 + $0x1b8] sm:$0xf]
      %v609 = vld [vmem:[%s1 + $0x1bc] sm:$0xf]
      %v610 = vld [vmem:[%s1 + $0x1c0] sm:$0xf]
      %v611 = vld [vmem:[%s1 + $0x1c4] sm:$0xf]
      %v612 = vld [vmem:[%s1 + $0x1c8] sm:$0xf]
      %v613 = vld [vmem:[%s1 + $0x1cc] sm:$0xf]
      %v614 = vld [vmem:[%s1 + $0x1d0] sm:$0xf]
      %v615 = vld [vmem:[%s1 + $0x1d4] sm:$0xf]
      %v616 = vld [vmem:[%s1 + $0x1d8] sm:$0xf]
      %v617 = vld [vmem:[%s1 + $0x1dc] sm:$0xf]
      %v618 = vld [vmem:[%s1 + $0x1e0] sm:$0xf]
      %v619 = vld [vmem:[%s1 + $0x1e4] sm:$0xf]
      %v620 = vld [vmem:[%s1 + $0x1e8] sm:$0xf]
      %v621 = vld [vmem:[%s1 + $0x1ec] sm:$0xf]
      %v622 = vld [vmem:[%s1 + $0x1f0] sm:$0xf]
      %v623 = vld [vmem:[%s1 + $0x1f4] sm:$0xf]
      %v624 = vld [vmem:[%s1 + $0x1f8] sm:$0xf]
      %v625 = vld [vmem:[%s1 + $0x1fc] sm:$0xf]
      %v626 = vld [vmem:[%s1 + $0x200] sm:$0xf]
      %v627 = vld [vmem:[%s1 + $0x204] sm:$0xf]
      %v628 = vld [vmem:[%s1 + $0x208] sm:$0xf]
      %v629 = vld [vmem:[%s1 + $0x20c] sm:$0xf]
      %v630 = vld [vmem:[%s1 + $0x210] sm:$0xf]
      %v631 = vld [vmem:[%s1 + $0x214] sm:$0xf]
      %v632 = vld [vmem:[%s1 + $0x218] sm:$0xf]
      %v633 = vld [vmem:[%s1 + $0x21c] sm:$0xf]
      %v634 = vld [vmem:[%s1 + $0x220] sm:$0xf]
      %v635 = vld [vmem:[%s1 + $0x224] sm:$0xf]
      %v636 = vld [vmem:[%s1 + $0x228] sm:$0xf]
      %v637 = vld [vmem:[%s1 + $0x22c] sm:$0xf]
      %v638 = vld [vmem:[%s1 + $0x230] sm:$0xf]
      %v639 = vld [vmem:[%s1 + $0x234] sm:$0xf]
      %v640 = vld [vmem:[%s1 + $0x238] sm:$0xf]
      %v641 = vld [vmem:[%s1 + $0x23c] sm:$0xf]
      %v642 = vld [vmem:[%s2] sm:$0x1]
      %v644 = vlaneseq
      %v645 = vshrl.u32 %v644, 7
      %v646 = vsub.s32 0, %v645
      %v647 = vrot.slane %v642, %v646
      %v969 = vunpack.c.l.b16 %v178
      %v970 = vunpack.c.h.b16 %v178
      %v971 = vunpack.c.l.b16 %v179
      %v972 = vunpack.c.h.b16 %v179
      %v973 = vunpack.c.l.b16 %v180
      %v974 = vunpack.c.h.b16 %v180
      %v975 = vunpack.c.l.b16 %v181
      %v976 = vunpack.c.h.b16 %v181
      %v977 = vunpack.c.l.b16 %v182
      %v978 = vunpack.c.l.b16 %v183
      %v979 = vunpack.c.h.b16 %v183
      %v980 = vunpack.c.l.b16 %v184
      %v981 = vunpack.c.h.b16 %v184
      %v982 = vunpack.c.l.b16 %v185
      %v983 = vunpack.c.h.b16 %v185
      %v984 = vunpack.c.l.b16 %v186
      %v985 = vunpack.c.h.b16 %v186
      %v986 = vunpack.c.l.b16 %v187
      %v987 = vunpack.c.l.b16 %v188
      %v988 = vunpack.c.h.b16 %v188
      %v989 = vunpack.c.l.b16 %v189
      %v990 = vunpack.c.h.b16 %v189
      %v991 = vunpack.c.l.b16 %v190
      %v992 = vunpack.c.h.b16 %v190
      %v993 = vunpack.c.l.b16 %v191
      %v994 = vunpack.c.h.b16 %v191
      %v995 = vunpack.c.l.b16 %v192
      %v996 = vunpack.c.l.b16 %v193
      %v997 = vunpack.c.h.b16 %v193
      %v998 = vunpack.c.l.b16 %v194
      %v999 = vunpack.c.h.b16 %v194
      %v1000 = vunpack.c.l.b16 %v195
      %v1001 = vunpack.c.h.b16 %v195
      %v1002 = vunpack.c.l.b16 %v196
      %v1003 = vunpack.c.h.b16 %v196
      %v1004 = vunpack.c.l.b16 %v197
      %v1005 = vunpack.c.l.b16 %v198
      %v1006 = vunpack.c.h.b16 %v198
      %v1007 = vunpack.c.l.b16 %v199
      %v1008 = vunpack.c.h.b16 %v199
      %v1009 = vunpack.c.l.b16 %v200
      %v1010 = vunpack.c.h.b16 %v200
      %v1011 = vunpack.c.l.b16 %v201
      %v1012 = vunpack.c.h.b16 %v201
      %v1013 = vunpack.c.l.b16 %v202
      %v1014 = vunpack.c.l.b16 %v203
      %v1015 = vunpack.c.h.b16 %v203
      %v1016 = vunpack.c.l.b16 %v204
      %v1017 = vunpack.c.h.b16 %v204
      %v1018 = vunpack.c.l.b16 %v205
      %v1019 = vunpack.c.h.b16 %v205
      %v1020 = vunpack.c.l.b16 %v206
      %v1021 = vunpack.c.h.b16 %v206
      %v1022 = vunpack.c.l.b16 %v207
      %v1023 = vunpack.c.l.b16 %v208
      %v1024 = vunpack.c.h.b16 %v208
      %v1025 = vunpack.c.l.b16 %v209
      %v1026 = vunpack.c.h.b16 %v209
      %v1027 = vunpack.c.l.b16 %v210
      %v1028 = vunpack.c.h.b16 %v210
      %v1029 = vunpack.c.l.b16 %v211
      %v1030 = vunpack.c.h.b16 %v211
      %v1031 = vunpack.c.l.b16 %v212
      %v1032 = vunpack.c.l.b16 %v213
      %v1033 = vunpack.c.h.b16 %v213
      %v1034 = vunpack.c.l.b16 %v214
      %v1035 = vunpack.c.h.b16 %v214
      %v1036 = vunpack.c.l.b16 %v215
      %v1037 = vunpack.c.h.b16 %v215
      %v1038 = vunpack.c.l.b16 %v216
      %v1039 = vunpack.c.h.b16 %v216
      %v1040 = vunpack.c.l.b16 %v217
      %v1041 = vunpack.c.l.b16 %v218
      %v1042 = vunpack.c.h.b16 %v218
      %v1043 = vunpack.c.l.b16 %v219
      %v1044 = vunpack.c.h.b16 %v219
      %v1045 = vunpack.c.l.b16 %v220
      %v1046 = vunpack.c.h.b16 %v220
      %v1047 = vunpack.c.l.b16 %v221
      %v1048 = vunpack.c.h.b16 %v221
      %v1049 = vunpack.c.l.b16 %v222
      %v1050 = vunpack.c.l.b16 %v223
      %v1051 = vunpack.c.h.b16 %v223
      %v1052 = vunpack.c.l.b16 %v224
      %v1053 = vunpack.c.h.b16 %v224
      %v1054 = vunpack.c.l.b16 %v225
      %v1055 = vunpack.c.h.b16 %v225
      %v1056 = vunpack.c.l.b16 %v226
      %v1057 = vunpack.c.h.b16 %v226
      %v1058 = vunpack.c.l.b16 %v227
      %v1059 = vunpack.c.l.b16 %v228
      %v1060 = vunpack.c.h.b16 %v228
      %v1061 = vunpack.c.l.b16 %v229
      %v1062 = vunpack.c.h.b16 %v229
      %v1063 = vunpack.c.l.b16 %v230
      %v1064 = vunpack.c.h.b16 %v230
      %v1065 = vunpack.c.l.b16 %v231
      %v1066 = vunpack.c.h.b16 %v231
      %v1067 = vunpack.c.l.b16 %v232
      %v1068 = vunpack.c.l.b16 %v233
      %v1069 = vunpack.c.h.b16 %v233
      %v1070 = vunpack.c.l.b16 %v234
      %v1071 = vunpack.c.h.b16 %v234
      %v1072 = vunpack.c.l.b16 %v235
      %v1073 = vunpack.c.h.b16 %v235
      %v1074 = vunpack.c.l.b16 %v236
      %v1075 = vunpack.c.h.b16 %v236
      %v1076 = vunpack.c.l.b16 %v237
      %v1077 = vunpack.c.l.b16 %v238
      %v1078 = vunpack.c.h.b16 %v238
      %v1079 = vunpack.c.l.b16 %v239
      %v1080 = vunpack.c.h.b16 %v239
      %v1081 = vunpack.c.l.b16 %v240
      %v1082 = vunpack.c.h.b16 %v240
      %v1083 = vunpack.c.l.b16 %v241
      %v1084 = vunpack.c.h.b16 %v241
      %v1085 = vunpack.c.l.b16 %v242
      %v1086 = vunpack.c.l.b16 %v243
      %v1087 = vunpack.c.h.b16 %v243
      %v1088 = vunpack.c.l.b16 %v244
      %v1089 = vunpack.c.h.b16 %v244
      %v1090 = vunpack.c.l.b16 %v245
      %v1091 = vunpack.c.h.b16 %v245
      %v1092 = vunpack.c.l.b16 %v246
      %v1093 = vunpack.c.h.b16 %v246
      %v1094 = vunpack.c.l.b16 %v247
      %v1095 = vunpack.c.l.b16 %v248
      %v1096 = vunpack.c.h.b16 %v248
      %v1097 = vunpack.c.l.b16 %v249
      %v1098 = vunpack.c.h.b16 %v249
      %v1099 = vunpack.c.l.b16 %v250
      %v1100 = vunpack.c.h.b16 %v250
      %v1101 = vunpack.c.l.b16 %v251
      %v1102 = vunpack.c.h.b16 %v251
      %v1103 = vunpack.c.l.b16 %v252
      %v1104 = vunpack.c.l.b16 %v253
      %v1105 = vunpack.c.h.b16 %v253
      %v1106 = vunpack.c.l.b16 %v254
      %v1107 = vunpack.c.h.b16 %v254
      %v1108 = vunpack.c.l.b16 %v255
      %v1109 = vunpack.c.h.b16 %v255
      %v1110 = vunpack.c.l.b16 %v256
      %v1111 = vunpack.c.h.b16 %v256
      %v1112 = vunpack.c.l.b16 %v257
      %v1113 = vunpack.c.l.b16 %v258
      %v1114 = vunpack.c.h.b16 %v258
      %v1115 = vunpack.c.l.b16 %v259
      %v1116 = vunpack.c.h.b16 %v259
      %v1117 = vunpack.c.l.b16 %v260
      %v1118 = vunpack.c.h.b16 %v260
      %v1119 = vunpack.c.l.b16 %v261
      %v1120 = vunpack.c.h.b16 %v261
      %v1121 = vunpack.c.l.b16 %v262
      %v1122 = vunpack.c.l.b16 %v263
      %v1123 = vunpack.c.h.b16 %v263
      %v1124 = vunpack.c.l.b16 %v264
      %v1125 = vunpack.c.h.b16 %v264
      %v1126 = vunpack.c.l.b16 %v265
      %v1127 = vunpack.c.h.b16 %v265
      %v1128 = vunpack.c.l.b16 %v266
      %v1129 = vunpack.c.h.b16 %v266
      %v1130 = vunpack.c.l.b16 %v267
      %v1131 = vunpack.c.l.b16 %v268
      %v1132 = vunpack.c.h.b16 %v268
      %v1133 = vunpack.c.l.b16 %v269
      %v1134 = vunpack.c.h.b16 %v269
      %v1135 = vunpack.c.l.b16 %v270
      %v1136 = vunpack.c.h.b16 %v270
      %v1137 = vunpack.c.l.b16 %v271
      %v1138 = vunpack.c.h.b16 %v271
      %v1139 = vunpack.c.l.b16 %v272
      %v1140 = vunpack.c.l.b16 %v273
      %v1141 = vunpack.c.h.b16 %v273
      %v1142 = vunpack.c.l.b16 %v274
      %v1143 = vunpack.c.h.b16 %v274
      %v1144 = vunpack.c.l.b16 %v275
      %v1145 = vunpack.c.h.b16 %v275
      %v1146 = vunpack.c.l.b16 %v276
      %v1147 = vunpack.c.h.b16 %v276
      %v1148 = vunpack.c.l.b16 %v277
      %v1149 = vunpack.c.l.b16 %v278
      %v1150 = vunpack.c.h.b16 %v278
      %v1151 = vunpack.c.l.b16 %v279
      %v1152 = vunpack.c.h.b16 %v279
      %v1153 = vunpack.c.l.b16 %v280
      %v1154 = vunpack.c.h.b16 %v280
      %v1155 = vunpack.c.l.b16 %v281
      %v1156 = vunpack.c.h.b16 %v281
      %v1157 = vunpack.c.l.b16 %v282
      %v1158 = vunpack.c.l.b16 %v283
      %v1159 = vunpack.c.h.b16 %v283
      %v1160 = vunpack.c.l.b16 %v284
      %v1161 = vunpack.c.h.b16 %v284
      %v1162 = vunpack.c.l.b16 %v285
      %v1163 = vunpack.c.h.b16 %v285
      %v1164 = vunpack.c.l.b16 %v286
      %v1165 = vunpack.c.h.b16 %v286
      %v1166 = vunpack.c.l.b16 %v287
      %v1167 = vunpack.c.l.b16 %v288
      %v1168 = vunpack.c.h.b16 %v288
      %v1169 = vunpack.c.l.b16 %v289
      %v1170 = vunpack.c.h.b16 %v289
      %v1171 = vunpack.c.l.b16 %v290
      %v1172 = vunpack.c.h.b16 %v290
      %v1173 = vunpack.c.l.b16 %v291
      %v1174 = vunpack.c.h.b16 %v291
      %v1175 = vunpack.c.l.b16 %v292
      %v1176 = vunpack.c.l.b16 %v293
      %v1177 = vunpack.c.h.b16 %v293
      %v1178 = vunpack.c.l.b16 %v294
      %v1179 = vunpack.c.h.b16 %v294
      %v1180 = vunpack.c.l.b16 %v295
      %v1181 = vunpack.c.h.b16 %v295
      %v1182 = vunpack.c.l.b16 %v296
      %v1183 = vunpack.c.h.b16 %v296
      %v1184 = vunpack.c.l.b16 %v297
      %v1185 = vunpack.c.l.b16 %v298
      %v1186 = vunpack.c.h.b16 %v298
      %v1187 = vunpack.c.l.b16 %v299
      %v1188 = vunpack.c.h.b16 %v299
      %v1189 = vunpack.c.l.b16 %v300
      %v1190 = vunpack.c.h.b16 %v300
      %v1191 = vunpack.c.l.b16 %v301
      %v1192 = vunpack.c.h.b16 %v301
      %v1193 = vunpack.c.l.b16 %v302
      %v1194 = vunpack.c.l.b16 %v303
      %v1195 = vunpack.c.h.b16 %v303
      %v1196 = vunpack.c.l.b16 %v304
      %v1197 = vunpack.c.h.b16 %v304
      %v1198 = vunpack.c.l.b16 %v305
      %v1199 = vunpack.c.h.b16 %v305
      %v1200 = vunpack.c.l.b16 %v306
      %v1201 = vunpack.c.h.b16 %v306
      %v1202 = vunpack.c.l.b16 %v307
      %v1203 = vunpack.c.l.b16 %v308
      %v1204 = vunpack.c.h.b16 %v308
      %v1205 = vunpack.c.l.b16 %v309
      %v1206 = vunpack.c.h.b16 %v309
      %v1207 = vunpack.c.l.b16 %v310
      %v1208 = vunpack.c.h.b16 %v310
      %v1209 = vunpack.c.l.b16 %v311
      %v1210 = vunpack.c.h.b16 %v311
      %v1211 = vunpack.c.l.b16 %v312
      %v1212 = vunpack.c.l.b16 %v313
      %v1213 = vunpack.c.h.b16 %v313
      %v1214 = vunpack.c.l.b16 %v314
      %v1215 = vunpack.c.h.b16 %v314
      %v1216 = vunpack.c.l.b16 %v315
      %v1217 = vunpack.c.h.b16 %v315
      %v1218 = vunpack.c.l.b16 %v316
      %v1219 = vunpack.c.h.b16 %v316
      %v1220 = vunpack.c.l.b16 %v317
      %v1221 = vunpack.c.l.b16 %v318
      %v1222 = vunpack.c.h.b16 %v318
      %v1223 = vunpack.c.l.b16 %v319
      %v1224 = vunpack.c.h.b16 %v319
      %v1225 = vunpack.c.l.b16 %v320
      %v1226 = vunpack.c.h.b16 %v320
      %v1227 = vunpack.c.l.b16 %v321
      %v1228 = vunpack.c.h.b16 %v321
      %v1229 = vunpack.c.l.b16 %v322
      %v1230 = vunpack.c.l.b16 %v323
      %v1231 = vunpack.c.h.b16 %v323
      %v1232 = vunpack.c.l.b16 %v324
      %v1233 = vunpack.c.h.b16 %v324
      %v1234 = vunpack.c.l.b16 %v325
      %v1235 = vunpack.c.h.b16 %v325
      %v1236 = vunpack.c.l.b16 %v326
      %v1237 = vunpack.c.h.b16 %v326
      %v1238 = vunpack.c.l.b16 %v327
      %v1239 = vunpack.c.l.b16 %v328
      %v1240 = vunpack.c.h.b16 %v328
      %v1241 = vunpack.c.l.b16 %v329
      %v1242 = vunpack.c.h.b16 %v329
      %v1243 = vunpack.c.l.b16 %v330
      %v1244 = vunpack.c.h.b16 %v330
      %v1245 = vunpack.c.l.b16 %v331
      %v1246 = vunpack.c.h.b16 %v331
      %v1247 = vunpack.c.l.b16 %v332
      %v1248 = vunpack.c.l.b16 %v333
      %v1249 = vunpack.c.h.b16 %v333
      %v1250 = vunpack.c.l.b16 %v334
      %v1251 = vunpack.c.h.b16 %v334
      %v1252 = vunpack.c.l.b16 %v335
      %v1253 = vunpack.c.h.b16 %v335
      %v1254 = vunpack.c.l.b16 %v336
      %v1255 = vunpack.c.h.b16 %v336
      %v1256 = vunpack.c.l.b16 %v337
      %v1257 = vunpack.c.l.b16 %v338
      %v1258 = vunpack.c.h.b16 %v338
      %v1259 = vunpack.c.l.b16 %v339
      %v1260 = vunpack.c.h.b16 %v339
      %v1261 = vunpack.c.l.b16 %v340
      %v1262 = vunpack.c.h.b16 %v340
      %v1263 = vunpack.c.l.b16 %v341
      %v1264 = vunpack.c.h.b16 %v341
      %v1265 = vunpack.c.l.b16 %v342
      %v1266 = vunpack.c.l.b16 %v343
      %v1267 = vunpack.c.h.b16 %v343
      %v1268 = vunpack.c.l.b16 %v344
      %v1269 = vunpack.c.h.b16 %v344
      %v1270 = vunpack.c.l.b16 %v345
      %v1271 = vunpack.c.h.b16 %v345
      %v1272 = vunpack.c.l.b16 %v346
      %v1273 = vunpack.c.h.b16 %v346
      %v1274 = vunpack.c.l.b16 %v347
      %v1275 = vunpack.c.l.b16 %v348
      %v1276 = vunpack.c.h.b16 %v348
      %v1277 = vunpack.c.l.b16 %v349
      %v1278 = vunpack.c.h.b16 %v349
      %v1279 = vunpack.c.l.b16 %v350
      %v1280 = vunpack.c.h.b16 %v350
      %v1281 = vunpack.c.l.b16 %v351
      %v1282 = vunpack.c.h.b16 %v351
      %v1283 = vunpack.c.l.b16 %v352
      %v1284 = vunpack.c.l.b16 %v353
      %v1285 = vunpack.c.h.b16 %v353
      %v1286 = vunpack.c.l.b16 %v354
      %v1287 = vunpack.c.h.b16 %v354
      %v1288 = vunpack.c.l.b16 %v355
      %v1289 = vunpack.c.h.b16 %v355
      %v1290 = vunpack.c.l.b16 %v356
      %v1291 = vunpack.c.h.b16 %v356
      %v1292 = vunpack.c.l.b16 %v357
      %v1293 = vunpack.c.l.b16 %v358
      %v1294 = vunpack.c.h.b16 %v358
      %v1295 = vunpack.c.l.b16 %v359
      %v1296 = vunpack.c.h.b16 %v359
      %v1297 = vunpack.c.l.b16 %v360
      %v1298 = vunpack.c.h.b16 %v360
      %v1299 = vunpack.c.l.b16 %v361
      %v1300 = vunpack.c.h.b16 %v361
      %v1301 = vunpack.c.l.b16 %v362
      %v1302 = vunpack.c.l.b16 %v363
      %v1303 = vunpack.c.h.b16 %v363
      %v1304 = vunpack.c.l.b16 %v364
      %v1305 = vunpack.c.h.b16 %v364
      %v1306 = vunpack.c.l.b16 %v365
      %v1307 = vunpack.c.h.b16 %v365
      %v1308 = vunpack.c.l.b16 %v366
      %v1309 = vunpack.c.h.b16 %v366
      %v1310 = vunpack.c.l.b16 %v367
      %v1311 = vunpack.c.l.b16 %v368
      %v1312 = vunpack.c.h.b16 %v368
      %v1313 = vunpack.c.l.b16 %v369
      %v1314 = vunpack.c.h.b16 %v369
      %v1315 = vunpack.c.l.b16 %v370
      %v1316 = vunpack.c.h.b16 %v370
      %v1317 = vunpack.c.l.b16 %v371
      %v1318 = vunpack.c.h.b16 %v371
      %v1319 = vunpack.c.l.b16 %v372
      %v1320 = vunpack.c.l.b16 %v373
      %v1321 = vunpack.c.h.b16 %v373
      %v1322 = vunpack.c.l.b16 %v374
      %v1323 = vunpack.c.h.b16 %v374
      %v1324 = vunpack.c.l.b16 %v375
      %v1325 = vunpack.c.h.b16 %v375
      %v1326 = vunpack.c.l.b16 %v376
      %v1327 = vunpack.c.h.b16 %v376
      %v1328 = vunpack.c.l.b16 %v377
      %v1329 = vunpack.c.l.b16 %v378
      %v1330 = vunpack.c.h.b16 %v378
      %v1331 = vunpack.c.l.b16 %v379
      %v1332 = vunpack.c.h.b16 %v379
      %v1333 = vunpack.c.l.b16 %v380
      %v1334 = vunpack.c.h.b16 %v380
      %v1335 = vunpack.c.l.b16 %v381
      %v1336 = vunpack.c.h.b16 %v381
      %v1337 = vunpack.c.l.b16 %v382
      %v1338 = vunpack.c.l.b16 %v383
      %v1339 = vunpack.c.h.b16 %v383
      %v1340 = vunpack.c.l.b16 %v384
      %v1341 = vunpack.c.h.b16 %v384
      %v1342 = vunpack.c.l.b16 %v385
      %v1343 = vunpack.c.h.b16 %v385
      %v1344 = vunpack.c.l.b16 %v386
      %v1345 = vunpack.c.h.b16 %v386
      %v1346 = vunpack.c.l.b16 %v387
      %v1347 = vunpack.c.l.b16 %v388
      %v1348 = vunpack.c.h.b16 %v388
      %v1349 = vunpack.c.l.b16 %v389
      %v1350 = vunpack.c.h.b16 %v389
      %v1351 = vunpack.c.l.b16 %v390
      %v1352 = vunpack.c.h.b16 %v390
      %v1353 = vunpack.c.l.b16 %v391
      %v1354 = vunpack.c.h.b16 %v391
      %v1355 = vunpack.c.l.b16 %v392
      %v1356 = vunpack.c.l.b16 %v393
      %v1357 = vunpack.c.h.b16 %v393
      %v1358 = vunpack.c.l.b16 %v394
      %v1359 = vunpack.c.h.b16 %v394
      %v1360 = vunpack.c.l.b16 %v395
      %v1361 = vunpack.c.h.b16 %v395
      %v1362 = vunpack.c.l.b16 %v396
      %v1363 = vunpack.c.h.b16 %v396
      %v1364 = vunpack.c.l.b16 %v397
      %v1365 = vunpack.c.l.b16 %v398
      %v1366 = vunpack.c.h.b16 %v398
      %v1367 = vunpack.c.l.b16 %v399
      %v1368 = vunpack.c.h.b16 %v399
      %v1369 = vunpack.c.l.b16 %v400
      %v1370 = vunpack.c.h.b16 %v400
      %v1371 = vunpack.c.l.b16 %v401
      %v1372 = vunpack.c.h.b16 %v401
      %v1373 = vunpack.c.l.b16 %v402
      %v1374 = vunpack.c.l.b16 %v403
      %v1375 = vunpack.c.h.b16 %v403
      %v1376 = vunpack.c.l.b16 %v404
      %v1377 = vunpack.c.h.b16 %v404
      %v1378 = vunpack.c.l.b16 %v405
      %v1379 = vunpack.c.h.b16 %v405
      %v1380 = vunpack.c.l.b16 %v406
      %v1381 = vunpack.c.h.b16 %v406
      %v1382 = vunpack.c.l.b16 %v407
      %v1383 = vunpack.c.l.b16 %v408
      %v1384 = vunpack.c.h.b16 %v408
      %v1385 = vunpack.c.l.b16 %v409
      %v1386 = vunpack.c.h.b16 %v409
      %v1387 = vunpack.c.l.b16 %v410
      %v1388 = vunpack.c.h.b16 %v410
      %v1389 = vunpack.c.l.b16 %v411
      %v1390 = vunpack.c.h.b16 %v411
      %v1391 = vunpack.c.l.b16 %v412
      %v1392 = vunpack.c.l.b16 %v413
      %v1393 = vunpack.c.h.b16 %v413
      %v1394 = vunpack.c.l.b16 %v414
      %v1395 = vunpack.c.h.b16 %v414
      %v1396 = vunpack.c.l.b16 %v415
      %v1397 = vunpack.c.h.b16 %v415
      %v1398 = vunpack.c.l.b16 %v416
      %v1399 = vunpack.c.h.b16 %v416
      %v1400 = vunpack.c.l.b16 %v417
      %v1401 = vunpack.c.l.b16 %v418
      %v1402 = vunpack.c.h.b16 %v418
      %v1403 = vunpack.c.l.b16 %v419
      %v1404 = vunpack.c.h.b16 %v419
      %v1405 = vunpack.c.l.b16 %v420
      %v1406 = vunpack.c.h.b16 %v420
      %v1407 = vunpack.c.l.b16 %v421
      %v1408 = vunpack.c.h.b16 %v421
      %v1409 = vunpack.c.l.b16 %v422
      %v1410 = vunpack.c.l.b16 %v423
      %v1411 = vunpack.c.h.b16 %v423
      %v1412 = vunpack.c.l.b16 %v424
      %v1413 = vunpack.c.h.b16 %v424
      %v1414 = vunpack.c.l.b16 %v425
      %v1415 = vunpack.c.h.b16 %v425
      %v1416 = vunpack.c.l.b16 %v426
      %v1417 = vunpack.c.h.b16 %v426
      %v1418 = vunpack.c.l.b16 %v427
      %v1419 = vunpack.c.l.b16 %v428
      %v1420 = vunpack.c.h.b16 %v428
      %v1421 = vunpack.c.l.b16 %v429
      %v1422 = vunpack.c.h.b16 %v429
      %v1423 = vunpack.c.l.b16 %v430
      %v1424 = vunpack.c.h.b16 %v430
      %v1425 = vunpack.c.l.b16 %v431
      %v1426 = vunpack.c.h.b16 %v431
      %v1427 = vunpack.c.l.b16 %v432
      %v1428 = vunpack.c.l.b16 %v433
      %v1429 = vunpack.c.h.b16 %v433
      %v1430 = vunpack.c.l.b16 %v434
      %v1431 = vunpack.c.h.b16 %v434
      %v1432 = vunpack.c.l.b16 %v435
      %v1433 = vunpack.c.h.b16 %v435
      %v1434 = vunpack.c.l.b16 %v436
      %v1435 = vunpack.c.h.b16 %v436
      %v1436 = vunpack.c.l.b16 %v437
      %v1437 = vunpack.c.l.b16 %v438
      %v1438 = vunpack.c.h.b16 %v438
      %v1439 = vunpack.c.l.b16 %v439
      %v1440 = vunpack.c.h.b16 %v439
      %v1441 = vunpack.c.l.b16 %v440
      %v1442 = vunpack.c.h.b16 %v440
      %v1443 = vunpack.c.l.b16 %v441
      %v1444 = vunpack.c.h.b16 %v441
      %v1445 = vunpack.c.l.b16 %v442
      %v1446 = vunpack.c.l.b16 %v443
      %v1447 = vunpack.c.h.b16 %v443
      %v1448 = vunpack.c.l.b16 %v444
      %v1449 = vunpack.c.h.b16 %v444
      %v1450 = vunpack.c.l.b16 %v445
      %v1451 = vunpack.c.h.b16 %v445
      %v1452 = vunpack.c.l.b16 %v446
      %v1453 = vunpack.c.h.b16 %v446
      %v1454 = vunpack.c.l.b16 %v447
      %v1455 = vunpack.c.l.b16 %v448
      %v1456 = vunpack.c.h.b16 %v448
      %v1457 = vunpack.c.l.b16 %v449
      %v1458 = vunpack.c.h.b16 %v449
      %v1459 = vunpack.c.l.b16 %v450
      %v1460 = vunpack.c.h.b16 %v450
      %v1461 = vunpack.c.l.b16 %v451
      %v1462 = vunpack.c.h.b16 %v451
      %v1463 = vunpack.c.l.b16 %v452
      %v1464 = vunpack.c.l.b16 %v453
      %v1465 = vunpack.c.h.b16 %v453
      %v1466 = vunpack.c.l.b16 %v454
      %v1467 = vunpack.c.h.b16 %v454
      %v1468 = vunpack.c.l.b16 %v455
      %v1469 = vunpack.c.h.b16 %v455
      %v1470 = vunpack.c.l.b16 %v456
      %v1471 = vunpack.c.h.b16 %v456
      %v1472 = vunpack.c.l.b16 %v457
      %v1473 = vunpack.c.l.b16 %v458
      %v1474 = vunpack.c.h.b16 %v458
      %v1475 = vunpack.c.l.b16 %v459
      %v1476 = vunpack.c.h.b16 %v459
      %v1477 = vunpack.c.l.b16 %v460
      %v1478 = vunpack.c.h.b16 %v460
      %v1479 = vunpack.c.l.b16 %v461
      %v1480 = vunpack.c.h.b16 %v461
      %v1481 = vunpack.c.l.b16 %v462
      %v1482 = vunpack.c.l.b16 %v463
      %v1483 = vunpack.c.h.b16 %v463
      %v1484 = vunpack.c.l.b16 %v464
      %v1485 = vunpack.c.h.b16 %v464
      %v1486 = vunpack.c.l.b16 %v465
      %v1487 = vunpack.c.h.b16 %v465
      %v1488 = vunpack.c.l.b16 %v466
      %v1489 = vunpack.c.h.b16 %v466
      %v1490 = vunpack.c.l.b16 %v467
      %v1491 = vunpack.c.l.b16 %v468
      %v1492 = vunpack.c.h.b16 %v468
      %v1493 = vunpack.c.l.b16 %v469
      %v1494 = vunpack.c.h.b16 %v469
      %v1495 = vunpack.c.l.b16 %v470
      %v1496 = vunpack.c.h.b16 %v470
      %v1497 = vunpack.c.l.b16 %v471
      %v1498 = vunpack.c.h.b16 %v471
      %v1499 = vunpack.c.l.b16 %v472
      %v1500 = vunpack.c.l.b16 %v473
      %v1501 = vunpack.c.h.b16 %v473
      %v1502 = vunpack.c.l.b16 %v474
      %v1503 = vunpack.c.h.b16 %v474
      %v1504 = vunpack.c.l.b16 %v475
      %v1505 = vunpack.c.h.b16 %v475
      %v1506 = vunpack.c.l.b16 %v476
      %v1507 = vunpack.c.h.b16 %v476
      %v1508 = vunpack.c.l.b16 %v477
      %v1509 = vunpack.c.l.b16 %v478
      %v1510 = vunpack.c.h.b16 %v478
      %v1511 = vunpack.c.l.b16 %v479
      %v1512 = vunpack.c.h.b16 %v479
      %v1513 = vunpack.c.l.b16 %v480
      %v1514 = vunpack.c.h.b16 %v480
      %v1515 = vunpack.c.l.b16 %v481
      %v1516 = vunpack.c.h.b16 %v481
      %v1517 = vunpack.c.l.b16 %v482
      %v1518 = vunpack.c.l.b16 %v483
      %v1519 = vunpack.c.h.b16 %v483
      %v1520 = vunpack.c.l.b16 %v484
      %v1521 = vunpack.c.h.b16 %v484
      %v1522 = vunpack.c.l.b16 %v485
      %v1523 = vunpack.c.h.b16 %v485
      %v1524 = vunpack.c.l.b16 %v486
      %v1525 = vunpack.c.h.b16 %v486
      %v1526 = vunpack.c.l.b16 %v487
      %v1527 = vunpack.c.l.b16 %v488
      %v1528 = vunpack.c.h.b16 %v488
      %v1529 = vunpack.c.l.b16 %v489
      %v1530 = vunpack.c.h.b16 %v489
      %v1531 = vunpack.c.l.b16 %v490
      %v1532 = vunpack.c.h.b16 %v490
      %v1533 = vunpack.c.l.b16 %v491
      %v1534 = vunpack.c.h.b16 %v491
      %v1535 = vunpack.c.l.b16 %v492
      %v1536 = vunpack.c.l.b16 %v493
      %v1537 = vunpack.c.h.b16 %v493
      %v1538 = vunpack.c.l.b16 %v494
      %v1539 = vunpack.c.h.b16 %v494
      %v1540 = vunpack.c.l.b16 %v495
      %v1541 = vunpack.c.h.b16 %v495
      %v1542 = vunpack.c.l.b16 %v496
      %v1543 = vunpack.c.h.b16 %v496
      %v1544 = vunpack.c.l.b16 %v497
      %v1545 = vpack.c.b16 %v978, %v969
      %v1546 = vpack.c.b16 %v979, %v970
      %v1547 = vpack.c.b16 %v980, %v971
      %v1548 = vpack.c.b16 %v981, %v972
      %v1549 = vpack.c.b16 %v982, %v973
      %v1550 = vpack.c.b16 %v983, %v974
      %v1551 = vpack.c.b16 %v984, %v975
      %v1552 = vpack.c.b16 %v985, %v976
      %v1553 = vpack.c.b16 %v986, %v977
      %v1554 = vpack.c.b16 %v996, %v987
      %v1555 = vpack.c.b16 %v997, %v988
      %v1556 = vpack.c.b16 %v998, %v989
      %v1557 = vpack.c.b16 %v999, %v990
      %v1558 = vpack.c.b16 %v1000, %v991
      %v1559 = vpack.c.b16 %v1001, %v992
      %v1560 = vpack.c.b16 %v1002, %v993
      %v1561 = vpack.c.b16 %v1003, %v994
      %v1562 = vpack.c.b16 %v1004, %v995
      %v1563 = vpack.c.b16 %v1014, %v1005
      %v1564 = vpack.c.b16 %v1015, %v1006
      %v1565 = vpack.c.b16 %v1016, %v1007
      %v1566 = vpack.c.b16 %v1017, %v1008
      %v1567 = vpack.c.b16 %v1018, %v1009
      %v1568 = vpack.c.b16 %v1019, %v1010
      %v1569 = vpack.c.b16 %v1020, %v1011
      %v1570 = vpack.c.b16 %v1021, %v1012
      %v1571 = vpack.c.b16 %v1022, %v1013
      %v1572 = vpack.c.b16 %v1032, %v1023
      %v1573 = vpack.c.b16 %v1033, %v1024
      %v1574 = vpack.c.b16 %v1034, %v1025
      %v1575 = vpack.c.b16 %v1035, %v1026
      %v1576 = vpack.c.b16 %v1036, %v1027
      %v1577 = vpack.c.b16 %v1037, %v1028
      %v1578 = vpack.c.b16 %v1038, %v1029
      %v1579 = vpack.c.b16 %v1039, %v1030
      %v1580 = vpack.c.b16 %v1040, %v1031
      %v1581 = vpack.c.b16 %v1050, %v1041
      %v1582 = vpack.c.b16 %v1051, %v1042
      %v1583 = vpack.c.b16 %v1052, %v1043
      %v1584 = vpack.c.b16 %v1053, %v1044
      %v1585 = vpack.c.b16 %v1054, %v1045
      %v1586 = vpack.c.b16 %v1055, %v1046
      %v1587 = vpack.c.b16 %v1056, %v1047
      %v1588 = vpack.c.b16 %v1057, %v1048
      %v1589 = vpack.c.b16 %v1058, %v1049
      %v1590 = vpack.c.b16 %v1068, %v1059
      %v1591 = vpack.c.b16 %v1069, %v1060
      %v1592 = vpack.c.b16 %v1070, %v1061
      %v1593 = vpack.c.b16 %v1071, %v1062
      %v1594 = vpack.c.b16 %v1072, %v1063
      %v1595 = vpack.c.b16 %v1073, %v1064
      %v1596 = vpack.c.b16 %v1074, %v1065
      %v1597 = vpack.c.b16 %v1075, %v1066
      %v1598 = vpack.c.b16 %v1076, %v1067
      %v1599 = vpack.c.b16 %v1086, %v1077
      %v1600 = vpack.c.b16 %v1087, %v1078
      %v1601 = vpack.c.b16 %v1088, %v1079
      %v1602 = vpack.c.b16 %v1089, %v1080
      %v1603 = vpack.c.b16 %v1090, %v1081
      %v1604 = vpack.c.b16 %v1091, %v1082
      %v1605 = vpack.c.b16 %v1092, %v1083
      %v1606 = vpack.c.b16 %v1093, %v1084
      %v1607 = vpack.c.b16 %v1094, %v1085
      %v1608 = vpack.c.b16 %v1104, %v1095
      %v1609 = vpack.c.b16 %v1105, %v1096
      %v1610 = vpack.c.b16 %v1106, %v1097
      %v1611 = vpack.c.b16 %v1107, %v1098
      %v1612 = vpack.c.b16 %v1108, %v1099
      %v1613 = vpack.c.b16 %v1109, %v1100
      %v1614 = vpack.c.b16 %v1110, %v1101
      %v1615 = vpack.c.b16 %v1111, %v1102
      %v1616 = vpack.c.b16 %v1112, %v1103
      %v1617 = vpack.c.b16 %v1122, %v1113
      %v1618 = vpack.c.b16 %v1123, %v1114
      %v1619 = vpack.c.b16 %v1124, %v1115
      %v1620 = vpack.c.b16 %v1125, %v1116
      %v1621 = vpack.c.b16 %v1126, %v1117
      %v1622 = vpack.c.b16 %v1127, %v1118
      %v1623 = vpack.c.b16 %v1128, %v1119
      %v1624 = vpack.c.b16 %v1129, %v1120
      %v1625 = vpack.c.b16 %v1130, %v1121
      %v1626 = vpack.c.b16 %v1140, %v1131
      %v1627 = vpack.c.b16 %v1141, %v1132
      %v1628 = vpack.c.b16 %v1142, %v1133
      %v1629 = vpack.c.b16 %v1143, %v1134
      %v1630 = vpack.c.b16 %v1144, %v1135
      %v1631 = vpack.c.b16 %v1145, %v1136
      %v1632 = vpack.c.b16 %v1146, %v1137
      %v1633 = vpack.c.b16 %v1147, %v1138
      %v1634 = vpack.c.b16 %v1148, %v1139
      %v1635 = vpack.c.b16 %v1158, %v1149
      %v1636 = vpack.c.b16 %v1159, %v1150
      %v1637 = vpack.c.b16 %v1160, %v1151
      %v1638 = vpack.c.b16 %v1161, %v1152
      %v1639 = vpack.c.b16 %v1162, %v1153
      %v1640 = vpack.c.b16 %v1163, %v1154
      %v1641 = vpack.c.b16 %v1164, %v1155
      %v1642 = vpack.c.b16 %v1165, %v1156
      %v1643 = vpack.c.b16 %v1166, %v1157
      %v1644 = vpack.c.b16 %v1176, %v1167
      %v1645 = vpack.c.b16 %v1177, %v1168
      %v1646 = vpack.c.b16 %v1178, %v1169
      %v1647 = vpack.c.b16 %v1179, %v1170
      %v1648 = vpack.c.b16 %v1180, %v1171
      %v1649 = vpack.c.b16 %v1181, %v1172
      %v1650 = vpack.c.b16 %v1182, %v1173
      %v1651 = vpack.c.b16 %v1183, %v1174
      %v1652 = vpack.c.b16 %v1184, %v1175
      %v1653 = vpack.c.b16 %v1194, %v1185
      %v1654 = vpack.c.b16 %v1195, %v1186
      %v1655 = vpack.c.b16 %v1196, %v1187
      %v1656 = vpack.c.b16 %v1197, %v1188
      %v1657 = vpack.c.b16 %v1198, %v1189
      %v1658 = vpack.c.b16 %v1199, %v1190
      %v1659 = vpack.c.b16 %v1200, %v1191
      %v1660 = vpack.c.b16 %v1201, %v1192
      %v1661 = vpack.c.b16 %v1202, %v1193
      %v1662 = vpack.c.b16 %v1212, %v1203
      %v1663 = vpack.c.b16 %v1213, %v1204
      %v1664 = vpack.c.b16 %v1214, %v1205
      %v1665 = vpack.c.b16 %v1215, %v1206
      %v1666 = vpack.c.b16 %v1216, %v1207
      %v1667 = vpack.c.b16 %v1217, %v1208
      %v1668 = vpack.c.b16 %v1218, %v1209
      %v1669 = vpack.c.b16 %v1219, %v1210
      %v1670 = vpack.c.b16 %v1220, %v1211
      %v1671 = vpack.c.b16 %v1230, %v1221
      %v1672 = vpack.c.b16 %v1231, %v1222
      %v1673 = vpack.c.b16 %v1232, %v1223
      %v1674 = vpack.c.b16 %v1233, %v1224
      %v1675 = vpack.c.b16 %v1234, %v1225
      %v1676 = vpack.c.b16 %v1235, %v1226
      %v1677 = vpack.c.b16 %v1236, %v1227
      %v1678 = vpack.c.b16 %v1237, %v1228
      %v1679 = vpack.c.b16 %v1238, %v1229
      %v1680 = vpack.c.b16 %v1248, %v1239
      %v1681 = vpack.c.b16 %v1249, %v1240
      %v1682 = vpack.c.b16 %v1250, %v1241
      %v1683 = vpack.c.b16 %v1251, %v1242
      %v1684 = vpack.c.b16 %v1252, %v1243
      %v1685 = vpack.c.b16 %v1253, %v1244
      %v1686 = vpack.c.b16 %v1254, %v1245
      %v1687 = vpack.c.b16 %v1255, %v1246
      %v1688 = vpack.c.b16 %v1256, %v1247
      %v1689 = vpack.c.b16 %v1266, %v1257
      %v1690 = vpack.c.b16 %v1267, %v1258
      %v1691 = vpack.c.b16 %v1268, %v1259
      %v1692 = vpack.c.b16 %v1269, %v1260
      %v1693 = vpack.c.b16 %v1270, %v1261
      %v1694 = vpack.c.b16 %v1271, %v1262
      %v1695 = vpack.c.b16 %v1272, %v1263
      %v1696 = vpack.c.b16 %v1273, %v1264
      %v1697 = vpack.c.b16 %v1274, %v1265
      %v1698 = vpack.c.b16 %v1284, %v1275
      %v1699 = vpack.c.b16 %v1285, %v1276
      %v1700 = vpack.c.b16 %v1286, %v1277
      %v1701 = vpack.c.b16 %v1287, %v1278
      %v1702 = vpack.c.b16 %v1288, %v1279
      %v1703 = vpack.c.b16 %v1289, %v1280
      %v1704 = vpack.c.b16 %v1290, %v1281
      %v1705 = vpack.c.b16 %v1291, %v1282
      %v1706 = vpack.c.b16 %v1292, %v1283
      %v1707 = vpack.c.b16 %v1302, %v1293
      %v1708 = vpack.c.b16 %v1303, %v1294
      %v1709 = vpack.c.b16 %v1304, %v1295
      %v1710 = vpack.c.b16 %v1305, %v1296
      %v1711 = vpack.c.b16 %v1306, %v1297
      %v1712 = vpack.c.b16 %v1307, %v1298
      %v1713 = vpack.c.b16 %v1308, %v1299
      %v1714 = vpack.c.b16 %v1309, %v1300
      %v1715 = vpack.c.b16 %v1310, %v1301
      %v1716 = vpack.c.b16 %v1320, %v1311
      %v1717 = vpack.c.b16 %v1321, %v1312
      %v1718 = vpack.c.b16 %v1322, %v1313
      %v1719 = vpack.c.b16 %v1323, %v1314
      %v1720 = vpack.c.b16 %v1324, %v1315
      %v1721 = vpack.c.b16 %v1325, %v1316
      %v1722 = vpack.c.b16 %v1326, %v1317
      %v1723 = vpack.c.b16 %v1327, %v1318
      %v1724 = vpack.c.b16 %v1328, %v1319
      %v1725 = vpack.c.b16 %v1338, %v1329
      %v1726 = vpack.c.b16 %v1339, %v1330
      %v1727 = vpack.c.b16 %v1340, %v1331
      %v1728 = vpack.c.b16 %v1341, %v1332
      %v1729 = vpack.c.b16 %v1342, %v1333
      %v1730 = vpack.c.b16 %v1343, %v1334
      %v1731 = vpack.c.b16 %v1344, %v1335
      %v1732 = vpack.c.b16 %v1345, %v1336
      %v1733 = vpack.c.b16 %v1346, %v1337
      %v1734 = vpack.c.b16 %v1356, %v1347
      %v1735 = vpack.c.b16 %v1357, %v1348
      %v1736 = vpack.c.b16 %v1358, %v1349
      %v1737 = vpack.c.b16 %v1359, %v1350
      %v1738 = vpack.c.b16 %v1360, %v1351
      %v1739 = vpack.c.b16 %v1361, %v1352
      %v1740 = vpack.c.b16 %v1362, %v1353
      %v1741 = vpack.c.b16 %v1363, %v1354
      %v1742 = vpack.c.b16 %v1364, %v1355
      %v1743 = vpack.c.b16 %v1374, %v1365
      %v1744 = vpack.c.b16 %v1375, %v1366
      %v1745 = vpack.c.b16 %v1376, %v1367
      %v1746 = vpack.c.b16 %v1377, %v1368
      %v1747 = vpack.c.b16 %v1378, %v1369
      %v1748 = vpack.c.b16 %v1379, %v1370
      %v1749 = vpack.c.b16 %v1380, %v1371
      %v1750 = vpack.c.b16 %v1381, %v1372
      %v1751 = vpack.c.b16 %v1382, %v1373
      %v1752 = vpack.c.b16 %v1392, %v1383
      %v1753 = vpack.c.b16 %v1393, %v1384
      %v1754 = vpack.c.b16 %v1394, %v1385
      %v1755 = vpack.c.b16 %v1395, %v1386
      %v1756 = vpack.c.b16 %v1396, %v1387
      %v1757 = vpack.c.b16 %v1397, %v1388
      %v1758 = vpack.c.b16 %v1398, %v1389
      %v1759 = vpack.c.b16 %v1399, %v1390
      %v1760 = vpack.c.b16 %v1400, %v1391
      %v1761 = vpack.c.b16 %v1410, %v1401
      %v1762 = vpack.c.b16 %v1411, %v1402
      %v1763 = vpack.c.b16 %v1412, %v1403
      %v1764 = vpack.c.b16 %v1413, %v1404
      %v1765 = vpack.c.b16 %v1414, %v1405
      %v1766 = vpack.c.b16 %v1415, %v1406
      %v1767 = vpack.c.b16 %v1416, %v1407
      %v1768 = vpack.c.b16 %v1417, %v1408
      %v1769 = vpack.c.b16 %v1418, %v1409
      %v1770 = vpack.c.b16 %v1428, %v1419
      %v1771 = vpack.c.b16 %v1429, %v1420
      %v1772 = vpack.c.b16 %v1430, %v1421
      %v1773 = vpack.c.b16 %v1431, %v1422
      %v1774 = vpack.c.b16 %v1432, %v1423
      %v1775 = vpack.c.b16 %v1433, %v1424
      %v1776 = vpack.c.b16 %v1434, %v1425
      %v1777 = vpack.c.b16 %v1435, %v1426
      %v1778 = vpack.c.b16 %v1436, %v1427
      %v1779 = vpack.c.b16 %v1446, %v1437
      %v1780 = vpack.c.b16 %v1447, %v1438
      %v1781 = vpack.c.b16 %v1448, %v1439
      %v1782 = vpack.c.b16 %v1449, %v1440
      %v1783 = vpack.c.b16 %v1450, %v1441
      %v1784 = vpack.c.b16 %v1451, %v1442
      %v1785 = vpack.c.b16 %v1452, %v1443
      %v1786 = vpack.c.b16 %v1453, %v1444
      %v1787 = vpack.c.b16 %v1454, %v1445
      %v1788 = vpack.c.b16 %v1464, %v1455
      %v1789 = vpack.c.b16 %v1465, %v1456
      %v1790 = vpack.c.b16 %v1466, %v1457
      %v1791 = vpack.c.b16 %v1467, %v1458
      %v1792 = vpack.c.b16 %v1468, %v1459
      %v1793 = vpack.c.b16 %v1469, %v1460
      %v1794 = vpack.c.b16 %v1470, %v1461
      %v1795 = vpack.c.b16 %v1471, %v1462
      %v1796 = vpack.c.b16 %v1472, %v1463
      %v1797 = vpack.c.b16 %v1482, %v1473
      %v1798 = vpack.c.b16 %v1483, %v1474
      %v1799 = vpack.c.b16 %v1484, %v1475
      %v1800 = vpack.c.b16 %v1485, %v1476
      %v1801 = vpack.c.b16 %v1486, %v1477
      %v1802 = vpack.c.b16 %v1487, %v1478
      %v1803 = vpack.c.b16 %v1488, %v1479
      %v1804 = vpack.c.b16 %v1489, %v1480
      %v1805 = vpack.c.b16 %v1490, %v1481
      %v1806 = vpack.c.b16 %v1500, %v1491
      %v1807 = vpack.c.b16 %v1501, %v1492
      %v1808 = vpack.c.b16 %v1502, %v1493
      %v1809 = vpack.c.b16 %v1503, %v1494
      %v1810 = vpack.c.b16 %v1504, %v1495
      %v1811 = vpack.c.b16 %v1505, %v1496
      %v1812 = vpack.c.b16 %v1506, %v1497
      %v1813 = vpack.c.b16 %v1507, %v1498
      %v1814 = vpack.c.b16 %v1508, %v1499
      %v1815 = vpack.c.b16 %v1518, %v1509
      %v1816 = vpack.c.b16 %v1519, %v1510
      %v1817 = vpack.c.b16 %v1520, %v1511
      %v1818 = vpack.c.b16 %v1521, %v1512
      %v1819 = vpack.c.b16 %v1522, %v1513
      %v1820 = vpack.c.b16 %v1523, %v1514
      %v1821 = vpack.c.b16 %v1524, %v1515
      %v1822 = vpack.c.b16 %v1525, %v1516
      %v1823 = vpack.c.b16 %v1526, %v1517
      %v1824 = vpack.c.b16 %v1536, %v1527
      %v1825 = vpack.c.b16 %v1537, %v1528
      %v1826 = vpack.c.b16 %v1538, %v1529
      %v1827 = vpack.c.b16 %v1539, %v1530
      %v1828 = vpack.c.b16 %v1540, %v1531
      %v1829 = vpack.c.b16 %v1541, %v1532
      %v1830 = vpack.c.b16 %v1542, %v1533
      %v1831 = vpack.c.b16 %v1543, %v1534
      %v1832 = vpack.c.b16 %v1544, %v1535
      %v2265 = vunpack.c.l.b16 %v498
      %v2266 = vunpack.c.l.b16 %v499
      %v2267 = vunpack.c.l.b16 %v500
      %v2268 = vunpack.c.l.b16 %v501
      %v2269 = vunpack.c.l.b16 %v502
      %v2270 = vunpack.c.l.b16 %v503
      %v2271 = vunpack.c.l.b16 %v504
      %v2272 = vunpack.c.l.b16 %v505
      %v2273 = vunpack.c.l.b16 %v506
      %v2274 = vunpack.c.l.b16 %v507
      %v2275 = vunpack.c.l.b16 %v508
      %v2276 = vunpack.c.l.b16 %v509
      %v2277 = vunpack.c.l.b16 %v510
      %v2278 = vunpack.c.l.b16 %v511
      %v2279 = vunpack.c.l.b16 %v512
      %v2280 = vunpack.c.l.b16 %v513
      %v2281 = vunpack.c.l.b16 %v514
      %v2282 = vunpack.c.l.b16 %v515
      %v2283 = vunpack.c.l.b16 %v516
      %v2284 = vunpack.c.l.b16 %v517
      %v2285 = vunpack.c.l.b16 %v518
      %v2286 = vunpack.c.l.b16 %v519
      %v2287 = vunpack.c.l.b16 %v520
      %v2288 = vunpack.c.l.b16 %v521
      %v2289 = vunpack.c.l.b16 %v522
      %v2290 = vunpack.c.l.b16 %v523
      %v2291 = vunpack.c.l.b16 %v524
      %v2292 = vunpack.c.l.b16 %v525
      %v2293 = vunpack.c.l.b16 %v526
      %v2294 = vunpack.c.l.b16 %v527
      %v2295 = vunpack.c.l.b16 %v528
      %v2296 = vunpack.c.l.b16 %v529
      %v2297 = vunpack.c.l.b16 %v530
      %v2298 = vunpack.c.l.b16 %v531
      %v2299 = vunpack.c.l.b16 %v532
      %v2300 = vunpack.c.l.b16 %v533
      %v2301 = vunpack.c.l.b16 %v534
      %v2302 = vunpack.c.l.b16 %v535
      %v2303 = vunpack.c.l.b16 %v536
      %v2304 = vunpack.c.l.b16 %v537
      %v2305 = vunpack.c.l.b16 %v538
      %v2306 = vunpack.c.l.b16 %v539
      %v2307 = vunpack.c.l.b16 %v540
      %v2308 = vunpack.c.l.b16 %v541
      %v2309 = vunpack.c.l.b16 %v542
      %v2310 = vunpack.c.l.b16 %v543
      %v2311 = vunpack.c.l.b16 %v544
      %v2312 = vunpack.c.l.b16 %v545
      %v2313 = vunpack.c.l.b16 %v546
      %v2314 = vunpack.c.l.b16 %v547
      %v2315 = vunpack.c.l.b16 %v548
      %v2316 = vunpack.c.l.b16 %v549
      %v2317 = vunpack.c.l.b16 %v550
      %v2318 = vunpack.c.l.b16 %v551
      %v2319 = vunpack.c.l.b16 %v552
      %v2320 = vunpack.c.l.b16 %v553
      %v2321 = vunpack.c.l.b16 %v554
      %v2322 = vunpack.c.l.b16 %v555
      %v2323 = vunpack.c.l.b16 %v556
      %v2324 = vunpack.c.l.b16 %v557
      %v2325 = vunpack.c.l.b16 %v558
      %v2326 = vunpack.c.l.b16 %v559
      %v2327 = vunpack.c.l.b16 %v560
      %v2328 = vunpack.c.l.b16 %v561
      %v2329 = vunpack.c.l.b16 %v562
      %v2330 = vunpack.c.l.b16 %v563
      %v2331 = vunpack.c.l.b16 %v564
      %v2332 = vunpack.c.l.b16 %v565
      %v2333 = vunpack.c.l.b16 %v566
      %v2334 = vunpack.c.l.b16 %v567
      %v2335 = vunpack.c.l.b16 %v568
      %v2336 = vunpack.c.l.b16 %v569
      %v2337 = vunpack.c.l.b16 %v570
      %v2338 = vunpack.c.l.b16 %v571
      %v2339 = vunpack.c.l.b16 %v572
      %v2340 = vunpack.c.l.b16 %v573
      %v2341 = vunpack.c.l.b16 %v574
      %v2342 = vunpack.c.l.b16 %v575
      %v2343 = vunpack.c.l.b16 %v576
      %v2344 = vunpack.c.l.b16 %v577
      %v2345 = vunpack.c.l.b16 %v578
      %v2346 = vunpack.c.l.b16 %v579
      %v2347 = vunpack.c.l.b16 %v580
      %v2348 = vunpack.c.l.b16 %v581
      %v2349 = vunpack.c.l.b16 %v582
      %v2350 = vunpack.c.l.b16 %v583
      %v2351 = vunpack.c.l.b16 %v584
      %v2352 = vunpack.c.l.b16 %v585
      %v2353 = vunpack.c.l.b16 %v586
      %v2354 = vunpack.c.l.b16 %v587
      %v2355 = vunpack.c.l.b16 %v588
      %v2356 = vunpack.c.l.b16 %v589
      %v2357 = vunpack.c.l.b16 %v590
      %v2358 = vunpack.c.l.b16 %v591
      %v2359 = vunpack.c.l.b16 %v592
      %v2360 = vunpack.c.l.b16 %v593
      %v2361 = vunpack.c.l.b16 %v594
      %v2362 = vunpack.c.l.b16 %v595
      %v2363 = vunpack.c.l.b16 %v596
      %v2364 = vunpack.c.l.b16 %v597
      %v2365 = vunpack.c.l.b16 %v598
      %v2366 = vunpack.c.l.b16 %v599
      %v2367 = vunpack.c.l.b16 %v600
      %v2368 = vunpack.c.l.b16 %v601
      %v2369 = vunpack.c.l.b16 %v602
      %v2370 = vunpack.c.l.b16 %v603
      %v2371 = vunpack.c.l.b16 %v604
      %v2372 = vunpack.c.l.b16 %v605
      %v2373 = vunpack.c.l.b16 %v606
      %v2374 = vunpack.c.l.b16 %v607
      %v2375 = vunpack.c.l.b16 %v608
      %v2376 = vunpack.c.l.b16 %v609
      %v2377 = vunpack.c.l.b16 %v610
      %v2378 = vunpack.c.l.b16 %v611
      %v2379 = vunpack.c.l.b16 %v612
      %v2380 = vunpack.c.l.b16 %v613
      %v2381 = vunpack.c.l.b16 %v614
      %v2382 = vunpack.c.l.b16 %v615
      %v2383 = vunpack.c.l.b16 %v616
      %v2384 = vunpack.c.l.b16 %v617
      %v2385 = vunpack.c.l.b16 %v618
      %v2386 = vunpack.c.l.b16 %v619
      %v2387 = vunpack.c.l.b16 %v620
      %v2388 = vunpack.c.l.b16 %v621
      %v2389 = vunpack.c.l.b16 %v622
      %v2390 = vunpack.c.l.b16 %v623
      %v2391 = vunpack.c.l.b16 %v624
      %v2392 = vunpack.c.l.b16 %v625
      %v2393 = vunpack.c.l.b16 %v626
      %v2394 = vunpack.c.l.b16 %v627
      %v2395 = vunpack.c.l.b16 %v628
      %v2396 = vunpack.c.l.b16 %v629
      %v2397 = vunpack.c.l.b16 %v630
      %v2398 = vunpack.c.l.b16 %v631
      %v2399 = vunpack.c.l.b16 %v632
      %v2400 = vunpack.c.l.b16 %v633
      %v2401 = vunpack.c.l.b16 %v634
      %v2402 = vunpack.c.l.b16 %v635
      %v2403 = vunpack.c.l.b16 %v636
      %v2404 = vunpack.c.l.b16 %v637
      %v2405 = vunpack.c.l.b16 %v638
      %v2406 = vunpack.c.l.b16 %v639
      %v2407 = vunpack.c.l.b16 %v640
      %v2408 = vunpack.c.l.b16 %v641
      %v2409 = vpack.c.b16 %v2266, %v2265
      %v2410 = vpack.c.b16 %v2268, %v2267
      %v2411 = vpack.c.b16 %v2270, %v2269
      %v2412 = vpack.c.b16 %v2272, %v2271
      %v2413 = vpack.c.b16 %v2274, %v2273
      %v2414 = vpack.c.b16 %v2276, %v2275
      %v2415 = vpack.c.b16 %v2278, %v2277
      %v2416 = vpack.c.b16 %v2280, %v2279
      %v2417 = vpack.c.b16 %v2282, %v2281
      %v2418 = vpack.c.b16 %v2284, %v2283
      %v2419 = vpack.c.b16 %v2286, %v2285
      %v2420 = vpack.c.b16 %v2288, %v2287
      %v2421 = vpack.c.b16 %v2290, %v2289
      %v2422 = vpack.c.b16 %v2292, %v2291
      %v2423 = vpack.c.b16 %v2294, %v2293
      %v2424 = vpack.c.b16 %v2296, %v2295
      %v2425 = vpack.c.b16 %v2298, %v2297
      %v2426 = vpack.c.b16 %v2300, %v2299
      %v2427 = vpack.c.b16 %v2302, %v2301
      %v2428 = vpack.c.b16 %v2304, %v2303
      %v2429 = vpack.c.b16 %v2306, %v2305
      %v2430 = vpack.c.b16 %v2308, %v2307
      %v2431 = vpack.c.b16 %v2310, %v2309
      %v2432 = vpack.c.b16 %v2312, %v2311
      %v2433 = vpack.c.b16 %v2314, %v2313
      %v2434 = vpack.c.b16 %v2316, %v2315
      %v2435 = vpack.c.b16 %v2318, %v2317
      %v2436 = vpack.c.b16 %v2320, %v2319
      %v2437 = vpack.c.b16 %v2322, %v2321
      %v2438 = vpack.c.b16 %v2324, %v2323
      %v2439 = vpack.c.b16 %v2326, %v2325
      %v2440 = vpack.c.b16 %v2328, %v2327
      %v2441 = vpack.c.b16 %v2330, %v2329
      %v2442 = vpack.c.b16 %v2332, %v2331
      %v2443 = vpack.c.b16 %v2334, %v2333
      %v2444 = vpack.c.b16 %v2336, %v2335
      %v2445 = vpack.c.b16 %v2338, %v2337
      %v2446 = vpack.c.b16 %v2340, %v2339
      %v2447 = vpack.c.b16 %v2342, %v2341
      %v2448 = vpack.c.b16 %v2344, %v2343
      %v2449 = vpack.c.b16 %v2346, %v2345
      %v2450 = vpack.c.b16 %v2348, %v2347
      %v2451 = vpack.c.b16 %v2350, %v2349
      %v2452 = vpack.c.b16 %v2352, %v2351
      %v2453 = vpack.c.b16 %v2354, %v2353
      %v2454 = vpack.c.b16 %v2356, %v2355
      %v2455 = vpack.c.b16 %v2358, %v2357
      %v2456 = vpack.c.b16 %v2360, %v2359
      %v2457 = vpack.c.b16 %v2362, %v2361
      %v2458 = vpack.c.b16 %v2364, %v2363
      %v2459 = vpack.c.b16 %v2366, %v2365
      %v2460 = vpack.c.b16 %v2368, %v2367
      %v2461 = vpack.c.b16 %v2370, %v2369
      %v2462 = vpack.c.b16 %v2372, %v2371
      %v2463 = vpack.c.b16 %v2374, %v2373
      %v2464 = vpack.c.b16 %v2376, %v2375
      %v2465 = vpack.c.b16 %v2378, %v2377
      %v2466 = vpack.c.b16 %v2380, %v2379
      %v2467 = vpack.c.b16 %v2382, %v2381
      %v2468 = vpack.c.b16 %v2384, %v2383
      %v2469 = vpack.c.b16 %v2386, %v2385
      %v2470 = vpack.c.b16 %v2388, %v2387
      %v2471 = vpack.c.b16 %v2390, %v2389
      %v2472 = vpack.c.b16 %v2392, %v2391
      %v2473 = vpack.c.b16 %v2394, %v2393
      %v2474 = vpack.c.b16 %v2396, %v2395
      %v2475 = vpack.c.b16 %v2398, %v2397
      %v2476 = vpack.c.b16 %v2400, %v2399
      %v2477 = vpack.c.b16 %v2402, %v2401
      %v2478 = vpack.c.b16 %v2404, %v2403
      %v2479 = vpack.c.b16 %v2406, %v2405
      %v2480 = vpack.c.b16 %v2408, %v2407
      %2553 = vmatprep.subr.bf16.mxu0 0
      %2554 = vmatpush1.bf16.msra.mxu0 %v2409
      %2555 = vmatprep.subr.bf16.mxu0 0
      %2556 = vmatpush1.bf16.msra.mxu0 %v2410
      %2557 = vmatprep.subr.bf16.mxu0 0
      %2558 = vmatpush1.bf16.msra.mxu0 %v2411
      %2559 = vmatprep.subr.bf16.mxu0 0
      %2560 = vmatpush1.bf16.msra.mxu0 %v2412
      %2561 = vmatprep.subr.bf16.mxu0 0
      %2562 = vmatpush1.bf16.msra.mxu0 %v2413
      %2563 = vmatprep.subr.bf16.mxu0 0
      %2564 = vmatpush1.bf16.msra.mxu0 %v2414
      %2565 = vmatprep.subr.bf16.mxu0 0
      %2566 = vmatpush1.bf16.msra.mxu0 %v2415
      %2567 = vmatprep.subr.bf16.mxu0 0
      %2568 = vmatpush1.bf16.msra.mxu0 %v2416
      %2569 = vmatprep.subr.bf16.mxu0 0
      %2570 = vmatpush1.bf16.msra.mxu0 %v2417
      %2571 = vmatprep.subr.bf16.mxu0 0
      %2572 = vmatpush1.bf16.msra.mxu0 %v2418
      %2573 = vmatprep.subr.bf16.mxu0 0
      %2574 = vmatpush1.bf16.msra.mxu0 %v2419
      %2575 = vmatprep.subr.bf16.mxu0 0
      %2576 = vmatpush1.bf16.msra.mxu0 %v2420
      %2577 = vmatprep.subr.bf16.mxu0 0
      %2578 = vmatpush1.bf16.msra.mxu0 %v2421
      %2579 = vmatprep.subr.bf16.mxu0 0
      %2580 = vmatpush1.bf16.msra.mxu0 %v2422
      %2581 = vmatprep.subr.bf16.mxu0 0
      %2582 = vmatpush1.bf16.msra.mxu0 %v2423
      %2583 = vmatprep.subr.bf16.mxu0 0
      %2584 = vmatpush1.bf16.msra.mxu0 %v2424
      %2585 = vmatprep.mubr.bf16.mxu0 %v1546
      %2586 = vmatmul.mubr.bf16.gmra.mrb[0].mxu0 %v1545
      %v2587 = vpop.f32.mrb[0].mxu0
      %v2588 = vadd.f32 %v647, %v2587
      %v2589 = vpop.f32.mrb[0].mxu0
      %v2590 = vpop.f32.mrb[0].mxu0
      %v2591 = vadd.f32 %v647, %v2590
      %v2592 = vpop.f32.mrb[0].mxu0
      %2593 = vmatprep.mubr.bf16.mxu0 %v1555
      %2594 = vmatmul.mubr.bf16.gmra.mrb[0].mxu0 %v1554
      %v2595 = vpop.f32.mrb[0].mxu0
      %v2596 = vadd.f32 %v647, %v2595
      %v2597 = vpop.f32.mrb[0].mxu0
      %v2598 = vpop.f32.mrb[0].mxu0
      %v2599 = vadd.f32 %v647, %v2598
      %v2600 = vpop.f32.mrb[0].mxu0
      %2601 = vmatprep.mubr.bf16.mxu0 %v1564
      %2602 = vmatmul.mubr.bf16.gmra.mrb[0].mxu0 %v1563
      %v2603 = vpop.f32.mrb[0].mxu0
      %v2604 = vadd.f32 %v647, %v2603
      %v2605 = vpop.f32.mrb[0].mxu0
      %v2606 = vpop.f32.mrb[0].mxu0
      %v2607 = vadd.f32 %v647, %v2606
      %v2608 = vpop.f32.mrb[0].mxu0
      %2609 = vmatprep.mubr.bf16.mxu0 %v1573
      %2610 = vmatmul.mubr.bf16.gmra.mrb[0].mxu0 %v1572
      %v2611 = vpop.f32.mrb[0].mxu0
      %v2612 = vadd.f32 %v647, %v2611
      %v2613 = vpop.f32.mrb[0].mxu0
      %v2614 = vpop.f32.mrb[0].mxu0
      %v2615 = vadd.f32 %v647, %v2614
      %v2616 = vpop.f32.mrb[0].mxu0
      %2617 = vmatprep.mubr.bf16.mxu0 %v1582
      %2618 = vmatmul.mubr.bf16.gmra.mrb[0].mxu0 %v1581
      %v2619 = vpop.f32.mrb[0].mxu0
      %v2620 = vadd.f32 %v647, %v2619
      %v2621 = vpop.f32.mrb[0].mxu0
      %v2622 = vpop.f32.mrb[0].mxu0
      %v2623 = vadd.f32 %v647, %v2622
      %v2624 = vpop.f32.mrb[0].mxu0
      %2625 = vmatprep.mubr.bf16.mxu0 %v1591
      %2626 = vmatmul.mubr.bf16.gmra.mrb[0].mxu0 %v1590
      %v2627 = vpop.f32.mrb[0].mxu0
      %v2628 = vadd.f32 %v647, %v2627
      %v2629 = vpop.f32.mrb[0].mxu0
      %v2630 = vpop.f32.mrb[0].mxu0
      %v2631 = vadd.f32 %v647, %v2630
      %v2632 = vpop.f32.mrb[0].mxu0
      %2633 = vmatprep.mubr.bf16.mxu0 %v1600
      %2634 = vmatmul.mubr.bf16.gmra.mrb[0].mxu0 %v1599
      %v2635 = vpop.f32.mrb[0].mxu0
      %v2636 = vadd.f32 %v647, %v2635
      %v2637 = vpop.f32.mrb[0].mxu0
      %v2638 = vpop.f32.mrb[0].mxu0
      %v2639 = vadd.f32 %v647, %v2638
      %v2640 = vpop.f32.mrb[0].mxu0
      %2641 = vmatprep.mubr.bf16.mxu0 %v1609
      %2642 = vmatmul.mubr.bf16.gmra.mrb[0].mxu0 %v1608
      %v2643 = vpop.f32.mrb[0].mxu0
      %v2644 = vadd.f32 %v647, %v2643
      %v2645 = vpop.f32.mrb[0].mxu0
      %v2646 = vpop.f32.mrb[0].mxu0
      %v2647 = vadd.f32 %v647, %v2646
      %v2648 = vpop.f32.mrb[0].mxu0
      %2649 = vmatprep.mubr.bf16.mxu0 %v1618
      %2650 = vmatmul.mubr.bf16.gmra.mrb[0].mxu0 %v1617
      %v2651 = vpop.f32.mrb[0].mxu0
      %v2652 = vadd.f32 %v647, %v2651
      %v2653 = vpop.f32.mrb[0].mxu0
      %v2654 = vpop.f32.mrb[0].mxu0
      %v2655 = vadd.f32 %v647, %v2654
      %v2656 = vpop.f32.mrb[0].mxu0
      %2657 = vmatprep.mubr.bf16.mxu0 %v1627
      %2658 = vmatmul.mubr.bf16.gmra.mrb[0].mxu0 %v1626
      %v2659 = vpop.f32.mrb[0].mxu0
      %v2660 = vadd.f32 %v647, %v2659
      %v2661 = vpop.f32.mrb[0].mxu0
      %v2662 = vpop.f32.mrb[0].mxu0
      %v2663 = vadd.f32 %v647, %v2662
      %v2664 = vpop.f32.mrb[0].mxu0
      %2665 = vmatprep.mubr.bf16.mxu0 %v1636
      %2666 = vmatmul.mubr.bf16.gmra.mrb[0].mxu0 %v1635
      %v2667 = vpop.f32.mrb[0].mxu0
      %v2668 = vadd.f32 %v647, %v2667
      %v2669 = vpop.f32.mrb[0].mxu0
      %v2670 = vpop.f32.mrb[0].mxu0
      %v2671 = vadd.f32 %v647, %v2670
      %v2672 = vpop.f32.mrb[0].mxu0
      %2673 = vmatprep.mubr.bf16.mxu0 %v1645
      %2674 = vmatmul.mubr.bf16.gmra.mrb[0].mxu0 %v1644
      %v2675 = vpop.f32.mrb[0].mxu0
      %v2676 = vadd.f32 %v647, %v2675
      %v2677 = vpop.f32.mrb[0].mxu0
      %v2678 = vpop.f32.mrb[0].mxu0
      %v2679 = vadd.f32 %v647, %v2678
      %v2680 = vpop.f32.mrb[0].mxu0
      %2681 = vmatprep.mubr.bf16.mxu0 %v1654
      %2682 = vmatmul.mubr.bf16.gmra.mrb[0].mxu0 %v1653
      %v2683 = vpop.f32.mrb[0].mxu0
      %v2684 = vadd.f32 %v647, %v2683
      %v2685 = vpop.f32.mrb[0].mxu0
      %v2686 = vpop.f32.mrb[0].mxu0
      %v2687 = vadd.f32 %v647, %v2686
      %v2688 = vpop.f32.mrb[0].mxu0
      %2689 = vmatprep.mubr.bf16.mxu0 %v1663
      %2690 = vmatmul.mubr.bf16.gmra.mrb[0].mxu0 %v1662
      %v2691 = vpop.f32.mrb[0].mxu0
      %v2692 = vadd.f32 %v647, %v2691
      %v2693 = vpop.f32.mrb[0].mxu0
      %v2694 = vpop.f32.mrb[0].mxu0
      %v2695 = vadd.f32 %v647, %v2694
      %v2696 = vpop.f32.mrb[0].mxu0
      %2697 = vmatprep.mubr.bf16.mxu0 %v1672
      %2698 = vmatmul.mubr.bf16.gmra.mrb[0].mxu0 %v1671
      %v2699 = vpop.f32.mrb[0].mxu0
      %v2700 = vadd.f32 %v647, %v2699
      %v2701 = vpop.f32.mrb[0].mxu0
      %v2702 = vpop.f32.mrb[0].mxu0
      %v2703 = vadd.f32 %v647, %v2702
      %v2704 = vpop.f32.mrb[0].mxu0
      %2705 = vmatprep.mubr.bf16.mxu0 %v1681
      %2706 = vmatmul.mubr.bf16.gmra.mrb[0].mxu0 %v1680
      %v2707 = vpop.f32.mrb[0].mxu0
      %v2708 = vadd.f32 %v647, %v2707
      %v2709 = vpop.f32.mrb[0].mxu0
      %v2710 = vpop.f32.mrb[0].mxu0
      %v2711 = vadd.f32 %v647, %v2710
      %v2712 = vpop.f32.mrb[0].mxu0
      %2713 = vmatprep.mubr.bf16.mxu0 %v1690
      %2714 = vmatmul.mubr.bf16.gmra.mrb[0].mxu0 %v1689
      %v2715 = vpop.f32.mrb[0].mxu0
      %v2716 = vadd.f32 %v647, %v2715
      %v2717 = vpop.f32.mrb[0].mxu0
      %v2718 = vpop.f32.mrb[0].mxu0
      %v2719 = vadd.f32 %v647, %v2718
      %v2720 = vpop.f32.mrb[0].mxu0
      %2721 = vmatprep.mubr.bf16.mxu0 %v1699
      %2722 = vmatmul.mubr.bf16.gmra.mrb[0].mxu0 %v1698
      %v2723 = vpop.f32.mrb[0].mxu0
      %v2724 = vadd.f32 %v647, %v2723
      %v2725 = vpop.f32.mrb[0].mxu0
      %v2726 = vpop.f32.mrb[0].mxu0
      %v2727 = vadd.f32 %v647, %v2726
      %v2728 = vpop.f32.mrb[0].mxu0
      %2729 = vmatprep.mubr.bf16.mxu0 %v1708
      %2730 = vmatmul.mubr.bf16.gmra.mrb[0].mxu0 %v1707
      %v2731 = vpop.f32.mrb[0].mxu0
      %v2732 = vadd.f32 %v647, %v2731
      %v2733 = vpop.f32.mrb[0].mxu0
      %v2734 = vpop.f32.mrb[0].mxu0
      %v2735 = vadd.f32 %v647, %v2734
      %v2736 = vpop.f32.mrb[0].mxu0
      %2737 = vmatprep.mubr.bf16.mxu0 %v1717
      %2738 = vmatmul.mubr.bf16.gmra.mrb[0].mxu0 %v1716
      %v2739 = vpop.f32.mrb[0].mxu0
      %v2740 = vadd.f32 %v647, %v2739
      %v2741 = vpop.f32.mrb[0].mxu0
      %v2742 = vpop.f32.mrb[0].mxu0
      %v2743 = vadd.f32 %v647, %v2742
      %v2744 = vpop.f32.mrb[0].mxu0
      %2745 = vmatprep.mubr.bf16.mxu0 %v1726
      %2746 = vmatmul.mubr.bf16.gmra.mrb[0].mxu0 %v1725
      %v2747 = vpop.f32.mrb[0].mxu0
      %v2748 = vadd.f32 %v647, %v2747
      %v2749 = vpop.f32.mrb[0].mxu0
      %v2750 = vpop.f32.mrb[0].mxu0
      %v2751 = vadd.f32 %v647, %v2750
      %v2752 = vpop.f32.mrb[0].mxu0
      %2753 = vmatprep.mubr.bf16.mxu0 %v1735
      %2754 = vmatmul.mubr.bf16.gmra.mrb[0].mxu0 %v1734
      %v2755 = vpop.f32.mrb[0].mxu0
      %v2756 = vadd.f32 %v647, %v2755
      %v2757 = vpop.f32.mrb[0].mxu0
      %v2758 = vpop.f32.mrb[0].mxu0
      %v2759 = vadd.f32 %v647, %v2758
      %v2760 = vpop.f32.mrb[0].mxu0
      %2761 = vmatprep.mubr.bf16.mxu0 %v1744
      %2762 = vmatmul.mubr.bf16.gmra.mrb[0].mxu0 %v1743
      %v2763 = vpop.f32.mrb[0].mxu0
      %v2764 = vadd.f32 %v647, %v2763
      %v2765 = vpop.f32.mrb[0].mxu0
      %v2766 = vpop.f32.mrb[0].mxu0
      %v2767 = vadd.f32 %v647, %v2766
      %v2768 = vpop.f32.mrb[0].mxu0
      %2769 = vmatprep.mubr.bf16.mxu0 %v1753
      %2770 = vmatmul.mubr.bf16.gmra.mrb[0].mxu0 %v1752
      %v2771 = vpop.f32.mrb[0].mxu0
      %v2772 = vadd.f32 %v647, %v2771
      %v2773 = vpop.f32.mrb[0].mxu0
      %v2774 = vpop.f32.mrb[0].mxu0
      %v2775 = vadd.f32 %v647, %v2774
      %v2776 = vpop.f32.mrb[0].mxu0
      %2777 = vmatprep.mubr.bf16.mxu0 %v1762
      %2778 = vmatmul.mubr.bf16.gmra.mrb[0].mxu0 %v1761
      %v2779 = vpop.f32.mrb[0].mxu0
      %v2780 = vadd.f32 %v647, %v2779
      %v2781 = vpop.f32.mrb[0].mxu0
      %v2782 = vpop.f32.mrb[0].mxu0
      %v2783 = vadd.f32 %v647, %v2782
      %v2784 = vpop.f32.mrb[0].mxu0
      %2785 = vmatprep.mubr.bf16.mxu0 %v1771
      %2786 = vmatmul.mubr.bf16.gmra.mrb[0].mxu0 %v1770
      %v2787 = vpop.f32.mrb[0].mxu0
      %v2788 = vadd.f32 %v647, %v2787
      %v2789 = vpop.f32.mrb[0].mxu0
      %v2790 = vpop.f32.mrb[0].mxu0
      %v2791 = vadd.f32 %v647, %v2790
      %v2792 = vpop.f32.mrb[0].mxu0
      %2793 = vmatprep.mubr.bf16.mxu0 %v1780
      %2794 = vmatmul.mubr.bf16.gmra.mrb[0].mxu0 %v1779
      %v2795 = vpop.f32.mrb[0].mxu0
      %v2796 = vadd.f32 %v647, %v2795
      %v2797 = vpop.f32.mrb[0].mxu0
      %v2798 = vpop.f32.mrb[0].mxu0
      %v2799 = vadd.f32 %v647, %v2798
      %v2800 = vpop.f32.mrb[0].mxu0
      %2801 = vmatprep.mubr.bf16.mxu0 %v1789
      %2802 = vmatmul.mubr.bf16.gmra.mrb[0].mxu0 %v1788
      %v2803 = vpop.f32.mrb[0].mxu0
      %v2804 = vadd.f32 %v647, %v2803
      %v2805 = vpop.f32.mrb[0].mxu0
      %v2806 = vpop.f32.mrb[0].mxu0
      %v2807 = vadd.f32 %v647, %v2806
      %v2808 = vpop.f32.mrb[0].mxu0
      %2809 = vmatprep.mubr.bf16.mxu0 %v1798
      %2810 = vmatmul.mubr.bf16.gmra.mrb[0].mxu0 %v1797
      %v2811 = vpop.f32.mrb[0].mxu0
      %v2812 = vadd.f32 %v647, %v2811
      %v2813 = vpop.f32.mrb[0].mxu0
      %v2814 = vpop.f32.mrb[0].mxu0
      %v2815 = vadd.f32 %v647, %v2814
      %v2816 = vpop.f32.mrb[0].mxu0
      %2817 = vmatprep.mubr.bf16.mxu0 %v1807
      %2818 = vmatmul.mubr.bf16.gmra.mrb[0].mxu0 %v1806
      %v2819 = vpop.f32.mrb[0].mxu0
      %v2820 = vadd.f32 %v647, %v2819
      %v2821 = vpop.f32.mrb[0].mxu0
      %v2822 = vpop.f32.mrb[0].mxu0
      %v2823 = vadd.f32 %v647, %v2822
      %v2824 = vpop.f32.mrb[0].mxu0
      %2825 = vmatprep.mubr.bf16.mxu0 %v1816
      %2826 = vmatmul.mubr.bf16.gmra.mrb[0].mxu0 %v1815
      %v2827 = vpop.f32.mrb[0].mxu0
      %v2828 = vadd.f32 %v647, %v2827
      %v2829 = vpop.f32.mrb[0].mxu0
      %v2830 = vpop.f32.mrb[0].mxu0
      %v2831 = vadd.f32 %v647, %v2830
      %v2832 = vpop.f32.mrb[0].mxu0
      %2833 = vmatprep.mubr.bf16.mxu0 %v1825
      %2834 = vmatmul.mubr.bf16.gmra.mrb[0].mxu0 %v1824
      %v2835 = vpop.f32.mrb[0].mxu0
      %v2836 = vadd.f32 %v647, %v2835
      %v2837 = vpop.f32.mrb[0].mxu0
      %v2838 = vpop.f32.mrb[0].mxu0
      %v2839 = vadd.f32 %v647, %v2838
      %v2840 = vpop.f32.mrb[0].mxu0
      %2841 = vdwg.mxu0
      %2842 = vmatprep.subr.bf16.mxu0 0
      %2843 = vmatpush1.bf16.msra.mxu0 %v2425
      %2844 = vmatprep.subr.bf16.mxu0 0
      %2845 = vmatpush1.bf16.msra.mxu0 %v2426
      %2846 = vmatprep.subr.bf16.mxu0 0
      %2847 = vmatpush1.bf16.msra.mxu0 %v2427
      %2848 = vmatprep.subr.bf16.mxu0 0
      %2849 = vmatpush1.bf16.msra.mxu0 %v2428
      %2850 = vmatprep.subr.bf16.mxu0 0
      %2851 = vmatpush1.bf16.msra.mxu0 %v2429
      %2852 = vmatprep.subr.bf16.mxu0 0
      %2853 = vmatpush1.bf16.msra.mxu0 %v2430
      %2854 = vmatprep.subr.bf16.mxu0 0
      %2855 = vmatpush1.bf16.msra.mxu0 %v2431
      %2856 = vmatprep.subr.bf16.mxu0 0
      %2857 = vmatpush1.bf16.msra.mxu0 %v2432
      %2858 = vmatprep.subr.bf16.mxu0 0
      %2859 = vmatpush1.bf16.msra.mxu0 %v2433
      %2860 = vmatprep.subr.bf16.mxu0 0
      %2861 = vmatpush1.bf16.msra.mxu0 %v2434
      %2862 = vmatprep.subr.bf16.mxu0 0
      %2863 = vmatpush1.bf16.msra.mxu0 %v2435
      %2864 = vmatprep.subr.bf16.mxu0 0
      %2865 = vmatpush1.bf16.msra.mxu0 %v2436
      %2866 = vmatprep.subr.bf16.mxu0 0
      %2867 = vmatpush1.bf16.msra.mxu0 %v2437
      %2868 = vmatprep.subr.bf16.mxu0 0
      %2869 = vmatpush1.bf16.msra.mxu0 %v2438
      %2870 = vmatprep.subr.bf16.mxu0 0
      %2871 = vmatpush1.bf16.msra.mxu0 %v2439
      %2872 = vmatprep.subr.bf16.mxu0 0
      %2873 = vmatpush1.bf16.msra.mxu0 %v2440
      %2874 = vmatprep.mubr.bf16.mxu0 %v1548
      %2875 = vmatmul.mubr.bf16.gmra.mrb[0].mxu0 %v1547
      %v2876 = vpop.f32.mrb[0].mxu0
      %v2877 = vadd.f32 %v2588, %v2876
      %v2878 = vpop.f32.mrb[0].mxu0
      %v2879 = vpop.f32.mrb[0].mxu0
      %v2880 = vadd.f32 %v2591, %v2879
      %v2881 = vpop.f32.mrb[0].mxu0
      %2882 = vmatprep.mubr.bf16.mxu0 %v1557
      %2883 = vmatmul.mubr.bf16.gmra.mrb[0].mxu0 %v1556
      %v2884 = vpop.f32.mrb[0].mxu0
      %v2885 = vadd.f32 %v2596, %v2884
      %v2886 = vpop.f32.mrb[0].mxu0
      %v2887 = vpop.f32.mrb[0].mxu0
      %v2888 = vadd.f32 %v2599, %v2887
      %v2889 = vpop.f32.mrb[0].mxu0
      %2890 = vmatprep.mubr.bf16.mxu0 %v1566
      %2891 = vmatmul.mubr.bf16.gmra.mrb[0].mxu0 %v1565
      %v2892 = vpop.f32.mrb[0].mxu0
      %v2893 = vadd.f32 %v2604, %v2892
      %v2894 = vpop.f32.mrb[0].mxu0
      %v2895 = vpop.f32.mrb[0].mxu0
      %v2896 = vadd.f32 %v2607, %v2895
      %v2897 = vpop.f32.mrb[0].mxu0
      %2898 = vmatprep.mubr.bf16.mxu0 %v1575
      %2899 = vmatmul.mubr.bf16.gmra.mrb[0].mxu0 %v1574
      %v2900 = vpop.f32.mrb[0].mxu0
      %v2901 = vadd.f32 %v2612, %v2900
      %v2902 = vpop.f32.mrb[0].mxu0
      %v2903 = vpop.f32.mrb[0].mxu0
      %v2904 = vadd.f32 %v2615, %v2903
      %v2905 = vpop.f32.mrb[0].mxu0
      %2906 = vmatprep.mubr.bf16.mxu0 %v1584
      %2907 = vmatmul.mubr.bf16.gmra.mrb[0].mxu0 %v1583
      %v2908 = vpop.f32.mrb[0].mxu0
      %v2909 = vadd.f32 %v2620, %v2908
      %v2910 = vpop.f32.mrb[0].mxu0
      %v2911 = vpop.f32.mrb[0].mxu0
      %v2912 = vadd.f32 %v2623, %v2911
      %v2913 = vpop.f32.mrb[0].mxu0
      %2914 = vmatprep.mubr.bf16.mxu0 %v1593
      %2915 = vmatmul.mubr.bf16.gmra.mrb[0].mxu0 %v1592
      %v2916 = vpop.f32.mrb[0].mxu0
      %v2917 = vadd.f32 %v2628, %v2916
      %v2918 = vpop.f32.mrb[0].mxu0
      %v2919 = vpop.f32.mrb[0].mxu0
      %v2920 = vadd.f32 %v2631, %v2919
      %v2921 = vpop.f32.mrb[0].mxu0
      %2922 = vmatprep.mubr.bf16.mxu0 %v1602
      %2923 = vmatmul.mubr.bf16.gmra.mrb[0].mxu0 %v1601
      %v2924 = vpop.f32.mrb[0].mxu0
      %v2925 = vadd.f32 %v2636, %v2924
      %v2926 = vpop.f32.mrb[0].mxu0
      %v2927 = vpop.f32.mrb[0].mxu0
      %v2928 = vadd.f32 %v2639, %v2927
      %v2929 = vpop.f32.mrb[0].mxu0
      %2930 = vmatprep.mubr.bf16.mxu0 %v1611
      %2931 = vmatmul.mubr.bf16.gmra.mrb[0].mxu0 %v1610
      %v2932 = vpop.f32.mrb[0].mxu0
      %v2933 = vadd.f32 %v2644, %v2932
      %v2934 = vpop.f32.mrb[0].mxu0
      %v2935 = vpop.f32.mrb[0].mxu0
      %v2936 = vadd.f32 %v2647, %v2935
      %v2937 = vpop.f32.mrb[0].mxu0
      %2938 = vmatprep.mubr.bf16.mxu0 %v1620
      %2939 = vmatmul.mubr.bf16.gmra.mrb[0].mxu0 %v1619
      %v2940 = vpop.f32.mrb[0].mxu0
      %v2941 = vadd.f32 %v2652, %v2940
      %v2942 = vpop.f32.mrb[0].mxu0
      %v2943 = vpop.f32.mrb[0].mxu0
      %v2944 = vadd.f32 %v2655, %v2943
      %v2945 = vpop.f32.mrb[0].mxu0
      %2946 = vmatprep.mubr.bf16.mxu0 %v1629
      %2947 = vmatmul.mubr.bf16.gmra.mrb[0].mxu0 %v1628
      %v2948 = vpop.f32.mrb[0].mxu0
      %v2949 = vadd.f32 %v2660, %v2948
      %v2950 = vpop.f32.mrb[0].mxu0
      %v2951 = vpop.f32.mrb[0].mxu0
      %v2952 = vadd.f32 %v2663, %v2951
      %v2953 = vpop.f32.mrb[0].mxu0
      %2954 = vmatprep.mubr.bf16.mxu0 %v1638
      %2955 = vmatmul.mubr.bf16.gmra.mrb[0].mxu0 %v1637
      %v2956 = vpop.f32.mrb[0].mxu0
      %v2957 = vadd.f32 %v2668, %v2956
      %v2958 = vpop.f32.mrb[0].mxu0
      %v2959 = vpop.f32.mrb[0].mxu0
      %v2960 = vadd.f32 %v2671, %v2959
      %v2961 = vpop.f32.mrb[0].mxu0
      %2962 = vmatprep.mubr.bf16.mxu0 %v1647
      %2963 = vmatmul.mubr.bf16.gmra.mrb[0].mxu0 %v1646
      %v2964 = vpop.f32.mrb[0].mxu0
      %v2965 = vadd.f32 %v2676, %v2964
      %v2966 = vpop.f32.mrb[0].mxu0
      %v2967 = vpop.f32.mrb[0].mxu0
      %v2968 = vadd.f32 %v2679, %v2967
      %v2969 = vpop.f32.mrb[0].mxu0
      %2970 = vmatprep.mubr.bf16.mxu0 %v1656
      %2971 = vmatmul.mubr.bf16.gmra.mrb[0].mxu0 %v1655
      %v2972 = vpop.f32.mrb[0].mxu0
      %v2973 = vadd.f32 %v2684, %v2972
      %v2974 = vpop.f32.mrb[0].mxu0
      %v2975 = vpop.f32.mrb[0].mxu0
      %v2976 = vadd.f32 %v2687, %v2975
      %v2977 = vpop.f32.mrb[0].mxu0
      %2978 = vmatprep.mubr.bf16.mxu0 %v1665
      %2979 = vmatmul.mubr.bf16.gmra.mrb[0].mxu0 %v1664
      %v2980 = vpop.f32.mrb[0].mxu0
      %v2981 = vadd.f32 %v2692, %v2980
      %v2982 = vpop.f32.mrb[0].mxu0
      %v2983 = vpop.f32.mrb[0].mxu0
      %v2984 = vadd.f32 %v2695, %v2983
      %v2985 = vpop.f32.mrb[0].mxu0
      %2986 = vmatprep.mubr.bf16.mxu0 %v1674
      %2987 = vmatmul.mubr.bf16.gmra.mrb[0].mxu0 %v1673
      %v2988 = vpop.f32.mrb[0].mxu0
      %v2989 = vadd.f32 %v2700, %v2988
      %v2990 = vpop.f32.mrb[0].mxu0
      %v2991 = vpop.f32.mrb[0].mxu0
      %v2992 = vadd.f32 %v2703, %v2991
      %v2993 = vpop.f32.mrb[0].mxu0
      %2994 = vmatprep.mubr.bf16.mxu0 %v1683
      %2995 = vmatmul.mubr.bf16.gmra.mrb[0].mxu0 %v1682
      %v2996 = vpop.f32.mrb[0].mxu0
      %v2997 = vadd.f32 %v2708, %v2996
      %v2998 = vpop.f32.mrb[0].mxu0
      %v2999 = vpop.f32.mrb[0].mxu0
      %v3000 = vadd.f32 %v2711, %v2999
      %v3001 = vpop.f32.mrb[0].mxu0
      %3002 = vmatprep.mubr.bf16.mxu0 %v1692
      %3003 = vmatmul.mubr.bf16.gmra.mrb[0].mxu0 %v1691
      %v3004 = vpop.f32.mrb[0].mxu0
      %v3005 = vadd.f32 %v2716, %v3004
      %v3006 = vpop.f32.mrb[0].mxu0
      %v3007 = vpop.f32.mrb[0].mxu0
      %v3008 = vadd.f32 %v2719, %v3007
      %v3009 = vpop.f32.mrb[0].mxu0
      %3010 = vmatprep.mubr.bf16.mxu0 %v1701
      %3011 = vmatmul.mubr.bf16.gmra.mrb[0].mxu0 %v1700
      %v3012 = vpop.f32.mrb[0].mxu0
      %v3013 = vadd.f32 %v2724, %v3012
      %v3014 = vpop.f32.mrb[0].mxu0
      %v3015 = vpop.f32.mrb[0].mxu0
      %v3016 = vadd.f32 %v2727, %v3015
      %v3017 = vpop.f32.mrb[0].mxu0
      %3018 = vmatprep.mubr.bf16.mxu0 %v1710
      %3019 = vmatmul.mubr.bf16.gmra.mrb[0].mxu0 %v1709
      %v3020 = vpop.f32.mrb[0].mxu0
      %v3021 = vadd.f32 %v2732, %v3020
      %v3022 = vpop.f32.mrb[0].mxu0
      %v3023 = vpop.f32.mrb[0].mxu0
      %v3024 = vadd.f32 %v2735, %v3023
      %v3025 = vpop.f32.mrb[0].mxu0
      %3026 = vmatprep.mubr.bf16.mxu0 %v1719
      %3027 = vmatmul.mubr.bf16.gmra.mrb[0].mxu0 %v1718
      %v3028 = vpop.f32.mrb[0].mxu0
      %v3029 = vadd.f32 %v2740, %v3028
      %v3030 = vpop.f32.mrb[0].mxu0
      %v3031 = vpop.f32.mrb[0].mxu0
      %v3032 = vadd.f32 %v2743, %v3031
      %v3033 = vpop.f32.mrb[0].mxu0
      %3034 = vmatprep.mubr.bf16.mxu0 %v1728
      %3035 = vmatmul.mubr.bf16.gmra.mrb[0].mxu0 %v1727
      %v3036 = vpop.f32.mrb[0].mxu0
      %v3037 = vadd.f32 %v2748, %v3036
      %v3038 = vpop.f32.mrb[0].mxu0
      %v3039 = vpop.f32.mrb[0].mxu0
      %v3040 = vadd.f32 %v2751, %v3039
      %v3041 = vpop.f32.mrb[0].mxu0
      %3042 = vmatprep.mubr.bf16.mxu0 %v1737
      %3043 = vmatmul.mubr.bf16.gmra.mrb[0].mxu0 %v1736
      %v3044 = vpop.f32.mrb[0].mxu0
      %v3045 = vadd.f32 %v2756, %v3044
      %v3046 = vpop.f32.mrb[0].mxu0
      %v3047 = vpop.f32.mrb[0].mxu0
      %v3048 = vadd.f32 %v2759, %v3047
      %v3049 = vpop.f32.mrb[0].mxu0
      %3050 = vmatprep.mubr.bf16.mxu0 %v1746
      %3051 = vmatmul.mubr.bf16.gmra.mrb[0].mxu0 %v1745
      %v3052 = vpop.f32.mrb[0].mxu0
      %v3053 = vadd.f32 %v2764, %v3052
      %v3054 = vpop.f32.mrb[0].mxu0
      %v3055 = vpop.f32.mrb[0].mxu0
      %v3056 = vadd.f32 %v2767, %v3055
      %v3057 = vpop.f32.mrb[0].mxu0
      %3058 = vmatprep.mubr.bf16.mxu0 %v1755
      %3059 = vmatmul.mubr.bf16.gmra.mrb[0].mxu0 %v1754
      %v3060 = vpop.f32.mrb[0].mxu0
      %v3061 = vadd.f32 %v2772, %v3060
      %v3062 = vpop.f32.mrb[0].mxu0
      %v3063 = vpop.f32.mrb[0].mxu0
      %v3064 = vadd.f32 %v2775, %v3063
      %v3065 = vpop.f32.mrb[0].mxu0
      %3066 = vmatprep.mubr.bf16.mxu0 %v1764
      %3067 = vmatmul.mubr.bf16.gmra.mrb[0].mxu0 %v1763
      %v3068 = vpop.f32.mrb[0].mxu0
      %v3069 = vadd.f32 %v2780, %v3068
      %v3070 = vpop.f32.mrb[0].mxu0
      %v3071 = vpop.f32.mrb[0].mxu0
      %v3072 = vadd.f32 %v2783, %v3071
      %v3073 = vpop.f32.mrb[0].mxu0
      %3074 = vmatprep.mubr.bf16.mxu0 %v1773
      %3075 = vmatmul.mubr.bf16.gmra.mrb[0].mxu0 %v1772
      %v3076 = vpop.f32.mrb[0].mxu0
      %v3077 = vadd.f32 %v2788, %v3076
      %v3078 = vpop.f32.mrb[0].mxu0
      %v3079 = vpop.f32.mrb[0].mxu0
      %v3080 = vadd.f32 %v2791, %v3079
      %v3081 = vpop.f32.mrb[0].mxu0
      %3082 = vmatprep.mubr.bf16.mxu0 %v1782
      %3083 = vmatmul.mubr.bf16.gmra.mrb[0].mxu0 %v1781
      %v3084 = vpop.f32.mrb[0].mxu0
      %v3085 = vadd.f32 %v2796, %v3084
      %v3086 = vpop.f32.mrb[0].mxu0
      %v3087 = vpop.f32.mrb[0].mxu0
      %v3088 = vadd.f32 %v2799, %v3087
      %v3089 = vpop.f32.mrb[0].mxu0
      %3090 = vmatprep.mubr.bf16.mxu0 %v1791
      %3091 = vmatmul.mubr.bf16.gmra.mrb[0].mxu0 %v1790
      %v3092 = vpop.f32.mrb[0].mxu0
      %v3093 = vadd.f32 %v2804, %v3092
      %v3094 = vpop.f32.mrb[0].mxu0
      %v3095 = vpop.f32.mrb[0].mxu0
      %v3096 = vadd.f32 %v2807, %v3095
      %v3097 = vpop.f32.mrb[0].mxu0
      %3098 = vmatprep.mubr.bf16.mxu0 %v1800
      %3099 = vmatmul.mubr.bf16.gmra.mrb[0].mxu0 %v1799
      %v3100 = vpop.f32.mrb[0].mxu0
      %v3101 = vadd.f32 %v2812, %v3100
      %v3102 = vpop.f32.mrb[0].mxu0
      %v3103 = vpop.f32.mrb[0].mxu0
      %v3104 = vadd.f32 %v2815, %v3103
      %v3105 = vpop.f32.mrb[0].mxu0
      %3106 = vmatprep.mubr.bf16.mxu0 %v1809
      %3107 = vmatmul.mubr.bf16.gmra.mrb[0].mxu0 %v1808
      %v3108 = vpop.f32.mrb[0].mxu0
      %v3109 = vadd.f32 %v2820, %v3108
      %v3110 = vpop.f32.mrb[0].mxu0
      %v3111 = vpop.f32.mrb[0].mxu0
      %v3112 = vadd.f32 %v2823, %v3111
      %v3113 = vpop.f32.mrb[0].mxu0
      %3114 = vmatprep.mubr.bf16.mxu0 %v1818
      %3115 = vmatmul.mubr.bf16.gmra.mrb[0].mxu0 %v1817
      %v3116 = vpop.f32.mrb[0].mxu0
      %v3117 = vadd.f32 %v2828, %v3116
      %v3118 = vpop.f32.mrb[0].mxu0
      %v3119 = vpop.f32.mrb[0].mxu0
      %v3120 = vadd.f32 %v2831, %v3119
      %v3121 = vpop.f32.mrb[0].mxu0
      %3122 = vmatprep.mubr.bf16.mxu0 %v1827
      %3123 = vmatmul.mubr.bf16.gmra.mrb[0].mxu0 %v1826
      %v3124 = vpop.f32.mrb[0].mxu0
      %v3125 = vadd.f32 %v2836, %v3124
      %v3126 = vpop.f32.mrb[0].mxu0
      %v3127 = vpop.f32.mrb[0].mxu0
      %v3128 = vadd.f32 %v2839, %v3127
      %v3129 = vpop.f32.mrb[0].mxu0
      %3130 = vdwg.mxu0
      %3131 = vmatprep.subr.bf16.mxu0 0
      %3132 = vmatpush1.bf16.msra.mxu0 %v2441
      %3133 = vmatprep.subr.bf16.mxu0 0
      %3134 = vmatpush1.bf16.msra.mxu0 %v2442
      %3135 = vmatprep.subr.bf16.mxu0 0
      %3136 = vmatpush1.bf16.msra.mxu0 %v2443
      %3137 = vmatprep.subr.bf16.mxu0 0
      %3138 = vmatpush1.bf16.msra.mxu0 %v2444
      %3139 = vmatprep.subr.bf16.mxu0 0
      %3140 = vmatpush1.bf16.msra.mxu0 %v2445
      %3141 = vmatprep.subr.bf16.mxu0 0
      %3142 = vmatpush1.bf16.msra.mxu0 %v2446
      %3143 = vmatprep.subr.bf16.mxu0 0
      %3144 = vmatpush1.bf16.msra.mxu0 %v2447
      %3145 = vmatprep.subr.bf16.mxu0 0
      %3146 = vmatpush1.bf16.msra.mxu0 %v2448
      %3147 = vmatprep.subr.bf16.mxu0 0
      %3148 = vmatpush1.bf16.msra.mxu0 %v2449
      %3149 = vmatprep.subr.bf16.mxu0 0
      %3150 = vmatpush1.bf16.msra.mxu0 %v2450
      %3151 = vmatprep.subr.bf16.mxu0 0
      %3152 = vmatpush1.bf16.msra.mxu0 %v2451
      %3153 = vmatprep.subr.bf16.mxu0 0
      %3154 = vmatpush1.bf16.msra.mxu0 %v2452
      %3155 = vmatprep.subr.bf16.mxu0 0
      %3156 = vmatpush1.bf16.msra.mxu0 %v2453
      %3157 = vmatprep.subr.bf16.mxu0 0
      %3158 = vmatpush1.bf16.msra.mxu0 %v2454
      %3159 = vmatprep.subr.bf16.mxu0 0
      %3160 = vmatpush1.bf16.msra.mxu0 %v2455
      %3161 = vmatprep.subr.bf16.mxu0 0
      %3162 = vmatpush1.bf16.msra.mxu0 %v2456
      %3163 = vmatprep.mubr.bf16.mxu0 %v1550
      %3164 = vmatmul.mubr.bf16.gmra.mrb[0].mxu0 %v1549
      %v3165 = vpop.f32.mrb[0].mxu0
      %v3166 = vadd.f32 %v2877, %v3165
      %v3167 = vpop.f32.mrb[0].mxu0
      %v3168 = vpop.f32.mrb[0].mxu0
      %v3169 = vadd.f32 %v2880, %v3168
      %v3170 = vpop.f32.mrb[0].mxu0
      %3171 = vmatprep.mubr.bf16.mxu0 %v1559
      %3172 = vmatmul.mubr.bf16.gmra.mrb[0].mxu0 %v1558
      %v3173 = vpop.f32.mrb[0].mxu0
      %v3174 = vadd.f32 %v2885, %v3173
      %v3175 = vpop.f32.mrb[0].mxu0
      %v3176 = vpop.f32.mrb[0].mxu0
      %v3177 = vadd.f32 %v2888, %v3176
      %v3178 = vpop.f32.mrb[0].mxu0
      %3179 = vmatprep.mubr.bf16.mxu0 %v1568
      %3180 = vmatmul.mubr.bf16.gmra.mrb[0].mxu0 %v1567
      %v3181 = vpop.f32.mrb[0].mxu0
      %v3182 = vadd.f32 %v2893, %v3181
      %v3183 = vpop.f32.mrb[0].mxu0
      %v3184 = vpop.f32.mrb[0].mxu0
      %v3185 = vadd.f32 %v2896, %v3184
      %v3186 = vpop.f32.mrb[0].mxu0
      %3187 = vmatprep.mubr.bf16.mxu0 %v1577
      %3188 = vmatmul.mubr.bf16.gmra.mrb[0].mxu0 %v1576
      %v3189 = vpop.f32.mrb[0].mxu0
      %v3190 = vadd.f32 %v2901, %v3189
      %v3191 = vpop.f32.mrb[0].mxu0
      %v3192 = vpop.f32.mrb[0].mxu0
      %v3193 = vadd.f32 %v2904, %v3192
      %v3194 = vpop.f32.mrb[0].mxu0
      %3195 = vmatprep.mubr.bf16.mxu0 %v1586
      %3196 = vmatmul.mubr.bf16.gmra.mrb[0].mxu0 %v1585
      %v3197 = vpop.f32.mrb[0].mxu0
      %v3198 = vadd.f32 %v2909, %v3197
      %v3199 = vpop.f32.mrb[0].mxu0
      %v3200 = vpop.f32.mrb[0].mxu0
      %v3201 = vadd.f32 %v2912, %v3200
      %v3202 = vpop.f32.mrb[0].mxu0
      %3203 = vmatprep.mubr.bf16.mxu0 %v1595
      %3204 = vmatmul.mubr.bf16.gmra.mrb[0].mxu0 %v1594
      %v3205 = vpop.f32.mrb[0].mxu0
      %v3206 = vadd.f32 %v2917, %v3205
      %v3207 = vpop.f32.mrb[0].mxu0
      %v3208 = vpop.f32.mrb[0].mxu0
      %v3209 = vadd.f32 %v2920, %v3208
      %v3210 = vpop.f32.mrb[0].mxu0
      %3211 = vmatprep.mubr.bf16.mxu0 %v1604
      %3212 = vmatmul.mubr.bf16.gmra.mrb[0].mxu0 %v1603
      %v3213 = vpop.f32.mrb[0].mxu0
      %v3214 = vadd.f32 %v2925, %v3213
      %v3215 = vpop.f32.mrb[0].mxu0
      %v3216 = vpop.f32.mrb[0].mxu0
      %v3217 = vadd.f32 %v2928, %v3216
      %v3218 = vpop.f32.mrb[0].mxu0
      %3219 = vmatprep.mubr.bf16.mxu0 %v1613
      %3220 = vmatmul.mubr.bf16.gmra.mrb[0].mxu0 %v1612
      %v3221 = vpop.f32.mrb[0].mxu0
      %v3222 = vadd.f32 %v2933, %v3221
      %v3223 = vpop.f32.mrb[0].mxu0
      %v3224 = vpop.f32.mrb[0].mxu0
      %v3225 = vadd.f32 %v2936, %v3224
      %v3226 = vpop.f32.mrb[0].mxu0
      %3227 = vmatprep.mubr.bf16.mxu0 %v1622
      %3228 = vmatmul.mubr.bf16.gmra.mrb[0].mxu0 %v1621
      %v3229 = vpop.f32.mrb[0].mxu0
      %v3230 = vadd.f32 %v2941, %v3229
      %v3231 = vpop.f32.mrb[0].mxu0
      %v3232 = vpop.f32.mrb[0].mxu0
      %v3233 = vadd.f32 %v2944, %v3232
      %v3234 = vpop.f32.mrb[0].mxu0
      %3235 = vmatprep.mubr.bf16.mxu0 %v1631
      %3236 = vmatmul.mubr.bf16.gmra.mrb[0].mxu0 %v1630
      %v3237 = vpop.f32.mrb[0].mxu0
      %v3238 = vadd.f32 %v2949, %v3237
      %v3239 = vpop.f32.mrb[0].mxu0
      %v3240 = vpop.f32.mrb[0].mxu0
      %v3241 = vadd.f32 %v2952, %v3240
      %v3242 = vpop.f32.mrb[0].mxu0
      %3243 = vmatprep.mubr.bf16.mxu0 %v1640
      %3244 = vmatmul.mubr.bf16.gmra.mrb[0].mxu0 %v1639
      %v3245 = vpop.f32.mrb[0].mxu0
      %v3246 = vadd.f32 %v2957, %v3245
      %v3247 = vpop.f32.mrb[0].mxu0
      %v3248 = vpop.f32.mrb[0].mxu0
      %v3249 = vadd.f32 %v2960, %v3248
      %v3250 = vpop.f32.mrb[0].mxu0
      %3251 = vmatprep.mubr.bf16.mxu0 %v1649
      %3252 = vmatmul.mubr.bf16.gmra.mrb[0].mxu0 %v1648
      %v3253 = vpop.f32.mrb[0].mxu0
      %v3254 = vadd.f32 %v2965, %v3253
      %v3255 = vpop.f32.mrb[0].mxu0
      %v3256 = vpop.f32.mrb[0].mxu0
      %v3257 = vadd.f32 %v2968, %v3256
      %v3258 = vpop.f32.mrb[0].mxu0
      %3259 = vmatprep.mubr.bf16.mxu0 %v1658
      %3260 = vmatmul.mubr.bf16.gmra.mrb[0].mxu0 %v1657
      %v3261 = vpop.f32.mrb[0].mxu0
      %v3262 = vadd.f32 %v2973, %v3261
      %v3263 = vpop.f32.mrb[0].mxu0
      %v3264 = vpop.f32.mrb[0].mxu0
      %v3265 = vadd.f32 %v2976, %v3264
      %v3266 = vpop.f32.mrb[0].mxu0
      %3267 = vmatprep.mubr.bf16.mxu0 %v1667
      %3268 = vmatmul.mubr.bf16.gmra.mrb[0].mxu0 %v1666
      %v3269 = vpop.f32.mrb[0].mxu0
      %v3270 = vadd.f32 %v2981, %v3269
      %v3271 = vpop.f32.mrb[0].mxu0
      %v3272 = vpop.f32.mrb[0].mxu0
      %v3273 = vadd.f32 %v2984, %v3272
      %v3274 = vpop.f32.mrb[0].mxu0
      %3275 = vmatprep.mubr.bf16.mxu0 %v1676
      %3276 = vmatmul.mubr.bf16.gmra.mrb[0].mxu0 %v1675
      %v3277 = vpop.f32.mrb[0].mxu0
      %v3278 = vadd.f32 %v2989, %v3277
      %v3279 = vpop.f32.mrb[0].mxu0
      %v3280 = vpop.f32.mrb[0].mxu0
      %v3281 = vadd.f32 %v2992, %v3280
      %v3282 = vpop.f32.mrb[0].mxu0
      %3283 = vmatprep.mubr.bf16.mxu0 %v1685
      %3284 = vmatmul.mubr.bf16.gmra.mrb[0].mxu0 %v1684
      %v3285 = vpop.f32.mrb[0].mxu0
      %v3286 = vadd.f32 %v2997, %v3285
      %v3287 = vpop.f32.mrb[0].mxu0
      %v3288 = vpop.f32.mrb[0].mxu0
      %v3289 = vadd.f32 %v3000, %v3288
      %v3290 = vpop.f32.mrb[0].mxu0
      %3291 = vmatprep.mubr.bf16.mxu0 %v1694
      %3292 = vmatmul.mubr.bf16.gmra.mrb[0].mxu0 %v1693
      %v3293 = vpop.f32.mrb[0].mxu0
      %v3294 = vadd.f32 %v3005, %v3293
      %v3295 = vpop.f32.mrb[0].mxu0
      %v3296 = vpop.f32.mrb[0].mxu0
      %v3297 = vadd.f32 %v3008, %v3296
      %v3298 = vpop.f32.mrb[0].mxu0
      %3299 = vmatprep.mubr.bf16.mxu0 %v1703
      %3300 = vmatmul.mubr.bf16.gmra.mrb[0].mxu0 %v1702
      %v3301 = vpop.f32.mrb[0].mxu0
      %v3302 = vadd.f32 %v3013, %v3301
      %v3303 = vpop.f32.mrb[0].mxu0
      %v3304 = vpop.f32.mrb[0].mxu0
      %v3305 = vadd.f32 %v3016, %v3304
      %v3306 = vpop.f32.mrb[0].mxu0
      %3307 = vmatprep.mubr.bf16.mxu0 %v1712
      %3308 = vmatmul.mubr.bf16.gmra.mrb[0].mxu0 %v1711
      %v3309 = vpop.f32.mrb[0].mxu0
      %v3310 = vadd.f32 %v3021, %v3309
      %v3311 = vpop.f32.mrb[0].mxu0
      %v3312 = vpop.f32.mrb[0].mxu0
      %v3313 = vadd.f32 %v3024, %v3312
      %v3314 = vpop.f32.mrb[0].mxu0
      %3315 = vmatprep.mubr.bf16.mxu0 %v1721
      %3316 = vmatmul.mubr.bf16.gmra.mrb[0].mxu0 %v1720
      %v3317 = vpop.f32.mrb[0].mxu0
      %v3318 = vadd.f32 %v3029, %v3317
      %v3319 = vpop.f32.mrb[0].mxu0
      %v3320 = vpop.f32.mrb[0].mxu0
      %v3321 = vadd.f32 %v3032, %v3320
      %v3322 = vpop.f32.mrb[0].mxu0
      %3323 = vmatprep.mubr.bf16.mxu0 %v1730
      %3324 = vmatmul.mubr.bf16.gmra.mrb[0].mxu0 %v1729
      %v3325 = vpop.f32.mrb[0].mxu0
      %v3326 = vadd.f32 %v3037, %v3325
      %v3327 = vpop.f32.mrb[0].mxu0
      %v3328 = vpop.f32.mrb[0].mxu0
      %v3329 = vadd.f32 %v3040, %v3328
      %v3330 = vpop.f32.mrb[0].mxu0
      %3331 = vmatprep.mubr.bf16.mxu0 %v1739
      %3332 = vmatmul.mubr.bf16.gmra.mrb[0].mxu0 %v1738
      %v3333 = vpop.f32.mrb[0].mxu0
      %v3334 = vadd.f32 %v3045, %v3333
      %v3335 = vpop.f32.mrb[0].mxu0
      %v3336 = vpop.f32.mrb[0].mxu0
      %v3337 = vadd.f32 %v3048, %v3336
      %v3338 = vpop.f32.mrb[0].mxu0
      %3339 = vmatprep.mubr.bf16.mxu0 %v1748
      %3340 = vmatmul.mubr.bf16.gmra.mrb[0].mxu0 %v1747
      %v3341 = vpop.f32.mrb[0].mxu0
      %v3342 = vadd.f32 %v3053, %v3341
      %v3343 = vpop.f32.mrb[0].mxu0
      %v3344 = vpop.f32.mrb[0].mxu0
      %v3345 = vadd.f32 %v3056, %v3344
      %v3346 = vpop.f32.mrb[0].mxu0
      %3347 = vmatprep.mubr.bf16.mxu0 %v1757
      %3348 = vmatmul.mubr.bf16.gmra.mrb[0].mxu0 %v1756
      %v3349 = vpop.f32.mrb[0].mxu0
      %v3350 = vadd.f32 %v3061, %v3349
      %v3351 = vpop.f32.mrb[0].mxu0
      %v3352 = vpop.f32.mrb[0].mxu0
      %v3353 = vadd.f32 %v3064, %v3352
      %v3354 = vpop.f32.mrb[0].mxu0
      %3355 = vmatprep.mubr.bf16.mxu0 %v1766
      %3356 = vmatmul.mubr.bf16.gmra.mrb[0].mxu0 %v1765
      %v3357 = vpop.f32.mrb[0].mxu0
      %v3358 = vadd.f32 %v3069, %v3357
      %v3359 = vpop.f32.mrb[0].mxu0
      %v3360 = vpop.f32.mrb[0].mxu0
      %v3361 = vadd.f32 %v3072, %v3360
      %v3362 = vpop.f32.mrb[0].mxu0
      %3363 = vmatprep.mubr.bf16.mxu0 %v1775
      %3364 = vmatmul.mubr.bf16.gmra.mrb[0].mxu0 %v1774
      %v3365 = vpop.f32.mrb[0].mxu0
      %v3366 = vadd.f32 %v3077, %v3365
      %v3367 = vpop.f32.mrb[0].mxu0
      %v3368 = vpop.f32.mrb[0].mxu0
      %v3369 = vadd.f32 %v3080, %v3368
      %v3370 = vpop.f32.mrb[0].mxu0
      %3371 = vmatprep.mubr.bf16.mxu0 %v1784
      %3372 = vmatmul.mubr.bf16.gmra.mrb[0].mxu0 %v1783
      %v3373 = vpop.f32.mrb[0].mxu0
      %v3374 = vadd.f32 %v3085, %v3373
      %v3375 = vpop.f32.mrb[0].mxu0
      %v3376 = vpop.f32.mrb[0].mxu0
      %v3377 = vadd.f32 %v3088, %v3376
      %v3378 = vpop.f32.mrb[0].mxu0
      %3379 = vmatprep.mubr.bf16.mxu0 %v1793
      %3380 = vmatmul.mubr.bf16.gmra.mrb[0].mxu0 %v1792
      %v3381 = vpop.f32.mrb[0].mxu0
      %v3382 = vadd.f32 %v3093, %v3381
      %v3383 = vpop.f32.mrb[0].mxu0
      %v3384 = vpop.f32.mrb[0].mxu0
      %v3385 = vadd.f32 %v3096, %v3384
      %v3386 = vpop.f32.mrb[0].mxu0
      %3387 = vmatprep.mubr.bf16.mxu0 %v1802
      %3388 = vmatmul.mubr.bf16.gmra.mrb[0].mxu0 %v1801
      %v3389 = vpop.f32.mrb[0].mxu0
      %v3390 = vadd.f32 %v3101, %v3389
      %v3391 = vpop.f32.mrb[0].mxu0
      %v3392 = vpop.f32.mrb[0].mxu0
      %v3393 = vadd.f32 %v3104, %v3392
      %v3394 = vpop.f32.mrb[0].mxu0
      %3395 = vmatprep.mubr.bf16.mxu0 %v1811
      %3396 = vmatmul.mubr.bf16.gmra.mrb[0].mxu0 %v1810
      %v3397 = vpop.f32.mrb[0].mxu0
      %v3398 = vadd.f32 %v3109, %v3397
      %v3399 = vpop.f32.mrb[0].mxu0
      %v3400 = vpop.f32.mrb[0].mxu0
      %v3401 = vadd.f32 %v3112, %v3400
      %v3402 = vpop.f32.mrb[0].mxu0
      %3403 = vmatprep.mubr.bf16.mxu0 %v1820
      %3404 = vmatmul.mubr.bf16.gmra.mrb[0].mxu0 %v1819
      %v3405 = vpop.f32.mrb[0].mxu0
      %v3406 = vadd.f32 %v3117, %v3405
      %v3407 = vpop.f32.mrb[0].mxu0
      %v3408 = vpop.f32.mrb[0].mxu0
      %v3409 = vadd.f32 %v3120, %v3408
      %v3410 = vpop.f32.mrb[0].mxu0
      %3411 = vmatprep.mubr.bf16.mxu0 %v1829
      %3412 = vmatmul.mubr.bf16.gmra.mrb[0].mxu0 %v1828
      %v3413 = vpop.f32.mrb[0].mxu0
      %v3414 = vadd.f32 %v3125, %v3413
      %v3415 = vpop.f32.mrb[0].mxu0
      %v3416 = vpop.f32.mrb[0].mxu0
      %v3417 = vadd.f32 %v3128, %v3416
      %v3418 = vpop.f32.mrb[0].mxu0
      %3419 = vdwg.mxu0
      %3420 = vmatprep.subr.bf16.mxu0 0
      %3421 = vmatpush1.bf16.msra.mxu0 %v2457
      %3422 = vmatprep.subr.bf16.mxu0 0
      %3423 = vmatpush1.bf16.msra.mxu0 %v2458
      %3424 = vmatprep.subr.bf16.mxu0 0
      %3425 = vmatpush1.bf16.msra.mxu0 %v2459
      %3426 = vmatprep.subr.bf16.mxu0 0
      %3427 = vmatpush1.bf16.msra.mxu0 %v2460
      %3428 = vmatprep.subr.bf16.mxu0 0
      %3429 = vmatpush1.bf16.msra.mxu0 %v2461
      %3430 = vmatprep.subr.bf16.mxu0 0
      %3431 = vmatpush1.bf16.msra.mxu0 %v2462
      %3432 = vmatprep.subr.bf16.mxu0 0
      %3433 = vmatpush1.bf16.msra.mxu0 %v2463
      %3434 = vmatprep.subr.bf16.mxu0 0
      %3435 = vmatpush1.bf16.msra.mxu0 %v2464
      %3436 = vmatprep.subr.bf16.mxu0 0
      %3437 = vmatpush1.bf16.msra.mxu0 %v2465
      %3438 = vmatprep.subr.bf16.mxu0 0
      %3439 = vmatpush1.bf16.msra.mxu0 %v2466
      %3440 = vmatprep.subr.bf16.mxu0 0
      %3441 = vmatpush1.bf16.msra.mxu0 %v2467
      %3442 = vmatprep.subr.bf16.mxu0 0
      %3443 = vmatpush1.bf16.msra.mxu0 %v2468
      %3444 = vmatprep.subr.bf16.mxu0 0
      %3445 = vmatpush1.bf16.msra.mxu0 %v2469
      %3446 = vmatprep.subr.bf16.mxu0 0
      %3447 = vmatpush1.bf16.msra.mxu0 %v2470
      %3448 = vmatprep.subr.bf16.mxu0 0
      %3449 = vmatpush1.bf16.msra.mxu0 %v2471
      %3450 = vmatprep.subr.bf16.mxu0 0
      %3451 = vmatpush1.bf16.msra.mxu0 %v2472
      %3452 = vmatprep.mubr.bf16.mxu0 %v1552
      %3453 = vmatmul.mubr.bf16.gmra.mrb[0].mxu0 %v1551
      %v3454 = vpop.f32.mrb[0].mxu0
      %v3455 = vadd.f32 %v3166, %v3454
      %v3456 = vpop.f32.mrb[0].mxu0
      %v3457 = vpop.f32.mrb[0].mxu0
      %v3458 = vadd.f32 %v3169, %v3457
      %v3459 = vpop.f32.mrb[0].mxu0
      %3460 = vmatprep.mubr.bf16.mxu0 %v1561
      %3461 = vmatmul.mubr.bf16.gmra.mrb[0].mxu0 %v1560
      %v3462 = vpop.f32.mrb[0].mxu0
      %v3463 = vadd.f32 %v3174, %v3462
      %v3464 = vpop.f32.mrb[0].mxu0
      %v3465 = vpop.f32.mrb[0].mxu0
      %v3466 = vadd.f32 %v3177, %v3465
      %v3467 = vpop.f32.mrb[0].mxu0
      %3468 = vmatprep.mubr.bf16.mxu0 %v1570
      %3469 = vmatmul.mubr.bf16.gmra.mrb[0].mxu0 %v1569
      %v3470 = vpop.f32.mrb[0].mxu0
      %v3471 = vadd.f32 %v3182, %v3470
      %v3472 = vpop.f32.mrb[0].mxu0
      %v3473 = vpop.f32.mrb[0].mxu0
      %v3474 = vadd.f32 %v3185, %v3473
      %v3475 = vpop.f32.mrb[0].mxu0
      %3476 = vmatprep.mubr.bf16.mxu0 %v1579
      %3477 = vmatmul.mubr.bf16.gmra.mrb[0].mxu0 %v1578
      %v3478 = vpop.f32.mrb[0].mxu0
      %v3479 = vadd.f32 %v3190, %v3478
      %v3480 = vpop.f32.mrb[0].mxu0
      %v3481 = vpop.f32.mrb[0].mxu0
      %v3482 = vadd.f32 %v3193, %v3481
      %v3483 = vpop.f32.mrb[0].mxu0
      %3484 = vmatprep.mubr.bf16.mxu0 %v1588
      %3485 = vmatmul.mubr.bf16.gmra.mrb[0].mxu0 %v1587
      %v3486 = vpop.f32.mrb[0].mxu0
      %v3487 = vadd.f32 %v3198, %v3486
      %v3488 = vpop.f32.mrb[0].mxu0
      %v3489 = vpop.f32.mrb[0].mxu0
      %v3490 = vadd.f32 %v3201, %v3489
      %v3491 = vpop.f32.mrb[0].mxu0
      %3492 = vmatprep.mubr.bf16.mxu0 %v1597
      %3493 = vmatmul.mubr.bf16.gmra.mrb[0].mxu0 %v1596
      %v3494 = vpop.f32.mrb[0].mxu0
      %v3495 = vadd.f32 %v3206, %v3494
      %v3496 = vpop.f32.mrb[0].mxu0
      %v3497 = vpop.f32.mrb[0].mxu0
      %v3498 = vadd.f32 %v3209, %v3497
      %v3499 = vpop.f32.mrb[0].mxu0
      %3500 = vmatprep.mubr.bf16.mxu0 %v1606
      %3501 = vmatmul.mubr.bf16.gmra.mrb[0].mxu0 %v1605
      %v3502 = vpop.f32.mrb[0].mxu0
      %v3503 = vadd.f32 %v3214, %v3502
      %v3504 = vpop.f32.mrb[0].mxu0
      %v3505 = vpop.f32.mrb[0].mxu0
      %v3506 = vadd.f32 %v3217, %v3505
      %v3507 = vpop.f32.mrb[0].mxu0
      %3508 = vmatprep.mubr.bf16.mxu0 %v1615
      %3509 = vmatmul.mubr.bf16.gmra.mrb[0].mxu0 %v1614
      %v3510 = vpop.f32.mrb[0].mxu0
      %v3511 = vadd.f32 %v3222, %v3510
      %v3512 = vpop.f32.mrb[0].mxu0
      %v3513 = vpop.f32.mrb[0].mxu0
      %v3514 = vadd.f32 %v3225, %v3513
      %v3515 = vpop.f32.mrb[0].mxu0
      %3516 = vmatprep.mubr.bf16.mxu0 %v1624
      %3517 = vmatmul.mubr.bf16.gmra.mrb[0].mxu0 %v1623
      %v3518 = vpop.f32.mrb[0].mxu0
      %v3519 = vadd.f32 %v3230, %v3518
      %v3520 = vpop.f32.mrb[0].mxu0
      %v3521 = vpop.f32.mrb[0].mxu0
      %v3522 = vadd.f32 %v3233, %v3521
      %v3523 = vpop.f32.mrb[0].mxu0
      %3524 = vmatprep.mubr.bf16.mxu0 %v1633
      %3525 = vmatmul.mubr.bf16.gmra.mrb[0].mxu0 %v1632
      %v3526 = vpop.f32.mrb[0].mxu0
      %v3527 = vadd.f32 %v3238, %v3526
      %v3528 = vpop.f32.mrb[0].mxu0
      %v3529 = vpop.f32.mrb[0].mxu0
      %v3530 = vadd.f32 %v3241, %v3529
      %v3531 = vpop.f32.mrb[0].mxu0
      %3532 = vmatprep.mubr.bf16.mxu0 %v1642
      %3533 = vmatmul.mubr.bf16.gmra.mrb[0].mxu0 %v1641
      %v3534 = vpop.f32.mrb[0].mxu0
      %v3535 = vadd.f32 %v3246, %v3534
      %v3536 = vpop.f32.mrb[0].mxu0
      %v3537 = vpop.f32.mrb[0].mxu0
      %v3538 = vadd.f32 %v3249, %v3537
      %v3539 = vpop.f32.mrb[0].mxu0
      %3540 = vmatprep.mubr.bf16.mxu0 %v1651
      %3541 = vmatmul.mubr.bf16.gmra.mrb[0].mxu0 %v1650
      %v3542 = vpop.f32.mrb[0].mxu0
      %v3543 = vadd.f32 %v3254, %v3542
      %v3544 = vpop.f32.mrb[0].mxu0
      %v3545 = vpop.f32.mrb[0].mxu0
      %v3546 = vadd.f32 %v3257, %v3545
      %v3547 = vpop.f32.mrb[0].mxu0
      %3548 = vmatprep.mubr.bf16.mxu0 %v1660
      %3549 = vmatmul.mubr.bf16.gmra.mrb[0].mxu0 %v1659
      %v3550 = vpop.f32.mrb[0].mxu0
      %v3551 = vadd.f32 %v3262, %v3550
      %v3552 = vpop.f32.mrb[0].mxu0
      %v3553 = vpop.f32.mrb[0].mxu0
      %v3554 = vadd.f32 %v3265, %v3553
      %v3555 = vpop.f32.mrb[0].mxu0
      %3556 = vmatprep.mubr.bf16.mxu0 %v1669
      %3557 = vmatmul.mubr.bf16.gmra.mrb[0].mxu0 %v1668
      %v3558 = vpop.f32.mrb[0].mxu0
      %v3559 = vadd.f32 %v3270, %v3558
      %v3560 = vpop.f32.mrb[0].mxu0
      %v3561 = vpop.f32.mrb[0].mxu0
      %v3562 = vadd.f32 %v3273, %v3561
      %v3563 = vpop.f32.mrb[0].mxu0
      %3564 = vmatprep.mubr.bf16.mxu0 %v1678
      %3565 = vmatmul.mubr.bf16.gmra.mrb[0].mxu0 %v1677
      %v3566 = vpop.f32.mrb[0].mxu0
      %v3567 = vadd.f32 %v3278, %v3566
      %v3568 = vpop.f32.mrb[0].mxu0
      %v3569 = vpop.f32.mrb[0].mxu0
      %v3570 = vadd.f32 %v3281, %v3569
      %v3571 = vpop.f32.mrb[0].mxu0
      %3572 = vmatprep.mubr.bf16.mxu0 %v1687
      %3573 = vmatmul.mubr.bf16.gmra.mrb[0].mxu0 %v1686
      %v3574 = vpop.f32.mrb[0].mxu0
      %v3575 = vadd.f32 %v3286, %v3574
      %v3576 = vpop.f32.mrb[0].mxu0
      %v3577 = vpop.f32.mrb[0].mxu0
      %v3578 = vadd.f32 %v3289, %v3577
      %v3579 = vpop.f32.mrb[0].mxu0
      %3580 = vmatprep.mubr.bf16.mxu0 %v1696
      %3581 = vmatmul.mubr.bf16.gmra.mrb[0].mxu0 %v1695
      %v3582 = vpop.f32.mrb[0].mxu0
      %v3583 = vadd.f32 %v3294, %v3582
      %v3584 = vpop.f32.mrb[0].mxu0
      %v3585 = vpop.f32.mrb[0].mxu0
      %v3586 = vadd.f32 %v3297, %v3585
      %v3587 = vpop.f32.mrb[0].mxu0
      %3588 = vmatprep.mubr.bf16.mxu0 %v1705
      %3589 = vmatmul.mubr.bf16.gmra.mrb[0].mxu0 %v1704
      %v3590 = vpop.f32.mrb[0].mxu0
      %v3591 = vadd.f32 %v3302, %v3590
      %v3592 = vpop.f32.mrb[0].mxu0
      %v3593 = vpop.f32.mrb[0].mxu0
      %v3594 = vadd.f32 %v3305, %v3593
      %v3595 = vpop.f32.mrb[0].mxu0
      %3596 = vmatprep.mubr.bf16.mxu0 %v1714
      %3597 = vmatmul.mubr.bf16.gmra.mrb[0].mxu0 %v1713
      %v3598 = vpop.f32.mrb[0].mxu0
      %v3599 = vadd.f32 %v3310, %v3598
      %v3600 = vpop.f32.mrb[0].mxu0
      %v3601 = vpop.f32.mrb[0].mxu0
      %v3602 = vadd.f32 %v3313, %v3601
      %v3603 = vpop.f32.mrb[0].mxu0
      %3604 = vmatprep.mubr.bf16.mxu0 %v1723
      %3605 = vmatmul.mubr.bf16.gmra.mrb[0].mxu0 %v1722
      %v3606 = vpop.f32.mrb[0].mxu0
      %v3607 = vadd.f32 %v3318, %v3606
      %v3608 = vpop.f32.mrb[0].mxu0
      %v3609 = vpop.f32.mrb[0].mxu0
      %v3610 = vadd.f32 %v3321, %v3609
      %v3611 = vpop.f32.mrb[0].mxu0
      %3612 = vmatprep.mubr.bf16.mxu0 %v1732
      %3613 = vmatmul.mubr.bf16.gmra.mrb[0].mxu0 %v1731
      %v3614 = vpop.f32.mrb[0].mxu0
      %v3615 = vadd.f32 %v3326, %v3614
      %v3616 = vpop.f32.mrb[0].mxu0
      %v3617 = vpop.f32.mrb[0].mxu0
      %v3618 = vadd.f32 %v3329, %v3617
      %v3619 = vpop.f32.mrb[0].mxu0
      %3620 = vmatprep.mubr.bf16.mxu0 %v1741
      %3621 = vmatmul.mubr.bf16.gmra.mrb[0].mxu0 %v1740
      %v3622 = vpop.f32.mrb[0].mxu0
      %v3623 = vadd.f32 %v3334, %v3622
      %v3624 = vpop.f32.mrb[0].mxu0
      %v3625 = vpop.f32.mrb[0].mxu0
      %v3626 = vadd.f32 %v3337, %v3625
      %v3627 = vpop.f32.mrb[0].mxu0
      %3628 = vmatprep.mubr.bf16.mxu0 %v1750
      %3629 = vmatmul.mubr.bf16.gmra.mrb[0].mxu0 %v1749
      %v3630 = vpop.f32.mrb[0].mxu0
      %v3631 = vadd.f32 %v3342, %v3630
      %v3632 = vpop.f32.mrb[0].mxu0
      %v3633 = vpop.f32.mrb[0].mxu0
      %v3634 = vadd.f32 %v3345, %v3633
      %v3635 = vpop.f32.mrb[0].mxu0
      %3636 = vmatprep.mubr.bf16.mxu0 %v1759
      %3637 = vmatmul.mubr.bf16.gmra.mrb[0].mxu0 %v1758
      %v3638 = vpop.f32.mrb[0].mxu0
      %v3639 = vadd.f32 %v3350, %v3638
      %v3640 = vpop.f32.mrb[0].mxu0
      %v3641 = vpop.f32.mrb[0].mxu0
      %v3642 = vadd.f32 %v3353, %v3641
      %v3643 = vpop.f32.mrb[0].mxu0
      %3644 = vmatprep.mubr.bf16.mxu0 %v1768
      %3645 = vmatmul.mubr.bf16.gmra.mrb[0].mxu0 %v1767
      %v3646 = vpop.f32.mrb[0].mxu0
      %v3647 = vadd.f32 %v3358, %v3646
      %v3648 = vpop.f32.mrb[0].mxu0
      %v3649 = vpop.f32.mrb[0].mxu0
      %v3650 = vadd.f32 %v3361, %v3649
      %v3651 = vpop.f32.mrb[0].mxu0
      %3652 = vmatprep.mubr.bf16.mxu0 %v1777
      %3653 = vmatmul.mubr.bf16.gmra.mrb[0].mxu0 %v1776
      %v3654 = vpop.f32.mrb[0].mxu0
      %v3655 = vadd.f32 %v3366, %v3654
      %v3656 = vpop.f32.mrb[0].mxu0
      %v3657 = vpop.f32.mrb[0].mxu0
      %v3658 = vadd.f32 %v3369, %v3657
      %v3659 = vpop.f32.mrb[0].mxu0
      %3660 = vmatprep.mubr.bf16.mxu0 %v1786
      %3661 = vmatmul.mubr.bf16.gmra.mrb[0].mxu0 %v1785
      %v3662 = vpop.f32.mrb[0].mxu0
      %v3663 = vadd.f32 %v3374, %v3662
      %v3664 = vpop.f32.mrb[0].mxu0
      %v3665 = vpop.f32.mrb[0].mxu0
      %v3666 = vadd.f32 %v3377, %v3665
      %v3667 = vpop.f32.mrb[0].mxu0
      %3668 = vmatprep.mubr.bf16.mxu0 %v1795
      %3669 = vmatmul.mubr.bf16.gmra.mrb[0].mxu0 %v1794
      %v3670 = vpop.f32.mrb[0].mxu0
      %v3671 = vadd.f32 %v3382, %v3670
      %v3672 = vpop.f32.mrb[0].mxu0
      %v3673 = vpop.f32.mrb[0].mxu0
      %v3674 = vadd.f32 %v3385, %v3673
      %v3675 = vpop.f32.mrb[0].mxu0
      %3676 = vmatprep.mubr.bf16.mxu0 %v1804
      %3677 = vmatmul.mubr.bf16.gmra.mrb[0].mxu0 %v1803
      %v3678 = vpop.f32.mrb[0].mxu0
      %v3679 = vadd.f32 %v3390, %v3678
      %v3680 = vpop.f32.mrb[0].mxu0
      %v3681 = vpop.f32.mrb[0].mxu0
      %v3682 = vadd.f32 %v3393, %v3681
      %v3683 = vpop.f32.mrb[0].mxu0
      %3684 = vmatprep.mubr.bf16.mxu0 %v1813
      %3685 = vmatmul.mubr.bf16.gmra.mrb[0].mxu0 %v1812
      %v3686 = vpop.f32.mrb[0].mxu0
      %v3687 = vadd.f32 %v3398, %v3686
      %v3688 = vpop.f32.mrb[0].mxu0
      %v3689 = vpop.f32.mrb[0].mxu0
      %v3690 = vadd.f32 %v3401, %v3689
      %v3691 = vpop.f32.mrb[0].mxu0
      %3692 = vmatprep.mubr.bf16.mxu0 %v1822
      %3693 = vmatmul.mubr.bf16.gmra.mrb[0].mxu0 %v1821
      %v3694 = vpop.f32.mrb[0].mxu0
      %v3695 = vadd.f32 %v3406, %v3694
      %v3696 = vpop.f32.mrb[0].mxu0
      %v3697 = vpop.f32.mrb[0].mxu0
      %v3698 = vadd.f32 %v3409, %v3697
      %v3699 = vpop.f32.mrb[0].mxu0
      %3700 = vmatprep.mubr.bf16.mxu0 %v1831
      %3701 = vmatmul.mubr.bf16.gmra.mrb[0].mxu0 %v1830
      %v3702 = vpop.f32.mrb[0].mxu0
      %v3703 = vadd.f32 %v3414, %v3702
      %v3704 = vpop.f32.mrb[0].mxu0
      %v3705 = vpop.f32.mrb[0].mxu0
      %v3706 = vadd.f32 %v3417, %v3705
      %v3707 = vpop.f32.mrb[0].mxu0
      %3708 = vdwg.mxu0
      %3709 = vmatprep.subr.bf16.mxu0 0
      %3710 = vmatpush1.bf16.msra.mxu0 %v2473
      %3711 = vmatprep.subr.bf16.mxu0 0
      %3712 = vmatpush1.bf16.msra.mxu0 %v2474
      %3713 = vmatprep.subr.bf16.mxu0 0
      %3714 = vmatpush1.bf16.msra.mxu0 %v2475
      %3715 = vmatprep.subr.bf16.mxu0 0
      %3716 = vmatpush1.bf16.msra.mxu0 %v2476
      %3717 = vmatprep.subr.bf16.mxu0 0
      %3718 = vmatpush1.bf16.msra.mxu0 %v2477
      %3719 = vmatprep.subr.bf16.mxu0 0
      %3720 = vmatpush1.bf16.msra.mxu0 %v2478
      %3721 = vmatprep.subr.bf16.mxu0 0
      %3722 = vmatpush1.bf16.msra.mxu0 %v2479
      %3723 = vmatprep.subr.bf16.mxu0 0
      %3724 = vmatpush1.bf16.msra.mxu0 %v2480
      %3725 = vmatprep.subr.bf16.mxu0 0
      %3726 = vmatpush1.bf16.msra.mxu0 0
      %3727 = vmatprep.subr.bf16.mxu0 0
      %3728 = vmatpush1.bf16.msra.mxu0 0
      %3729 = vmatprep.subr.bf16.mxu0 0
      %3730 = vmatpush1.bf16.msra.mxu0 0
      %3731 = vmatprep.subr.bf16.mxu0 0
      %3732 = vmatpush1.bf16.msra.mxu0 0
      %3733 = vmatprep.subr.bf16.mxu0 0
      %3734 = vmatpush1.bf16.msra.mxu0 0
      %3735 = vmatprep.subr.bf16.mxu0 0
      %3736 = vmatpush1.bf16.msra.mxu0 0
      %3737 = vmatprep.subr.bf16.mxu0 0
      %3738 = vmatpush1.bf16.msra.mxu0 0
      %3739 = vmatprep.subr.bf16.mxu0 0
      %3740 = vmatpush1.bf16.msra.mxu0 0
      %3741 = vmatprep.mubr.bf16.mxu0 0
      %3742 = vmatmul.mubr.bf16.gmra.mrb[0].mxu0 %v1553
      %v3743 = vpop.f32.mrb[0].mxu0
      %v3744 = vadd.f32 %v3455, %v3743
      %v3745 = vpop.f32.mrb[0].mxu0
      %v3746 = vpop.f32.mrb[0].mxu0
      %v3747 = vadd.f32 %v3458, %v3746
      %v3748 = vpop.f32.mrb[0].mxu0
      %3749 = vmatprep.mubr.bf16.mxu0 0
      %3750 = vmatmul.mubr.bf16.gmra.mrb[0].mxu0 %v1562
      %v3751 = vpop.f32.mrb[0].mxu0
      %v3752 = vadd.f32 %v3463, %v3751
      %v3753 = vpop.f32.mrb[0].mxu0
      %v3754 = vpop.f32.mrb[0].mxu0
      %v3755 = vadd.f32 %v3466, %v3754
      %v3756 = vpop.f32.mrb[0].mxu0
      %3757 = vmatprep.mubr.bf16.mxu0 0
      %3758 = vmatmul.mubr.bf16.gmra.mrb[0].mxu0 %v1571
      %v3759 = vpop.f32.mrb[0].mxu0
      %v3760 = vadd.f32 %v3471, %v3759
      %v3761 = vpop.f32.mrb[0].mxu0
      %v3762 = vpop.f32.mrb[0].mxu0
      %v3763 = vadd.f32 %v3474, %v3762
      %v3764 = vpop.f32.mrb[0].mxu0
      %3765 = vmatprep.mubr.bf16.mxu0 0
      %3766 = vmatmul.mubr.bf16.gmra.mrb[0].mxu0 %v1580
      %v3767 = vpop.f32.mrb[0].mxu0
      %v3768 = vadd.f32 %v3479, %v3767
      %v3769 = vpop.f32.mrb[0].mxu0
      %v3770 = vpop.f32.mrb[0].mxu0
      %v3771 = vadd.f32 %v3482, %v3770
      %v3772 = vpop.f32.mrb[0].mxu0
      %3773 = vmatprep.mubr.bf16.mxu0 0
      %3774 = vmatmul.mubr.bf16.gmra.mrb[0].mxu0 %v1589
      %v3775 = vpop.f32.mrb[0].mxu0
      %v3776 = vadd.f32 %v3487, %v3775
      %v3777 = vpop.f32.mrb[0].mxu0
      %v3778 = vpop.f32.mrb[0].mxu0
      %v3779 = vadd.f32 %v3490, %v3778
      %v3780 = vpop.f32.mrb[0].mxu0
      %3781 = vmatprep.mubr.bf16.mxu0 0
      %3782 = vmatmul.mubr.bf16.gmra.mrb[0].mxu0 %v1598
      %v3783 = vpop.f32.mrb[0].mxu0
      %v3784 = vadd.f32 %v3495, %v3783
      %v3785 = vpop.f32.mrb[0].mxu0
      %v3786 = vpop.f32.mrb[0].mxu0
      %v3787 = vadd.f32 %v3498, %v3786
      %v3788 = vpop.f32.mrb[0].mxu0
      %3789 = vmatprep.mubr.bf16.mxu0 0
      %3790 = vmatmul.mubr.bf16.gmra.mrb[0].mxu0 %v1607
      %v3791 = vpop.f32.mrb[0].mxu0
      %v3792 = vadd.f32 %v3503, %v3791
      %v3793 = vpop.f32.mrb[0].mxu0
      %v3794 = vpop.f32.mrb[0].mxu0
      %v3795 = vadd.f32 %v3506, %v3794
      %v3796 = vpop.f32.mrb[0].mxu0
      %3797 = vmatprep.mubr.bf16.mxu0 0
      %3798 = vmatmul.mubr.bf16.gmra.mrb[0].mxu0 %v1616
      %v3799 = vpop.f32.mrb[0].mxu0
      %v3800 = vadd.f32 %v3511, %v3799
      %v3801 = vpop.f32.mrb[0].mxu0
      %v3802 = vpop.f32.mrb[0].mxu0
      %v3803 = vadd.f32 %v3514, %v3802
      %v3804 = vpop.f32.mrb[0].mxu0
      %3805 = vmatprep.mubr.bf16.mxu0 0
      %3806 = vmatmul.mubr.bf16.gmra.mrb[0].mxu0 %v1625
      %v3807 = vpop.f32.mrb[0].mxu0
      %v3808 = vadd.f32 %v3519, %v3807
      %v3809 = vpop.f32.mrb[0].mxu0
      %v3810 = vpop.f32.mrb[0].mxu0
      %v3811 = vadd.f32 %v3522, %v3810
      %v3812 = vpop.f32.mrb[0].mxu0
      %3813 = vmatprep.mubr.bf16.mxu0 0
      %3814 = vmatmul.mubr.bf16.gmra.mrb[0].mxu0 %v1634
      %v3815 = vpop.f32.mrb[0].mxu0
      %v3816 = vadd.f32 %v3527, %v3815
      %v3817 = vpop.f32.mrb[0].mxu0
      %v3818 = vpop.f32.mrb[0].mxu0
      %v3819 = vadd.f32 %v3530, %v3818
      %v3820 = vpop.f32.mrb[0].mxu0
      %3821 = vmatprep.mubr.bf16.mxu0 0
      %3822 = vmatmul.mubr.bf16.gmra.mrb[0].mxu0 %v1643
      %v3823 = vpop.f32.mrb[0].mxu0
      %v3824 = vadd.f32 %v3535, %v3823
      %v3825 = vpop.f32.mrb[0].mxu0
      %v3826 = vpop.f32.mrb[0].mxu0
      %v3827 = vadd.f32 %v3538, %v3826
      %v3828 = vpop.f32.mrb[0].mxu0
      %3829 = vmatprep.mubr.bf16.mxu0 0
      %3830 = vmatmul.mubr.bf16.gmra.mrb[0].mxu0 %v1652
      %v3831 = vpop.f32.mrb[0].mxu0
      %v3832 = vadd.f32 %v3543, %v3831
      %v3833 = vpop.f32.mrb[0].mxu0
      %v3834 = vpop.f32.mrb[0].mxu0
      %v3835 = vadd.f32 %v3546, %v3834
      %v3836 = vpop.f32.mrb[0].mxu0
      %3837 = vmatprep.mubr.bf16.mxu0 0
      %3838 = vmatmul.mubr.bf16.gmra.mrb[0].mxu0 %v1661
      %v3839 = vpop.f32.mrb[0].mxu0
      %v3840 = vadd.f32 %v3551, %v3839
      %v3841 = vpop.f32.mrb[0].mxu0
      %v3842 = vpop.f32.mrb[0].mxu0
      %v3843 = vadd.f32 %v3554, %v3842
      %v3844 = vpop.f32.mrb[0].mxu0
      %3845 = vmatprep.mubr.bf16.mxu0 0
      %3846 = vmatmul.mubr.bf16.gmra.mrb[0].mxu0 %v1670
      %v3847 = vpop.f32.mrb[0].mxu0
      %v3848 = vadd.f32 %v3559, %v3847
      %v3849 = vpop.f32.mrb[0].mxu0
      %v3850 = vpop.f32.mrb[0].mxu0
      %v3851 = vadd.f32 %v3562, %v3850
      %v3852 = vpop.f32.mrb[0].mxu0
      %3853 = vmatprep.mubr.bf16.mxu0 0
      %3854 = vmatmul.mubr.bf16.gmra.mrb[0].mxu0 %v1679
      %v3855 = vpop.f32.mrb[0].mxu0
      %v3856 = vadd.f32 %v3567, %v3855
      %v3857 = vpop.f32.mrb[0].mxu0
      %v3858 = vpop.f32.mrb[0].mxu0
      %v3859 = vadd.f32 %v3570, %v3858
      %v3860 = vpop.f32.mrb[0].mxu0
      %3861 = vmatprep.mubr.bf16.mxu0 0
      %3862 = vmatmul.mubr.bf16.gmra.mrb[0].mxu0 %v1688
      %v3863 = vpop.f32.mrb[0].mxu0
      %v3864 = vadd.f32 %v3575, %v3863
      %v3865 = vpop.f32.mrb[0].mxu0
      %v3866 = vpop.f32.mrb[0].mxu0
      %v3867 = vadd.f32 %v3578, %v3866
      %v3868 = vpop.f32.mrb[0].mxu0
      %3869 = vmatprep.mubr.bf16.mxu0 0
      %3870 = vmatmul.mubr.bf16.gmra.mrb[0].mxu0 %v1697
      %v3871 = vpop.f32.mrb[0].mxu0
      %v3872 = vadd.f32 %v3583, %v3871
      %v3873 = vpop.f32.mrb[0].mxu0
      %v3874 = vpop.f32.mrb[0].mxu0
      %v3875 = vadd.f32 %v3586, %v3874
      %v3876 = vpop.f32.mrb[0].mxu0
      %3877 = vmatprep.mubr.bf16.mxu0 0
      %3878 = vmatmul.mubr.bf16.gmra.mrb[0].mxu0 %v1706
      %v3879 = vpop.f32.mrb[0].mxu0
      %v3880 = vadd.f32 %v3591, %v3879
      %v3881 = vpop.f32.mrb[0].mxu0
      %v3882 = vpop.f32.mrb[0].mxu0
      %v3883 = vadd.f32 %v3594, %v3882
      %v3884 = vpop.f32.mrb[0].mxu0
      %3885 = vmatprep.mubr.bf16.mxu0 0
      %3886 = vmatmul.mubr.bf16.gmra.mrb[0].mxu0 %v1715
      %v3887 = vpop.f32.mrb[0].mxu0
      %v3888 = vadd.f32 %v3599, %v3887
      %v3889 = vpop.f32.mrb[0].mxu0
      %v3890 = vpop.f32.mrb[0].mxu0
      %v3891 = vadd.f32 %v3602, %v3890
      %v3892 = vpop.f32.mrb[0].mxu0
      %3893 = vmatprep.mubr.bf16.mxu0 0
      %3894 = vmatmul.mubr.bf16.gmra.mrb[0].mxu0 %v1724
      %v3895 = vpop.f32.mrb[0].mxu0
      %v3896 = vadd.f32 %v3607, %v3895
      %v3897 = vpop.f32.mrb[0].mxu0
      %v3898 = vpop.f32.mrb[0].mxu0
      %v3899 = vadd.f32 %v3610, %v3898
      %v3900 = vpop.f32.mrb[0].mxu0
      %3901 = vmatprep.mubr.bf16.mxu0 0
      %3902 = vmatmul.mubr.bf16.gmra.mrb[0].mxu0 %v1733
      %v3903 = vpop.f32.mrb[0].mxu0
      %v3904 = vadd.f32 %v3615, %v3903
      %v3905 = vpop.f32.mrb[0].mxu0
      %v3906 = vpop.f32.mrb[0].mxu0
      %v3907 = vadd.f32 %v3618, %v3906
      %v3908 = vpop.f32.mrb[0].mxu0
      %3909 = vmatprep.mubr.bf16.mxu0 0
      %3910 = vmatmul.mubr.bf16.gmra.mrb[0].mxu0 %v1742
      %v3911 = vpop.f32.mrb[0].mxu0
      %v3912 = vadd.f32 %v3623, %v3911
      %v3913 = vpop.f32.mrb[0].mxu0
      %v3914 = vpop.f32.mrb[0].mxu0
      %v3915 = vadd.f32 %v3626, %v3914
      %v3916 = vpop.f32.mrb[0].mxu0
      %3917 = vmatprep.mubr.bf16.mxu0 0
      %3918 = vmatmul.mubr.bf16.gmra.mrb[0].mxu0 %v1751
      %v3919 = vpop.f32.mrb[0].mxu0
      %v3920 = vadd.f32 %v3631, %v3919
      %v3921 = vpop.f32.mrb[0].mxu0
      %v3922 = vpop.f32.mrb[0].mxu0
      %v3923 = vadd.f32 %v3634, %v3922
      %v3924 = vpop.f32.mrb[0].mxu0
      %3925 = vmatprep.mubr.bf16.mxu0 0
      %3926 = vmatmul.mubr.bf16.gmra.mrb[0].mxu0 %v1760
      %v3927 = vpop.f32.mrb[0].mxu0
      %v3928 = vadd.f32 %v3639, %v3927
      %v3929 = vpop.f32.mrb[0].mxu0
      %v3930 = vpop.f32.mrb[0].mxu0
      %v3931 = vadd.f32 %v3642, %v3930
      %v3932 = vpop.f32.mrb[0].mxu0
      %3933 = vmatprep.mubr.bf16.mxu0 0
      %3934 = vmatmul.mubr.bf16.gmra.mrb[0].mxu0 %v1769
      %v3935 = vpop.f32.mrb[0].mxu0
      %v3936 = vadd.f32 %v3647, %v3935
      %v3937 = vpop.f32.mrb[0].mxu0
      %v3938 = vpop.f32.mrb[0].mxu0
      %v3939 = vadd.f32 %v3650, %v3938
      %v3940 = vpop.f32.mrb[0].mxu0
      %3941 = vmatprep.mubr.bf16.mxu0 0
      %3942 = vmatmul.mubr.bf16.gmra.mrb[0].mxu0 %v1778
      %v3943 = vpop.f32.mrb[0].mxu0
      %v3944 = vadd.f32 %v3655, %v3943
      %v3945 = vpop.f32.mrb[0].mxu0
      %v3946 = vpop.f32.mrb[0].mxu0
      %v3947 = vadd.f32 %v3658, %v3946
      %v3948 = vpop.f32.mrb[0].mxu0
      %3949 = vmatprep.mubr.bf16.mxu0 0
      %3950 = vmatmul.mubr.bf16.gmra.mrb[0].mxu0 %v1787
      %v3951 = vpop.f32.mrb[0].mxu0
      %v3952 = vadd.f32 %v3663, %v3951
      %v3953 = vpop.f32.mrb[0].mxu0
      %v3954 = vpop.f32.mrb[0].mxu0
      %v3955 = vadd.f32 %v3666, %v3954
      %v3956 = vpop.f32.mrb[0].mxu0
      %3957 = vmatprep.mubr.bf16.mxu0 0
      %3958 = vmatmul.mubr.bf16.gmra.mrb[0].mxu0 %v1796
      %v3959 = vpop.f32.mrb[0].mxu0
      %v3960 = vadd.f32 %v3671, %v3959
      %v3961 = vpop.f32.mrb[0].mxu0
      %v3962 = vpop.f32.mrb[0].mxu0
      %v3963 = vadd.f32 %v3674, %v3962
      %v3964 = vpop.f32.mrb[0].mxu0
      %3965 = vmatprep.mubr.bf16.mxu0 0
      %3966 = vmatmul.mubr.bf16.gmra.mrb[0].mxu0 %v1805
      %v3967 = vpop.f32.mrb[0].mxu0
      %v3968 = vadd.f32 %v3679, %v3967
      %v3969 = vpop.f32.mrb[0].mxu0
      %v3970 = vpop.f32.mrb[0].mxu0
      %v3971 = vadd.f32 %v3682, %v3970
      %v3972 = vpop.f32.mrb[0].mxu0
      %3973 = vmatprep.mubr.bf16.mxu0 0
      %3974 = vmatmul.mubr.bf16.gmra.mrb[0].mxu0 %v1814
      %v3975 = vpop.f32.mrb[0].mxu0
      %v3976 = vadd.f32 %v3687, %v3975
      %v3977 = vpop.f32.mrb[0].mxu0
      %v3978 = vpop.f32.mrb[0].mxu0
      %v3979 = vadd.f32 %v3690, %v3978
      %v3980 = vpop.f32.mrb[0].mxu0
      %3981 = vmatprep.mubr.bf16.mxu0 0
      %3982 = vmatmul.mubr.bf16.gmra.mrb[0].mxu0 %v1823
      %v3983 = vpop.f32.mrb[0].mxu0
      %v3984 = vadd.f32 %v3695, %v3983
      %v3985 = vpop.f32.mrb[0].mxu0
      %v3986 = vpop.f32.mrb[0].mxu0
      %v3987 = vadd.f32 %v3698, %v3986
      %v3988 = vpop.f32.mrb[0].mxu0
      %3989 = vmatprep.mubr.bf16.mxu0 0
      %3990 = vmatmul.mubr.bf16.gmra.mrb[0].mxu0 %v1832
      %v3991 = vpop.f32.mrb[0].mxu0
      %v3992 = vadd.f32 %v3703, %v3991
      %v3993 = vpop.f32.mrb[0].mxu0
      %v3994 = vpop.f32.mrb[0].mxu0
      %v3995 = vadd.f32 %v3706, %v3994
      %v3996 = vpop.f32.mrb[0].mxu0
      %3997 = vdwg.mxu0
      %vm3998 = vcmp.ge.f32.partialorder %v3744, 0.0
      %vm3999 = vcmp.ge.f32.partialorder %v3747, 0.0
      %vm4000 = vcmp.ge.f32.partialorder %v3752, 0.0
      %vm4001 = vcmp.ge.f32.partialorder %v3755, 0.0
      %vm4002 = vcmp.ge.f32.partialorder %v3760, 0.0
      %vm4003 = vcmp.ge.f32.partialorder %v3763, 0.0
      %vm4004 = vcmp.ge.f32.partialorder %v3768, 0.0
      %vm4005 = vcmp.ge.f32.partialorder %v3771, 0.0
      %vm4006 = vcmp.ge.f32.partialorder %v3776, 0.0
      %vm4007 = vcmp.ge.f32.partialorder %v3779, 0.0
      %vm4008 = vcmp.ge.f32.partialorder %v3784, 0.0
      %vm4009 = vcmp.ge.f32.partialorder %v3787, 0.0
      %vm4010 = vcmp.ge.f32.partialorder %v3792, 0.0
      %vm4011 = vcmp.ge.f32.partialorder %v3795, 0.0
      %vm4012 = vcmp.ge.f32.partialorder %v3800, 0.0
      %vm4013 = vcmp.ge.f32.partialorder %v3803, 0.0
      %vm4014 = vcmp.ge.f32.partialorder %v3808, 0.0
      %vm4015 = vcmp.ge.f32.partialorder %v3811, 0.0
      %vm4016 = vcmp.ge.f32.partialorder %v3816, 0.0
      %vm4017 = vcmp.ge.f32.partialorder %v3819, 0.0
      %vm4018 = vcmp.ge.f32.partialorder %v3824, 0.0
      %vm4019 = vcmp.ge.f32.partialorder %v3827, 0.0
      %vm4020 = vcmp.ge.f32.partialorder %v3832, 0.0
      %vm4021 = vcmp.ge.f32.partialorder %v3835, 0.0
      %vm4022 = vcmp.ge.f32.partialorder %v3840, 0.0
      %vm4023 = vcmp.ge.f32.partialorder %v3843, 0.0
      %vm4024 = vcmp.ge.f32.partialorder %v3848, 0.0
      %vm4025 = vcmp.ge.f32.partialorder %v3851, 0.0
      %vm4026 = vcmp.ge.f32.partialorder %v3856, 0.0
      %vm4027 = vcmp.ge.f32.partialorder %v3859, 0.0
      %vm4028 = vcmp.ge.f32.partialorder %v3864, 0.0
      %vm4029 = vcmp.ge.f32.partialorder %v3867, 0.0
      %vm4030 = vcmp.ge.f32.partialorder %v3872, 0.0
      %vm4031 = vcmp.ge.f32.partialorder %v3875, 0.0
      %vm4032 = vcmp.ge.f32.partialorder %v3880, 0.0
      %vm4033 = vcmp.ge.f32.partialorder %v3883, 0.0
      %vm4034 = vcmp.ge.f32.partialorder %v3888, 0.0
      %vm4035 = vcmp.ge.f32.partialorder %v3891, 0.0
      %vm4036 = vcmp.ge.f32.partialorder %v3896, 0.0
      %vm4037 = vcmp.ge.f32.partialorder %v3899, 0.0
      %vm4038 = vcmp.ge.f32.partialorder %v3904, 0.0
      %vm4039 = vcmp.ge.f32.partialorder %v3907, 0.0
      %vm4040 = vcmp.ge.f32.partialorder %v3912, 0.0
      %vm4041 = vcmp.ge.f32.partialorder %v3915, 0.0
      %vm4042 = vcmp.ge.f32.partialorder %v3920, 0.0
      %vm4043 = vcmp.ge.f32.partialorder %v3923, 0.0
      %vm4044 = vcmp.ge.f32.partialorder %v3928, 0.0
      %vm4045 = vcmp.ge.f32.partialorder %v3931, 0.0
      %vm4046 = vcmp.ge.f32.partialorder %v3936, 0.0
      %vm4047 = vcmp.ge.f32.partialorder %v3939, 0.0
      %vm4048 = vcmp.ge.f32.partialorder %v3944, 0.0
      %vm4049 = vcmp.ge.f32.partialorder %v3947, 0.0
      %vm4050 = vcmp.ge.f32.partialorder %v3952, 0.0
      %vm4051 = vcmp.ge.f32.partialorder %v3955, 0.0
      %vm4052 = vcmp.ge.f32.partialorder %v3960, 0.0
      %vm4053 = vcmp.ge.f32.partialorder %v3963, 0.0
      %vm4054 = vcmp.ge.f32.partialorder %v3968, 0.0
      %vm4055 = vcmp.ge.f32.partialorder %v3971, 0.0
      %vm4056 = vcmp.ge.f32.partialorder %v3976, 0.0
      %vm4057 = vcmp.ge.f32.partialorder %v3979, 0.0
      %vm4058 = vcmp.ge.f32.partialorder %v3984, 0.0
      %vm4059 = vcmp.ge.f32.partialorder %v3987, 0.0
      %vm4060 = vcmp.ge.f32.partialorder %v3992, 0.0
      %vm4061 = vcmp.ge.f32.partialorder %v3995, 0.0
      %v4062 = vmul.f32 %v3744, 0.25
      %v4063 = vmul.f32 %v3747, 0.25
      %v4064 = vmul.f32 %v3752, 0.25
      %v4065 = vmul.f32 %v3755, 0.25
      %v4066 = vmul.f32 %v3760, 0.25
      %v4067 = vmul.f32 %v3763, 0.25
      %v4068 = vmul.f32 %v3768, 0.25
      %v4069 = vmul.f32 %v3771, 0.25
      %v4070 = vmul.f32 %v3776, 0.25
      %v4071 = vmul.f32 %v3779, 0.25
      %v4072 = vmul.f32 %v3784, 0.25
      %v4073 = vmul.f32 %v3787, 0.25
      %v4074 = vmul.f32 %v3792, 0.25
      %v4075 = vmul.f32 %v3795, 0.25
      %v4076 = vmul.f32 %v3800, 0.25
      %v4077 = vmul.f32 %v3803, 0.25
      %v4078 = vmul.f32 %v3808, 0.25
      %v4079 = vmul.f32 %v3811, 0.25
      %v4080 = vmul.f32 %v3816, 0.25
      %v4081 = vmul.f32 %v3819, 0.25
      %v4082 = vmul.f32 %v3824, 0.25
      %v4083 = vmul.f32 %v3827, 0.25
      %v4084 = vmul.f32 %v3832, 0.25
      %v4085 = vmul.f32 %v3835, 0.25
      %v4086 = vmul.f32 %v3840, 0.25
      %v4087 = vmul.f32 %v3843, 0.25
      %v4088 = vmul.f32 %v3848, 0.25
      %v4089 = vmul.f32 %v3851, 0.25
      %v4090 = vmul.f32 %v3856, 0.25
      %v4091 = vmul.f32 %v3859, 0.25
      %v4092 = vmul.f32 %v3864, 0.25
      %v4093 = vmul.f32 %v3867, 0.25
      %v4094 = vmul.f32 %v3872, 0.25
      %v4095 = vmul.f32 %v3875, 0.25
      %v4096 = vmul.f32 %v3880, 0.25
      %v4097 = vmul.f32 %v3883, 0.25
      %v4098 = vmul.f32 %v3888, 0.25
      %v4099 = vmul.f32 %v3891, 0.25
      %v4100 = vmul.f32 %v3896, 0.25
      %v4101 = vmul.f32 %v3899, 0.25
      %v4102 = vmul.f32 %v3904, 0.25
      %v4103 = vmul.f32 %v3907, 0.25
      %v4104 = vmul.f32 %v3912, 0.25
      %v4105 = vmul.f32 %v3915, 0.25
      %v4106 = vmul.f32 %v3920, 0.25
      %v4107 = vmul.f32 %v3923, 0.25
      %v4108 = vmul.f32 %v3928, 0.25
      %v4109 = vmul.f32 %v3931, 0.25
      %v4110 = vmul.f32 %v3936, 0.25
      %v4111 = vmul.f32 %v3939, 0.25
      %v4112 = vmul.f32 %v3944, 0.25
      %v4113 = vmul.f32 %v3947, 0.25
      %v4114 = vmul.f32 %v3952, 0.25
      %v4115 = vmul.f32 %v3955, 0.25
      %v4116 = vmul.f32 %v3960, 0.25
      %v4117 = vmul.f32 %v3963, 0.25
      %v4118 = vmul.f32 %v3968, 0.25
      %v4119 = vmul.f32 %v3971, 0.25
      %v4120 = vmul.f32 %v3976, 0.25
      %v4121 = vmul.f32 %v3979, 0.25
      %v4122 = vmul.f32 %v3984, 0.25
      %v4123 = vmul.f32 %v3987, 0.25
      %v4124 = vmul.f32 %v3992, 0.25
      %v4125 = vmul.f32 %v3995, 0.25
      %v4126 = vsel %vm3998, %v3744, %v4062
      %v4127 = vsel %vm3999, %v3747, %v4063
      %v4128 = vsel %vm4000, %v3752, %v4064
      %v4129 = vsel %vm4001, %v3755, %v4065
      %v4130 = vsel %vm4002, %v3760, %v4066
      %v4131 = vsel %vm4003, %v3763, %v4067
      %v4132 = vsel %vm4004, %v3768, %v4068
      %v4133 = vsel %vm4005, %v3771, %v4069
      %v4134 = vsel %vm4006, %v3776, %v4070
      %v4135 = vsel %vm4007, %v3779, %v4071
      %v4136 = vsel %vm4008, %v3784, %v4072
      %v4137 = vsel %vm4009, %v3787, %v4073
      %v4138 = vsel %vm4010, %v3792, %v4074
      %v4139 = vsel %vm4011, %v3795, %v4075
      %v4140 = vsel %vm4012, %v3800, %v4076
      %v4141 = vsel %vm4013, %v3803, %v4077
      %v4142 = vsel %vm4014, %v3808, %v4078
      %v4143 = vsel %vm4015, %v3811, %v4079
      %v4144 = vsel %vm4016, %v3816, %v4080
      %v4145 = vsel %vm4017, %v3819, %v4081
      %v4146 = vsel %vm4018, %v3824, %v4082
      %v4147 = vsel %vm4019, %v3827, %v4083
      %v4148 = vsel %vm4020, %v3832, %v4084
      %v4149 = vsel %vm4021, %v3835, %v4085
      %v4150 = vsel %vm4022, %v3840, %v4086
      %v4151 = vsel %vm4023, %v3843, %v4087
      %v4152 = vsel %vm4024, %v3848, %v4088
      %v4153 = vsel %vm4025, %v3851, %v4089
      %v4154 = vsel %vm4026, %v3856, %v4090
      %v4155 = vsel %vm4027, %v3859, %v4091
      %v4156 = vsel %vm4028, %v3864, %v4092
      %v4157 = vsel %vm4029, %v3867, %v4093
      %v4158 = vsel %vm4030, %v3872, %v4094
      %v4159 = vsel %vm4031, %v3875, %v4095
      %v4160 = vsel %vm4032, %v3880, %v4096
      %v4161 = vsel %vm4033, %v3883, %v4097
      %v4162 = vsel %vm4034, %v3888, %v4098
      %v4163 = vsel %vm4035, %v3891, %v4099
      %v4164 = vsel %vm4036, %v3896, %v4100
      %v4165 = vsel %vm4037, %v3899, %v4101
      %v4166 = vsel %vm4038, %v3904, %v4102
      %v4167 = vsel %vm4039, %v3907, %v4103
      %v4168 = vsel %vm4040, %v3912, %v4104
      %v4169 = vsel %vm4041, %v3915, %v4105
      %v4170 = vsel %vm4042, %v3920, %v4106
      %v4171 = vsel %vm4043, %v3923, %v4107
      %v4172 = vsel %vm4044, %v3928, %v4108
      %v4173 = vsel %vm4045, %v3931, %v4109
      %v4174 = vsel %vm4046, %v3936, %v4110
      %v4175 = vsel %vm4047, %v3939, %v4111
      %v4176 = vsel %vm4048, %v3944, %v4112
      %v4177 = vsel %vm4049, %v3947, %v4113
      %v4178 = vsel %vm4050, %v3952, %v4114
      %v4179 = vsel %vm4051, %v3955, %v4115
      %v4180 = vsel %vm4052, %v3960, %v4116
      %v4181 = vsel %vm4053, %v3963, %v4117
      %v4182 = vsel %vm4054, %v3968, %v4118
      %v4183 = vsel %vm4055, %v3971, %v4119
      %v4184 = vsel %vm4056, %v3976, %v4120
      %v4185 = vsel %vm4057, %v3979, %v4121
      %v4186 = vsel %vm4058, %v3984, %v4122
      %v4187 = vsel %vm4059, %v3987, %v4123
      %v4188 = vsel %vm4060, %v3992, %v4124
      %v4189 = vsel %vm4061, %v3995, %v4125
      %v4190 = vpack.c.bf16 %v4127, %v4126
      %v4191 = vpack.c.bf16 %v4129, %v4128
      %v4192 = vpack.c.bf16 %v4131, %v4130
      %v4193 = vpack.c.bf16 %v4133, %v4132
      %v4194 = vpack.c.bf16 %v4135, %v4134
      %v4195 = vpack.c.bf16 %v4137, %v4136
      %v4196 = vpack.c.bf16 %v4139, %v4138
      %v4197 = vpack.c.bf16 %v4141, %v4140
      %v4198 = vpack.c.bf16 %v4143, %v4142
      %v4199 = vpack.c.bf16 %v4145, %v4144
      %v4200 = vpack.c.bf16 %v4147, %v4146
      %v4201 = vpack.c.bf16 %v4149, %v4148
      %v4202 = vpack.c.bf16 %v4151, %v4150
      %v4203 = vpack.c.bf16 %v4153, %v4152
      %v4204 = vpack.c.bf16 %v4155, %v4154
      %v4205 = vpack.c.bf16 %v4157, %v4156
      %v4206 = vpack.c.bf16 %v4159, %v4158
      %v4207 = vpack.c.bf16 %v4161, %v4160
      %v4208 = vpack.c.bf16 %v4163, %v4162
      %v4209 = vpack.c.bf16 %v4165, %v4164
      %v4210 = vpack.c.bf16 %v4167, %v4166
      %v4211 = vpack.c.bf16 %v4169, %v4168
      %v4212 = vpack.c.bf16 %v4171, %v4170
      %v4213 = vpack.c.bf16 %v4173, %v4172
      %v4214 = vpack.c.bf16 %v4175, %v4174
      %v4215 = vpack.c.bf16 %v4177, %v4176
      %v4216 = vpack.c.bf16 %v4179, %v4178
      %v4217 = vpack.c.bf16 %v4181, %v4180
      %v4218 = vpack.c.bf16 %v4183, %v4182
      %v4219 = vpack.c.bf16 %v4185, %v4184
      %v4220 = vpack.c.bf16 %v4187, %v4186
      %v4221 = vpack.c.bf16 %v4189, %v4188
      %v4254 = vunpack.c.l.b16 %v4190
      %v4255 = vunpack.c.h.b16 %v4190
      %v4256 = vunpack.c.l.b16 %v4191
      %v4257 = vunpack.c.h.b16 %v4191
      %v4258 = vunpack.c.l.b16 %v4192
      %v4259 = vunpack.c.h.b16 %v4192
      %v4260 = vunpack.c.l.b16 %v4193
      %v4261 = vunpack.c.h.b16 %v4193
      %v4262 = vunpack.c.l.b16 %v4194
      %v4263 = vunpack.c.h.b16 %v4194
      %v4264 = vunpack.c.l.b16 %v4195
      %v4265 = vunpack.c.h.b16 %v4195
      %v4266 = vunpack.c.l.b16 %v4196
      %v4267 = vunpack.c.h.b16 %v4196
      %v4268 = vunpack.c.l.b16 %v4197
      %v4269 = vunpack.c.h.b16 %v4197
      %v4270 = vunpack.c.l.b16 %v4198
      %v4271 = vunpack.c.h.b16 %v4198
      %v4272 = vunpack.c.l.b16 %v4199
      %v4273 = vunpack.c.h.b16 %v4199
      %v4274 = vunpack.c.l.b16 %v4200
      %v4275 = vunpack.c.h.b16 %v4200
      %v4276 = vunpack.c.l.b16 %v4201
      %v4277 = vunpack.c.h.b16 %v4201
      %v4278 = vunpack.c.l.b16 %v4202
      %v4279 = vunpack.c.h.b16 %v4202
      %v4280 = vunpack.c.l.b16 %v4203
      %v4281 = vunpack.c.h.b16 %v4203
      %v4282 = vunpack.c.l.b16 %v4204
      %v4283 = vunpack.c.h.b16 %v4204
      %v4284 = vunpack.c.l.b16 %v4205
      %v4285 = vunpack.c.h.b16 %v4205
      %v4286 = vunpack.c.l.b16 %v4206
      %v4287 = vunpack.c.h.b16 %v4206
      %v4288 = vunpack.c.l.b16 %v4207
      %v4289 = vunpack.c.h.b16 %v4207
      %v4290 = vunpack.c.l.b16 %v4208
      %v4291 = vunpack.c.h.b16 %v4208
      %v4292 = vunpack.c.l.b16 %v4209
      %v4293 = vunpack.c.h.b16 %v4209
      %v4294 = vunpack.c.l.b16 %v4210
      %v4295 = vunpack.c.h.b16 %v4210
      %v4296 = vunpack.c.l.b16 %v4211
      %v4297 = vunpack.c.h.b16 %v4211
      %v4298 = vunpack.c.l.b16 %v4212
      %v4299 = vunpack.c.h.b16 %v4212
      %v4300 = vunpack.c.l.b16 %v4213
      %v4301 = vunpack.c.h.b16 %v4213
      %v4302 = vunpack.c.l.b16 %v4214
      %v4303 = vunpack.c.h.b16 %v4214
      %v4304 = vunpack.c.l.b16 %v4215
      %v4305 = vunpack.c.h.b16 %v4215
      %v4306 = vunpack.c.l.b16 %v4216
      %v4307 = vunpack.c.h.b16 %v4216
      %v4308 = vunpack.c.l.b16 %v4217
      %v4309 = vunpack.c.h.b16 %v4217
      %v4310 = vunpack.c.l.b16 %v4218
      %v4311 = vunpack.c.h.b16 %v4218
      %v4312 = vunpack.c.l.b16 %v4219
      %v4313 = vunpack.c.h.b16 %v4219
      %v4314 = vunpack.c.l.b16 %v4220
      %v4315 = vunpack.c.h.b16 %v4220
      %v4316 = vunpack.c.l.b16 %v4221
      %v4317 = vunpack.c.h.b16 %v4221
      %v4318 = vpack.c.b16 %v4254, %v4254
      %v4319 = vpack.c.b16 %v4255, %v4255
      %v4320 = vpack.c.b16 %v4256, %v4256
      %v4321 = vpack.c.b16 %v4257, %v4257
      %v4322 = vpack.c.b16 %v4258, %v4258
      %v4323 = vpack.c.b16 %v4259, %v4259
      %v4324 = vpack.c.b16 %v4260, %v4260
      %v4325 = vpack.c.b16 %v4261, %v4261
      %v4326 = vpack.c.b16 %v4262, %v4262
      %v4327 = vpack.c.b16 %v4263, %v4263
      %v4328 = vpack.c.b16 %v4264, %v4264
      %v4329 = vpack.c.b16 %v4265, %v4265
      %v4330 = vpack.c.b16 %v4266, %v4266
      %v4331 = vpack.c.b16 %v4267, %v4267
      %v4332 = vpack.c.b16 %v4268, %v4268
      %v4333 = vpack.c.b16 %v4269, %v4269
      %v4334 = vpack.c.b16 %v4270, %v4270
      %v4335 = vpack.c.b16 %v4271, %v4271
      %v4336 = vpack.c.b16 %v4272, %v4272
      %v4337 = vpack.c.b16 %v4273, %v4273
      %v4338 = vpack.c.b16 %v4274, %v4274
      %v4339 = vpack.c.b16 %v4275, %v4275
      %v4340 = vpack.c.b16 %v4276, %v4276
      %v4341 = vpack.c.b16 %v4277, %v4277
      %v4342 = vpack.c.b16 %v4278, %v4278
      %v4343 = vpack.c.b16 %v4279, %v4279
      %v4344 = vpack.c.b16 %v4280, %v4280
      %v4345 = vpack.c.b16 %v4281, %v4281
      %v4346 = vpack.c.b16 %v4282, %v4282
      %v4347 = vpack.c.b16 %v4283, %v4283
      %v4348 = vpack.c.b16 %v4284, %v4284
      %v4349 = vpack.c.b16 %v4285, %v4285
      %v4350 = vpack.c.b16 %v4286, %v4286
      %v4351 = vpack.c.b16 %v4287, %v4287
      %v4352 = vpack.c.b16 %v4288, %v4288
      %v4353 = vpack.c.b16 %v4289, %v4289
      %v4354 = vpack.c.b16 %v4290, %v4290
      %v4355 = vpack.c.b16 %v4291, %v4291
      %v4356 = vpack.c.b16 %v4292, %v4292
      %v4357 = vpack.c.b16 %v4293, %v4293
      %v4358 = vpack.c.b16 %v4294, %v4294
      %v4359 = vpack.c.b16 %v4295, %v4295
      %v4360 = vpack.c.b16 %v4296, %v4296
      %v4361 = vpack.c.b16 %v4297, %v4297
      %v4362 = vpack.c.b16 %v4298, %v4298
      %v4363 = vpack.c.b16 %v4299, %v4299
      %v4364 = vpack.c.b16 %v4300, %v4300
      %v4365 = vpack.c.b16 %v4301, %v4301
      %v4366 = vpack.c.b16 %v4302, %v4302
      %v4367 = vpack.c.b16 %v4303, %v4303
      %v4368 = vpack.c.b16 %v4304, %v4304
      %v4369 = vpack.c.b16 %v4305, %v4305
      %v4370 = vpack.c.b16 %v4306, %v4306
      %v4371 = vpack.c.b16 %v4307, %v4307
      %v4372 = vpack.c.b16 %v4308, %v4308
      %v4373 = vpack.c.b16 %v4309, %v4309
      %v4374 = vpack.c.b16 %v4310, %v4310
      %v4375 = vpack.c.b16 %v4311, %v4311
      %v4376 = vpack.c.b16 %v4312, %v4312
      %v4377 = vpack.c.b16 %v4313, %v4313
      %v4378 = vpack.c.b16 %v4314, %v4314
      %v4379 = vpack.c.b16 %v4315, %v4315
      %v4380 = vpack.c.b16 %v4316, %v4316
      %v4381 = vpack.c.b16 %v4317, %v4317
      %4446 = vst [vmem:[%s175] sm:$0xf] %v4318
      %4447 = vst [vmem:[%s175 + $0x4] sm:$0xf] %v4319
      %4448 = vst [vmem:[%s175 + $0x8] sm:$0xf] %v4320
      %4449 = vst [vmem:[%s175 + $0xc] sm:$0xf] %v4321
      %4450 = vst [vmem:[%s175 + $0x10] sm:$0xf] %v4322
      %4451 = vst [vmem:[%s175 + $0x14] sm:$0xf] %v4323
      %4452 = vst [vmem:[%s175 + $0x18] sm:$0xf] %v4324
      %4453 = vst [vmem:[%s175 + $0x1c] sm:$0xf] %v4325
      %4454 = vst [vmem:[%s175 + $0x20] sm:$0xf] %v4326
      %4455 = vst [vmem:[%s175 + $0x24] sm:$0xf] %v4327
      %4456 = vst [vmem:[%s175 + $0x28] sm:$0xf] %v4328
      %4457 = vst [vmem:[%s175 + $0x2c] sm:$0xf] %v4329
      %4458 = vst [vmem:[%s175 + $0x30] sm:$0xf] %v4330
      %4459 = vst [vmem:[%s175 + $0x34] sm:$0xf] %v4331
      %4460 = vst [vmem:[%s175 + $0x38] sm:$0xf] %v4332
      %4461 = vst [vmem:[%s175 + $0x3c] sm:$0xf] %v4333
      %4462 = vst [vmem:[%s175 + $0x40] sm:$0xf] %v4334
      %4463 = vst [vmem:[%s175 + $0x44] sm:$0xf] %v4335
      %4464 = vst [vmem:[%s175 + $0x48] sm:$0xf] %v4336
      %4465 = vst [vmem:[%s175 + $0x4c] sm:$0xf] %v4337
      %4466 = vst [vmem:[%s175 + $0x50] sm:$0xf] %v4338
      %4467 = vst [vmem:[%s175 + $0x54] sm:$0xf] %v4339
      %4468 = vst [vmem:[%s175 + $0x58] sm:$0xf] %v4340
      %4469 = vst [vmem:[%s175 + $0x5c] sm:$0xf] %v4341
      %4470 = vst [vmem:[%s175 + $0x60] sm:$0xf] %v4342
      %4471 = vst [vmem:[%s175 + $0x64] sm:$0xf] %v4343
      %4472 = vst [vmem:[%s175 + $0x68] sm:$0xf] %v4344
      %4473 = vst [vmem:[%s175 + $0x6c] sm:$0xf] %v4345
      %4474 = vst [vmem:[%s175 + $0x70] sm:$0xf] %v4346
      %4475 = vst [vmem:[%s175 + $0x74] sm:$0xf] %v4347
      %4476 = vst [vmem:[%s175 + $0x78] sm:$0xf] %v4348
      %4477 = vst [vmem:[%s175 + $0x7c] sm:$0xf] %v4349
      %4478 = vst [vmem:[%s175 + $0x80] sm:$0xf] %v4350
      %4479 = vst [vmem:[%s175 + $0x84] sm:$0xf] %v4351
      %4480 = vst [vmem:[%s175 + $0x88] sm:$0xf] %v4352
      %4481 = vst [vmem:[%s175 + $0x8c] sm:$0xf] %v4353
      %4482 = vst [vmem:[%s175 + $0x90] sm:$0xf] %v4354
      %4483 = vst [vmem:[%s175 + $0x94] sm:$0xf] %v4355
      %4484 = vst [vmem:[%s175 + $0x98] sm:$0xf] %v4356
      %4485 = vst [vmem:[%s175 + $0x9c] sm:$0xf] %v4357
      %4486 = vst [vmem:[%s175 + $0xa0] sm:$0xf] %v4358
      %4487 = vst [vmem:[%s175 + $0xa4] sm:$0xf] %v4359
      %4488 = vst [vmem:[%s175 + $0xa8] sm:$0xf] %v4360
      %4489 = vst [vmem:[%s175 + $0xac] sm:$0xf] %v4361
      %4490 = vst [vmem:[%s175 + $0xb0] sm:$0xf] %v4362
      %4491 = vst [vmem:[%s175 + $0xb4] sm:$0xf] %v4363
      %4492 = vst [vmem:[%s175 + $0xb8] sm:$0xf] %v4364
      %4493 = vst [vmem:[%s175 + $0xbc] sm:$0xf] %v4365
      %4494 = vst [vmem:[%s175 + $0xc0] sm:$0xf] %v4366
      %4495 = vst [vmem:[%s175 + $0xc4] sm:$0xf] %v4367
      %4496 = vst [vmem:[%s175 + $0xc8] sm:$0xf] %v4368
      %4497 = vst [vmem:[%s175 + $0xcc] sm:$0xf] %v4369
      %4498 = vst [vmem:[%s175 + $0xd0] sm:$0xf] %v4370
      %4499 = vst [vmem:[%s175 + $0xd4] sm:$0xf] %v4371
      %4500 = vst [vmem:[%s175 + $0xd8] sm:$0xf] %v4372
      %4501 = vst [vmem:[%s175 + $0xdc] sm:$0xf] %v4373
      %4502 = vst [vmem:[%s175 + $0xe0] sm:$0xf] %v4374
      %4503 = vst [vmem:[%s175 + $0xe4] sm:$0xf] %v4375
      %4504 = vst [vmem:[%s175 + $0xe8] sm:$0xf] %v4376
      %4505 = vst [vmem:[%s175 + $0xec] sm:$0xf] %v4377
      %4506 = vst [vmem:[%s175 + $0xf0] sm:$0xf] %v4378
      %4507 = vst [vmem:[%s175 + $0xf4] sm:$0xf] %v4379
      %4508 = vst [vmem:[%s175 + $0xf8] sm:$0xf] %v4380
      %4509 = vst [vmem:[%s175 + $0xfc] sm:$0xf] %v4381
      %s4510 = smul.u32 64, %s14
      %p4511 = scmp.lt.s32.totalorder %s4510, 255
      %s4512 = scalar_select %p4511, %s4510, 255
      %s4513 = smul.addr %s4512, 4
      %s4514 = scalar_lea.vmem %s3, %s4513
      // Predicated region
      $region33: #{closed_call.58} parent=31 // pred_check
        %p4515 = pneg %p100
      $region34: #{closed_call.58} parent=31 // pred_check_branch
        %4517 = sbr.rel (%p4515) target = $region36
      $region35: #{closed_call.58} parent=31 // pred_region
        %s4518 = smul.u32 64, %s14
      $region36: #{closed_call.58} parent=31 // pred_fallthru
        _
    $region32: #{closed_call.58} parent=5 // pred_fallthru
      _
    %p4519 = scmp.le.s32.totalorder 2, %s9
    // Predicated region
    $region37: #{closed_call.58} parent=5 // pred_check
      %p4520 = pneg %p4519
    $region38: #{closed_call.58} parent=5 // pred_check_branch
      %4522 = sbr.rel (%p4520) target = $region40
    $region39: #{closed_call.58} parent=5 // pred_region
      %s4523 = ssub.s32 %s9, 2
      // Predicated region
      $region41: #{closed_call.58} parent=39 // pred_check
        %p4524 = pneg %p106
      $region42: #{closed_call.58} parent=39 // pred_check_branch
        %4526 = sbr.rel (%p4524) target = $region44
      $region43: #{closed_call.58} parent=39 // pred_region
        %s4527 = smul.u32 64, %s15
        %p4528 = scmp.lt.s32.totalorder %s4527, 255
        %s4529 = scalar_select %p4528, %s4527, 255
        %s4530 = smul.addr %s4529, 4
        %s4531 = scalar_lea.vmem %s3, %s4530
      $region44: #{closed_call.58} parent=39 // pred_fallthru
        _
    $region40: #{closed_call.58} parent=5 // pred_fallthru
      _
  $region6: #{closed_call.58} parent=0 // loop_footer
    %s13 = sadd.s32 1, %s9
  $region7: #{closed_call.58} parent=0 // loop_footer_branch
    %8 = sbr.rel target = $region3
  $region8: #{closed_call.58} parent=0 // loop_exit
    _

// kernel: closed_call.59
$region0: #{closed_call.59}
  #allocation0 [shape = 'u32[]', space=smem, size = 0x4, offset = 0x4, fixed_abs, tag = 'smem constant byte address 0x4 - core index']
  #allocation1 [shape = 'u32[144,128]{1,0:T(1,128)}', space=vmem, size = 0x12000, scoped, tag = 'internal scratch']
  %s0 = inlined_call_operand.vmem [shape: bf16[512,288], index: 0, kind: input, shape index: {}]
  %s1 = inlined_call_operand.vmem [shape: bf16[288,128], index: 1, kind: input, shape index: {}]
  %s2 = inlined_call_operand.vmem [shape: f32[1,128], index: 2, kind: input, shape index: {}]
  %s3 = inlined_call_operand.vmem [shape: bf16[512,128], index: 3, kind: output, shape index: {}]
  %s4 = sld [smem:[#allocation0]]
  $region45: #{closed_call.59} parent=0
    _
  %s6 = ssub.s32 1, %s4
  %s7 = scalar_select 0, %s6, %s4
  loop: start=0, step=1, limit=4
  $region2: #{closed_call.59} parent=0 // loop_pre_header
    _
  $region3: #{closed_call.59} parent=0 // loop_header
    %s9 = sphi 0, %s13
    %p10 = scmp.ge.s32.totalorder %s9, 4
    %s19 = sphi 0, %s21
    %s22 = sphi 0, %s19
    %s23 = sphi 0, %s22
    %s39 = sphi 0, %s23
    %s43 = sphi 0, %s43
    %s45 = sphi 0, %s43
    %s46 = sphi 0, %s45
    %s60 = sphi 0, %s46
    %s64 = sphi 0, %s64
    %s66 = sphi 0, %s64
    %s67 = sphi 0, %s66
    %s81 = sphi 0, %s67
    %s87 = sphi 0, %s89
    %s90 = sphi 0, %s87
    %s91 = sphi 0, %s90
    %s107 = sphi 0, %s91
  $region4: #{closed_call.59} parent=0 // loop_header_branch
    %12 = sbr.rel (%p10) target = $region8
  $region5: #{closed_call.59} parent=0 // loop_body
    %s14 = ssub.s32 %s9, 1
    %s15 = ssub.s32 %s9, 2
    %s16 = sadd.s32 %s9, 1
    %s17 = ssub.s32 %s9, %s16
    %p18 = scmp.eq.s32.totalorder %s17, 0
    %s20 = sadd.s32 %s19, 1
    %s21 = scalar_select %p18, %s19, %s20
    %p24 = pneg %p18
    %p25 = scmp.eq.s32.totalorder %s9, 1
    %p26 = por %p24, %p25
    %p27 = scmp.ne.s32.totalorder %s19, %s22
    %p28 = scmp.eq.s32.totalorder %s9, 0
    %p29 = por %p27, %p28
    %p30 = scmp.ne.s32.totalorder %s19, %s22
    %p31 = scmp.eq.s32.totalorder %s14, 1
    %p32 = por %p30, %p31
    %p33 = scmp.ne.s32.totalorder %s22, %s23
    %p34 = scmp.eq.s32.totalorder %s14, 0
    %p35 = por %p33, %p34
    %p36 = scmp.ne.s32.totalorder %s22, %s23
    %p37 = scmp.eq.s32.totalorder %s15, 1
    %p38 = por %p36, %p37
    %p40 = scmp.ne.s32.totalorder %s23, %s39
    %p41 = scmp.eq.s32.totalorder %s15, 0
    %p42 = por %p40, %p41
    %s44 = sadd.s32 %s43, 1
    %p47 = scmp.eq.s32.totalorder %s9, 1
    %p48 = scmp.ne.s32.totalorder %s43, %s45
    %p49 = scmp.eq.s32.totalorder %s9, 0
    %p50 = por %p48, %p49
    %p51 = scmp.ne.s32.totalorder %s43, %s45
    %p52 = scmp.eq.s32.totalorder %s14, 1
    %p53 = por %p51, %p52
    %p54 = scmp.ne.s32.totalorder %s45, %s46
    %p55 = scmp.eq.s32.totalorder %s14, 0
    %p56 = por %p54, %p55
    %p57 = scmp.ne.s32.totalorder %s45, %s46
    %p58 = scmp.eq.s32.totalorder %s15, 1
    %p59 = por %p57, %p58
    %p61 = scmp.ne.s32.totalorder %s46, %s60
    %p62 = scmp.eq.s32.totalorder %s15, 0
    %p63 = por %p61, %p62
    %s65 = sadd.s32 %s64, 1
    %p68 = scmp.eq.s32.totalorder %s9, 1
    %p69 = scmp.ne.s32.totalorder %s64, %s66
    %p70 = scmp.eq.s32.totalorder %s9, 0
    %p71 = por %p69, %p70
    %p72 = scmp.ne.s32.totalorder %s64, %s66
    %p73 = scmp.eq.s32.totalorder %s14, 1
    %p74 = por %p72, %p73
    %p75 = scmp.ne.s32.totalorder %s66, %s67
    %p76 = scmp.eq.s32.totalorder %s14, 0
    %p77 = por %p75, %p76
    %p78 = scmp.ne.s32.totalorder %s66, %s67
    %p79 = scmp.eq.s32.totalorder %s15, 1
    %p80 = por %p78, %p79
    %p82 = scmp.ne.s32.totalorder %s67, %s81
    %p83 = scmp.eq.s32.totalorder %s15, 0
    %p84 = por %p82, %p83
    %s85 = ssub.s32 %s9, %s16
    %p86 = scmp.eq.s32.totalorder %s85, 0
    %s88 = sadd.s32 %s87, 1
    %s89 = scalar_select %p86, %s87, %s88
    %p92 = pneg %p86
    %p93 = scmp.eq.s32.totalorder %s9, 1
    %p94 = por %p92, %p93
    %p95 = scmp.ne.s32.totalorder %s87, %s90
    %p96 = scmp.eq.s32.totalorder %s9, 0
    %p97 = por %p95, %p96
    %p98 = scmp.ne.s32.totalorder %s87, %s90
    %p99 = scmp.eq.s32.totalorder %s14, 1
    %p100 = por %p98, %p99
    %p101 = scmp.ne.s32.totalorder %s90, %s91
    %p102 = scmp.eq.s32.totalorder %s14, 0
    %p103 = por %p101, %p102
    %p104 = scmp.ne.s32.totalorder %s90, %s91
    %p105 = scmp.eq.s32.totalorder %s15, 1
    %p106 = por %p104, %p105
    %p108 = scmp.ne.s32.totalorder %s91, %s107
    %p109 = scmp.eq.s32.totalorder %s15, 0
    %p110 = por %p108, %p109
    %p111 = scmp.le.s32.totalorder 1, %s9
    %p112 = scmp.lt.s32.totalorder %s9, 3
    %p113 = pnand %p111, %p112
    %p114 = pneg %p113
    // Predicated region
    $region9: #{closed_call.59} parent=5 // pred_check
      _
    $region10: #{closed_call.59} parent=5 // pred_check_branch
      %116 = sbr.rel (%p113) target = $region12
    $region11: #{closed_call.59} parent=5 // pred_region
      %s117 = ssub.s32 %s9, 1
      // Predicated region
      $region13: #{closed_call.59} parent=11 // pred_check
        %p118 = pneg %p56
      $region14: #{closed_call.59} parent=11 // pred_check_branch
        %120 = sbr.rel (%p118) target = $region16
      $region15: #{closed_call.59} parent=11 // pred_region
        _
      $region16: #{closed_call.59} parent=11 // pred_fallthru
        _
      // Predicated region
      $region17: #{closed_call.59} parent=11 // pred_check
        %p121 = pneg %p77
      $region18: #{closed_call.59} parent=11 // pred_check_branch
        %123 = sbr.rel (%p121) target = $region20
      $region19: #{closed_call.59} parent=11 // pred_region
        _
      $region20: #{closed_call.59} parent=11 // pred_fallthru
        _
    $region12: #{closed_call.59} parent=5 // pred_fallthru
      _
    %p124 = scmp.lt.s32.totalorder %s9, 2
    // Predicated region
    $region21: #{closed_call.59} parent=5 // pred_check
      %p125 = pneg %p124
    $region22: #{closed_call.59} parent=5 // pred_check_branch
      %127 = sbr.rel (%p125) target = $region24
    $region23: #{closed_call.59} parent=5 // pred_region
      // Predicated region
      $region25: #{closed_call.59} parent=23 // pred_check
        %p128 = pneg %p29
      $region26: #{closed_call.59} parent=23 // pred_check_branch
        %130 = sbr.rel (%p128) target = $region28
      $region27: #{closed_call.59} parent=23 // pred_region
        %s131 = smul.u32 32, %s9
        %p132 = scmp.lt.s32.totalorder %s131, 63
        %s133 = scalar_select %p132, %s131, 63
        %s134 = smul.addr %s133, 3
        %s135 = smul.addr %s134, 4
        %s136 = scalar_lea.vmem %s0, %s135
        %s137 = smul.u32 32, %s9
      $region28: #{closed_call.59} parent=23 // pred_fallthru
        _
    $region24: #{closed_call.59} parent=5 // pred_fallthru
      _
    %p138 = scmp.le.s32.totalorder 1, %s9
    %p139 = scmp.lt.s32.totalorder %s9, 3
    %p140 = pnand %p138, %p139
    %p141 = pneg %p140
    // Predicated region
    $region29: #{closed_call.59} parent=5 // pred_check
      _
    $region30: #{closed_call.59} parent=5 // pred_check_branch
      %143 = sbr.rel (%p140) target = $region32
    $region31: #{closed_call.59} parent=5 // pred_region
      %s144 = ssub.s32 %s9, 1
      %s145 = smul.u32 32, %s14
      %p146 = scmp.lt.s32.totalorder %s145, 63
      %s147 = scalar_select %p146, %s145, 63
      %s148 = smul.addr %s147, 3
      %s149 = smul.addr %s148, 4
      %s150 = scalar_lea.vmem %s0, %s149
      %p151 = pneg %p35
      %p152 = pneg %p32
      %p153 = pneg %p56
      %p154 = pneg %p53
      %p155 = pneg %p77
      %p156 = pneg %p74
      %p157 = pneg %p103
      %p158 = pneg %p100
      %s159 = smul.u32 32, %s14
      %p160 = scmp.lt.s32.totalorder %s159, 63
      %s161 = scalar_select %p160, %s159, 63
      %s162 = smul.addr %s161, 4
      %s163 = scalar_lea.vmem %s3, %s162
      %s164 = smul.u32 32, %s14
      %p165 = scmp.lt.s32.totalorder %s164, 63
      %s166 = scalar_select %p165, %s164, 63
      %s167 = smul.addr %s166, 3
      %s168 = smul.addr %s167, 4
      %s169 = scalar_lea.vmem %s0, %s168
      %s170 = smul.u32 32, %s14
      %s171 = smul.u32 32, %s14
      %p172 = scmp.lt.s32.totalorder %s171, 63
      %s173 = scalar_select %p172, %s171, 63
      %s174 = smul.addr %s173, 4
      %s175 = scalar_lea.vmem %s3, %s174
      %s176 = smul.u32 32, %s14
      %v178 = vld [vmem:[%s169] sm:$0xff]
      %v179 = vld [vmem:[%s169 + $0x8] sm:$0xf]
      %v180 = vld [vmem:[%s169 + $0xc] sm:$0xff]
      %v181 = vld [vmem:[%s169 + $0x14] sm:$0xf]
      %v182 = vld [vmem:[%s169 + $0x18] sm:$0xff]
      %v183 = vld [vmem:[%s169 + $0x20] sm:$0xf]
      %v184 = vld [vmem:[%s169 + $0x24] sm:$0xff]
      %v185 = vld [vmem:[%s169 + $0x2c] sm:$0xf]
      %v186 = vld [vmem:[%s169 + $0x30] sm:$0xff]
      %v187 = vld [vmem:[%s169 + $0x38] sm:$0xf]
      %v188 = vld [vmem:[%s169 + $0x3c] sm:$0xff]
      %v189 = vld [vmem:[%s169 + $0x44] sm:$0xf]
      %v190 = vld [vmem:[%s169 + $0x48] sm:$0xff]
      %v191 = vld [vmem:[%s169 + $0x50] sm:$0xf]
      %v192 = vld [vmem:[%s169 + $0x54] sm:$0xff]
      %v193 = vld [vmem:[%s169 + $0x5c] sm:$0xf]
      %v194 = vld [vmem:[%s169 + $0x60] sm:$0xff]
      %v195 = vld [vmem:[%s169 + $0x68] sm:$0xf]
      %v196 = vld [vmem:[%s169 + $0x6c] sm:$0xff]
      %v197 = vld [vmem:[%s169 + $0x74] sm:$0xf]
      %v198 = vld [vmem:[%s169 + $0x78] sm:$0xff]
      %v199 = vld [vmem:[%s169 + $0x80] sm:$0xf]
      %v200 = vld [vmem:[%s169 + $0x84] sm:$0xff]
      %v201 = vld [vmem:[%s169 + $0x8c] sm:$0xf]
      %v202 = vld [vmem:[%s169 + $0x90] sm:$0xff]
      %v203 = vld [vmem:[%s169 + $0x98] sm:$0xf]
      %v204 = vld [vmem:[%s169 + $0x9c] sm:$0xff]
      %v205 = vld [vmem:[%s169 + $0xa4] sm:$0xf]
      %v206 = vld [vmem:[%s169 + $0xa8] sm:$0xff]
      %v207 = vld [vmem:[%s169 + $0xb0] sm:$0xf]
      %v208 = vld [vmem:[%s169 + $0xb4] sm:$0xff]
      %v209 = vld [vmem:[%s169 + $0xbc] sm:$0xf]
      %v210 = vld [vmem:[%s169 + $0xc0] sm:$0xff]
      %v211 = vld [vmem:[%s169 + $0xc8] sm:$0xf]
      %v212 = vld [vmem:[%s169 + $0xcc] sm:$0xff]
      %v213 = vld [vmem:[%s169 + $0xd4] sm:$0xf]
      %v214 = vld [vmem:[%s169 + $0xd8] sm:$0xff]
      %v215 = vld [vmem:[%s169 + $0xe0] sm:$0xf]
      %v216 = vld [vmem:[%s169 + $0xe4] sm:$0xff]
      %v217 = vld [vmem:[%s169 + $0xec] sm:$0xf]
      %v218 = vld [vmem:[%s169 + $0xf0] sm:$0xff]
      %v219 = vld [vmem:[%s169 + $0xf8] sm:$0xf]
      %v220 = vld [vmem:[%s169 + $0xfc] sm:$0xff]
      %v221 = vld [vmem:[%s169 + $0x104] sm:$0xf]
      %v222 = vld [vmem:[%s169 + $0x108] sm:$0xff]
      %v223 = vld [vmem:[%s169 + $0x110] sm:$0xf]
      %v224 = vld [vmem:[%s169 + $0x114] sm:$0xff]
      %v225 = vld [vmem:[%s169 + $0x11c] sm:$0xf]
      %v226 = vld [vmem:[%s169 + $0x120] sm:$0xff]
      %v227 = vld [vmem:[%s169 + $0x128] sm:$0xf]
      %v228 = vld [vmem:[%s169 + $0x12c] sm:$0xff]
      %v229 = vld [vmem:[%s169 + $0x134] sm:$0xf]
      %v230 = vld [vmem:[%s169 + $0x138] sm:$0xff]
      %v231 = vld [vmem:[%s169 + $0x140] sm:$0xf]
      %v232 = vld [vmem:[%s169 + $0x144] sm:$0xff]
      %v233 = vld [vmem:[%s169 + $0x14c] sm:$0xf]
      %v234 = vld [vmem:[%s169 + $0x150] sm:$0xff]
      %v235 = vld [vmem:[%s169 + $0x158] sm:$0xf]
      %v236 = vld [vmem:[%s169 + $0x15c] sm:$0xff]
      %v237 = vld [vmem:[%s169 + $0x164] sm:$0xf]
      %v238 = vld [vmem:[%s169 + $0x168] sm:$0xff]
      %v239 = vld [vmem:[%s169 + $0x170] sm:$0xf]
      %v240 = vld [vmem:[%s169 + $0x174] sm:$0xff]
      %v241 = vld [vmem:[%s169 + $0x17c] sm:$0xf]
      %v242 = vld [vmem:[%s1] sm:$0xf]
      %v243 = vld [vmem:[%s1 + $0x4] sm:$0xf]
      %v244 = vld [vmem:[%s1 + $0x8] sm:$0xf]
      %v245 = vld [vmem:[%s1 + $0xc] sm:$0xf]
      %v246 = vld [vmem:[%s1 + $0x10] sm:$0xf]
      %v247 = vld [vmem:[%s1 + $0x14] sm:$0xf]
      %v248 = vld [vmem:[%s1 + $0x18] sm:$0xf]
      %v249 = vld [vmem:[%s1 + $0x1c] sm:$0xf]
      %v250 = vld [vmem:[%s1 + $0x20] sm:$0xf]
      %v251 = vld [vmem:[%s1 + $0x24] sm:$0xf]
      %v252 = vld [vmem:[%s1 + $0x28] sm:$0xf]
      %v253 = vld [vmem:[%s1 + $0x2c] sm:$0xf]
      %v254 = vld [vmem:[%s1 + $0x30] sm:$0xf]
      %v255 = vld [vmem:[%s1 + $0x34] sm:$0xf]
      %v256 = vld [vmem:[%s1 + $0x38] sm:$0xf]
      %v257 = vld [vmem:[%s1 + $0x3c] sm:$0xf]
      %v258 = vld [vmem:[%s1 + $0x40] sm:$0xf]
      %v259 = vld [vmem:[%s1 + $0x44] sm:$0xf]
      %v260 = vld [vmem:[%s1 + $0x48] sm:$0xf]
      %v261 = vld [vmem:[%s1 + $0x4c] sm:$0xf]
      %v262 = vld [vmem:[%s1 + $0x50] sm:$0xf]
      %v263 = vld [vmem:[%s1 + $0x54] sm:$0xf]
      %v264 = vld [vmem:[%s1 + $0x58] sm:$0xf]
      %v265 = vld [vmem:[%s1 + $0x5c] sm:$0xf]
      %v266 = vld [vmem:[%s1 + $0x60] sm:$0xf]
      %v267 = vld [vmem:[%s1 + $0x64] sm:$0xf]
      %v268 = vld [vmem:[%s1 + $0x68] sm:$0xf]
      %v269 = vld [vmem:[%s1 + $0x6c] sm:$0xf]
      %v270 = vld [vmem:[%s1 + $0x70] sm:$0xf]
      %v271 = vld [vmem:[%s1 + $0x74] sm:$0xf]
      %v272 = vld [vmem:[%s1 + $0x78] sm:$0xf]
      %v273 = vld [vmem:[%s1 + $0x7c] sm:$0xf]
      %v274 = vld [vmem:[%s1 + $0x80] sm:$0xf]
      %v275 = vld [vmem:[%s1 + $0x84] sm:$0xf]
      %v276 = vld [vmem:[%s1 + $0x88] sm:$0xf]
      %v277 = vld [vmem:[%s1 + $0x8c] sm:$0xf]
      %v278 = vld [vmem:[%s2] sm:$0x1]
      %v280 = vlaneseq
      %v281 = vshrl.u32 %v280, 7
      %v282 = vsub.s32 0, %v281
      %v283 = vrot.slane %v278, %v282
      %v349 = vunpack.c.l.b16 %v178
      %v350 = vunpack.c.h.b16 %v178
      %v351 = vunpack.c.l.b16 %v179
      %v352 = vunpack.c.l.b16 %v180
      %v353 = vunpack.c.h.b16 %v180
      %v354 = vunpack.c.l.b16 %v181
      %v355 = vunpack.c.l.b16 %v182
      %v356 = vunpack.c.h.b16 %v182
      %v357 = vunpack.c.l.b16 %v183
      %v358 = vunpack.c.l.b16 %v184
      %v359 = vunpack.c.h.b16 %v184
      %v360 = vunpack.c.l.b16 %v185
      %v361 = vunpack.c.l.b16 %v186
      %v362 = vunpack.c.h.b16 %v186
      %v363 = vunpack.c.l.b16 %v187
      %v364 = vunpack.c.l.b16 %v188
      %v365 = vunpack.c.h.b16 %v188
      %v366 = vunpack.c.l.b16 %v189
      %v367 = vunpack.c.l.b16 %v190
      %v368 = vunpack.c.h.b16 %v190
      %v369 = vunpack.c.l.b16 %v191
      %v370 = vunpack.c.l.b16 %v192
      %v371 = vunpack.c.h.b16 %v192
      %v372 = vunpack.c.l.b16 %v193
      %v373 = vunpack.c.l.b16 %v194
      %v374 = vunpack.c.h.b16 %v194
      %v375 = vunpack.c.l.b16 %v195
      %v376 = vunpack.c.l.b16 %v196
      %v377 = vunpack.c.h.b16 %v196
      %v378 = vunpack.c.l.b16 %v197
      %v379 = vunpack.c.l.b16 %v198
      %v380 = vunpack.c.h.b16 %v198
      %v381 = vunpack.c.l.b16 %v199
      %v382 = vunpack.c.l.b16 %v200
      %v383 = vunpack.c.h.b16 %v200
      %v384 = vunpack.c.l.b16 %v201
      %v385 = vunpack.c.l.b16 %v202
      %v386 = vunpack.c.h.b16 %v202
      %v387 = vunpack.c.l.b16 %v203
      %v388 = vunpack.c.l.b16 %v204
      %v389 = vunpack.c.h.b16 %v204
      %v390 = vunpack.c.l.b16 %v205
      %v391 = vunpack.c.l.b16 %v206
      %v392 = vunpack.c.h.b16 %v206
      %v393 = vunpack.c.l.b16 %v207
      %v394 = vunpack.c.l.b16 %v208
      %v395 = vunpack.c.h.b16 %v208
      %v396 = vunpack.c.l.b16 %v209
      %v397 = vunpack.c.l.b16 %v210
      %v398 = vunpack.c.h.b16 %v210
      %v399 = vunpack.c.l.b16 %v211
      %v400 = vunpack.c.l.b16 %v212
      %v401 = vunpack.c.h.b16 %v212
      %v402 = vunpack.c.l.b16 %v213
      %v403 = vunpack.c.l.b16 %v214
      %v404 = vunpack.c.h.b16 %v214
      %v405 = vunpack.c.l.b16 %v215
      %v406 = vunpack.c.l.b16 %v216
      %v407 = vunpack.c.h.b16 %v216
      %v408 = vunpack.c.l.b16 %v217
      %v409 = vunpack.c.l.b16 %v218
      %v410 = vunpack.c.h.b16 %v218
      %v411 = vunpack.c.l.b16 %v219
      %v412 = vunpack.c.l.b16 %v220
      %v413 = vunpack.c.h.b16 %v220
      %v414 = vunpack.c.l.b16 %v221
      %v415 = vunpack.c.l.b16 %v222
      %v416 = vunpack.c.h.b16 %v222
      %v417 = vunpack.c.l.b16 %v223
      %v418 = vunpack.c.l.b16 %v224
      %v419 = vunpack.c.h.b16 %v224
      %v420 = vunpack.c.l.b16 %v225
      %v421 = vunpack.c.l.b16 %v226
      %v422 = vunpack.c.h.b16 %v226
      %v423 = vunpack.c.l.b16 %v227
      %v424 = vunpack.c.l.b16 %v228
      %v425 = vunpack.c.h.b16 %v228
      %v426 = vunpack.c.l.b16 %v229
      %v427 = vunpack.c.l.b16 %v230
      %v428 = vunpack.c.h.b16 %v230
      %v429 = vunpack.c.l.b16 %v231
      %v430 = vunpack.c.l.b16 %v232
      %v431 = vunpack.c.h.b16 %v232
      %v432 = vunpack.c.l.b16 %v233
      %v433 = vunpack.c.l.b16 %v234
      %v434 = vunpack.c.h.b16 %v234
      %v435 = vunpack.c.l.b16 %v235
      %v436 = vunpack.c.l.b16 %v236
      %v437 = vunpack.c.h.b16 %v236
      %v438 = vunpack.c.l.b16 %v237
      %v439 = vunpack.c.l.b16 %v238
      %v440 = vunpack.c.h.b16 %v238
      %v441 = vunpack.c.l.b16 %v239
      %v442 = vunpack.c.l.b16 %v240
      %v443 = vunpack.c.h.b16 %v240
      %v444 = vunpack.c.l.b16 %v241
      %v445 = vpack.c.b16 %v352, %v349
      %v446 = vpack.c.b16 %v353, %v350
      %v447 = vpack.c.b16 %v354, %v351
      %v448 = vpack.c.b16 %v358, %v355
      %v449 = vpack.c.b16 %v359, %v356
      %v450 = vpack.c.b16 %v360, %v357
      %v451 = vpack.c.b16 %v364, %v361
      %v452 = vpack.c.b16 %v365, %v362
      %v453 = vpack.c.b16 %v366, %v363
      %v454 = vpack.c.b16 %v370, %v367
      %v455 = vpack.c.b16 %v371, %v368
      %v456 = vpack.c.b16 %v372, %v369
      %v457 = vpack.c.b16 %v376, %v373
      %v458 = vpack.c.b16 %v377, %v374
      %v459 = vpack.c.b16 %v378, %v375
      %v460 = vpack.c.b16 %v382, %v379
      %v461 = vpack.c.b16 %v383, %v380
      %v462 = vpack.c.b16 %v384, %v381
      %v463 = vpack.c.b16 %v388, %v385
      %v464 = vpack.c.b16 %v389, %v386
      %v465 = vpack.c.b16 %v390, %v387
      %v466 = vpack.c.b16 %v394, %v391
      %v467 = vpack.c.b16 %v395, %v392
      %v468 = vpack.c.b16 %v396, %v393
      %v469 = vpack.c.b16 %v400, %v397
      %v470 = vpack.c.b16 %v401, %v398
      %v471 = vpack.c.b16 %v402, %v399
      %v472 = vpack.c.b16 %v406, %v403
      %v473 = vpack.c.b16 %v407, %v404
      %v474 = vpack.c.b16 %v408, %v405
      %v475 = vpack.c.b16 %v412, %v409
      %v476 = vpack.c.b16 %v413, %v410
      %v477 = vpack.c.b16 %v414, %v411
      %v478 = vpack.c.b16 %v418, %v415
      %v479 = vpack.c.b16 %v419, %v416
      %v480 = vpack.c.b16 %v420, %v417
      %v481 = vpack.c.b16 %v424, %v421
      %v482 = vpack.c.b16 %v425, %v422
      %v483 = vpack.c.b16 %v426, %v423
      %v484 = vpack.c.b16 %v430, %v427
      %v485 = vpack.c.b16 %v431, %v428
      %v486 = vpack.c.b16 %v432, %v429
      %v487 = vpack.c.b16 %v436, %v433
      %v488 = vpack.c.b16 %v437, %v434
      %v489 = vpack.c.b16 %v438, %v435
      %v490 = vpack.c.b16 %v442, %v439
      %v491 = vpack.c.b16 %v443, %v440
      %v492 = vpack.c.b16 %v444, %v441
      %v561 = vunpack.c.l.b16 %v242
      %v562 = vunpack.c.l.b16 %v243
      %v563 = vunpack.c.l.b16 %v244
      %v564 = vunpack.c.l.b16 %v245
      %v565 = vunpack.c.l.b16 %v246
      %v566 = vunpack.c.l.b16 %v247
      %v567 = vunpack.c.l.b16 %v248
      %v568 = vunpack.c.l.b16 %v249
      %v569 = vunpack.c.l.b16 %v250
      %v570 = vunpack.c.l.b16 %v251
      %v571 = vunpack.c.l.b16 %v252
      %v572 = vunpack.c.l.b16 %v253
      %v573 = vunpack.c.l.b16 %v254
      %v574 = vunpack.c.l.b16 %v255
      %v575 = vunpack.c.l.b16 %v256
      %v576 = vunpack.c.l.b16 %v257
      %v577 = vunpack.c.l.b16 %v258
      %v578 = vunpack.c.l.b16 %v259
      %v579 = vunpack.c.l.b16 %v260
      %v580 = vunpack.c.l.b16 %v261
      %v581 = vunpack.c.l.b16 %v262
      %v582 = vunpack.c.l.b16 %v263
      %v583 = vunpack.c.l.b16 %v264
      %v584 = vunpack.c.l.b16 %v265
      %v585 = vunpack.c.l.b16 %v266
      %v586 = vunpack.c.l.b16 %v267
      %v587 = vunpack.c.l.b16 %v268
      %v588 = vunpack.c.l.b16 %v269
      %v589 = vunpack.c.l.b16 %v270
      %v590 = vunpack.c.l.b16 %v271
      %v591 = vunpack.c.l.b16 %v272
      %v592 = vunpack.c.l.b16 %v273
      %v593 = vunpack.c.l.b16 %v274
      %v594 = vunpack.c.l.b16 %v275
      %v595 = vunpack.c.l.b16 %v276
      %v596 = vunpack.c.l.b16 %v277
      %v597 = vpack.c.b16 %v562, %v561
      %v598 = vpack.c.b16 %v564, %v563
      %v599 = vpack.c.b16 %v566, %v565
      %v600 = vpack.c.b16 %v568, %v567
      %v601 = vpack.c.b16 %v570, %v569
      %v602 = vpack.c.b16 %v572, %v571
      %v603 = vpack.c.b16 %v574, %v573
      %v604 = vpack.c.b16 %v576, %v575
      %v605 = vpack.c.b16 %v578, %v577
      %v606 = vpack.c.b16 %v580, %v579
      %v607 = vpack.c.b16 %v582, %v581
      %v608 = vpack.c.b16 %v584, %v583
      %v609 = vpack.c.b16 %v586, %v585
      %v610 = vpack.c.b16 %v588, %v587
      %v611 = vpack.c.b16 %v590, %v589
      %v612 = vpack.c.b16 %v592, %v591
      %v613 = vpack.c.b16 %v594, %v593
      %v614 = vpack.c.b16 %v596, %v595
      %vm633 = vcmask 261120
      %v635 = vsel %vm633, %v447, 0
      %v638 = vsel %vm633, %v450, 0
      %v641 = vsel %vm633, %v453, 0
      %v644 = vsel %vm633, %v456, 0
      %v647 = vsel %vm633, %v459, 0
      %v650 = vsel %vm633, %v462, 0
      %v653 = vsel %vm633, %v465, 0
      %v656 = vsel %vm633, %v468, 0
      %v659 = vsel %vm633, %v471, 0
      %v662 = vsel %vm633, %v474, 0
      %v665 = vsel %vm633, %v477, 0
      %v668 = vsel %vm633, %v480, 0
      %v671 = vsel %vm633, %v483, 0
      %v674 = vsel %vm633, %v486, 0
      %v677 = vsel %vm633, %v489, 0
      %v680 = vsel %vm633, %v492, 0
      %682 = vmatprep.subr.bf16.mxu0 0
      %683 = vmatpush1.bf16.msra.mxu0 %v597
      %684 = vmatprep.subr.bf16.mxu0 0
      %685 = vmatpush1.bf16.msra.mxu0 %v598
      %686 = vmatprep.subr.bf16.mxu0 0
      %687 = vmatpush1.bf16.msra.mxu0 %v599
      %688 = vmatprep.subr.bf16.mxu0 0
      %689 = vmatpush1.bf16.msra.mxu0 %v600
      %690 = vmatprep.subr.bf16.mxu0 0
      %691 = vmatpush1.bf16.msra.mxu0 %v601
      %692 = vmatprep.subr.bf16.mxu0 0
      %693 = vmatpush1.bf16.msra.mxu0 %v602
      %694 = vmatprep.subr.bf16.mxu0 0
      %695 = vmatpush1.bf16.msra.mxu0 %v603
      %696 = vmatprep.subr.bf16.mxu0 0
      %697 = vmatpush1.bf16.msra.mxu0 %v604
      %698 = vmatprep.subr.bf16.mxu0 0
      %699 = vmatpush1.bf16.msra.mxu0 %v605
      %700 = vmatprep.subr.bf16.mxu0 0
      %701 = vmatpush1.bf16.msra.mxu0 %v606
      %702 = vmatprep.subr.bf16.mxu0 0
      %703 = vmatpush1.bf16.msra.mxu0 %v607
      %704 = vmatprep.subr.bf16.mxu0 0
      %705 = vmatpush1.bf16.msra.mxu0 %v608
      %706 = vmatprep.subr.bf16.mxu0 0
      %707 = vmatpush1.bf16.msra.mxu0 %v609
      %708 = vmatprep.subr.bf16.mxu0 0
      %709 = vmatpush1.bf16.msra.mxu0 %v610
      %710 = vmatprep.subr.bf16.mxu0 0
      %711 = vmatpush1.bf16.msra.mxu0 %v611
      %712 = vmatprep.subr.bf16.mxu0 0
      %713 = vmatpush1.bf16.msra.mxu0 %v612
      %714 = vmatprep.mubr.bf16.mxu0 %v446
      %715 = vmatmul.mubr.bf16.gmra.mrb[0].mxu0 %v445
      %v716 = vpop.f32.mrb[0].mxu0
      %v717 = vadd.f32 %v283, %v716
      %v718 = vpop.f32.mrb[0].mxu0
      %v719 = vpop.f32.mrb[0].mxu0
      %v720 = vadd.f32 %v283, %v719
      %v721 = vpop.f32.mrb[0].mxu0
      %722 = vmatprep.mubr.bf16.mxu0 %v449
      %723 = vmatmul.mubr.bf16.gmra.mrb[0].mxu0 %v448
      %v724 = vpop.f32.mrb[0].mxu0
      %v725 = vadd.f32 %v283, %v724
      %v726 = vpop.f32.mrb[0].mxu0
      %v727 = vpop.f32.mrb[0].mxu0
      %v728 = vadd.f32 %v283, %v727
      %v729 = vpop.f32.mrb[0].mxu0
      %730 = vmatprep.mubr.bf16.mxu0 %v452
      %731 = vmatmul.mubr.bf16.gmra.mrb[0].mxu0 %v451
      %v732 = vpop.f32.mrb[0].mxu0
      %v733 = vadd.f32 %v283, %v732
      %v734 = vpop.f32.mrb[0].mxu0
      %v735 = vpop.f32.mrb[0].mxu0
      %v736 = vadd.f32 %v283, %v735
      %v737 = vpop.f32.mrb[0].mxu0
      %738 = vmatprep.mubr.bf16.mxu0 %v455
      %739 = vmatmul.mubr.bf16.gmra.mrb[0].mxu0 %v454
      %v740 = vpop.f32.mrb[0].mxu0
      %v741 = vadd.f32 %v283, %v740
      %v742 = vpop.f32.mrb[0].mxu0
      %v743 = vpop.f32.mrb[0].mxu0
      %v744 = vadd.f32 %v283, %v743
      %v745 = vpop.f32.mrb[0].mxu0
      %746 = vmatprep.mubr.bf16.mxu0 %v458
      %747 = vmatmul.mubr.bf16.gmra.mrb[0].mxu0 %v457
      %v748 = vpop.f32.mrb[0].mxu0
      %v749 = vadd.f32 %v283, %v748
      %v750 = vpop.f32.mrb[0].mxu0
      %v751 = vpop.f32.mrb[0].mxu0
      %v752 = vadd.f32 %v283, %v751
      %v753 = vpop.f32.mrb[0].mxu0
      %754 = vmatprep.mubr.bf16.mxu0 %v461
      %755 = vmatmul.mubr.bf16.gmra.mrb[0].mxu0 %v460
      %v756 = vpop.f32.mrb[0].mxu0
      %v757 = vadd.f32 %v283, %v756
      %v758 = vpop.f32.mrb[0].mxu0
      %v759 = vpop.f32.mrb[0].mxu0
      %v760 = vadd.f32 %v283, %v759
      %v761 = vpop.f32.mrb[0].mxu0
      %762 = vmatprep.mubr.bf16.mxu0 %v464
      %763 = vmatmul.mubr.bf16.gmra.mrb[0].mxu0 %v463
      %v764 = vpop.f32.mrb[0].mxu0
      %v765 = vadd.f32 %v283, %v764
      %v766 = vpop.f32.mrb[0].mxu0
      %v767 = vpop.f32.mrb[0].mxu0
      %v768 = vadd.f32 %v283, %v767
      %v769 = vpop.f32.mrb[0].mxu0
      %770 = vmatprep.mubr.bf16.mxu0 %v467
      %771 = vmatmul.mubr.bf16.gmra.mrb[0].mxu0 %v466
      %v772 = vpop.f32.mrb[0].mxu0
      %v773 = vadd.f32 %v283, %v772
      %v774 = vpop.f32.mrb[0].mxu0
      %v775 = vpop.f32.mrb[0].mxu0
      %v776 = vadd.f32 %v283, %v775
      %v777 = vpop.f32.mrb[0].mxu0
      %778 = vmatprep.mubr.bf16.mxu0 %v470
      %779 = vmatmul.mubr.bf16.gmra.mrb[0].mxu0 %v469
      %v780 = vpop.f32.mrb[0].mxu0
      %v781 = vadd.f32 %v283, %v780
      %v782 = vpop.f32.mrb[0].mxu0
      %v783 = vpop.f32.mrb[0].mxu0
      %v784 = vadd.f32 %v283, %v783
      %v785 = vpop.f32.mrb[0].mxu0
      %786 = vmatprep.mubr.bf16.mxu0 %v473
      %787 = vmatmul.mubr.bf16.gmra.mrb[0].mxu0 %v472
      %v788 = vpop.f32.mrb[0].mxu0
      %v789 = vadd.f32 %v283, %v788
      %v790 = vpop.f32.mrb[0].mxu0
      %v791 = vpop.f32.mrb[0].mxu0
      %v792 = vadd.f32 %v283, %v791
      %v793 = vpop.f32.mrb[0].mxu0
      %794 = vmatprep.mubr.bf16.mxu0 %v476
      %795 = vmatmul.mubr.bf16.gmra.mrb[0].mxu0 %v475
      %v796 = vpop.f32.mrb[0].mxu0
      %v797 = vadd.f32 %v283, %v796
      %v798 = vpop.f32.mrb[0].mxu0
      %v799 = vpop.f32.mrb[0].mxu0
      %v800 = vadd.f32 %v283, %v799
      %v801 = vpop.f32.mrb[0].mxu0
      %802 = vmatprep.mubr.bf16.mxu0 %v479
      %803 = vmatmul.mubr.bf16.gmra.mrb[0].mxu0 %v478
      %v804 = vpop.f32.mrb[0].mxu0
      %v805 = vadd.f32 %v283, %v804
      %v806 = vpop.f32.mrb[0].mxu0
      %v807 = vpop.f32.mrb[0].mxu0
      %v808 = vadd.f32 %v283, %v807
      %v809 = vpop.f32.mrb[0].mxu0
      %810 = vmatprep.mubr.bf16.mxu0 %v482
      %811 = vmatmul.mubr.bf16.gmra.mrb[0].mxu0 %v481
      %v812 = vpop.f32.mrb[0].mxu0
      %v813 = vadd.f32 %v283, %v812
      %v814 = vpop.f32.mrb[0].mxu0
      %v815 = vpop.f32.mrb[0].mxu0
      %v816 = vadd.f32 %v283, %v815
      %v817 = vpop.f32.mrb[0].mxu0
      %818 = vmatprep.mubr.bf16.mxu0 %v485
      %819 = vmatmul.mubr.bf16.gmra.mrb[0].mxu0 %v484
      %v820 = vpop.f32.mrb[0].mxu0
      %v821 = vadd.f32 %v283, %v820
      %v822 = vpop.f32.mrb[0].mxu0
      %v823 = vpop.f32.mrb[0].mxu0
      %v824 = vadd.f32 %v283, %v823
      %v825 = vpop.f32.mrb[0].mxu0
      %826 = vmatprep.mubr.bf16.mxu0 %v488
      %827 = vmatmul.mubr.bf16.gmra.mrb[0].mxu0 %v487
      %v828 = vpop.f32.mrb[0].mxu0
      %v829 = vadd.f32 %v283, %v828
      %v830 = vpop.f32.mrb[0].mxu0
      %v831 = vpop.f32.mrb[0].mxu0
      %v832 = vadd.f32 %v283, %v831
      %v833 = vpop.f32.mrb[0].mxu0
      %834 = vmatprep.mubr.bf16.mxu0 %v491
      %835 = vmatmul.mubr.bf16.gmra.mrb[0].mxu0 %v490
      %v836 = vpop.f32.mrb[0].mxu0
      %v837 = vadd.f32 %v283, %v836
      %v838 = vpop.f32.mrb[0].mxu0
      %v839 = vpop.f32.mrb[0].mxu0
      %v840 = vadd.f32 %v283, %v839
      %v841 = vpop.f32.mrb[0].mxu0
      %842 = vdwg.mxu0
      %843 = vmatprep.subr.bf16.mxu0 0
      %844 = vmatpush1.bf16.msra.mxu0 %v613
      %845 = vmatprep.subr.bf16.mxu0 0
      %846 = vmatpush1.bf16.msra.mxu0 %v614
      %847 = vmatprep.subr.bf16.mxu0 0
      %848 = vmatpush1.bf16.msra.mxu0 0
      %849 = vmatprep.subr.bf16.mxu0 0
      %850 = vmatpush1.bf16.msra.mxu0 0
      %851 = vmatprep.subr.bf16.mxu0 0
      %852 = vmatpush1.bf16.msra.mxu0 0
      %853 = vmatprep.subr.bf16.mxu0 0
      %854 = vmatpush1.bf16.msra.mxu0 0
      %855 = vmatprep.subr.bf16.mxu0 0
      %856 = vmatpush1.bf16.msra.mxu0 0
      %857 = vmatprep.subr.bf16.mxu0 0
      %858 = vmatpush1.bf16.msra.mxu0 0
      %859 = vmatprep.subr.bf16.mxu0 0
      %860 = vmatpush1.bf16.msra.mxu0 0
      %861 = vmatprep.subr.bf16.mxu0 0
      %862 = vmatpush1.bf16.msra.mxu0 0
      %863 = vmatprep.subr.bf16.mxu0 0
      %864 = vmatpush1.bf16.msra.mxu0 0
      %865 = vmatprep.subr.bf16.mxu0 0
      %866 = vmatpush1.bf16.msra.mxu0 0
      %867 = vmatprep.subr.bf16.mxu0 0
      %868 = vmatpush1.bf16.msra.mxu0 0
      %869 = vmatprep.subr.bf16.mxu0 0
      %870 = vmatpush1.bf16.msra.mxu0 0
      %871 = vmatprep.subr.bf16.mxu0 0
      %872 = vmatpush1.bf16.msra.mxu0 0
      %873 = vmatprep.subr.bf16.mxu0 0
      %874 = vmatpush1.bf16.msra.mxu0 0
      %875 = vmatprep.mubr.bf16.mxu0 0
      %876 = vmatmul.mubr.bf16.gmra.mrb[0].mxu0 %v635
      %v877 = vpop.f32.mrb[0].mxu0
      %v878 = vadd.f32 %v717, %v877
      %v879 = vpop.f32.mrb[0].mxu0
      %v880 = vpop.f32.mrb[0].mxu0
      %v881 = vadd.f32 %v720, %v880
      %v882 = vpop.f32.mrb[0].mxu0
      %883 = vmatprep.mubr.bf16.mxu0 0
      %884 = vmatmul.mubr.bf16.gmra.mrb[0].mxu0 %v638
      %v885 = vpop.f32.mrb[0].mxu0
      %v886 = vadd.f32 %v725, %v885
      %v887 = vpop.f32.mrb[0].mxu0
      %v888 = vpop.f32.mrb[0].mxu0
      %v889 = vadd.f32 %v728, %v888
      %v890 = vpop.f32.mrb[0].mxu0
      %891 = vmatprep.mubr.bf16.mxu0 0
      %892 = vmatmul.mubr.bf16.gmra.mrb[0].mxu0 %v641
      %v893 = vpop.f32.mrb[0].mxu0
      %v894 = vadd.f32 %v733, %v893
      %v895 = vpop.f32.mrb[0].mxu0
      %v896 = vpop.f32.mrb[0].mxu0
      %v897 = vadd.f32 %v736, %v896
      %v898 = vpop.f32.mrb[0].mxu0
      %899 = vmatprep.mubr.bf16.mxu0 0
      %900 = vmatmul.mubr.bf16.gmra.mrb[0].mxu0 %v644
      %v901 = vpop.f32.mrb[0].mxu0
      %v902 = vadd.f32 %v741, %v901
      %v903 = vpop.f32.mrb[0].mxu0
      %v904 = vpop.f32.mrb[0].mxu0
      %v905 = vadd.f32 %v744, %v904
      %v906 = vpop.f32.mrb[0].mxu0
      %907 = vmatprep.mubr.bf16.mxu0 0
      %908 = vmatmul.mubr.bf16.gmra.mrb[0].mxu0 %v647
      %v909 = vpop.f32.mrb[0].mxu0
      %v910 = vadd.f32 %v749, %v909
      %v911 = vpop.f32.mrb[0].mxu0
      %v912 = vpop.f32.mrb[0].mxu0
      %v913 = vadd.f32 %v752, %v912
      %v914 = vpop.f32.mrb[0].mxu0
      %915 = vmatprep.mubr.bf16.mxu0 0
      %916 = vmatmul.mubr.bf16.gmra.mrb[0].mxu0 %v650
      %v917 = vpop.f32.mrb[0].mxu0
      %v918 = vadd.f32 %v757, %v917
      %v919 = vpop.f32.mrb[0].mxu0
      %v920 = vpop.f32.mrb[0].mxu0
      %v921 = vadd.f32 %v760, %v920
      %v922 = vpop.f32.mrb[0].mxu0
      %923 = vmatprep.mubr.bf16.mxu0 0
      %924 = vmatmul.mubr.bf16.gmra.mrb[0].mxu0 %v653
      %v925 = vpop.f32.mrb[0].mxu0
      %v926 = vadd.f32 %v765, %v925
      %v927 = vpop.f32.mrb[0].mxu0
      %v928 = vpop.f32.mrb[0].mxu0
      %v929 = vadd.f32 %v768, %v928
      %v930 = vpop.f32.mrb[0].mxu0
      %931 = vmatprep.mubr.bf16.mxu0 0
      %932 = vmatmul.mubr.bf16.gmra.mrb[0].mxu0 %v656
      %v933 = vpop.f32.mrb[0].mxu0
      %v934 = vadd.f32 %v773, %v933
      %v935 = vpop.f32.mrb[0].mxu0
      %v936 = vpop.f32.mrb[0].mxu0
      %v937 = vadd.f32 %v776, %v936
      %v938 = vpop.f32.mrb[0].mxu0
      %939 = vmatprep.mubr.bf16.mxu0 0
      %940 = vmatmul.mubr.bf16.gmra.mrb[0].mxu0 %v659
      %v941 = vpop.f32.mrb[0].mxu0
      %v942 = vadd.f32 %v781, %v941
      %v943 = vpop.f32.mrb[0].mxu0
      %v944 = vpop.f32.mrb[0].mxu0
      %v945 = vadd.f32 %v784, %v944
      %v946 = vpop.f32.mrb[0].mxu0
      %947 = vmatprep.mubr.bf16.mxu0 0
      %948 = vmatmul.mubr.bf16.gmra.mrb[0].mxu0 %v662
      %v949 = vpop.f32.mrb[0].mxu0
      %v950 = vadd.f32 %v789, %v949
      %v951 = vpop.f32.mrb[0].mxu0
      %v952 = vpop.f32.mrb[0].mxu0
      %v953 = vadd.f32 %v792, %v952
      %v954 = vpop.f32.mrb[0].mxu0
      %955 = vmatprep.mubr.bf16.mxu0 0
      %956 = vmatmul.mubr.bf16.gmra.mrb[0].mxu0 %v665
      %v957 = vpop.f32.mrb[0].mxu0
      %v958 = vadd.f32 %v797, %v957
      %v959 = vpop.f32.mrb[0].mxu0
      %v960 = vpop.f32.mrb[0].mxu0
      %v961 = vadd.f32 %v800, %v960
      %v962 = vpop.f32.mrb[0].mxu0
      %963 = vmatprep.mubr.bf16.mxu0 0
      %964 = vmatmul.mubr.bf16.gmra.mrb[0].mxu0 %v668
      %v965 = vpop.f32.mrb[0].mxu0
      %v966 = vadd.f32 %v805, %v965
      %v967 = vpop.f32.mrb[0].mxu0
      %v968 = vpop.f32.mrb[0].mxu0
      %v969 = vadd.f32 %v808, %v968
      %v970 = vpop.f32.mrb[0].mxu0
      %971 = vmatprep.mubr.bf16.mxu0 0
      %972 = vmatmul.mubr.bf16.gmra.mrb[0].mxu0 %v671
      %v973 = vpop.f32.mrb[0].mxu0
      %v974 = vadd.f32 %v813, %v973
      %v975 = vpop.f32.mrb[0].mxu0
      %v976 = vpop.f32.mrb[0].mxu0
      %v977 = vadd.f32 %v816, %v976
      %v978 = vpop.f32.mrb[0].mxu0
      %979 = vmatprep.mubr.bf16.mxu0 0
      %980 = vmatmul.mubr.bf16.gmra.mrb[0].mxu0 %v674
      %v981 = vpop.f32.mrb[0].mxu0
      %v982 = vadd.f32 %v821, %v981
      %v983 = vpop.f32.mrb[0].mxu0
      %v984 = vpop.f32.mrb[0].mxu0
      %v985 = vadd.f32 %v824, %v984
      %v986 = vpop.f32.mrb[0].mxu0
      %987 = vmatprep.mubr.bf16.mxu0 0
      %988 = vmatmul.mubr.bf16.gmra.mrb[0].mxu0 %v677
      %v989 = vpop.f32.mrb[0].mxu0
      %v990 = vadd.f32 %v829, %v989
      %v991 = vpop.f32.mrb[0].mxu0
      %v992 = vpop.f32.mrb[0].mxu0
      %v993 = vadd.f32 %v832, %v992
      %v994 = vpop.f32.mrb[0].mxu0
      %995 = vmatprep.mubr.bf16.mxu0 0
      %996 = vmatmul.mubr.bf16.gmra.mrb[0].mxu0 %v680
      %v997 = vpop.f32.mrb[0].mxu0
      %v998 = vadd.f32 %v837, %v997
      %v999 = vpop.f32.mrb[0].mxu0
      %v1000 = vpop.f32.mrb[0].mxu0
      %v1001 = vadd.f32 %v840, %v1000
      %v1002 = vpop.f32.mrb[0].mxu0
      %1003 = vdwg.mxu0
      %vm1004 = vcmp.ge.f32.partialorder %v878, 0.0
      %vm1005 = vcmp.ge.f32.partialorder %v881, 0.0
      %vm1006 = vcmp.ge.f32.partialorder %v886, 0.0
      %vm1007 = vcmp.ge.f32.partialorder %v889, 0.0
      %vm1008 = vcmp.ge.f32.partialorder %v894, 0.0
      %vm1009 = vcmp.ge.f32.partialorder %v897, 0.0
      %vm1010 = vcmp.ge.f32.partialorder %v902, 0.0
      %vm1011 = vcmp.ge.f32.partialorder %v905, 0.0
      %vm1012 = vcmp.ge.f32.partialorder %v910, 0.0
      %vm1013 = vcmp.ge.f32.partialorder %v913, 0.0
      %vm1014 = vcmp.ge.f32.partialorder %v918, 0.0
      %vm1015 = vcmp.ge.f32.partialorder %v921, 0.0
      %vm1016 = vcmp.ge.f32.partialorder %v926, 0.0
      %vm1017 = vcmp.ge.f32.partialorder %v929, 0.0
      %vm1018 = vcmp.ge.f32.partialorder %v934, 0.0
      %vm1019 = vcmp.ge.f32.partialorder %v937, 0.0
      %vm1020 = vcmp.ge.f32.partialorder %v942, 0.0
      %vm1021 = vcmp.ge.f32.partialorder %v945, 0.0
      %vm1022 = vcmp.ge.f32.partialorder %v950, 0.0
      %vm1023 = vcmp.ge.f32.partialorder %v953, 0.0
      %vm1024 = vcmp.ge.f32.partialorder %v958, 0.0
      %vm1025 = vcmp.ge.f32.partialorder %v961, 0.0
      %vm1026 = vcmp.ge.f32.partialorder %v966, 0.0
      %vm1027 = vcmp.ge.f32.partialorder %v969, 0.0
      %vm1028 = vcmp.ge.f32.partialorder %v974, 0.0
      %vm1029 = vcmp.ge.f32.partialorder %v977, 0.0
      %vm1030 = vcmp.ge.f32.partialorder %v982, 0.0
      %vm1031 = vcmp.ge.f32.partialorder %v985, 0.0
      %vm1032 = vcmp.ge.f32.partialorder %v990, 0.0
      %vm1033 = vcmp.ge.f32.partialorder %v993, 0.0
      %vm1034 = vcmp.ge.f32.partialorder %v998, 0.0
      %vm1035 = vcmp.ge.f32.partialorder %v1001, 0.0
      %v1036 = vmul.f32 %v878, 0.25
      %v1037 = vmul.f32 %v881, 0.25
      %v1038 = vmul.f32 %v886, 0.25
      %v1039 = vmul.f32 %v889, 0.25
      %v1040 = vmul.f32 %v894, 0.25
      %v1041 = vmul.f32 %v897, 0.25
      %v1042 = vmul.f32 %v902, 0.25
      %v1043 = vmul.f32 %v905, 0.25
      %v1044 = vmul.f32 %v910, 0.25
      %v1045 = vmul.f32 %v913, 0.25
      %v1046 = vmul.f32 %v918, 0.25
      %v1047 = vmul.f32 %v921, 0.25
      %v1048 = vmul.f32 %v926, 0.25
      %v1049 = vmul.f32 %v929, 0.25
      %v1050 = vmul.f32 %v934, 0.25
      %v1051 = vmul.f32 %v937, 0.25
      %v1052 = vmul.f32 %v942, 0.25
      %v1053 = vmul.f32 %v945, 0.25
      %v1054 = vmul.f32 %v950, 0.25
      %v1055 = vmul.f32 %v953, 0.25
      %v1056 = vmul.f32 %v958, 0.25
      %v1057 = vmul.f32 %v961, 0.25
      %v1058 = vmul.f32 %v966, 0.25
      %v1059 = vmul.f32 %v969, 0.25
      %v1060 = vmul.f32 %v974, 0.25
      %v1061 = vmul.f32 %v977, 0.25
      %v1062 = vmul.f32 %v982, 0.25
      %v1063 = vmul.f32 %v985, 0.25
      %v1064 = vmul.f32 %v990, 0.25
      %v1065 = vmul.f32 %v993, 0.25
      %v1066 = vmul.f32 %v998, 0.25
      %v1067 = vmul.f32 %v1001, 0.25
      %v1068 = vsel %vm1004, %v878, %v1036
      %v1069 = vsel %vm1005, %v881, %v1037
      %v1070 = vsel %vm1006, %v886, %v1038
      %v1071 = vsel %vm1007, %v889, %v1039
      %v1072 = vsel %vm1008, %v894, %v1040
      %v1073 = vsel %vm1009, %v897, %v1041
      %v1074 = vsel %vm1010, %v902, %v1042
      %v1075 = vsel %vm1011, %v905, %v1043
      %v1076 = vsel %vm1012, %v910, %v1044
      %v1077 = vsel %vm1013, %v913, %v1045
      %v1078 = vsel %vm1014, %v918, %v1046
      %v1079 = vsel %vm1015, %v921, %v1047
      %v1080 = vsel %vm1016, %v926, %v1048
      %v1081 = vsel %vm1017, %v929, %v1049
      %v1082 = vsel %vm1018, %v934, %v1050
      %v1083 = vsel %vm1019, %v937, %v1051
      %v1084 = vsel %vm1020, %v942, %v1052
      %v1085 = vsel %vm1021, %v945, %v1053
      %v1086 = vsel %vm1022, %v950, %v1054
      %v1087 = vsel %vm1023, %v953, %v1055
      %v1088 = vsel %vm1024, %v958, %v1056
      %v1089 = vsel %vm1025, %v961, %v1057
      %v1090 = vsel %vm1026, %v966, %v1058
      %v1091 = vsel %vm1027, %v969, %v1059
      %v1092 = vsel %vm1028, %v974, %v1060
      %v1093 = vsel %vm1029, %v977, %v1061
      %v1094 = vsel %vm1030, %v982, %v1062
      %v1095 = vsel %vm1031, %v985, %v1063
      %v1096 = vsel %vm1032, %v990, %v1064
      %v1097 = vsel %vm1033, %v993, %v1065
      %v1098 = vsel %vm1034, %v998, %v1066
      %v1099 = vsel %vm1035, %v1001, %v1067
      %v1100 = vpack.c.bf16 %v1069, %v1068
      %v1101 = vpack.c.bf16 %v1071, %v1070
      %v1102 = vpack.c.bf16 %v1073, %v1072
      %v1103 = vpack.c.bf16 %v1075, %v1074
      %v1104 = vpack.c.bf16 %v1077, %v1076
      %v1105 = vpack.c.bf16 %v1079, %v1078
      %v1106 = vpack.c.bf16 %v1081, %v1080
      %v1107 = vpack.c.bf16 %v1083, %v1082
      %v1108 = vpack.c.bf16 %v1085, %v1084
      %v1109 = vpack.c.bf16 %v1087, %v1086
      %v1110 = vpack.c.bf16 %v1089, %v1088
      %v1111 = vpack.c.bf16 %v1091, %v1090
      %v1112 = vpack.c.bf16 %v1093, %v1092
      %v1113 = vpack.c.bf16 %v1095, %v1094
      %v1114 = vpack.c.bf16 %v1097, %v1096
      %v1115 = vpack.c.bf16 %v1099, %v1098
      %v1132 = vunpack.c.l.b16 %v1100
      %v1133 = vunpack.c.h.b16 %v1100
      %v1134 = vunpack.c.l.b16 %v1101
      %v1135 = vunpack.c.h.b16 %v1101
      %v1136 = vunpack.c.l.b16 %v1102
      %v1137 = vunpack.c.h.b16 %v1102
      %v1138 = vunpack.c.l.b16 %v1103
      %v1139 = vunpack.c.h.b16 %v1103
      %v1140 = vunpack.c.l.b16 %v1104
      %v1141 = vunpack.c.h.b16 %v1104
      %v1142 = vunpack.c.l.b16 %v1105
      %v1143 = vunpack.c.h.b16 %v1105
      %v1144 = vunpack.c.l.b16 %v1106
      %v1145 = vunpack.c.h.b16 %v1106
      %v1146 = vunpack.c.l.b16 %v1107
      %v1147 = vunpack.c.h.b16 %v1107
      %v1148 = vunpack.c.l.b16 %v1108
      %v1149 = vunpack.c.h.b16 %v1108
      %v1150 = vunpack.c.l.b16 %v1109
      %v1151 = vunpack.c.h.b16 %v1109
      %v1152 = vunpack.c.l.b16 %v1110
      %v1153 = vunpack.c.h.b16 %v1110
      %v1154 = vunpack.c.l.b16 %v1111
      %v1155 = vunpack.c.h.b16 %v1111
      %v1156 = vunpack.c.l.b16 %v1112
      %v1157 = vunpack.c.h.b16 %v1112
      %v1158 = vunpack.c.l.b16 %v1113
      %v1159 = vunpack.c.h.b16 %v1113
      %v1160 = vunpack.c.l.b16 %v1114
      %v1161 = vunpack.c.h.b16 %v1114
      %v1162 = vunpack.c.l.b16 %v1115
      %v1163 = vunpack.c.h.b16 %v1115
      %v1164 = vpack.c.b16 %v1132, %v1132
      %v1165 = vpack.c.b16 %v1133, %v1133
      %v1166 = vpack.c.b16 %v1134, %v1134
      %v1167 = vpack.c.b16 %v1135, %v1135
      %v1168 = vpack.c.b16 %v1136, %v1136
      %v1169 = vpack.c.b16 %v1137, %v1137
      %v1170 = vpack.c.b16 %v1138, %v1138
      %v1171 = vpack.c.b16 %v1139, %v1139
      %v1172 = vpack.c.b16 %v1140, %v1140
      %v1173 = vpack.c.b16 %v1141, %v1141
      %v1174 = vpack.c.b16 %v1142, %v1142
      %v1175 = vpack.c.b16 %v1143, %v1143
      %v1176 = vpack.c.b16 %v1144, %v1144
      %v1177 = vpack.c.b16 %v1145, %v1145
      %v1178 = vpack.c.b16 %v1146, %v1146
      %v1179 = vpack.c.b16 %v1147, %v1147
      %v1180 = vpack.c.b16 %v1148, %v1148
      %v1181 = vpack.c.b16 %v1149, %v1149
      %v1182 = vpack.c.b16 %v1150, %v1150
      %v1183 = vpack.c.b16 %v1151, %v1151
      %v1184 = vpack.c.b16 %v1152, %v1152
      %v1185 = vpack.c.b16 %v1153, %v1153
      %v1186 = vpack.c.b16 %v1154, %v1154
      %v1187 = vpack.c.b16 %v1155, %v1155
      %v1188 = vpack.c.b16 %v1156, %v1156
      %v1189 = vpack.c.b16 %v1157, %v1157
      %v1190 = vpack.c.b16 %v1158, %v1158
      %v1191 = vpack.c.b16 %v1159, %v1159
      %v1192 = vpack.c.b16 %v1160, %v1160
      %v1193 = vpack.c.b16 %v1161, %v1161
      %v1194 = vpack.c.b16 %v1162, %v1162
      %v1195 = vpack.c.b16 %v1163, %v1163
      %1228 = vst [vmem:[%s175] sm:$0xf] %v1164
      %1229 = vst [vmem:[%s175 + $0x4] sm:$0xf] %v1165
      %1230 = vst [vmem:[%s175 + $0x8] sm:$0xf] %v1166
      %1231 = vst [vmem:[%s175 + $0xc] sm:$0xf] %v1167
      %1232 = vst [vmem:[%s175 + $0x10] sm:$0xf] %v1168
      %1233 = vst [vmem:[%s175 + $0x14] sm:$0xf] %v1169
      %1234 = vst [vmem:[%s175 + $0x18] sm:$0xf] %v1170
      %1235 = vst [vmem:[%s175 + $0x1c] sm:$0xf] %v1171
      %1236 = vst [vmem:[%s175 + $0x20] sm:$0xf] %v1172
      %1237 = vst [vmem:[%s175 + $0x24] sm:$0xf] %v1173
      %1238 = vst [vmem:[%s175 + $0x28] sm:$0xf] %v1174
      %1239 = vst [vmem:[%s175 + $0x2c] sm:$0xf] %v1175
      %1240 = vst [vmem:[%s175 + $0x30] sm:$0xf] %v1176
      %1241 = vst [vmem:[%s175 + $0x34] sm:$0xf] %v1177
      %1242 = vst [vmem:[%s175 + $0x38] sm:$0xf] %v1178
      %1243 = vst [vmem:[%s175 + $0x3c] sm:$0xf] %v1179
      %1244 = vst [vmem:[%s175 + $0x40] sm:$0xf] %v1180
      %1245 = vst [vmem:[%s175 + $0x44] sm:$0xf] %v1181
      %1246 = vst [vmem:[%s175 + $0x48] sm:$0xf] %v1182
      %1247 = vst [vmem:[%s175 + $0x4c] sm:$0xf] %v1183
      %1248 = vst [vmem:[%s175 + $0x50] sm:$0xf] %v1184
      %1249 = vst [vmem:[%s175 + $0x54] sm:$0xf] %v1185
      %1250 = vst [vmem:[%s175 + $0x58] sm:$0xf] %v1186
      %1251 = vst [vmem:[%s175 + $0x5c] sm:$0xf] %v1187
      %1252 = vst [vmem:[%s175 + $0x60] sm:$0xf] %v1188
      %1253 = vst [vmem:[%s175 + $0x64] sm:$0xf] %v1189
      %1254 = vst [vmem:[%s175 + $0x68] sm:$0xf] %v1190
      %1255 = vst [vmem:[%s175 + $0x6c] sm:$0xf] %v1191
      %1256 = vst [vmem:[%s175 + $0x70] sm:$0xf] %v1192
      %1257 = vst [vmem:[%s175 + $0x74] sm:$0xf] %v1193
      %1258 = vst [vmem:[%s175 + $0x78] sm:$0xf] %v1194
      %1259 = vst [vmem:[%s175 + $0x7c] sm:$0xf] %v1195
      %s1260 = smul.u32 32, %s14
      %p1261 = scmp.lt.s32.totalorder %s1260, 63
      %s1262 = scalar_select %p1261, %s1260, 63
      %s1263 = smul.addr %s1262, 4
      %s1264 = scalar_lea.vmem %s3, %s1263
      // Predicated region
      $region33: #{closed_call.59} parent=31 // pred_check
        %p1265 = pneg %p100
      $region34: #{closed_call.59} parent=31 // pred_check_branch
        %1267 = sbr.rel (%p1265) target = $region36
      $region35: #{closed_call.59} parent=31 // pred_region
        %s1268 = smul.u32 32, %s14
      $region36: #{closed_call.59} parent=31 // pred_fallthru
        _
    $region32: #{closed_call.59} parent=5 // pred_fallthru
      _
    %p1269 = scmp.le.s32.totalorder 2, %s9
    // Predicated region
    $region37: #{closed_call.59} parent=5 // pred_check
      %p1270 = pneg %p1269
    $region38: #{closed_call.59} parent=5 // pred_check_branch
      %1272 = sbr.rel (%p1270) target = $region40
    $region39: #{closed_call.59} parent=5 // pred_region
      %s1273 = ssub.s32 %s9, 2
      // Predicated region
      $region41: #{closed_call.59} parent=39 // pred_check
        %p1274 = pneg %p106
      $region42: #{closed_call.59} parent=39 // pred_check_branch
        %1276 = sbr.rel (%p1274) target = $region44
      $region43: #{closed_call.59} parent=39 // pred_region
        %s1277 = smul.u32 32, %s15
        %p1278 = scmp.lt.s32.totalorder %s1277, 63
        %s1279 = scalar_select %p1278, %s1277, 63
        %s1280 = smul.addr %s1279, 4
        %s1281 = scalar_lea.vmem %s3, %s1280
      $region44: #{closed_call.59} parent=39 // pred_fallthru
        _
    $region40: #{closed_call.59} parent=5 // pred_fallthru
      _
  $region6: #{closed_call.59} parent=0 // loop_footer
    %s13 = sadd.s32 1, %s9
  $region7: #{closed_call.59} parent=0 // loop_footer_branch
    %8 = sbr.rel target = $region3
  $region8: #{closed_call.59} parent=0 // loop_exit
    _

// kernel: closed_call.65
$region0: #{closed_call.65}
  #allocation0 [shape = 'u32[]', space=smem, size = 0x4, offset = 0x4, fixed_abs, tag = 'smem constant byte address 0x4 - core index']
  #allocation1 [shape = 'u32[144,128]{1,0:T(1,128)}', space=vmem, size = 0x12000, scoped, tag = 'internal scratch']
  %s0 = inlined_call_operand.vmem [shape: bf16[2048,288], index: 0, kind: input, shape index: {}]
  %s1 = inlined_call_operand.vmem [shape: bf16[288,128], index: 1, kind: input, shape index: {}]
  %s2 = inlined_call_operand.vmem [shape: f32[1,128], index: 2, kind: input, shape index: {}]
  %s3 = inlined_call_operand.vmem [shape: f32[2048,1], index: 3, kind: input, shape index: {}]
  %s4 = inlined_call_operand.vmem [shape: f32[2048,1], index: 4, kind: output, shape index: {}]
  %s5 = sld [smem:[#allocation0]]
  $region49: #{closed_call.65} parent=0
    _
  %s7 = ssub.s32 1, %s5
  %s8 = scalar_select 0, %s7, %s5
  loop: start=0, step=1, limit=6
  $region2: #{closed_call.65} parent=0 // loop_pre_header
    _
  $region3: #{closed_call.65} parent=0 // loop_header
    %s10 = sphi 0, %s14
    %p11 = scmp.ge.s32.totalorder %s10, 6
    %s20 = sphi 0, %s22
    %s23 = sphi 0, %s20
    %s24 = sphi 0, %s23
    %s40 = sphi 0, %s24
    %s44 = sphi 0, %s44
    %s46 = sphi 0, %s44
    %s47 = sphi 0, %s46
    %s61 = sphi 0, %s47
    %s65 = sphi 0, %s65
    %s67 = sphi 0, %s65
    %s68 = sphi 0, %s67
    %s82 = sphi 0, %s68
    %s88 = sphi 0, %s90
    %s91 = sphi 0, %s88
    %s92 = sphi 0, %s91
    %s108 = sphi 0, %s92
    %s114 = sphi 0, %s116
    %s117 = sphi 0, %s114
    %s118 = sphi 0, %s117
    %s134 = sphi 0, %s118
  $region4: #{closed_call.65} parent=0 // loop_header_branch
    %13 = sbr.rel (%p11) target = $region8
  $region5: #{closed_call.65} parent=0 // loop_body
    %s15 = ssub.s32 %s10, 1
    %s16 = ssub.s32 %s10, 2
    %s17 = sadd.s32 %s10, 1
    %s18 = ssub.s32 %s10, %s17
    %p19 = scmp.eq.s32.totalorder %s18, 0
    %s21 = sadd.s32 %s20, 1
    %s22 = scalar_select %p19, %s20, %s21
    %p25 = pneg %p19
    %p26 = scmp.eq.s32.totalorder %s10, 3
    %p27 = por %p25, %p26
    %p28 = scmp.ne.s32.totalorder %s20, %s23
    %p29 = scmp.eq.s32.totalorder %s10, 0
    %p30 = por %p28, %p29
    %p31 = scmp.ne.s32.totalorder %s20, %s23
    %p32 = scmp.eq.s32.totalorder %s15, 3
    %p33 = por %p31, %p32
    %p34 = scmp.ne.s32.totalorder %s23, %s24
    %p35 = scmp.eq.s32.totalorder %s15, 0
    %p36 = por %p34, %p35
    %p37 = scmp.ne.s32.totalorder %s23, %s24
    %p38 = scmp.eq.s32.totalorder %s16, 3
    %p39 = por %p37, %p38
    %p41 = scmp.ne.s32.totalorder %s24, %s40
    %p42 = scmp.eq.s32.totalorder %s16, 0
    %p43 = por %p41, %p42
    %s45 = sadd.s32 %s44, 1
    %p48 = scmp.eq.s32.totalorder %s10, 3
    %p49 = scmp.ne.s32.totalorder %s44, %s46
    %p50 = scmp.eq.s32.totalorder %s10, 0
    %p51 = por %p49, %p50
    %p52 = scmp.ne.s32.totalorder %s44, %s46
    %p53 = scmp.eq.s32.totalorder %s15, 3
    %p54 = por %p52, %p53
    %p55 = scmp.ne.s32.totalorder %s46, %s47
    %p56 = scmp.eq.s32.totalorder %s15, 0
    %p57 = por %p55, %p56
    %p58 = scmp.ne.s32.totalorder %s46, %s47
    %p59 = scmp.eq.s32.totalorder %s16, 3
    %p60 = por %p58, %p59
    %p62 = scmp.ne.s32.totalorder %s47, %s61
    %p63 = scmp.eq.s32.totalorder %s16, 0
    %p64 = por %p62, %p63
    %s66 = sadd.s32 %s65, 1
    %p69 = scmp.eq.s32.totalorder %s10, 3
    %p70 = scmp.ne.s32.totalorder %s65, %s67
    %p71 = scmp.eq.s32.totalorder %s10, 0
    %p72 = por %p70, %p71
    %p73 = scmp.ne.s32.totalorder %s65, %s67
    %p74 = scmp.eq.s32.totalorder %s15, 3
    %p75 = por %p73, %p74
    %p76 = scmp.ne.s32.totalorder %s67, %s68
    %p77 = scmp.eq.s32.totalorder %s15, 0
    %p78 = por %p76, %p77
    %p79 = scmp.ne.s32.totalorder %s67, %s68
    %p80 = scmp.eq.s32.totalorder %s16, 3
    %p81 = por %p79, %p80
    %p83 = scmp.ne.s32.totalorder %s68, %s82
    %p84 = scmp.eq.s32.totalorder %s16, 0
    %p85 = por %p83, %p84
    %s86 = ssub.s32 %s10, %s17
    %p87 = scmp.eq.s32.totalorder %s86, 0
    %s89 = sadd.s32 %s88, 1
    %s90 = scalar_select %p87, %s88, %s89
    %p93 = pneg %p87
    %p94 = scmp.eq.s32.totalorder %s10, 3
    %p95 = por %p93, %p94
    %p96 = scmp.ne.s32.totalorder %s88, %s91
    %p97 = scmp.eq.s32.totalorder %s10, 0
    %p98 = por %p96, %p97
    %p99 = scmp.ne.s32.totalorder %s88, %s91
    %p100 = scmp.eq.s32.totalorder %s15, 3
    %p101 = por %p99, %p100
    %p102 = scmp.ne.s32.totalorder %s91, %s92
    %p103 = scmp.eq.s32.totalorder %s15, 0
    %p104 = por %p102, %p103
    %p105 = scmp.ne.s32.totalorder %s91, %s92
    %p106 = scmp.eq.s32.totalorder %s16, 3
    %p107 = por %p105, %p106
    %p109 = scmp.ne.s32.totalorder %s92, %s108
    %p110 = scmp.eq.s32.totalorder %s16, 0
    %p111 = por %p109, %p110
    %s112 = ssub.s32 %s10, %s17
    %p113 = scmp.eq.s32.totalorder %s112, 0
    %s115 = sadd.s32 %s114, 1
    %s116 = scalar_select %p113, %s114, %s115
    %p119 = pneg %p113
    %p120 = scmp.eq.s32.totalorder %s10, 3
    %p121 = por %p119, %p120
    %p122 = scmp.ne.s32.totalorder %s114, %s117
    %p123 = scmp.eq.s32.totalorder %s10, 0
    %p124 = por %p122, %p123
    %p125 = scmp.ne.s32.totalorder %s114, %s117
    %p126 = scmp.eq.s32.totalorder %s15, 3
    %p127 = por %p125, %p126
    %p128 = scmp.ne.s32.totalorder %s117, %s118
    %p129 = scmp.eq.s32.totalorder %s15, 0
    %p130 = por %p128, %p129
    %p131 = scmp.ne.s32.totalorder %s117, %s118
    %p132 = scmp.eq.s32.totalorder %s16, 3
    %p133 = por %p131, %p132
    %p135 = scmp.ne.s32.totalorder %s118, %s134
    %p136 = scmp.eq.s32.totalorder %s16, 0
    %p137 = por %p135, %p136
    %p138 = scmp.le.s32.totalorder 1, %s10
    %p139 = scmp.lt.s32.totalorder %s10, 5
    %p140 = pnand %p138, %p139
    %p141 = pneg %p140
    // Predicated region
    $region9: #{closed_call.65} parent=5 // pred_check
      _
    $region10: #{closed_call.65} parent=5 // pred_check_branch
      %143 = sbr.rel (%p140) target = $region12
    $region11: #{closed_call.65} parent=5 // pred_region
      %s144 = ssub.s32 %s10, 1
      // Predicated region
      $region13: #{closed_call.65} parent=11 // pred_check
        %p145 = pneg %p57
      $region14: #{closed_call.65} parent=11 // pred_check_branch
        %147 = sbr.rel (%p145) target = $region16
      $region15: #{closed_call.65} parent=11 // pred_region
        _
      $region16: #{closed_call.65} parent=11 // pred_fallthru
        _
      // Predicated region
      $region17: #{closed_call.65} parent=11 // pred_check
        %p148 = pneg %p78
      $region18: #{closed_call.65} parent=11 // pred_check_branch
        %150 = sbr.rel (%p148) target = $region20
      $region19: #{closed_call.65} parent=11 // pred_region
        _
      $region20: #{closed_call.65} parent=11 // pred_fallthru
        _
    $region12: #{closed_call.65} parent=5 // pred_fallthru
      _
    %p151 = scmp.lt.s32.totalorder %s10, 4
    // Predicated region
    $region21: #{closed_call.65} parent=5 // pred_check
      %p152 = pneg %p151
    $region22: #{closed_call.65} parent=5 // pred_check_branch
      %154 = sbr.rel (%p152) target = $region24
    $region23: #{closed_call.65} parent=5 // pred_region
      // Predicated region
      $region25: #{closed_call.65} parent=23 // pred_check
        %p155 = pneg %p30
      $region26: #{closed_call.65} parent=23 // pred_check_branch
        %157 = sbr.rel (%p155) target = $region28
      $region27: #{closed_call.65} parent=23 // pred_region
        %s158 = smul.u32 64, %s10
        %p159 = scmp.lt.s32.totalorder %s158, 255
        %s160 = scalar_select %p159, %s158, 255
        %s161 = smul.addr %s160, 3
        %s162 = smul.addr %s161, 4
        %s163 = scalar_lea.vmem %s0, %s162
        %s164 = smul.u32 64, %s10
      $region28: #{closed_call.65} parent=23 // pred_fallthru
        _
      // Predicated region
      $region29: #{closed_call.65} parent=23 // pred_check
        %p165 = pneg %p98
      $region30: #{closed_call.65} parent=23 // pred_check_branch
        %167 = sbr.rel (%p165) target = $region32
      $region31: #{closed_call.65} parent=23 // pred_region
        %s168 = smul.u32 64, %s10
        %p169 = scmp.lt.s32.totalorder %s168, 255
        %s170 = scalar_select %p169, %s168, 255
        %s171 = smul.addr %s170, 8
        %s172 = scalar_lea.vmem %s3, %s171
        %s173 = smul.u32 64, %s10
      $region32: #{closed_call.65} parent=23 // pred_fallthru
        _
    $region24: #{closed_call.65} parent=5 // pred_fallthru
      _
    %p174 = scmp.le.s32.totalorder 1, %s10
    %p175 = scmp.lt.s32.totalorder %s10, 5
    %p176 = pnand %p174, %p175
    %p177 = pneg %p176
    // Predicated region
    $region33: #{closed_call.65} parent=5 // pred_check
      _
    $region34: #{closed_call.65} parent=5 // pred_check_branch
      %179 = sbr.rel (%p176) target = $region36
    $region35: #{closed_call.65} parent=5 // pred_region
      %s180 = ssub.s32 %s10, 1
      %s181 = smul.u32 64, %s15
      %p182 = scmp.lt.s32.totalorder %s181, 255
      %s183 = scalar_select %p182, %s181, 255
      %s184 = smul.addr %s183, 3
      %s185 = smul.addr %s184, 4
      %s186 = scalar_lea.vmem %s0, %s185
      %p187 = pneg %p36
      %p188 = pneg %p33
      %p189 = pneg %p57
      %p190 = pneg %p54
      %p191 = pneg %p78
      %p192 = pneg %p75
      %s193 = smul.u32 64, %s15
      %p194 = scmp.lt.s32.totalorder %s193, 255
      %s195 = scalar_select %p194, %s193, 255
      %s196 = smul.addr %s195, 8
      %s197 = scalar_lea.vmem %s3, %s196
      %p198 = pneg %p104
      %p199 = pneg %p101
      %p200 = pneg %p130
      %p201 = pneg %p127
      %s202 = smul.u32 64, %s15
      %p203 = scmp.lt.s32.totalorder %s202, 255
      %s204 = scalar_select %p203, %s202, 255
      %s205 = smul.addr %s204, 8
      %s206 = scalar_lea.vmem %s4, %s205
      %s207 = smul.u32 64, %s15
      %p208 = scmp.lt.s32.totalorder %s207, 255
      %s209 = scalar_select %p208, %s207, 255
      %s210 = smul.addr %s209, 3
      %s211 = smul.addr %s210, 4
      %s212 = scalar_lea.vmem %s0, %s211
      %s213 = smul.u32 64, %s15
      %s214 = smul.u32 64, %s15
      %p215 = scmp.lt.s32.totalorder %s214, 255
      %s216 = scalar_select %p215, %s214, 255
      %s217 = smul.addr %s216, 8
      %s218 = scalar_lea.vmem %s3, %s217
      %s219 = smul.u32 64, %s15
      %s220 = smul.u32 64, %s15
      %p221 = scmp.lt.s32.totalorder %s220, 255
      %s222 = scalar_select %p221, %s220, 255
      %s223 = smul.addr %s222, 8
      %s224 = scalar_lea.vmem %s4, %s223
      %s225 = smul.u32 64, %s15
      %v227 = vld [vmem:[%s212] sm:$0xff]
      %v228 = vld [vmem:[%s212 + $0x8] sm:$0xf]
      %v229 = vld [vmem:[%s212 + $0xc] sm:$0xff]
      %v230 = vld [vmem:[%s212 + $0x14] sm:$0xf]
      %v231 = vld [vmem:[%s212 + $0x18] sm:$0xff]
      %v232 = vld [vmem:[%s212 + $0x20] sm:$0xf]
      %v233 = vld [vmem:[%s212 + $0x24] sm:$0xff]
      %v234 = vld [vmem:[%s212 + $0x2c] sm:$0xf]
      %v235 = vld [vmem:[%s212 + $0x30] sm:$0xff]
      %v236 = vld [vmem:[%s212 + $0x38] sm:$0xf]
      %v237 = vld [vmem:[%s212 + $0x3c] sm:$0xff]
      %v238 = vld [vmem:[%s212 + $0x44] sm:$0xf]
      %v239 = vld [vmem:[%s212 + $0x48] sm:$0xff]
      %v240 = vld [vmem:[%s212 + $0x50] sm:$0xf]
      %v241 = vld [vmem:[%s212 + $0x54] sm:$0xff]
      %v242 = vld [vmem:[%s212 + $0x5c] sm:$0xf]
      %v243 = vld [vmem:[%s212 + $0x60] sm:$0xff]
      %v244 = vld [vmem:[%s212 + $0x68] sm:$0xf]
      %v245 = vld [vmem:[%s212 + $0x6c] sm:$0xff]
      %v246 = vld [vmem:[%s212 + $0x74] sm:$0xf]
      %v247 = vld [vmem:[%s212 + $0x78] sm:$0xff]
      %v248 = vld [vmem:[%s212 + $0x80] sm:$0xf]
      %v249 = vld [vmem:[%s212 + $0x84] sm:$0xff]
      %v250 = vld [vmem:[%s212 + $0x8c] sm:$0xf]
      %v251 = vld [vmem:[%s212 + $0x90] sm:$0xff]
      %v252 = vld [vmem:[%s212 + $0x98] sm:$0xf]
      %v253 = vld [vmem:[%s212 + $0x9c] sm:$0xff]
      %v254 = vld [vmem:[%s212 + $0xa4] sm:$0xf]
      %v255 = vld [vmem:[%s212 + $0xa8] sm:$0xff]
      %v256 = vld [vmem:[%s212 + $0xb0] sm:$0xf]
      %v257 = vld [vmem:[%s212 + $0xb4] sm:$0xff]
      %v258 = vld [vmem:[%s212 + $0xbc] sm:$0xf]
      %v259 = vld [vmem:[%s212 + $0xc0] sm:$0xff]
      %v260 = vld [vmem:[%s212 + $0xc8] sm:$0xf]
      %v261 = vld [vmem:[%s212 + $0xcc] sm:$0xff]
      %v262 = vld [vmem:[%s212 + $0xd4] sm:$0xf]
      %v263 = vld [vmem:[%s212 + $0xd8] sm:$0xff]
      %v264 = vld [vmem:[%s212 + $0xe0] sm:$0xf]
      %v265 = vld [vmem:[%s212 + $0xe4] sm:$0xff]
      %v266 = vld [vmem:[%s212 + $0xec] sm:$0xf]
      %v267 = vld [vmem:[%s212 + $0xf0] sm:$0xff]
      %v268 = vld [vmem:[%s212 + $0xf8] sm:$0xf]
      %v269 = vld [vmem:[%s212 + $0xfc] sm:$0xff]
      %v270 = vld [vmem:[%s212 + $0x104] sm:$0xf]
      %v271 = vld [vmem:[%s212 + $0x108] sm:$0xff]
      %v272 = vld [vmem:[%s212 + $0x110] sm:$0xf]
      %v273 = vld [vmem:[%s212 + $0x114] sm:$0xff]
      %v274 = vld [vmem:[%s212 + $0x11c] sm:$0xf]
      %v275 = vld [vmem:[%s212 + $0x120] sm:$0xff]
      %v276 = vld [vmem:[%s212 + $0x128] sm:$0xf]
      %v277 = vld [vmem:[%s212 + $0x12c] sm:$0xff]
      %v278 = vld [vmem:[%s212 + $0x134] sm:$0xf]
      %v279 = vld [vmem:[%s212 + $0x138] sm:$0xff]
      %v280 = vld [vmem:[%s212 + $0x140] sm:$0xf]
      %v281 = vld [vmem:[%s212 + $0x144] sm:$0xff]
      %v282 = vld [vmem:[%s212 + $0x14c] sm:$0xf]
      %v283 = vld [vmem:[%s212 + $0x150] sm:$0xff]
      %v284 = vld [vmem:[%s212 + $0x158] sm:$0xf]
      %v285 = vld [vmem:[%s212 + $0x15c] sm:$0xff]
      %v286 = vld [vmem:[%s212 + $0x164] sm:$0xf]
      %v287 = vld [vmem:[%s212 + $0x168] sm:$0xff]
      %v288 = vld [vmem:[%s212 + $0x170] sm:$0xf]
      %v289 = vld [vmem:[%s212 + $0x174] sm:$0xff]
      %v290 = vld [vmem:[%s212 + $0x17c] sm:$0xf]
      %v291 = vld [vmem:[%s212 + $0x180] sm:$0xff]
      %v292 = vld [vmem:[%s212 + $0x188] sm:$0xf]
      %v293 = vld [vmem:[%s212 + $0x18c] sm:$0xff]
      %v294 = vld [vmem:[%s212 + $0x194] sm:$0xf]
      %v295 = vld [vmem:[%s212 + $0x198] sm:$0xff]
      %v296 = vld [vmem:[%s212 + $0x1a0] sm:$0xf]
      %v297 = vld [vmem:[%s212 + $0x1a4] sm:$0xff]
      %v298 = vld [vmem:[%s212 + $0x1ac] sm:$0xf]
      %v299 = vld [vmem:[%s212 + $0x1b0] sm:$0xff]
      %v300 = vld [vmem:[%s212 + $0x1b8] sm:$0xf]
      %v301 = vld [vmem:[%s212 + $0x1bc] sm:$0xff]
      %v302 = vld [vmem:[%s212 + $0x1c4] sm:$0xf]
      %v303 = vld [vmem:[%s212 + $0x1c8] sm:$0xff]
      %v304 = vld [vmem:[%s212 + $0x1d0] sm:$0xf]
      %v305 = vld [vmem:[%s212 + $0x1d4] sm:$0xff]
      %v306 = vld [vmem:[%s212 + $0x1dc] sm:$0xf]
      %v307 = vld [vmem:[%s212 + $0x1e0] sm:$0xff]
      %v308 = vld [vmem:[%s212 + $0x1e8] sm:$0xf]
      %v309 = vld [vmem:[%s212 + $0x1ec] sm:$0xff]
      %v310 = vld [vmem:[%s212 + $0x1f4] sm:$0xf]
      %v311 = vld [vmem:[%s212 + $0x1f8] sm:$0xff]
      %v312 = vld [vmem:[%s212 + $0x200] sm:$0xf]
      %v313 = vld [vmem:[%s212 + $0x204] sm:$0xff]
      %v314 = vld [vmem:[%s212 + $0x20c] sm:$0xf]
      %v315 = vld [vmem:[%s212 + $0x210] sm:$0xff]
      %v316 = vld [vmem:[%s212 + $0x218] sm:$0xf]
      %v317 = vld [vmem:[%s212 + $0x21c] sm:$0xff]
      %v318 = vld [vmem:[%s212 + $0x224] sm:$0xf]
      %v319 = vld [vmem:[%s212 + $0x228] sm:$0xff]
      %v320 = vld [vmem:[%s212 + $0x230] sm:$0xf]
      %v321 = vld [vmem:[%s212 + $0x234] sm:$0xff]
      %v322 = vld [vmem:[%s212 + $0x23c] sm:$0xf]
      %v323 = vld [vmem:[%s212 + $0x240] sm:$0xff]
      %v324 = vld [vmem:[%s212 + $0x248] sm:$0xf]
      %v325 = vld [vmem:[%s212 + $0x24c] sm:$0xff]
      %v326 = vld [vmem:[%s212 + $0x254] sm:$0xf]
      %v327 = vld [vmem:[%s212 + $0x258] sm:$0xff]
      %v328 = vld [vmem:[%s212 + $0x260] sm:$0xf]
      %v329 = vld [vmem:[%s212 + $0x264] sm:$0xff]
      %v330 = vld [vmem:[%s212 + $0x26c] sm:$0xf]
      %v331 = vld [vmem:[%s212 + $0x270] sm:$0xff]
      %v332 = vld [vmem:[%s212 + $0x278] sm:$0xf]
      %v333 = vld [vmem:[%s212 + $0x27c] sm:$0xff]
      %v334 = vld [vmem:[%s212 + $0x284] sm:$0xf]
      %v335 = vld [vmem:[%s212 + $0x288] sm:$0xff]
      %v336 = vld [vmem:[%s212 + $0x290] sm:$0xf]
      %v337 = vld [vmem:[%s212 + $0x294] sm:$0xff]
      %v338 = vld [vmem:[%s212 + $0x29c] sm:$0xf]
      %v339 = vld [vmem:[%s212 + $0x2a0] sm:$0xff]
      %v340 = vld [vmem:[%s212 + $0x2a8] sm:$0xf]
      %v341 = vld [vmem:[%s212 + $0x2ac] sm:$0xff]
      %v342 = vld [vmem:[%s212 + $0x2b4] sm:$0xf]
      %v343 = vld [vmem:[%s212 + $0x2b8] sm:$0xff]
      %v344 = vld [vmem:[%s212 + $0x2c0] sm:$0xf]
      %v345 = vld [vmem:[%s212 + $0x2c4] sm:$0xff]
      %v346 = vld [vmem:[%s212 + $0x2cc] sm:$0xf]
      %v347 = vld [vmem:[%s212 + $0x2d0] sm:$0xff]
      %v348 = vld [vmem:[%s212 + $0x2d8] sm:$0xf]
      %v349 = vld [vmem:[%s212 + $0x2dc] sm:$0xff]
      %v350 = vld [vmem:[%s212 + $0x2e4] sm:$0xf]
      %v351 = vld [vmem:[%s212 + $0x2e8] sm:$0xff]
      %v352 = vld [vmem:[%s212 + $0x2f0] sm:$0xf]
      %v353 = vld [vmem:[%s212 + $0x2f4] sm:$0xff]
      %v354 = vld [vmem:[%s212 + $0x2fc] sm:$0xf]
      %v355 = vld [vmem:[%s1] sm:$0xf]
      %v356 = vld [vmem:[%s1 + $0x4] sm:$0xf]
      %v357 = vld [vmem:[%s1 + $0x8] sm:$0xf]
      %v358 = vld [vmem:[%s1 + $0xc] sm:$0xf]
      %v359 = vld [vmem:[%s1 + $0x10] sm:$0xf]
      %v360 = vld [vmem:[%s1 + $0x14] sm:$0xf]
      %v361 = vld [vmem:[%s1 + $0x18] sm:$0xf]
      %v362 = vld [vmem:[%s1 + $0x1c] sm:$0xf]
      %v363 = vld [vmem:[%s1 + $0x20] sm:$0xf]
      %v364 = vld [vmem:[%s1 + $0x24] sm:$0xf]
      %v365 = vld [vmem:[%s1 + $0x28] sm:$0xf]
      %v366 = vld [vmem:[%s1 + $0x2c] sm:$0xf]
      %v367 = vld [vmem:[%s1 + $0x30] sm:$0xf]
      %v368 = vld [vmem:[%s1 + $0x34] sm:$0xf]
      %v369 = vld [vmem:[%s1 + $0x38] sm:$0xf]
      %v370 = vld [vmem:[%s1 + $0x3c] sm:$0xf]
      %v371 = vld [vmem:[%s1 + $0x40] sm:$0xf]
      %v372 = vld [vmem:[%s1 + $0x44] sm:$0xf]
      %v373 = vld [vmem:[%s1 + $0x48] sm:$0xf]
      %v374 = vld [vmem:[%s1 + $0x4c] sm:$0xf]
      %v375 = vld [vmem:[%s1 + $0x50] sm:$0xf]
      %v376 = vld [vmem:[%s1 + $0x54] sm:$0xf]
      %v377 = vld [vmem:[%s1 + $0x58] sm:$0xf]
      %v378 = vld [vmem:[%s1 + $0x5c] sm:$0xf]
      %v379 = vld [vmem:[%s1 + $0x60] sm:$0xf]
      %v380 = vld [vmem:[%s1 + $0x64] sm:$0xf]
      %v381 = vld [vmem:[%s1 + $0x68] sm:$0xf]
      %v382 = vld [vmem:[%s1 + $0x6c] sm:$0xf]
      %v383 = vld [vmem:[%s1 + $0x70] sm:$0xf]
      %v384 = vld [vmem:[%s1 + $0x74] sm:$0xf]
      %v385 = vld [vmem:[%s1 + $0x78] sm:$0xf]
      %v386 = vld [vmem:[%s1 + $0x7c] sm:$0xf]
      %v387 = vld [vmem:[%s1 + $0x80] sm:$0xf]
      %v388 = vld [vmem:[%s1 + $0x84] sm:$0xf]
      %v389 = vld [vmem:[%s1 + $0x88] sm:$0xf]
      %v390 = vld [vmem:[%s1 + $0x8c] sm:$0xf]
      %v391 = vld [vmem:[%s2] sm:$0x1]
      %v393 = vlaneseq
      %v394 = vshrl.u32 %v393, 7
      %v395 = vsub.s32 0, %v394
      %v396 = vrot.slane %v391, %v395
      %v526 = vunpack.c.l.b16 %v227
      %v527 = vunpack.c.h.b16 %v227
      %v528 = vunpack.c.l.b16 %v228
      %v529 = vunpack.c.l.b16 %v229
      %v530 = vunpack.c.h.b16 %v229
      %v531 = vunpack.c.l.b16 %v230
      %v532 = vunpack.c.l.b16 %v231
      %v533 = vunpack.c.h.b16 %v231
      %v534 = vunpack.c.l.b16 %v232
      %v535 = vunpack.c.l.b16 %v233
      %v536 = vunpack.c.h.b16 %v233
      %v537 = vunpack.c.l.b16 %v234
      %v538 = vunpack.c.l.b16 %v235
      %v539 = vunpack.c.h.b16 %v235
      %v540 = vunpack.c.l.b16 %v236
      %v541 = vunpack.c.l.b16 %v237
      %v542 = vunpack.c.h.b16 %v237
      %v543 = vunpack.c.l.b16 %v238
      %v544 = vunpack.c.l.b16 %v239
      %v545 = vunpack.c.h.b16 %v239
      %v546 = vunpack.c.l.b16 %v240
      %v547 = vunpack.c.l.b16 %v241
      %v548 = vunpack.c.h.b16 %v241
      %v549 = vunpack.c.l.b16 %v242
      %v550 = vunpack.c.l.b16 %v243
      %v551 = vunpack.c.h.b16 %v243
      %v552 = vunpack.c.l.b16 %v244
      %v553 = vunpack.c.l.b16 %v245
      %v554 = vunpack.c.h.b16 %v245
      %v555 = vunpack.c.l.b16 %v246
      %v556 = vunpack.c.l.b16 %v247
      %v557 = vunpack.c.h.b16 %v247
      %v558 = vunpack.c.l.b16 %v248
      %v559 = vunpack.c.l.b16 %v249
      %v560 = vunpack.c.h.b16 %v249
      %v561 = vunpack.c.l.b16 %v250
      %v562 = vunpack.c.l.b16 %v251
      %v563 = vunpack.c.h.b16 %v251
      %v564 = vunpack.c.l.b16 %v252
      %v565 = vunpack.c.l.b16 %v253
      %v566 = vunpack.c.h.b16 %v253
      %v567 = vunpack.c.l.b16 %v254
      %v568 = vunpack.c.l.b16 %v255
      %v569 = vunpack.c.h.b16 %v255
      %v570 = vunpack.c.l.b16 %v256
      %v571 = vunpack.c.l.b16 %v257
      %v572 = vunpack.c.h.b16 %v257
      %v573 = vunpack.c.l.b16 %v258
      %v574 = vunpack.c.l.b16 %v259
      %v575 = vunpack.c.h.b16 %v259
      %v576 = vunpack.c.l.b16 %v260
      %v577 = vunpack.c.l.b16 %v261
      %v578 = vunpack.c.h.b16 %v261
      %v579 = vunpack.c.l.b16 %v262
      %v580 = vunpack.c.l.b16 %v263
      %v581 = vunpack.c.h.b16 %v263
      %v582 = vunpack.c.l.b16 %v264
      %v583 = vunpack.c.l.b16 %v265
      %v584 = vunpack.c.h.b16 %v265
      %v585 = vunpack.c.l.b16 %v266
      %v586 = vunpack.c.l.b16 %v267
      %v587 = vunpack.c.h.b16 %v267
      %v588 = vunpack.c.l.b16 %v268
      %v589 = vunpack.c.l.b16 %v269
      %v590 = vunpack.c.h.b16 %v269
      %v591 = vunpack.c.l.b16 %v270
      %v592 = vunpack.c.l.b16 %v271
      %v593 = vunpack.c.h.b16 %v271
      %v594 = vunpack.c.l.b16 %v272
      %v595 = vunpack.c.l.b16 %v273
      %v596 = vunpack.c.h.b16 %v273
      %v597 = vunpack.c.l.b16 %v274
      %v598 = vunpack.c.l.b16 %v275
      %v599 = vunpack.c.h.b16 %v275
      %v600 = vunpack.c.l.b16 %v276
      %v601 = vunpack.c.l.b16 %v277
      %v602 = vunpack.c.h.b16 %v277
      %v603 = vunpack.c.l.b16 %v278
      %v604 = vunpack.c.l.b16 %v279
      %v605 = vunpack.c.h.b16 %v279
      %v606 = vunpack.c.l.b16 %v280
      %v607 = vunpack.c.l.b16 %v281
      %v608 = vunpack.c.h.b16 %v281
      %v609 = vunpack.c.l.b16 %v282
      %v610 = vunpack.c.l.b16 %v283
      %v611 = vunpack.c.h.b16 %v283
      %v612 = vunpack.c.l.b16 %v284
      %v613 = vunpack.c.l.b16 %v285
      %v614 = vunpack.c.h.b16 %v285
      %v615 = vunpack.c.l.b16 %v286
      %v616 = vunpack.c.l.b16 %v287
      %v617 = vunpack.c.h.b16 %v287
      %v618 = vunpack.c.l.b16 %v288
      %v619 = vunpack.c.l.b16 %v289
      %v620 = vunpack.c.h.b16 %v289
      %v621 = vunpack.c.l.b16 %v290
      %v622 = vunpack.c.l.b16 %v291
      %v623 = vunpack.c.h.b16 %v291
      %v624 = vunpack.c.l.b16 %v292
      %v625 = vunpack.c.l.b16 %v293
      %v626 = vunpack.c.h.b16 %v293
      %v627 = vunpack.c.l.b16 %v294
      %v628 = vunpack.c.l.b16 %v295
      %v629 = vunpack.c.h.b16 %v295
      %v630 = vunpack.c.l.b16 %v296
      %v631 = vunpack.c.l.b16 %v297
      %v632 = vunpack.c.h.b16 %v297
      %v633 = vunpack.c.l.b16 %v298
      %v634 = vunpack.c.l.b16 %v299
      %v635 = vunpack.c.h.b16 %v299
      %v636 = vunpack.c.l.b16 %v300
      %v637 = vunpack.c.l.b16 %v301
      %v638 = vunpack.c.h.b16 %v301
      %v639 = vunpack.c.l.b16 %v302
      %v640 = vunpack.c.l.b16 %v303
      %v641 = vunpack.c.h.b16 %v303
      %v642 = vunpack.c.l.b16 %v304
      %v643 = vunpack.c.l.b16 %v305
      %v644 = vunpack.c.h.b16 %v305
      %v645 = vunpack.c.l.b16 %v306
      %v646 = vunpack.c.l.b16 %v307
      %v647 = vunpack.c.h.b16 %v307
      %v648 = vunpack.c.l.b16 %v308
      %v649 = vunpack.c.l.b16 %v309
      %v650 = vunpack.c.h.b16 %v309
      %v651 = vunpack.c.l.b16 %v310
      %v652 = vunpack.c.l.b16 %v311
      %v653 = vunpack.c.h.b16 %v311
      %v654 = vunpack.c.l.b16 %v312
      %v655 = vunpack.c.l.b16 %v313
      %v656 = vunpack.c.h.b16 %v313
      %v657 = vunpack.c.l.b16 %v314
      %v658 = vunpack.c.l.b16 %v315
      %v659 = vunpack.c.h.b16 %v315
      %v660 = vunpack.c.l.b16 %v316
      %v661 = vunpack.c.l.b16 %v317
      %v662 = vunpack.c.h.b16 %v317
      %v663 = vunpack.c.l.b16 %v318
      %v664 = vunpack.c.l.b16 %v319
      %v665 = vunpack.c.h.b16 %v319
      %v666 = vunpack.c.l.b16 %v320
      %v667 = vunpack.c.l.b16 %v321
      %v668 = vunpack.c.h.b16 %v321
      %v669 = vunpack.c.l.b16 %v322
      %v670 = vunpack.c.l.b16 %v323
      %v671 = vunpack.c.h.b16 %v323
      %v672 = vunpack.c.l.b16 %v324
      %v673 = vunpack.c.l.b16 %v325
      %v674 = vunpack.c.h.b16 %v325
      %v675 = vunpack.c.l.b16 %v326
      %v676 = vunpack.c.l.b16 %v327
      %v677 = vunpack.c.h.b16 %v327
      %v678 = vunpack.c.l.b16 %v328
      %v679 = vunpack.c.l.b16 %v329
      %v680 = vunpack.c.h.b16 %v329
      %v681 = vunpack.c.l.b16 %v330
      %v682 = vunpack.c.l.b16 %v331
      %v683 = vunpack.c.h.b16 %v331
      %v684 = vunpack.c.l.b16 %v332
      %v685 = vunpack.c.l.b16 %v333
      %v686 = vunpack.c.h.b16 %v333
      %v687 = vunpack.c.l.b16 %v334
      %v688 = vunpack.c.l.b16 %v335
      %v689 = vunpack.c.h.b16 %v335
      %v690 = vunpack.c.l.b16 %v336
      %v691 = vunpack.c.l.b16 %v337
      %v692 = vunpack.c.h.b16 %v337
      %v693 = vunpack.c.l.b16 %v338
      %v694 = vunpack.c.l.b16 %v339
      %v695 = vunpack.c.h.b16 %v339
      %v696 = vunpack.c.l.b16 %v340
      %v697 = vunpack.c.l.b16 %v341
      %v698 = vunpack.c.h.b16 %v341
      %v699 = vunpack.c.l.b16 %v342
      %v700 = vunpack.c.l.b16 %v343
      %v701 = vunpack.c.h.b16 %v343
      %v702 = vunpack.c.l.b16 %v344
      %v703 = vunpack.c.l.b16 %v345
      %v704 = vunpack.c.h.b16 %v345
      %v705 = vunpack.c.l.b16 %v346
      %v706 = vunpack.c.l.b16 %v347
      %v707 = vunpack.c.h.b16 %v347
      %v708 = vunpack.c.l.b16 %v348
      %v709 = vunpack.c.l.b16 %v349
      %v710 = vunpack.c.h.b16 %v349
      %v711 = vunpack.c.l.b16 %v350
      %v712 = vunpack.c.l.b16 %v351
      %v713 = vunpack.c.h.b16 %v351
      %v714 = vunpack.c.l.b16 %v352
      %v715 = vunpack.c.l.b16 %v353
      %v716 = vunpack.c.h.b16 %v353
      %v717 = vunpack.c.l.b16 %v354
      %v718 = vpack.c.b16 %v529, %v526
      %v719 = vpack.c.b16 %v530, %v527
      %v720 = vpack.c.b16 %v531, %v528
      %v721 = vpack.c.b16 %v535, %v532
      %v722 = vpack.c.b16 %v536, %v533
      %v723 = vpack.c.b16 %v537, %v534
      %v724 = vpack.c.b16 %v541, %v538
      %v725 = vpack.c.b16 %v542, %v539
      %v726 = vpack.c.b16 %v543, %v540
      %v727 = vpack.c.b16 %v547, %v544
      %v728 = vpack.c.b16 %v548, %v545
      %v729 = vpack.c.b16 %v549, %v546
      %v730 = vpack.c.b16 %v553, %v550
      %v731 = vpack.c.b16 %v554, %v551
      %v732 = vpack.c.b16 %v555, %v552
      %v733 = vpack.c.b16 %v559, %v556
      %v734 = vpack.c.b16 %v560, %v557
      %v735 = vpack.c.b16 %v561, %v558
      %v736 = vpack.c.b16 %v565, %v562
      %v737 = vpack.c.b16 %v566, %v563
      %v738 = vpack.c.b16 %v567, %v564
      %v739 = vpack.c.b16 %v571, %v568
      %v740 = vpack.c.b16 %v572, %v569
      %v741 = vpack.c.b16 %v573, %v570
      %v742 = vpack.c.b16 %v577, %v574
      %v743 = vpack.c.b16 %v578, %v575
      %v744 = vpack.c.b16 %v579, %v576
      %v745 = vpack.c.b16 %v583, %v580
      %v746 = vpack.c.b16 %v584, %v581
      %v747 = vpack.c.b16 %v585, %v582
      %v748 = vpack.c.b16 %v589, %v586
      %v749 = vpack.c.b16 %v590, %v587
      %v750 = vpack.c.b16 %v591, %v588
      %v751 = vpack.c.b16 %v595, %v592
      %v752 = vpack.c.b16 %v596, %v593
      %v753 = vpack.c.b16 %v597, %v594
      %v754 = vpack.c.b16 %v601, %v598
      %v755 = vpack.c.b16 %v602, %v599
      %v756 = vpack.c.b16 %v603, %v600
      %v757 = vpack.c.b16 %v607, %v604
      %v758 = vpack.c.b16 %v608, %v605
      %v759 = vpack.c.b16 %v609, %v606
      %v760 = vpack.c.b16 %v613, %v610
      %v761 = vpack.c.b16 %v614, %v611
      %v762 = vpack.c.b16 %v615, %v612
      %v763 = vpack.c.b16 %v619, %v616
      %v764 = vpack.c.b16 %v620, %v617
      %v765 = vpack.c.b16 %v621, %v618
      %v766 = vpack.c.b16 %v625, %v622
      %v767 = vpack.c.b16 %v626, %v623
      %v768 = vpack.c.b16 %v627, %v624
      %v769 = vpack.c.b16 %v631, %v628
      %v770 = vpack.c.b16 %v632, %v629
      %v771 = vpack.c.b16 %v633, %v630
      %v772 = vpack.c.b16 %v637, %v634
      %v773 = vpack.c.b16 %v638, %v635
      %v774 = vpack.c.b16 %v639, %v636
      %v775 = vpack.c.b16 %v643, %v640
      %v776 = vpack.c.b16 %v644, %v641
      %v777 = vpack.c.b16 %v645, %v642
      %v778 = vpack.c.b16 %v649, %v646
      %v779 = vpack.c.b16 %v650, %v647
      %v780 = vpack.c.b16 %v651, %v648
      %v781 = vpack.c.b16 %v655, %v652
      %v782 = vpack.c.b16 %v656, %v653
      %v783 = vpack.c.b16 %v657, %v654
      %v784 = vpack.c.b16 %v661, %v658
      %v785 = vpack.c.b16 %v662, %v659
      %v786 = vpack.c.b16 %v663, %v660
      %v787 = vpack.c.b16 %v667, %v664
      %v788 = vpack.c.b16 %v668, %v665
      %v789 = vpack.c.b16 %v669, %v666
      %v790 = vpack.c.b16 %v673, %v670
      %v791 = vpack.c.b16 %v674, %v671
      %v792 = vpack.c.b16 %v675, %v672
      %v793 = vpack.c.b16 %v679, %v676
      %v794 = vpack.c.b16 %v680, %v677
      %v795 = vpack.c.b16 %v681, %v678
      %v796 = vpack.c.b16 %v685, %v682
      %v797 = vpack.c.b16 %v686, %v683
      %v798 = vpack.c.b16 %v687, %v684
      %v799 = vpack.c.b16 %v691, %v688
      %v800 = vpack.c.b16 %v692, %v689
      %v801 = vpack.c.b16 %v693, %v690
      %v802 = vpack.c.b16 %v697, %v694
      %v803 = vpack.c.b16 %v698, %v695
      %v804 = vpack.c.b16 %v699, %v696
      %v805 = vpack.c.b16 %v703, %v700
      %v806 = vpack.c.b16 %v704, %v701
      %v807 = vpack.c.b16 %v705, %v702
      %v808 = vpack.c.b16 %v709, %v706
      %v809 = vpack.c.b16 %v710, %v707
      %v810 = vpack.c.b16 %v711, %v708
      %v811 = vpack.c.b16 %v715, %v712
      %v812 = vpack.c.b16 %v716, %v713
      %v813 = vpack.c.b16 %v717, %v714
      %v914 = vunpack.c.l.b16 %v355
      %v915 = vunpack.c.l.b16 %v356
      %v916 = vunpack.c.l.b16 %v357
      %v917 = vunpack.c.l.b16 %v358
      %v918 = vunpack.c.l.b16 %v359
      %v919 = vunpack.c.l.b16 %v360
      %v920 = vunpack.c.l.b16 %v361
      %v921 = vunpack.c.l.b16 %v362
      %v922 = vunpack.c.l.b16 %v363
      %v923 = vunpack.c.l.b16 %v364
      %v924 = vunpack.c.l.b16 %v365
      %v925 = vunpack.c.l.b16 %v366
      %v926 = vunpack.c.l.b16 %v367
      %v927 = vunpack.c.l.b16 %v368
      %v928 = vunpack.c.l.b16 %v369
      %v929 = vunpack.c.l.b16 %v370
      %v930 = vunpack.c.l.b16 %v371
      %v931 = vunpack.c.l.b16 %v372
      %v932 = vunpack.c.l.b16 %v373
      %v933 = vunpack.c.l.b16 %v374
      %v934 = vunpack.c.l.b16 %v375
      %v935 = vunpack.c.l.b16 %v376
      %v936 = vunpack.c.l.b16 %v377
      %v937 = vunpack.c.l.b16 %v378
      %v938 = vunpack.c.l.b16 %v379
      %v939 = vunpack.c.l.b16 %v380
      %v940 = vunpack.c.l.b16 %v381
      %v941 = vunpack.c.l.b16 %v382
      %v942 = vunpack.c.l.b16 %v383
      %v943 = vunpack.c.l.b16 %v384
      %v944 = vunpack.c.l.b16 %v385
      %v945 = vunpack.c.l.b16 %v386
      %v946 = vunpack.c.l.b16 %v387
      %v947 = vunpack.c.l.b16 %v388
      %v948 = vunpack.c.l.b16 %v389
      %v949 = vunpack.c.l.b16 %v390
      %v950 = vpack.c.b16 %v915, %v914
      %v951 = vpack.c.b16 %v917, %v916
      %v952 = vpack.c.b16 %v919, %v918
      %v953 = vpack.c.b16 %v921, %v920
      %v954 = vpack.c.b16 %v923, %v922
      %v955 = vpack.c.b16 %v925, %v924
      %v956 = vpack.c.b16 %v927, %v926
      %v957 = vpack.c.b16 %v929, %v928
      %v958 = vpack.c.b16 %v931, %v930
      %v959 = vpack.c.b16 %v933, %v932
      %v960 = vpack.c.b16 %v935, %v934
      %v961 = vpack.c.b16 %v937, %v936
      %v962 = vpack.c.b16 %v939, %v938
      %v963 = vpack.c.b16 %v941, %v940
      %v964 = vpack.c.b16 %v943, %v942
      %v965 = vpack.c.b16 %v945, %v944
      %v966 = vpack.c.b16 %v947, %v946
      %v967 = vpack.c.b16 %v949, %v948
      %vm986 = vcmask 261120
      %v988 = vsel %vm986, %v720, 0
      %v991 = vsel %vm986, %v723, 0
      %v994 = vsel %vm986, %v726, 0
      %v997 = vsel %vm986, %v729, 0
      %v1000 = vsel %vm986, %v732, 0
      %v1003 = vsel %vm986, %v735, 0
      %v1006 = vsel %vm986, %v738, 0
      %v1009 = vsel %vm986, %v741, 0
      %v1012 = vsel %vm986, %v744, 0
      %v1015 = vsel %vm986, %v747, 0
      %v1018 = vsel %vm986, %v750, 0
      %v1021 = vsel %vm986, %v753, 0
      %v1024 = vsel %vm986, %v756, 0
      %v1027 = vsel %vm986, %v759, 0
      %v1030 = vsel %vm986, %v762, 0
      %v1033 = vsel %vm986, %v765, 0
      %v1036 = vsel %vm986, %v768, 0
      %v1039 = vsel %vm986, %v771, 0
      %v1042 = vsel %vm986, %v774, 0
      %v1045 = vsel %vm986, %v777, 0
      %v1048 = vsel %vm986, %v780, 0
      %v1051 = vsel %vm986, %v783, 0
      %v1054 = vsel %vm986, %v786, 0
      %v1057 = vsel %vm986, %v789, 0
      %v1060 = vsel %vm986, %v792, 0
      %v1063 = vsel %vm986, %v795, 0
      %v1066 = vsel %vm986, %v798, 0
      %v1069 = vsel %vm986, %v801, 0
      %v1072 = vsel %vm986, %v804, 0
      %v1075 = vsel %vm986, %v807, 0
      %v1078 = vsel %vm986, %v810, 0
      %v1081 = vsel %vm986, %v813, 0
      %1083 = vmatprep.subr.bf16.mxu0 0
      %1084 = vmatpush1.bf16.msra.mxu0 %v950
      %1085 = vmatprep.subr.bf16.mxu0 0
      %1086 = vmatpush1.bf16.msra.mxu0 %v951
      %1087 = vmatprep.subr.bf16.mxu0 0
      %1088 = vmatpush1.bf16.msra.mxu0 %v952
      %1089 = vmatprep.subr.bf16.mxu0 0
      %1090 = vmatpush1.bf16.msra.mxu0 %v953
      %1091 = vmatprep.subr.bf16.mxu0 0
      %1092 = vmatpush1.bf16.msra.mxu0 %v954
      %1093 = vmatprep.subr.bf16.mxu0 0
      %1094 = vmatpush1.bf16.msra.mxu0 %v955
      %1095 = vmatprep.subr.bf16.mxu0 0
      %1096 = vmatpush1.bf16.msra.mxu0 %v956
      %1097 = vmatprep.subr.bf16.mxu0 0
      %1098 = vmatpush1.bf16.msra.mxu0 %v957
      %1099 = vmatprep.subr.bf16.mxu0 0
      %1100 = vmatpush1.bf16.msra.mxu0 %v958
      %1101 = vmatprep.subr.bf16.mxu0 0
      %1102 = vmatpush1.bf16.msra.mxu0 %v959
      %1103 = vmatprep.subr.bf16.mxu0 0
      %1104 = vmatpush1.bf16.msra.mxu0 %v960
      %1105 = vmatprep.subr.bf16.mxu0 0
      %1106 = vmatpush1.bf16.msra.mxu0 %v961
      %1107 = vmatprep.subr.bf16.mxu0 0
      %1108 = vmatpush1.bf16.msra.mxu0 %v962
      %1109 = vmatprep.subr.bf16.mxu0 0
      %1110 = vmatpush1.bf16.msra.mxu0 %v963
      %1111 = vmatprep.subr.bf16.mxu0 0
      %1112 = vmatpush1.bf16.msra.mxu0 %v964
      %1113 = vmatprep.subr.bf16.mxu0 0
      %1114 = vmatpush1.bf16.msra.mxu0 %v965
      %1115 = vmatprep.mubr.bf16.mxu0 %v719
      %1116 = vmatmul.mubr.bf16.gmra.mrb[0].mxu0 %v718
      %v1117 = vpop.f32.mrb[0].mxu0
      %v1118 = vadd.f32 %v396, %v1117
      %v1119 = vpop.f32.mrb[0].mxu0
      %v1120 = vpop.f32.mrb[0].mxu0
      %v1121 = vadd.f32 %v396, %v1120
      %v1122 = vpop.f32.mrb[0].mxu0
      %1123 = vmatprep.mubr.bf16.mxu0 %v722
      %1124 = vmatmul.mubr.bf16.gmra.mrb[0].mxu0 %v721
      %v1125 = vpop.f32.mrb[0].mxu0
      %v1126 = vadd.f32 %v396, %v1125
      %v1127 = vpop.f32.mrb[0].mxu0
      %v1128 = vpop.f32.mrb[0].mxu0
      %v1129 = vadd.f32 %v396, %v1128
      %v1130 = vpop.f32.mrb[0].mxu0
      %1131 = vmatprep.mubr.bf16.mxu0 %v725
      %1132 = vmatmul.mubr.bf16.gmra.mrb[0].mxu0 %v724
      %v1133 = vpop.f32.mrb[0].mxu0
      %v1134 = vadd.f32 %v396, %v1133
      %v1135 = vpop.f32.mrb[0].mxu0
      %v1136 = vpop.f32.mrb[0].mxu0
      %v1137 = vadd.f32 %v396, %v1136
      %v1138 = vpop.f32.mrb[0].mxu0
      %1139 = vmatprep.mubr.bf16.mxu0 %v728
      %1140 = vmatmul.mubr.bf16.gmra.mrb[0].mxu0 %v727
      %v1141 = vpop.f32.mrb[0].mxu0
      %v1142 = vadd.f32 %v396, %v1141
      %v1143 = vpop.f32.mrb[0].mxu0
      %v1144 = vpop.f32.mrb[0].mxu0
      %v1145 = vadd.f32 %v396, %v1144
      %v1146 = vpop.f32.mrb[0].mxu0
      %1147 = vmatprep.mubr.bf16.mxu0 %v731
      %1148 = vmatmul.mubr.bf16.gmra.mrb[0].mxu0 %v730
      %v1149 = vpop.f32.mrb[0].mxu0
      %v1150 = vadd.f32 %v396, %v1149
      %v1151 = vpop.f32.mrb[0].mxu0
      %v1152 = vpop.f32.mrb[0].mxu0
      %v1153 = vadd.f32 %v396, %v1152
      %v1154 = vpop.f32.mrb[0].mxu0
      %1155 = vmatprep.mubr.bf16.mxu0 %v734
      %1156 = vmatmul.mubr.bf16.gmra.mrb[0].mxu0 %v733
      %v1157 = vpop.f32.mrb[0].mxu0
      %v1158 = vadd.f32 %v396, %v1157
      %v1159 = vpop.f32.mrb[0].mxu0
      %v1160 = vpop.f32.mrb[0].mxu0
      %v1161 = vadd.f32 %v396, %v1160
      %v1162 = vpop.f32.mrb[0].mxu0
      %1163 = vmatprep.mubr.bf16.mxu0 %v737
      %1164 = vmatmul.mubr.bf16.gmra.mrb[0].mxu0 %v736
      %v1165 = vpop.f32.mrb[0].mxu0
      %v1166 = vadd.f32 %v396, %v1165
      %v1167 = vpop.f32.mrb[0].mxu0
      %v1168 = vpop.f32.mrb[0].mxu0
      %v1169 = vadd.f32 %v396, %v1168
      %v1170 = vpop.f32.mrb[0].mxu0
      %1171 = vmatprep.mubr.bf16.mxu0 %v740
      %1172 = vmatmul.mubr.bf16.gmra.mrb[0].mxu0 %v739
      %v1173 = vpop.f32.mrb[0].mxu0
      %v1174 = vadd.f32 %v396, %v1173
      %v1175 = vpop.f32.mrb[0].mxu0
      %v1176 = vpop.f32.mrb[0].mxu0
      %v1177 = vadd.f32 %v396, %v1176
      %v1178 = vpop.f32.mrb[0].mxu0
      %1179 = vmatprep.mubr.bf16.mxu0 %v743
      %1180 = vmatmul.mubr.bf16.gmra.mrb[0].mxu0 %v742
      %v1181 = vpop.f32.mrb[0].mxu0
      %v1182 = vadd.f32 %v396, %v1181
      %v1183 = vpop.f32.mrb[0].mxu0
      %v1184 = vpop.f32.mrb[0].mxu0
      %v1185 = vadd.f32 %v396, %v1184
      %v1186 = vpop.f32.mrb[0].mxu0
      %1187 = vmatprep.mubr.bf16.mxu0 %v746
      %1188 = vmatmul.mubr.bf16.gmra.mrb[0].mxu0 %v745
      %v1189 = vpop.f32.mrb[0].mxu0
      %v1190 = vadd.f32 %v396, %v1189
      %v1191 = vpop.f32.mrb[0].mxu0
      %v1192 = vpop.f32.mrb[0].mxu0
      %v1193 = vadd.f32 %v396, %v1192
      %v1194 = vpop.f32.mrb[0].mxu0
      %1195 = vmatprep.mubr.bf16.mxu0 %v749
      %1196 = vmatmul.mubr.bf16.gmra.mrb[0].mxu0 %v748
      %v1197 = vpop.f32.mrb[0].mxu0
      %v1198 = vadd.f32 %v396, %v1197
      %v1199 = vpop.f32.mrb[0].mxu0
      %v1200 = vpop.f32.mrb[0].mxu0
      %v1201 = vadd.f32 %v396, %v1200
      %v1202 = vpop.f32.mrb[0].mxu0
      %1203 = vmatprep.mubr.bf16.mxu0 %v752
      %1204 = vmatmul.mubr.bf16.gmra.mrb[0].mxu0 %v751
      %v1205 = vpop.f32.mrb[0].mxu0
      %v1206 = vadd.f32 %v396, %v1205
      %v1207 = vpop.f32.mrb[0].mxu0
      %v1208 = vpop.f32.mrb[0].mxu0
      %v1209 = vadd.f32 %v396, %v1208
      %v1210 = vpop.f32.mrb[0].mxu0
      %1211 = vmatprep.mubr.bf16.mxu0 %v755
      %1212 = vmatmul.mubr.bf16.gmra.mrb[0].mxu0 %v754
      %v1213 = vpop.f32.mrb[0].mxu0
      %v1214 = vadd.f32 %v396, %v1213
      %v1215 = vpop.f32.mrb[0].mxu0
      %v1216 = vpop.f32.mrb[0].mxu0
      %v1217 = vadd.f32 %v396, %v1216
      %v1218 = vpop.f32.mrb[0].mxu0
      %1219 = vmatprep.mubr.bf16.mxu0 %v758
      %1220 = vmatmul.mubr.bf16.gmra.mrb[0].mxu0 %v757
      %v1221 = vpop.f32.mrb[0].mxu0
      %v1222 = vadd.f32 %v396, %v1221
      %v1223 = vpop.f32.mrb[0].mxu0
      %v1224 = vpop.f32.mrb[0].mxu0
      %v1225 = vadd.f32 %v396, %v1224
      %v1226 = vpop.f32.mrb[0].mxu0
      %1227 = vmatprep.mubr.bf16.mxu0 %v761
      %1228 = vmatmul.mubr.bf16.gmra.mrb[0].mxu0 %v760
      %v1229 = vpop.f32.mrb[0].mxu0
      %v1230 = vadd.f32 %v396, %v1229
      %v1231 = vpop.f32.mrb[0].mxu0
      %v1232 = vpop.f32.mrb[0].mxu0
      %v1233 = vadd.f32 %v396, %v1232
      %v1234 = vpop.f32.mrb[0].mxu0
      %1235 = vmatprep.mubr.bf16.mxu0 %v764
      %1236 = vmatmul.mubr.bf16.gmra.mrb[0].mxu0 %v763
      %v1237 = vpop.f32.mrb[0].mxu0
      %v1238 = vadd.f32 %v396, %v1237
      %v1239 = vpop.f32.mrb[0].mxu0
      %v1240 = vpop.f32.mrb[0].mxu0
      %v1241 = vadd.f32 %v396, %v1240
      %v1242 = vpop.f32.mrb[0].mxu0
      %1243 = vmatprep.mubr.bf16.mxu0 %v767
      %1244 = vmatmul.mubr.bf16.gmra.mrb[0].mxu0 %v766
      %v1245 = vpop.f32.mrb[0].mxu0
      %v1246 = vadd.f32 %v396, %v1245
      %v1247 = vpop.f32.mrb[0].mxu0
      %v1248 = vpop.f32.mrb[0].mxu0
      %v1249 = vadd.f32 %v396, %v1248
      %v1250 = vpop.f32.mrb[0].mxu0
      %1251 = vmatprep.mubr.bf16.mxu0 %v770
      %1252 = vmatmul.mubr.bf16.gmra.mrb[0].mxu0 %v769
      %v1253 = vpop.f32.mrb[0].mxu0
      %v1254 = vadd.f32 %v396, %v1253
      %v1255 = vpop.f32.mrb[0].mxu0
      %v1256 = vpop.f32.mrb[0].mxu0
      %v1257 = vadd.f32 %v396, %v1256
      %v1258 = vpop.f32.mrb[0].mxu0
      %1259 = vmatprep.mubr.bf16.mxu0 %v773
      %1260 = vmatmul.mubr.bf16.gmra.mrb[0].mxu0 %v772
      %v1261 = vpop.f32.mrb[0].mxu0
      %v1262 = vadd.f32 %v396, %v1261
      %v1263 = vpop.f32.mrb[0].mxu0
      %v1264 = vpop.f32.mrb[0].mxu0
      %v1265 = vadd.f32 %v396, %v1264
      %v1266 = vpop.f32.mrb[0].mxu0
      %1267 = vmatprep.mubr.bf16.mxu0 %v776
      %1268 = vmatmul.mubr.bf16.gmra.mrb[0].mxu0 %v775
      %v1269 = vpop.f32.mrb[0].mxu0
      %v1270 = vadd.f32 %v396, %v1269
      %v1271 = vpop.f32.mrb[0].mxu0
      %v1272 = vpop.f32.mrb[0].mxu0
      %v1273 = vadd.f32 %v396, %v1272
      %v1274 = vpop.f32.mrb[0].mxu0
      %1275 = vmatprep.mubr.bf16.mxu0 %v779
      %1276 = vmatmul.mubr.bf16.gmra.mrb[0].mxu0 %v778
      %v1277 = vpop.f32.mrb[0].mxu0
      %v1278 = vadd.f32 %v396, %v1277
      %v1279 = vpop.f32.mrb[0].mxu0
      %v1280 = vpop.f32.mrb[0].mxu0
      %v1281 = vadd.f32 %v396, %v1280
      %v1282 = vpop.f32.mrb[0].mxu0
      %1283 = vmatprep.mubr.bf16.mxu0 %v782
      %1284 = vmatmul.mubr.bf16.gmra.mrb[0].mxu0 %v781
      %v1285 = vpop.f32.mrb[0].mxu0
      %v1286 = vadd.f32 %v396, %v1285
      %v1287 = vpop.f32.mrb[0].mxu0
      %v1288 = vpop.f32.mrb[0].mxu0
      %v1289 = vadd.f32 %v396, %v1288
      %v1290 = vpop.f32.mrb[0].mxu0
      %1291 = vmatprep.mubr.bf16.mxu0 %v785
      %1292 = vmatmul.mubr.bf16.gmra.mrb[0].mxu0 %v784
      %v1293 = vpop.f32.mrb[0].mxu0
      %v1294 = vadd.f32 %v396, %v1293
      %v1295 = vpop.f32.mrb[0].mxu0
      %v1296 = vpop.f32.mrb[0].mxu0
      %v1297 = vadd.f32 %v396, %v1296
      %v1298 = vpop.f32.mrb[0].mxu0
      %1299 = vmatprep.mubr.bf16.mxu0 %v788
      %1300 = vmatmul.mubr.bf16.gmra.mrb[0].mxu0 %v787
      %v1301 = vpop.f32.mrb[0].mxu0
      %v1302 = vadd.f32 %v396, %v1301
      %v1303 = vpop.f32.mrb[0].mxu0
      %v1304 = vpop.f32.mrb[0].mxu0
      %v1305 = vadd.f32 %v396, %v1304
      %v1306 = vpop.f32.mrb[0].mxu0
      %1307 = vmatprep.mubr.bf16.mxu0 %v791
      %1308 = vmatmul.mubr.bf16.gmra.mrb[0].mxu0 %v790
      %v1309 = vpop.f32.mrb[0].mxu0
      %v1310 = vadd.f32 %v396, %v1309
      %v1311 = vpop.f32.mrb[0].mxu0
      %v1312 = vpop.f32.mrb[0].mxu0
      %v1313 = vadd.f32 %v396, %v1312
      %v1314 = vpop.f32.mrb[0].mxu0
      %1315 = vmatprep.mubr.bf16.mxu0 %v794
      %1316 = vmatmul.mubr.bf16.gmra.mrb[0].mxu0 %v793
      %v1317 = vpop.f32.mrb[0].mxu0
      %v1318 = vadd.f32 %v396, %v1317
      %v1319 = vpop.f32.mrb[0].mxu0
      %v1320 = vpop.f32.mrb[0].mxu0
      %v1321 = vadd.f32 %v396, %v1320
      %v1322 = vpop.f32.mrb[0].mxu0
      %1323 = vmatprep.mubr.bf16.mxu0 %v797
      %1324 = vmatmul.mubr.bf16.gmra.mrb[0].mxu0 %v796
      %v1325 = vpop.f32.mrb[0].mxu0
      %v1326 = vadd.f32 %v396, %v1325
      %v1327 = vpop.f32.mrb[0].mxu0
      %v1328 = vpop.f32.mrb[0].mxu0
      %v1329 = vadd.f32 %v396, %v1328
      %v1330 = vpop.f32.mrb[0].mxu0
      %1331 = vmatprep.mubr.bf16.mxu0 %v800
      %1332 = vmatmul.mubr.bf16.gmra.mrb[0].mxu0 %v799
      %v1333 = vpop.f32.mrb[0].mxu0
      %v1334 = vadd.f32 %v396, %v1333
      %v1335 = vpop.f32.mrb[0].mxu0
      %v1336 = vpop.f32.mrb[0].mxu0
      %v1337 = vadd.f32 %v396, %v1336
      %v1338 = vpop.f32.mrb[0].mxu0
      %1339 = vmatprep.mubr.bf16.mxu0 %v803
      %1340 = vmatmul.mubr.bf16.gmra.mrb[0].mxu0 %v802
      %v1341 = vpop.f32.mrb[0].mxu0
      %v1342 = vadd.f32 %v396, %v1341
      %v1343 = vpop.f32.mrb[0].mxu0
      %v1344 = vpop.f32.mrb[0].mxu0
      %v1345 = vadd.f32 %v396, %v1344
      %v1346 = vpop.f32.mrb[0].mxu0
      %1347 = vmatprep.mubr.bf16.mxu0 %v806
      %1348 = vmatmul.mubr.bf16.gmra.mrb[0].mxu0 %v805
      %v1349 = vpop.f32.mrb[0].mxu0
      %v1350 = vadd.f32 %v396, %v1349
      %v1351 = vpop.f32.mrb[0].mxu0
      %v1352 = vpop.f32.mrb[0].mxu0
      %v1353 = vadd.f32 %v396, %v1352
      %v1354 = vpop.f32.mrb[0].mxu0
      %1355 = vmatprep.mubr.bf16.mxu0 %v809
      %1356 = vmatmul.mubr.bf16.gmra.mrb[0].mxu0 %v808
      %v1357 = vpop.f32.mrb[0].mxu0
      %v1358 = vadd.f32 %v396, %v1357
      %v1359 = vpop.f32.mrb[0].mxu0
      %v1360 = vpop.f32.mrb[0].mxu0
      %v1361 = vadd.f32 %v396, %v1360
      %v1362 = vpop.f32.mrb[0].mxu0
      %1363 = vmatprep.mubr.bf16.mxu0 %v812
      %1364 = vmatmul.mubr.bf16.gmra.mrb[0].mxu0 %v811
      %v1365 = vpop.f32.mrb[0].mxu0
      %v1366 = vadd.f32 %v396, %v1365
      %v1367 = vpop.f32.mrb[0].mxu0
      %v1368 = vpop.f32.mrb[0].mxu0
      %v1369 = vadd.f32 %v396, %v1368
      %v1370 = vpop.f32.mrb[0].mxu0
      %1371 = vdwg.mxu0
      %1372 = vmatprep.subr.bf16.mxu0 0
      %1373 = vmatpush1.bf16.msra.mxu0 %v966
      %1374 = vmatprep.subr.bf16.mxu0 0
      %1375 = vmatpush1.bf16.msra.mxu0 %v967
      %1376 = vmatprep.subr.bf16.mxu0 0
      %1377 = vmatpush1.bf16.msra.mxu0 0
      %1378 = vmatprep.subr.bf16.mxu0 0
      %1379 = vmatpush1.bf16.msra.mxu0 0
      %1380 = vmatprep.subr.bf16.mxu0 0
      %1381 = vmatpush1.bf16.msra.mxu0 0
      %1382 = vmatprep.subr.bf16.mxu0 0
      %1383 = vmatpush1.bf16.msra.mxu0 0
      %1384 = vmatprep.subr.bf16.mxu0 0
      %1385 = vmatpush1.bf16.msra.mxu0 0
      %1386 = vmatprep.subr.bf16.mxu0 0
      %1387 = vmatpush1.bf16.msra.mxu0 0
      %1388 = vmatprep.subr.bf16.mxu0 0
      %1389 = vmatpush1.bf16.msra.mxu0 0
      %1390 = vmatprep.subr.bf16.mxu0 0
      %1391 = vmatpush1.bf16.msra.mxu0 0
      %1392 = vmatprep.subr.bf16.mxu0 0
      %1393 = vmatpush1.bf16.msra.mxu0 0
      %1394 = vmatprep.subr.bf16.mxu0 0
      %1395 = vmatpush1.bf16.msra.mxu0 0
      %1396 = vmatprep.subr.bf16.mxu0 0
      %1397 = vmatpush1.bf16.msra.mxu0 0
      %1398 = vmatprep.subr.bf16.mxu0 0
      %1399 = vmatpush1.bf16.msra.mxu0 0
      %1400 = vmatprep.subr.bf16.mxu0 0
      %1401 = vmatpush1.bf16.msra.mxu0 0
      %1402 = vmatprep.subr.bf16.mxu0 0
      %1403 = vmatpush1.bf16.msra.mxu0 0
      %1404 = vmatprep.mubr.bf16.mxu0 0
      %1405 = vmatmul.mubr.bf16.gmra.mrb[0].mxu0 %v988
      %v1406 = vpop.f32.mrb[0].mxu0
      %v1407 = vadd.f32 %v1118, %v1406
      %v1408 = vpop.f32.mrb[0].mxu0
      %v1409 = vpop.f32.mrb[0].mxu0
      %v1410 = vadd.f32 %v1121, %v1409
      %v1411 = vpop.f32.mrb[0].mxu0
      %1412 = vmatprep.mubr.bf16.mxu0 0
      %1413 = vmatmul.mubr.bf16.gmra.mrb[0].mxu0 %v991
      %v1414 = vpop.f32.mrb[0].mxu0
      %v1415 = vadd.f32 %v1126, %v1414
      %v1416 = vpop.f32.mrb[0].mxu0
      %v1417 = vpop.f32.mrb[0].mxu0
      %v1418 = vadd.f32 %v1129, %v1417
      %v1419 = vpop.f32.mrb[0].mxu0
      %1420 = vmatprep.mubr.bf16.mxu0 0
      %1421 = vmatmul.mubr.bf16.gmra.mrb[0].mxu0 %v994
      %v1422 = vpop.f32.mrb[0].mxu0
      %v1423 = vadd.f32 %v1134, %v1422
      %v1424 = vpop.f32.mrb[0].mxu0
      %v1425 = vpop.f32.mrb[0].mxu0
      %v1426 = vadd.f32 %v1137, %v1425
      %v1427 = vpop.f32.mrb[0].mxu0
      %1428 = vmatprep.mubr.bf16.mxu0 0
      %1429 = vmatmul.mubr.bf16.gmra.mrb[0].mxu0 %v997
      %v1430 = vpop.f32.mrb[0].mxu0
      %v1431 = vadd.f32 %v1142, %v1430
      %v1432 = vpop.f32.mrb[0].mxu0
      %v1433 = vpop.f32.mrb[0].mxu0
      %v1434 = vadd.f32 %v1145, %v1433
      %v1435 = vpop.f32.mrb[0].mxu0
      %1436 = vmatprep.mubr.bf16.mxu0 0
      %1437 = vmatmul.mubr.bf16.gmra.mrb[0].mxu0 %v1000
      %v1438 = vpop.f32.mrb[0].mxu0
      %v1439 = vadd.f32 %v1150, %v1438
      %v1440 = vpop.f32.mrb[0].mxu0
      %v1441 = vpop.f32.mrb[0].mxu0
      %v1442 = vadd.f32 %v1153, %v1441
      %v1443 = vpop.f32.mrb[0].mxu0
      %1444 = vmatprep.mubr.bf16.mxu0 0
      %1445 = vmatmul.mubr.bf16.gmra.mrb[0].mxu0 %v1003
      %v1446 = vpop.f32.mrb[0].mxu0
      %v1447 = vadd.f32 %v1158, %v1446
      %v1448 = vpop.f32.mrb[0].mxu0
      %v1449 = vpop.f32.mrb[0].mxu0
      %v1450 = vadd.f32 %v1161, %v1449
      %v1451 = vpop.f32.mrb[0].mxu0
      %1452 = vmatprep.mubr.bf16.mxu0 0
      %1453 = vmatmul.mubr.bf16.gmra.mrb[0].mxu0 %v1006
      %v1454 = vpop.f32.mrb[0].mxu0
      %v1455 = vadd.f32 %v1166, %v1454
      %v1456 = vpop.f32.mrb[0].mxu0
      %v1457 = vpop.f32.mrb[0].mxu0
      %v1458 = vadd.f32 %v1169, %v1457
      %v1459 = vpop.f32.mrb[0].mxu0
      %1460 = vmatprep.mubr.bf16.mxu0 0
      %1461 = vmatmul.mubr.bf16.gmra.mrb[0].mxu0 %v1009
      %v1462 = vpop.f32.mrb[0].mxu0
      %v1463 = vadd.f32 %v1174, %v1462
      %v1464 = vpop.f32.mrb[0].mxu0
      %v1465 = vpop.f32.mrb[0].mxu0
      %v1466 = vadd.f32 %v1177, %v1465
      %v1467 = vpop.f32.mrb[0].mxu0
      %1468 = vmatprep.mubr.bf16.mxu0 0
      %1469 = vmatmul.mubr.bf16.gmra.mrb[0].mxu0 %v1012
      %v1470 = vpop.f32.mrb[0].mxu0
      %v1471 = vadd.f32 %v1182, %v1470
      %v1472 = vpop.f32.mrb[0].mxu0
      %v1473 = vpop.f32.mrb[0].mxu0
      %v1474 = vadd.f32 %v1185, %v1473
      %v1475 = vpop.f32.mrb[0].mxu0
      %1476 = vmatprep.mubr.bf16.mxu0 0
      %1477 = vmatmul.mubr.bf16.gmra.mrb[0].mxu0 %v1015
      %v1478 = vpop.f32.mrb[0].mxu0
      %v1479 = vadd.f32 %v1190, %v1478
      %v1480 = vpop.f32.mrb[0].mxu0
      %v1481 = vpop.f32.mrb[0].mxu0
      %v1482 = vadd.f32 %v1193, %v1481
      %v1483 = vpop.f32.mrb[0].mxu0
      %1484 = vmatprep.mubr.bf16.mxu0 0
      %1485 = vmatmul.mubr.bf16.gmra.mrb[0].mxu0 %v1018
      %v1486 = vpop.f32.mrb[0].mxu0
      %v1487 = vadd.f32 %v1198, %v1486
      %v1488 = vpop.f32.mrb[0].mxu0
      %v1489 = vpop.f32.mrb[0].mxu0
      %v1490 = vadd.f32 %v1201, %v1489
      %v1491 = vpop.f32.mrb[0].mxu0
      %1492 = vmatprep.mubr.bf16.mxu0 0
      %1493 = vmatmul.mubr.bf16.gmra.mrb[0].mxu0 %v1021
      %v1494 = vpop.f32.mrb[0].mxu0
      %v1495 = vadd.f32 %v1206, %v1494
      %v1496 = vpop.f32.mrb[0].mxu0
      %v1497 = vpop.f32.mrb[0].mxu0
      %v1498 = vadd.f32 %v1209, %v1497
      %v1499 = vpop.f32.mrb[0].mxu0
      %1500 = vmatprep.mubr.bf16.mxu0 0
      %1501 = vmatmul.mubr.bf16.gmra.mrb[0].mxu0 %v1024
      %v1502 = vpop.f32.mrb[0].mxu0
      %v1503 = vadd.f32 %v1214, %v1502
      %v1504 = vpop.f32.mrb[0].mxu0
      %v1505 = vpop.f32.mrb[0].mxu0
      %v1506 = vadd.f32 %v1217, %v1505
      %v1507 = vpop.f32.mrb[0].mxu0
      %1508 = vmatprep.mubr.bf16.mxu0 0
      %1509 = vmatmul.mubr.bf16.gmra.mrb[0].mxu0 %v1027
      %v1510 = vpop.f32.mrb[0].mxu0
      %v1511 = vadd.f32 %v1222, %v1510
      %v1512 = vpop.f32.mrb[0].mxu0
      %v1513 = vpop.f32.mrb[0].mxu0
      %v1514 = vadd.f32 %v1225, %v1513
      %v1515 = vpop.f32.mrb[0].mxu0
      %1516 = vmatprep.mubr.bf16.mxu0 0
      %1517 = vmatmul.mubr.bf16.gmra.mrb[0].mxu0 %v1030
      %v1518 = vpop.f32.mrb[0].mxu0
      %v1519 = vadd.f32 %v1230, %v1518
      %v1520 = vpop.f32.mrb[0].mxu0
      %v1521 = vpop.f32.mrb[0].mxu0
      %v1522 = vadd.f32 %v1233, %v1521
      %v1523 = vpop.f32.mrb[0].mxu0
      %1524 = vmatprep.mubr.bf16.mxu0 0
      %1525 = vmatmul.mubr.bf16.gmra.mrb[0].mxu0 %v1033
      %v1526 = vpop.f32.mrb[0].mxu0
      %v1527 = vadd.f32 %v1238, %v1526
      %v1528 = vpop.f32.mrb[0].mxu0
      %v1529 = vpop.f32.mrb[0].mxu0
      %v1530 = vadd.f32 %v1241, %v1529
      %v1531 = vpop.f32.mrb[0].mxu0
      %1532 = vmatprep.mubr.bf16.mxu0 0
      %1533 = vmatmul.mubr.bf16.gmra.mrb[0].mxu0 %v1036
      %v1534 = vpop.f32.mrb[0].mxu0
      %v1535 = vadd.f32 %v1246, %v1534
      %v1536 = vpop.f32.mrb[0].mxu0
      %v1537 = vpop.f32.mrb[0].mxu0
      %v1538 = vadd.f32 %v1249, %v1537
      %v1539 = vpop.f32.mrb[0].mxu0
      %1540 = vmatprep.mubr.bf16.mxu0 0
      %1541 = vmatmul.mubr.bf16.gmra.mrb[0].mxu0 %v1039
      %v1542 = vpop.f32.mrb[0].mxu0
      %v1543 = vadd.f32 %v1254, %v1542
      %v1544 = vpop.f32.mrb[0].mxu0
      %v1545 = vpop.f32.mrb[0].mxu0
      %v1546 = vadd.f32 %v1257, %v1545
      %v1547 = vpop.f32.mrb[0].mxu0
      %1548 = vmatprep.mubr.bf16.mxu0 0
      %1549 = vmatmul.mubr.bf16.gmra.mrb[0].mxu0 %v1042
      %v1550 = vpop.f32.mrb[0].mxu0
      %v1551 = vadd.f32 %v1262, %v1550
      %v1552 = vpop.f32.mrb[0].mxu0
      %v1553 = vpop.f32.mrb[0].mxu0
      %v1554 = vadd.f32 %v1265, %v1553
      %v1555 = vpop.f32.mrb[0].mxu0
      %1556 = vmatprep.mubr.bf16.mxu0 0
      %1557 = vmatmul.mubr.bf16.gmra.mrb[0].mxu0 %v1045
      %v1558 = vpop.f32.mrb[0].mxu0
      %v1559 = vadd.f32 %v1270, %v1558
      %v1560 = vpop.f32.mrb[0].mxu0
      %v1561 = vpop.f32.mrb[0].mxu0
      %v1562 = vadd.f32 %v1273, %v1561
      %v1563 = vpop.f32.mrb[0].mxu0
      %1564 = vmatprep.mubr.bf16.mxu0 0
      %1565 = vmatmul.mubr.bf16.gmra.mrb[0].mxu0 %v1048
      %v1566 = vpop.f32.mrb[0].mxu0
      %v1567 = vadd.f32 %v1278, %v1566
      %v1568 = vpop.f32.mrb[0].mxu0
      %v1569 = vpop.f32.mrb[0].mxu0
      %v1570 = vadd.f32 %v1281, %v1569
      %v1571 = vpop.f32.mrb[0].mxu0
      %1572 = vmatprep.mubr.bf16.mxu0 0
      %1573 = vmatmul.mubr.bf16.gmra.mrb[0].mxu0 %v1051
      %v1574 = vpop.f32.mrb[0].mxu0
      %v1575 = vadd.f32 %v1286, %v1574
      %v1576 = vpop.f32.mrb[0].mxu0
      %v1577 = vpop.f32.mrb[0].mxu0
      %v1578 = vadd.f32 %v1289, %v1577
      %v1579 = vpop.f32.mrb[0].mxu0
      %1580 = vmatprep.mubr.bf16.mxu0 0
      %1581 = vmatmul.mubr.bf16.gmra.mrb[0].mxu0 %v1054
      %v1582 = vpop.f32.mrb[0].mxu0
      %v1583 = vadd.f32 %v1294, %v1582
      %v1584 = vpop.f32.mrb[0].mxu0
      %v1585 = vpop.f32.mrb[0].mxu0
      %v1586 = vadd.f32 %v1297, %v1585
      %v1587 = vpop.f32.mrb[0].mxu0
      %1588 = vmatprep.mubr.bf16.mxu0 0
      %1589 = vmatmul.mubr.bf16.gmra.mrb[0].mxu0 %v1057
      %v1590 = vpop.f32.mrb[0].mxu0
      %v1591 = vadd.f32 %v1302, %v1590
      %v1592 = vpop.f32.mrb[0].mxu0
      %v1593 = vpop.f32.mrb[0].mxu0
      %v1594 = vadd.f32 %v1305, %v1593
      %v1595 = vpop.f32.mrb[0].mxu0
      %1596 = vmatprep.mubr.bf16.mxu0 0
      %1597 = vmatmul.mubr.bf16.gmra.mrb[0].mxu0 %v1060
      %v1598 = vpop.f32.mrb[0].mxu0
      %v1599 = vadd.f32 %v1310, %v1598
      %v1600 = vpop.f32.mrb[0].mxu0
      %v1601 = vpop.f32.mrb[0].mxu0
      %v1602 = vadd.f32 %v1313, %v1601
      %v1603 = vpop.f32.mrb[0].mxu0
      %1604 = vmatprep.mubr.bf16.mxu0 0
      %1605 = vmatmul.mubr.bf16.gmra.mrb[0].mxu0 %v1063
      %v1606 = vpop.f32.mrb[0].mxu0
      %v1607 = vadd.f32 %v1318, %v1606
      %v1608 = vpop.f32.mrb[0].mxu0
      %v1609 = vpop.f32.mrb[0].mxu0
      %v1610 = vadd.f32 %v1321, %v1609
      %v1611 = vpop.f32.mrb[0].mxu0
      %1612 = vmatprep.mubr.bf16.mxu0 0
      %1613 = vmatmul.mubr.bf16.gmra.mrb[0].mxu0 %v1066
      %v1614 = vpop.f32.mrb[0].mxu0
      %v1615 = vadd.f32 %v1326, %v1614
      %v1616 = vpop.f32.mrb[0].mxu0
      %v1617 = vpop.f32.mrb[0].mxu0
      %v1618 = vadd.f32 %v1329, %v1617
      %v1619 = vpop.f32.mrb[0].mxu0
      %1620 = vmatprep.mubr.bf16.mxu0 0
      %1621 = vmatmul.mubr.bf16.gmra.mrb[0].mxu0 %v1069
      %v1622 = vpop.f32.mrb[0].mxu0
      %v1623 = vadd.f32 %v1334, %v1622
      %v1624 = vpop.f32.mrb[0].mxu0
      %v1625 = vpop.f32.mrb[0].mxu0
      %v1626 = vadd.f32 %v1337, %v1625
      %v1627 = vpop.f32.mrb[0].mxu0
      %1628 = vmatprep.mubr.bf16.mxu0 0
      %1629 = vmatmul.mubr.bf16.gmra.mrb[0].mxu0 %v1072
      %v1630 = vpop.f32.mrb[0].mxu0
      %v1631 = vadd.f32 %v1342, %v1630
      %v1632 = vpop.f32.mrb[0].mxu0
      %v1633 = vpop.f32.mrb[0].mxu0
      %v1634 = vadd.f32 %v1345, %v1633
      %v1635 = vpop.f32.mrb[0].mxu0
      %1636 = vmatprep.mubr.bf16.mxu0 0
      %1637 = vmatmul.mubr.bf16.gmra.mrb[0].mxu0 %v1075
      %v1638 = vpop.f32.mrb[0].mxu0
      %v1639 = vadd.f32 %v1350, %v1638
      %v1640 = vpop.f32.mrb[0].mxu0
      %v1641 = vpop.f32.mrb[0].mxu0
      %v1642 = vadd.f32 %v1353, %v1641
      %v1643 = vpop.f32.mrb[0].mxu0
      %1644 = vmatprep.mubr.bf16.mxu0 0
      %1645 = vmatmul.mubr.bf16.gmra.mrb[0].mxu0 %v1078
      %v1646 = vpop.f32.mrb[0].mxu0
      %v1647 = vadd.f32 %v1358, %v1646
      %v1648 = vpop.f32.mrb[0].mxu0
      %v1649 = vpop.f32.mrb[0].mxu0
      %v1650 = vadd.f32 %v1361, %v1649
      %v1651 = vpop.f32.mrb[0].mxu0
      %1652 = vmatprep.mubr.bf16.mxu0 0
      %1653 = vmatmul.mubr.bf16.gmra.mrb[0].mxu0 %v1081
      %v1654 = vpop.f32.mrb[0].mxu0
      %v1655 = vadd.f32 %v1366, %v1654
      %v1656 = vpop.f32.mrb[0].mxu0
      %v1657 = vpop.f32.mrb[0].mxu0
      %v1658 = vadd.f32 %v1369, %v1657
      %v1659 = vpop.f32.mrb[0].mxu0
      %1660 = vdwg.mxu0
      %v1661 = vld [vmem:[%s218] sm:$0xff]
      %v1662 = vld [vmem:[%s218 + $0x8] sm:$0xff]
      %v1663 = vld [vmem:[%s218 + $0x10] sm:$0xff]
      %v1664 = vld [vmem:[%s218 + $0x18] sm:$0xff]
      %v1665 = vld [vmem:[%s218 + $0x20] sm:$0xff]
      %v1666 = vld [vmem:[%s218 + $0x28] sm:$0xff]
      %v1667 = vld [vmem:[%s218 + $0x30] sm:$0xff]
      %v1668 = vld [vmem:[%s218 + $0x38] sm:$0xff]
      %v1669 = vld [vmem:[%s218 + $0x40] sm:$0xff]
      %v1670 = vld [vmem:[%s218 + $0x48] sm:$0xff]
      %v1671 = vld [vmem:[%s218 + $0x50] sm:$0xff]
      %v1672 = vld [vmem:[%s218 + $0x58] sm:$0xff]
      %v1673 = vld [vmem:[%s218 + $0x60] sm:$0xff]
      %v1674 = vld [vmem:[%s218 + $0x68] sm:$0xff]
      %v1675 = vld [vmem:[%s218 + $0x70] sm:$0xff]
      %v1676 = vld [vmem:[%s218 + $0x78] sm:$0xff]
      %v1677 = vld [vmem:[%s218 + $0x80] sm:$0xff]
      %v1678 = vld [vmem:[%s218 + $0x88] sm:$0xff]
      %v1679 = vld [vmem:[%s218 + $0x90] sm:$0xff]
      %v1680 = vld [vmem:[%s218 + $0x98] sm:$0xff]
      %v1681 = vld [vmem:[%s218 + $0xa0] sm:$0xff]
      %v1682 = vld [vmem:[%s218 + $0xa8] sm:$0xff]
      %v1683 = vld [vmem:[%s218 + $0xb0] sm:$0xff]
      %v1684 = vld [vmem:[%s218 + $0xb8] sm:$0xff]
      %v1685 = vld [vmem:[%s218 + $0xc0] sm:$0xff]
      %v1686 = vld [vmem:[%s218 + $0xc8] sm:$0xff]
      %v1687 = vld [vmem:[%s218 + $0xd0] sm:$0xff]
      %v1688 = vld [vmem:[%s218 + $0xd8] sm:$0xff]
      %v1689 = vld [vmem:[%s218 + $0xe0] sm:$0xff]
      %v1690 = vld [vmem:[%s218 + $0xe8] sm:$0xff]
      %v1691 = vld [vmem:[%s218 + $0xf0] sm:$0xff]
      %v1692 = vld [vmem:[%s218 + $0xf8] sm:$0xff]
      %v1693 = vld [vmem:[%s218 + $0x100] sm:$0xff]
      %v1694 = vld [vmem:[%s218 + $0x108] sm:$0xff]
      %v1695 = vld [vmem:[%s218 + $0x110] sm:$0xff]
      %v1696 = vld [vmem:[%s218 + $0x118] sm:$0xff]
      %v1697 = vld [vmem:[%s218 + $0x120] sm:$0xff]
      %v1698 = vld [vmem:[%s218 + $0x128] sm:$0xff]
      %v1699 = vld [vmem:[%s218 + $0x130] sm:$0xff]
      %v1700 = vld [vmem:[%s218 + $0x138] sm:$0xff]
      %v1701 = vld [vmem:[%s218 + $0x140] sm:$0xff]
      %v1702 = vld [vmem:[%s218 + $0x148] sm:$0xff]
      %v1703 = vld [vmem:[%s218 + $0x150] sm:$0xff]
      %v1704 = vld [vmem:[%s218 + $0x158] sm:$0xff]
      %v1705 = vld [vmem:[%s218 + $0x160] sm:$0xff]
      %v1706 = vld [vmem:[%s218 + $0x168] sm:$0xff]
      %v1707 = vld [vmem:[%s218 + $0x170] sm:$0xff]
      %v1708 = vld [vmem:[%s218 + $0x178] sm:$0xff]
      %v1709 = vld [vmem:[%s218 + $0x180] sm:$0xff]
      %v1710 = vld [vmem:[%s218 + $0x188] sm:$0xff]
      %v1711 = vld [vmem:[%s218 + $0x190] sm:$0xff]
      %v1712 = vld [vmem:[%s218 + $0x198] sm:$0xff]
      %v1713 = vld [vmem:[%s218 + $0x1a0] sm:$0xff]
      %v1714 = vld [vmem:[%s218 + $0x1a8] sm:$0xff]
      %v1715 = vld [vmem:[%s218 + $0x1b0] sm:$0xff]
      %v1716 = vld [vmem:[%s218 + $0x1b8] sm:$0xff]
      %v1717 = vld [vmem:[%s218 + $0x1c0] sm:$0xff]
      %v1718 = vld [vmem:[%s218 + $0x1c8] sm:$0xff]
      %v1719 = vld [vmem:[%s218 + $0x1d0] sm:$0xff]
      %v1720 = vld [vmem:[%s218 + $0x1d8] sm:$0xff]
      %v1721 = vld [vmem:[%s218 + $0x1e0] sm:$0xff]
      %v1722 = vld [vmem:[%s218 + $0x1e8] sm:$0xff]
      %v1723 = vld [vmem:[%s218 + $0x1f0] sm:$0xff]
      %v1724 = vld [vmem:[%s218 + $0x1f8] sm:$0xff]
      %v1725 = vadd.f32 %v1407, %v1661
      %v1726 = vadd.f32 %v1410, %v1662
      %v1727 = vadd.f32 %v1415, %v1663
      %v1728 = vadd.f32 %v1418, %v1664
      %v1729 = vadd.f32 %v1423, %v1665
      %v1730 = vadd.f32 %v1426, %v1666
      %v1731 = vadd.f32 %v1431, %v1667
      %v1732 = vadd.f32 %v1434, %v1668
      %v1733 = vadd.f32 %v1439, %v1669
      %v1734 = vadd.f32 %v1442, %v1670
      %v1735 = vadd.f32 %v1447, %v1671
      %v1736 = vadd.f32 %v1450, %v1672
      %v1737 = vadd.f32 %v1455, %v1673
      %v1738 = vadd.f32 %v1458, %v1674
      %v1739 = vadd.f32 %v1463, %v1675
      %v1740 = vadd.f32 %v1466, %v1676
      %v1741 = vadd.f32 %v1471, %v1677
      %v1742 = vadd.f32 %v1474, %v1678
      %v1743 = vadd.f32 %v1479, %v1679
      %v1744 = vadd.f32 %v1482, %v1680
      %v1745 = vadd.f32 %v1487, %v1681
      %v1746 = vadd.f32 %v1490, %v1682
      %v1747 = vadd.f32 %v1495, %v1683
      %v1748 = vadd.f32 %v1498, %v1684
      %v1749 = vadd.f32 %v1503, %v1685
      %v1750 = vadd.f32 %v1506, %v1686
      %v1751 = vadd.f32 %v1511, %v1687
      %v1752 = vadd.f32 %v1514, %v1688
      %v1753 = vadd.f32 %v1519, %v1689
      %v1754 = vadd.f32 %v1522, %v1690
      %v1755 = vadd.f32 %v1527, %v1691
      %v1756 = vadd.f32 %v1530, %v1692
      %v1757 = vadd.f32 %v1535, %v1693
      %v1758 = vadd.f32 %v1538, %v1694
      %v1759 = vadd.f32 %v1543, %v1695
      %v1760 = vadd.f32 %v1546, %v1696
      %v1761 = vadd.f32 %v1551, %v1697
      %v1762 = vadd.f32 %v1554, %v1698
      %v1763 = vadd.f32 %v1559, %v1699
      %v1764 = vadd.f32 %v1562, %v1700
      %v1765 = vadd.f32 %v1567, %v1701
      %v1766 = vadd.f32 %v1570, %v1702
      %v1767 = vadd.f32 %v1575, %v1703
      %v1768 = vadd.f32 %v1578, %v1704
      %v1769 = vadd.f32 %v1583, %v1705
      %v1770 = vadd.f32 %v1586, %v1706
      %v1771 = vadd.f32 %v1591, %v1707
      %v1772 = vadd.f32 %v1594, %v1708
      %v1773 = vadd.f32 %v1599, %v1709
      %v1774 = vadd.f32 %v1602, %v1710
      %v1775 = vadd.f32 %v1607, %v1711
      %v1776 = vadd.f32 %v1610, %v1712
      %v1777 = vadd.f32 %v1615, %v1713
      %v1778 = vadd.f32 %v1618, %v1714
      %v1779 = vadd.f32 %v1623, %v1715
      %v1780 = vadd.f32 %v1626, %v1716
      %v1781 = vadd.f32 %v1631, %v1717
      %v1782 = vadd.f32 %v1634, %v1718
      %v1783 = vadd.f32 %v1639, %v1719
      %v1784 = vadd.f32 %v1642, %v1720
      %v1785 = vadd.f32 %v1647, %v1721
      %v1786 = vadd.f32 %v1650, %v1722
      %v1787 = vadd.f32 %v1655, %v1723
      %v1788 = vadd.f32 %v1658, %v1724
      %vm1789 = vcmask 7168
      %1790 = vst.msk [vmem:[%s224] sm:$0xff] %vm1789, %v1725
      %1791 = vst.msk [vmem:[%s224 + $0x8] sm:$0xff] %vm1789, %v1726
      %1792 = vst.msk [vmem:[%s224 + $0x10] sm:$0xff] %vm1789, %v1727
      %1793 = vst.msk [vmem:[%s224 + $0x18] sm:$0xff] %vm1789, %v1728
      %1794 = vst.msk [vmem:[%s224 + $0x20] sm:$0xff] %vm1789, %v1729
      %1795 = vst.msk [vmem:[%s224 + $0x28] sm:$0xff] %vm1789, %v1730
      %1796 = vst.msk [vmem:[%s224 + $0x30] sm:$0xff] %vm1789, %v1731
      %1797 = vst.msk [vmem:[%s224 + $0x38] sm:$0xff] %vm1789, %v1732
      %1798 = vst.msk [vmem:[%s224 + $0x40] sm:$0xff] %vm1789, %v1733
      %1799 = vst.msk [vmem:[%s224 + $0x48] sm:$0xff] %vm1789, %v1734
      %1800 = vst.msk [vmem:[%s224 + $0x50] sm:$0xff] %vm1789, %v1735
      %1801 = vst.msk [vmem:[%s224 + $0x58] sm:$0xff] %vm1789, %v1736
      %1802 = vst.msk [vmem:[%s224 + $0x60] sm:$0xff] %vm1789, %v1737
      %1803 = vst.msk [vmem:[%s224 + $0x68] sm:$0xff] %vm1789, %v1738
      %1804 = vst.msk [vmem:[%s224 + $0x70] sm:$0xff] %vm1789, %v1739
      %1805 = vst.msk [vmem:[%s224 + $0x78] sm:$0xff] %vm1789, %v1740
      %1806 = vst.msk [vmem:[%s224 + $0x80] sm:$0xff] %vm1789, %v1741
      %1807 = vst.msk [vmem:[%s224 + $0x88] sm:$0xff] %vm1789, %v1742
      %1808 = vst.msk [vmem:[%s224 + $0x90] sm:$0xff] %vm1789, %v1743
      %1809 = vst.msk [vmem:[%s224 + $0x98] sm:$0xff] %vm1789, %v1744
      %1810 = vst.msk [vmem:[%s224 + $0xa0] sm:$0xff] %vm1789, %v1745
      %1811 = vst.msk [vmem:[%s224 + $0xa8] sm:$0xff] %vm1789, %v1746
      %1812 = vst.msk [vmem:[%s224 + $0xb0] sm:$0xff] %vm1789, %v1747
      %1813 = vst.msk [vmem:[%s224 + $0xb8] sm:$0xff] %vm1789, %v1748
      %1814 = vst.msk [vmem:[%s224 + $0xc0] sm:$0xff] %vm1789, %v1749
      %1815 = vst.msk [vmem:[%s224 + $0xc8] sm:$0xff] %vm1789, %v1750
      %1816 = vst.msk [vmem:[%s224 + $0xd0] sm:$0xff] %vm1789, %v1751
      %1817 = vst.msk [vmem:[%s224 + $0xd8] sm:$0xff] %vm1789, %v1752
      %1818 = vst.msk [vmem:[%s224 + $0xe0] sm:$0xff] %vm1789, %v1753
      %1819 = vst.msk [vmem:[%s224 + $0xe8] sm:$0xff] %vm1789, %v1754
      %1820 = vst.msk [vmem:[%s224 + $0xf0] sm:$0xff] %vm1789, %v1755
      %1821 = vst.msk [vmem:[%s224 + $0xf8] sm:$0xff] %vm1789, %v1756
      %1822 = vst.msk [vmem:[%s224 + $0x100] sm:$0xff] %vm1789, %v1757
      %1823 = vst.msk [vmem:[%s224 + $0x108] sm:$0xff] %vm1789, %v1758
      %1824 = vst.msk [vmem:[%s224 + $0x110] sm:$0xff] %vm1789, %v1759
      %1825 = vst.msk [vmem:[%s224 + $0x118] sm:$0xff] %vm1789, %v1760
      %1826 = vst.msk [vmem:[%s224 + $0x120] sm:$0xff] %vm1789, %v1761
      %1827 = vst.msk [vmem:[%s224 + $0x128] sm:$0xff] %vm1789, %v1762
      %1828 = vst.msk [vmem:[%s224 + $0x130] sm:$0xff] %vm1789, %v1763
      %1829 = vst.msk [vmem:[%s224 + $0x138] sm:$0xff] %vm1789, %v1764
      %1830 = vst.msk [vmem:[%s224 + $0x140] sm:$0xff] %vm1789, %v1765
      %1831 = vst.msk [vmem:[%s224 + $0x148] sm:$0xff] %vm1789, %v1766
      %1832 = vst.msk [vmem:[%s224 + $0x150] sm:$0xff] %vm1789, %v1767
      %1833 = vst.msk [vmem:[%s224 + $0x158] sm:$0xff] %vm1789, %v1768
      %1834 = vst.msk [vmem:[%s224 + $0x160] sm:$0xff] %vm1789, %v1769
      %1835 = vst.msk [vmem:[%s224 + $0x168] sm:$0xff] %vm1789, %v1770
      %1836 = vst.msk [vmem:[%s224 + $0x170] sm:$0xff] %vm1789, %v1771
      %1837 = vst.msk [vmem:[%s224 + $0x178] sm:$0xff] %vm1789, %v1772
      %1838 = vst.msk [vmem:[%s224 + $0x180] sm:$0xff] %vm1789, %v1773
      %1839 = vst.msk [vmem:[%s224 + $0x188] sm:$0xff] %vm1789, %v1774
      %1840 = vst.msk [vmem:[%s224 + $0x190] sm:$0xff] %vm1789, %v1775
      %1841 = vst.msk [vmem:[%s224 + $0x198] sm:$0xff] %vm1789, %v1776
      %1842 = vst.msk [vmem:[%s224 + $0x1a0] sm:$0xff] %vm1789, %v1777
      %1843 = vst.msk [vmem:[%s224 + $0x1a8] sm:$0xff] %vm1789, %v1778
      %1844 = vst.msk [vmem:[%s224 + $0x1b0] sm:$0xff] %vm1789, %v1779
      %1845 = vst.msk [vmem:[%s224 + $0x1b8] sm:$0xff] %vm1789, %v1780
      %1846 = vst.msk [vmem:[%s224 + $0x1c0] sm:$0xff] %vm1789, %v1781
      %1847 = vst.msk [vmem:[%s224 + $0x1c8] sm:$0xff] %vm1789, %v1782
      %1848 = vst.msk [vmem:[%s224 + $0x1d0] sm:$0xff] %vm1789, %v1783
      %1849 = vst.msk [vmem:[%s224 + $0x1d8] sm:$0xff] %vm1789, %v1784
      %1850 = vst.msk [vmem:[%s224 + $0x1e0] sm:$0xff] %vm1789, %v1785
      %1851 = vst.msk [vmem:[%s224 + $0x1e8] sm:$0xff] %vm1789, %v1786
      %1852 = vst.msk [vmem:[%s224 + $0x1f0] sm:$0xff] %vm1789, %v1787
      %1853 = vst.msk [vmem:[%s224 + $0x1f8] sm:$0xff] %vm1789, %v1788
      %s1854 = smul.u32 64, %s15
      %p1855 = scmp.lt.s32.totalorder %s1854, 255
      %s1856 = scalar_select %p1855, %s1854, 255
      %s1857 = smul.addr %s1856, 8
      %s1858 = scalar_lea.vmem %s4, %s1857
      // Predicated region
      $region37: #{closed_call.65} parent=35 // pred_check
        %p1859 = pneg %p127
      $region38: #{closed_call.65} parent=35 // pred_check_branch
        %1861 = sbr.rel (%p1859) target = $region40
      $region39: #{closed_call.65} parent=35 // pred_region
        %s1862 = smul.u32 64, %s15
      $region40: #{closed_call.65} parent=35 // pred_fallthru
        _
    $region36: #{closed_call.65} parent=5 // pred_fallthru
      _
    %p1863 = scmp.le.s32.totalorder 2, %s10
    // Predicated region
    $region41: #{closed_call.65} parent=5 // pred_check
      %p1864 = pneg %p1863
    $region42: #{closed_call.65} parent=5 // pred_check_branch
      %1866 = sbr.rel (%p1864) target = $region44
    $region43: #{closed_call.65} parent=5 // pred_region
      %s1867 = ssub.s32 %s10, 2
      // Predicated region
      $region45: #{closed_call.65} parent=43 // pred_check
        %p1868 = pneg %p133
      $region46: #{closed_call.65} parent=43 // pred_check_branch
        %1870 = sbr.rel (%p1868) target = $region48
      $region47: #{closed_call.65} parent=43 // pred_region
        %s1871 = smul.u32 64, %s16
        %p1872 = scmp.lt.s32.totalorder %s1871, 255
        %s1873 = scalar_select %p1872, %s1871, 255
        %s1874 = smul.addr %s1873, 8
        %s1875 = scalar_lea.vmem %s4, %s1874
      $region48: #{closed_call.65} parent=43 // pred_fallthru
        _
    $region44: #{closed_call.65} parent=5 // pred_fallthru
      _
  $region6: #{closed_call.65} parent=0 // loop_footer
    %s14 = sadd.s32 1, %s10
  $region7: #{closed_call.65} parent=0 // loop_footer_branch
    %9 = sbr.rel target = $region3
  $region8: #{closed_call.65} parent=0 // loop_exit
    _

// kernel: forward_core.2
$region0: #{forward_core.2}
  #allocation0 [shape = 'u32[]', space=smem, size = 0x4, offset = 0x4, fixed_abs, tag = 'smem constant byte address 0x4 - core index']
  #allocation1 [shape = 'u32[144,128]{1,0:T(1,128)}', space=vmem, size = 0x12000, scoped, tag = 'internal scratch']
  %s0 = inlined_call_operand.vmem [shape: bf16[2048,9], index: 0, kind: input, shape index: {}]
  %s1 = inlined_call_operand.vmem [shape: bf16[9,128], index: 1, kind: input, shape index: {}]
  %s2 = inlined_call_operand.vmem [shape: f32[1,128], index: 2, kind: input, shape index: {}]
  %s3 = inlined_call_operand.vmem [shape: bf16[2048,128], index: 3, kind: output, shape index: {}]
  %s4 = sld [smem:[#allocation0]]
  $region45: #{forward_core.2} parent=0
    _
  %s6 = ssub.s32 1, %s4
  %s7 = scalar_select 0, %s6, %s4
  loop: start=0, step=1, limit=6
  $region2: #{forward_core.2} parent=0 // loop_pre_header
    _
  $region3: #{forward_core.2} parent=0 // loop_header
    %s9 = sphi 0, %s13
    %p10 = scmp.ge.s32.totalorder %s9, 6
    %s19 = sphi 0, %s21
    %s22 = sphi 0, %s19
    %s23 = sphi 0, %s22
    %s39 = sphi 0, %s23
    %s43 = sphi 0, %s43
    %s45 = sphi 0, %s43
    %s46 = sphi 0, %s45
    %s60 = sphi 0, %s46
    %s64 = sphi 0, %s64
    %s66 = sphi 0, %s64
    %s67 = sphi 0, %s66
    %s81 = sphi 0, %s67
    %s87 = sphi 0, %s89
    %s90 = sphi 0, %s87
    %s91 = sphi 0, %s90
    %s107 = sphi 0, %s91
  $region4: #{forward_core.2} parent=0 // loop_header_branch
    %12 = sbr.rel (%p10) target = $region8
  $region5: #{forward_core.2} parent=0 // loop_body
    %s14 = ssub.s32 %s9, 1
    %s15 = ssub.s32 %s9, 2
    %s16 = sadd.s32 %s9, 1
    %s17 = ssub.s32 %s9, %s16
    %p18 = scmp.eq.s32.totalorder %s17, 0
    %s20 = sadd.s32 %s19, 1
    %s21 = scalar_select %p18, %s19, %s20
    %p24 = pneg %p18
    %p25 = scmp.eq.s32.totalorder %s9, 3
    %p26 = por %p24, %p25
    %p27 = scmp.ne.s32.totalorder %s19, %s22
    %p28 = scmp.eq.s32.totalorder %s9, 0
    %p29 = por %p27, %p28
    %p30 = scmp.ne.s32.totalorder %s19, %s22
    %p31 = scmp.eq.s32.totalorder %s14, 3
    %p32 = por %p30, %p31
    %p33 = scmp.ne.s32.totalorder %s22, %s23
    %p34 = scmp.eq.s32.totalorder %s14, 0
    %p35 = por %p33, %p34
    %p36 = scmp.ne.s32.totalorder %s22, %s23
    %p37 = scmp.eq.s32.totalorder %s15, 3
    %p38 = por %p36, %p37
    %p40 = scmp.ne.s32.totalorder %s23, %s39
    %p41 = scmp.eq.s32.totalorder %s15, 0
    %p42 = por %p40, %p41
    %s44 = sadd.s32 %s43, 1
    %p47 = scmp.eq.s32.totalorder %s9, 3
    %p48 = scmp.ne.s32.totalorder %s43, %s45
    %p49 = scmp.eq.s32.totalorder %s9, 0
    %p50 = por %p48, %p49
    %p51 = scmp.ne.s32.totalorder %s43, %s45
    %p52 = scmp.eq.s32.totalorder %s14, 3
    %p53 = por %p51, %p52
    %p54 = scmp.ne.s32.totalorder %s45, %s46
    %p55 = scmp.eq.s32.totalorder %s14, 0
    %p56 = por %p54, %p55
    %p57 = scmp.ne.s32.totalorder %s45, %s46
    %p58 = scmp.eq.s32.totalorder %s15, 3
    %p59 = por %p57, %p58
    %p61 = scmp.ne.s32.totalorder %s46, %s60
    %p62 = scmp.eq.s32.totalorder %s15, 0
    %p63 = por %p61, %p62
    %s65 = sadd.s32 %s64, 1
    %p68 = scmp.eq.s32.totalorder %s9, 3
    %p69 = scmp.ne.s32.totalorder %s64, %s66
    %p70 = scmp.eq.s32.totalorder %s9, 0
    %p71 = por %p69, %p70
    %p72 = scmp.ne.s32.totalorder %s64, %s66
    %p73 = scmp.eq.s32.totalorder %s14, 3
    %p74 = por %p72, %p73
    %p75 = scmp.ne.s32.totalorder %s66, %s67
    %p76 = scmp.eq.s32.totalorder %s14, 0
    %p77 = por %p75, %p76
    %p78 = scmp.ne.s32.totalorder %s66, %s67
    %p79 = scmp.eq.s32.totalorder %s15, 3
    %p80 = por %p78, %p79
    %p82 = scmp.ne.s32.totalorder %s67, %s81
    %p83 = scmp.eq.s32.totalorder %s15, 0
    %p84 = por %p82, %p83
    %s85 = ssub.s32 %s9, %s16
    %p86 = scmp.eq.s32.totalorder %s85, 0
    %s88 = sadd.s32 %s87, 1
    %s89 = scalar_select %p86, %s87, %s88
    %p92 = pneg %p86
    %p93 = scmp.eq.s32.totalorder %s9, 3
    %p94 = por %p92, %p93
    %p95 = scmp.ne.s32.totalorder %s87, %s90
    %p96 = scmp.eq.s32.totalorder %s9, 0
    %p97 = por %p95, %p96
    %p98 = scmp.ne.s32.totalorder %s87, %s90
    %p99 = scmp.eq.s32.totalorder %s14, 3
    %p100 = por %p98, %p99
    %p101 = scmp.ne.s32.totalorder %s90, %s91
    %p102 = scmp.eq.s32.totalorder %s14, 0
    %p103 = por %p101, %p102
    %p104 = scmp.ne.s32.totalorder %s90, %s91
    %p105 = scmp.eq.s32.totalorder %s15, 3
    %p106 = por %p104, %p105
    %p108 = scmp.ne.s32.totalorder %s91, %s107
    %p109 = scmp.eq.s32.totalorder %s15, 0
    %p110 = por %p108, %p109
    %p111 = scmp.le.s32.totalorder 1, %s9
    %p112 = scmp.lt.s32.totalorder %s9, 5
    %p113 = pnand %p111, %p112
    %p114 = pneg %p113
    // Predicated region
    $region9: #{forward_core.2} parent=5 // pred_check
      _
    $region10: #{forward_core.2} parent=5 // pred_check_branch
      %116 = sbr.rel (%p113) target = $region12
    $region11: #{forward_core.2} parent=5 // pred_region
      %s117 = ssub.s32 %s9, 1
      // Predicated region
      $region13: #{forward_core.2} parent=11 // pred_check
        %p118 = pneg %p56
      $region14: #{forward_core.2} parent=11 // pred_check_branch
        %120 = sbr.rel (%p118) target = $region16
      $region15: #{forward_core.2} parent=11 // pred_region
        _
      $region16: #{forward_core.2} parent=11 // pred_fallthru
        _
      // Predicated region
      $region17: #{forward_core.2} parent=11 // pred_check
        %p121 = pneg %p77
      $region18: #{forward_core.2} parent=11 // pred_check_branch
        %123 = sbr.rel (%p121) target = $region20
      $region19: #{forward_core.2} parent=11 // pred_region
        _
      $region20: #{forward_core.2} parent=11 // pred_fallthru
        _
    $region12: #{forward_core.2} parent=5 // pred_fallthru
      _
    %p124 = scmp.lt.s32.totalorder %s9, 4
    // Predicated region
    $region21: #{forward_core.2} parent=5 // pred_check
      %p125 = pneg %p124
    $region22: #{forward_core.2} parent=5 // pred_check_branch
      %127 = sbr.rel (%p125) target = $region24
    $region23: #{forward_core.2} parent=5 // pred_region
      // Predicated region
      $region25: #{forward_core.2} parent=23 // pred_check
        %p128 = pneg %p29
      $region26: #{forward_core.2} parent=23 // pred_check_branch
        %130 = sbr.rel (%p128) target = $region28
      $region27: #{forward_core.2} parent=23 // pred_region
        %s131 = smul.u32 64, %s9
        %p132 = scmp.lt.s32.totalorder %s131, 255
        %s133 = scalar_select %p132, %s131, 255
        %s134 = smul.addr %s133, 4
        %s135 = scalar_lea.vmem %s0, %s134
        %s136 = smul.u32 64, %s9
      $region28: #{forward_core.2} parent=23 // pred_fallthru
        _
    $region24: #{forward_core.2} parent=5 // pred_fallthru
      _
    %p137 = scmp.le.s32.totalorder 1, %s9
    %p138 = scmp.lt.s32.totalorder %s9, 5
    %p139 = pnand %p137, %p138
    %p140 = pneg %p139
    // Predicated region
    $region29: #{forward_core.2} parent=5 // pred_check
      _
    $region30: #{forward_core.2} parent=5 // pred_check_branch
      %142 = sbr.rel (%p139) target = $region32
    $region31: #{forward_core.2} parent=5 // pred_region
      %s143 = ssub.s32 %s9, 1
      %s144 = smul.u32 64, %s14
      %p145 = scmp.lt.s32.totalorder %s144, 255
      %s146 = scalar_select %p145, %s144, 255
      %s147 = smul.addr %s146, 4
      %s148 = scalar_lea.vmem %s0, %s147
      %p149 = pneg %p35
      %p150 = pneg %p32
      %p151 = pneg %p56
      %p152 = pneg %p53
      %p153 = pneg %p77
      %p154 = pneg %p74
      %p155 = pneg %p103
      %p156 = pneg %p100
      %s157 = smul.u32 64, %s14
      %p158 = scmp.lt.s32.totalorder %s157, 255
      %s159 = scalar_select %p158, %s157, 255
      %s160 = smul.addr %s159, 4
      %s161 = scalar_lea.vmem %s3, %s160
      %s162 = smul.u32 64, %s14
      %p163 = scmp.lt.s32.totalorder %s162, 255
      %s164 = scalar_select %p163, %s162, 255
      %s165 = smul.addr %s164, 4
      %s166 = scalar_lea.vmem %s0, %s165
      %s167 = smul.u32 64, %s14
      %s168 = smul.u32 64, %s14
      %p169 = scmp.lt.s32.totalorder %s168, 255
      %s170 = scalar_select %p169, %s168, 255
      %s171 = smul.addr %s170, 4
      %s172 = scalar_lea.vmem %s3, %s171
      %s173 = smul.u32 64, %s14
      %v175 = vld [vmem:[%s166] sm:$0xf]
      %v176 = vld [vmem:[%s166 + $0x4] sm:$0xf]
      %v177 = vld [vmem:[%s166 + $0x8] sm:$0xf]
      %v178 = vld [vmem:[%s166 + $0xc] sm:$0xf]
      %v179 = vld [vmem:[%s166 + $0x10] sm:$0xf]
      %v180 = vld [vmem:[%s166 + $0x14] sm:$0xf]
      %v181 = vld [vmem:[%s166 + $0x18] sm:$0xf]
      %v182 = vld [vmem:[%s166 + $0x1c] sm:$0xf]
      %v183 = vld [vmem:[%s166 + $0x20] sm:$0xf]
      %v184 = vld [vmem:[%s166 + $0x24] sm:$0xf]
      %v185 = vld [vmem:[%s166 + $0x28] sm:$0xf]
      %v186 = vld [vmem:[%s166 + $0x2c] sm:$0xf]
      %v187 = vld [vmem:[%s166 + $0x30] sm:$0xf]
      %v188 = vld [vmem:[%s166 + $0x34] sm:$0xf]
      %v189 = vld [vmem:[%s166 + $0x38] sm:$0xf]
      %v190 = vld [vmem:[%s166 + $0x3c] sm:$0xf]
      %v191 = vld [vmem:[%s166 + $0x40] sm:$0xf]
      %v192 = vld [vmem:[%s166 + $0x44] sm:$0xf]
      %v193 = vld [vmem:[%s166 + $0x48] sm:$0xf]
      %v194 = vld [vmem:[%s166 + $0x4c] sm:$0xf]
      %v195 = vld [vmem:[%s166 + $0x50] sm:$0xf]
      %v196 = vld [vmem:[%s166 + $0x54] sm:$0xf]
      %v197 = vld [vmem:[%s166 + $0x58] sm:$0xf]
      %v198 = vld [vmem:[%s166 + $0x5c] sm:$0xf]
      %v199 = vld [vmem:[%s166 + $0x60] sm:$0xf]
      %v200 = vld [vmem:[%s166 + $0x64] sm:$0xf]
      %v201 = vld [vmem:[%s166 + $0x68] sm:$0xf]
      %v202 = vld [vmem:[%s166 + $0x6c] sm:$0xf]
      %v203 = vld [vmem:[%s166 + $0x70] sm:$0xf]
      %v204 = vld [vmem:[%s166 + $0x74] sm:$0xf]
      %v205 = vld [vmem:[%s166 + $0x78] sm:$0xf]
      %v206 = vld [vmem:[%s166 + $0x7c] sm:$0xf]
      %v207 = vld [vmem:[%s166 + $0x80] sm:$0xf]
      %v208 = vld [vmem:[%s166 + $0x84] sm:$0xf]
      %v209 = vld [vmem:[%s166 + $0x88] sm:$0xf]
      %v210 = vld [vmem:[%s166 + $0x8c] sm:$0xf]
      %v211 = vld [vmem:[%s166 + $0x90] sm:$0xf]
      %v212 = vld [vmem:[%s166 + $0x94] sm:$0xf]
      %v213 = vld [vmem:[%s166 + $0x98] sm:$0xf]
      %v214 = vld [vmem:[%s166 + $0x9c] sm:$0xf]
      %v215 = vld [vmem:[%s166 + $0xa0] sm:$0xf]
      %v216 = vld [vmem:[%s166 + $0xa4] sm:$0xf]
      %v217 = vld [vmem:[%s166 + $0xa8] sm:$0xf]
      %v218 = vld [vmem:[%s166 + $0xac] sm:$0xf]
      %v219 = vld [vmem:[%s166 + $0xb0] sm:$0xf]
      %v220 = vld [vmem:[%s166 + $0xb4] sm:$0xf]
      %v221 = vld [vmem:[%s166 + $0xb8] sm:$0xf]
      %v222 = vld [vmem:[%s166 + $0xbc] sm:$0xf]
      %v223 = vld [vmem:[%s166 + $0xc0] sm:$0xf]
      %v224 = vld [vmem:[%s166 + $0xc4] sm:$0xf]
      %v225 = vld [vmem:[%s166 + $0xc8] sm:$0xf]
      %v226 = vld [vmem:[%s166 + $0xcc] sm:$0xf]
      %v227 = vld [vmem:[%s166 + $0xd0] sm:$0xf]
      %v228 = vld [vmem:[%s166 + $0xd4] sm:$0xf]
      %v229 = vld [vmem:[%s166 + $0xd8] sm:$0xf]
      %v230 = vld [vmem:[%s166 + $0xdc] sm:$0xf]
      %v231 = vld [vmem:[%s166 + $0xe0] sm:$0xf]
      %v232 = vld [vmem:[%s166 + $0xe4] sm:$0xf]
      %v233 = vld [vmem:[%s166 + $0xe8] sm:$0xf]
      %v234 = vld [vmem:[%s166 + $0xec] sm:$0xf]
      %v235 = vld [vmem:[%s166 + $0xf0] sm:$0xf]
      %v236 = vld [vmem:[%s166 + $0xf4] sm:$0xf]
      %v237 = vld [vmem:[%s166 + $0xf8] sm:$0xf]
      %v238 = vld [vmem:[%s166 + $0xfc] sm:$0xf]
      %v239 = vld [vmem:[%s1] sm:$0xf]
      %v240 = vld [vmem:[%s1 + $0x4] sm:$0x1]
      %v241 = vld [vmem:[%s2] sm:$0x1]
      %v243 = vlaneseq
      %v244 = vshrl.u32 %v243, 7
      %v245 = vsub.s32 0, %v244
      %v246 = vrot.slane %v241, %v245
      %v312 = vunpack.c.l.b16 %v175
      %v313 = vunpack.c.l.b16 %v176
      %v314 = vunpack.c.l.b16 %v177
      %v315 = vunpack.c.l.b16 %v178
      %v316 = vunpack.c.l.b16 %v179
      %v317 = vunpack.c.l.b16 %v180
      %v318 = vunpack.c.l.b16 %v181
      %v319 = vunpack.c.l.b16 %v182
      %v320 = vunpack.c.l.b16 %v183
      %v321 = vunpack.c.l.b16 %v184
      %v322 = vunpack.c.l.b16 %v185
      %v323 = vunpack.c.l.b16 %v186
      %v324 = vunpack.c.l.b16 %v187
      %v325 = vunpack.c.l.b16 %v188
      %v326 = vunpack.c.l.b16 %v189
      %v327 = vunpack.c.l.b16 %v190
      %v328 = vunpack.c.l.b16 %v191
      %v329 = vunpack.c.l.b16 %v192
      %v330 = vunpack.c.l.b16 %v193
      %v331 = vunpack.c.l.b16 %v194
      %v332 = vunpack.c.l.b16 %v195
      %v333 = vunpack.c.l.b16 %v196
      %v334 = vunpack.c.l.b16 %v197
      %v335 = vunpack.c.l.b16 %v198
      %v336 = vunpack.c.l.b16 %v199
      %v337 = vunpack.c.l.b16 %v200
      %v338 = vunpack.c.l.b16 %v201
      %v339 = vunpack.c.l.b16 %v202
      %v340 = vunpack.c.l.b16 %v203
      %v341 = vunpack.c.l.b16 %v204
      %v342 = vunpack.c.l.b16 %v205
      %v343 = vunpack.c.l.b16 %v206
      %v344 = vunpack.c.l.b16 %v207
      %v345 = vunpack.c.l.b16 %v208
      %v346 = vunpack.c.l.b16 %v209
      %v347 = vunpack.c.l.b16 %v210
      %v348 = vunpack.c.l.b16 %v211
      %v349 = vunpack.c.l.b16 %v212
      %v350 = vunpack.c.l.b16 %v213
      %v351 = vunpack.c.l.b16 %v214
      %v352 = vunpack.c.l.b16 %v215
      %v353 = vunpack.c.l.b16 %v216
      %v354 = vunpack.c.l.b16 %v217
      %v355 = vunpack.c.l.b16 %v218
      %v356 = vunpack.c.l.b16 %v219
      %v357 = vunpack.c.l.b16 %v220
      %v358 = vunpack.c.l.b16 %v221
      %v359 = vunpack.c.l.b16 %v222
      %v360 = vunpack.c.l.b16 %v223
      %v361 = vunpack.c.l.b16 %v224
      %v362 = vunpack.c.l.b16 %v225
      %v363 = vunpack.c.l.b16 %v226
      %v364 = vunpack.c.l.b16 %v227
      %v365 = vunpack.c.l.b16 %v228
      %v366 = vunpack.c.l.b16 %v229
      %v367 = vunpack.c.l.b16 %v230
      %v368 = vunpack.c.l.b16 %v231
      %v369 = vunpack.c.l.b16 %v232
      %v370 = vunpack.c.l.b16 %v233
      %v371 = vunpack.c.l.b16 %v234
      %v372 = vunpack.c.l.b16 %v235
      %v373 = vunpack.c.l.b16 %v236
      %v374 = vunpack.c.l.b16 %v237
      %v375 = vunpack.c.l.b16 %v238
      %v376 = vpack.c.b16 %v313, %v312
      %v377 = vpack.c.b16 %v315, %v314
      %v378 = vpack.c.b16 %v317, %v316
      %v379 = vpack.c.b16 %v319, %v318
      %v380 = vpack.c.b16 %v321, %v320
      %v381 = vpack.c.b16 %v323, %v322
      %v382 = vpack.c.b16 %v325, %v324
      %v383 = vpack.c.b16 %v327, %v326
      %v384 = vpack.c.b16 %v329, %v328
      %v385 = vpack.c.b16 %v331, %v330
      %v386 = vpack.c.b16 %v333, %v332
      %v387 = vpack.c.b16 %v335, %v334
      %v388 = vpack.c.b16 %v337, %v336
      %v389 = vpack.c.b16 %v339, %v338
      %v390 = vpack.c.b16 %v341, %v340
      %v391 = vpack.c.b16 %v343, %v342
      %v392 = vpack.c.b16 %v345, %v344
      %v393 = vpack.c.b16 %v347, %v346
      %v394 = vpack.c.b16 %v349, %v348
      %v395 = vpack.c.b16 %v351, %v350
      %v396 = vpack.c.b16 %v353, %v352
      %v397 = vpack.c.b16 %v355, %v354
      %v398 = vpack.c.b16 %v357, %v356
      %v399 = vpack.c.b16 %v359, %v358
      %v400 = vpack.c.b16 %v361, %v360
      %v401 = vpack.c.b16 %v363, %v362
      %v402 = vpack.c.b16 %v365, %v364
      %v403 = vpack.c.b16 %v367, %v366
      %v404 = vpack.c.b16 %v369, %v368
      %v405 = vpack.c.b16 %v371, %v370
      %v406 = vpack.c.b16 %v373, %v372
      %v407 = vpack.c.b16 %v375, %v374
      %v410 = vunpack.c.l.b16 %v239
      %v411 = vunpack.c.l.b16 %v240
      %v412 = vpack.c.b16 %v411, %v410
      %vm413 = vcmask 72704
      %v415 = vsel %vm413, %v376, 0
      %v418 = vsel %vm413, %v377, 0
      %v421 = vsel %vm413, %v378, 0
      %v424 = vsel %vm413, %v379, 0
      %v427 = vsel %vm413, %v380, 0
      %v430 = vsel %vm413, %v381, 0
      %v433 = vsel %vm413, %v382, 0
      %v436 = vsel %vm413, %v383, 0
      %v439 = vsel %vm413, %v384, 0
      %v442 = vsel %vm413, %v385, 0
      %v445 = vsel %vm413, %v386, 0
      %v448 = vsel %vm413, %v387, 0
      %v451 = vsel %vm413, %v388, 0
      %v454 = vsel %vm413, %v389, 0
      %v457 = vsel %vm413, %v390, 0
      %v460 = vsel %vm413, %v391, 0
      %v463 = vsel %vm413, %v392, 0
      %v466 = vsel %vm413, %v393, 0
      %v469 = vsel %vm413, %v394, 0
      %v472 = vsel %vm413, %v395, 0
      %v475 = vsel %vm413, %v396, 0
      %v478 = vsel %vm413, %v397, 0
      %v481 = vsel %vm413, %v398, 0
      %v484 = vsel %vm413, %v399, 0
      %v487 = vsel %vm413, %v400, 0
      %v490 = vsel %vm413, %v401, 0
      %v493 = vsel %vm413, %v402, 0
      %v496 = vsel %vm413, %v403, 0
      %v499 = vsel %vm413, %v404, 0
      %v502 = vsel %vm413, %v405, 0
      %v505 = vsel %vm413, %v406, 0
      %v508 = vsel %vm413, %v407, 0
      %vm510 = vcmask 1043456
      %vm511 = vcmask 1044480
      %v512 = vsel %vm510, 4294967295, 65535
      %v513 = vsel %vm511, %v512, 0
      %v515 = vand.u32 %v412, %v513
      %517 = vmatprep.subr.bf16.mxu0 0
      %518 = vmatpush1.bf16.msra.mxu0 %v515
      %519 = vmatprep.subr.bf16.mxu0 0
      %520 = vmatpush1.bf16.msra.mxu0 0
      %521 = vmatprep.subr.bf16.mxu0 0
      %522 = vmatpush1.bf16.msra.mxu0 0
      %523 = vmatprep.subr.bf16.mxu0 0
      %524 = vmatpush1.bf16.msra.mxu0 0
      %525 = vmatprep.subr.bf16.mxu0 0
      %526 = vmatpush1.bf16.msra.mxu0 0
      %527 = vmatprep.subr.bf16.mxu0 0
      %528 = vmatpush1.bf16.msra.mxu0 0
      %529 = vmatprep.subr.bf16.mxu0 0
      %530 = vmatpush1.bf16.msra.mxu0 0
      %531 = vmatprep.subr.bf16.mxu0 0
      %532 = vmatpush1.bf16.msra.mxu0 0
      %533 = vmatprep.subr.bf16.mxu0 0
      %534 = vmatpush1.bf16.msra.mxu0 0
      %535 = vmatprep.subr.bf16.mxu0 0
      %536 = vmatpush1.bf16.msra.mxu0 0
      %537 = vmatprep.subr.bf16.mxu0 0
      %538 = vmatpush1.bf16.msra.mxu0 0
      %539 = vmatprep.subr.bf16.mxu0 0
      %540 = vmatpush1.bf16.msra.mxu0 0
      %541 = vmatprep.subr.bf16.mxu0 0
      %542 = vmatpush1.bf16.msra.mxu0 0
      %543 = vmatprep.subr.bf16.mxu0 0
      %544 = vmatpush1.bf16.msra.mxu0 0
      %545 = vmatprep.subr.bf16.mxu0 0
      %546 = vmatpush1.bf16.msra.mxu0 0
      %547 = vmatprep.subr.bf16.mxu0 0
      %548 = vmatpush1.bf16.msra.mxu0 0
      %549 = vmatprep.mubr.bf16.mxu0 0
      %550 = vmatmul.mubr.bf16.gmra.mrb[0].mxu0 %v415
      %v551 = vpop.f32.mrb[0].mxu0
      %v552 = vadd.f32 %v246, %v551
      %v553 = vpop.f32.mrb[0].mxu0
      %v554 = vpop.f32.mrb[0].mxu0
      %v555 = vadd.f32 %v246, %v554
      %v556 = vpop.f32.mrb[0].mxu0
      %557 = vmatprep.mubr.bf16.mxu0 0
      %558 = vmatmul.mubr.bf16.gmra.mrb[0].mxu0 %v418
      %v559 = vpop.f32.mrb[0].mxu0
      %v560 = vadd.f32 %v246, %v559
      %v561 = vpop.f32.mrb[0].mxu0
      %v562 = vpop.f32.mrb[0].mxu0
      %v563 = vadd.f32 %v246, %v562
      %v564 = vpop.f32.mrb[0].mxu0
      %565 = vmatprep.mubr.bf16.mxu0 0
      %566 = vmatmul.mubr.bf16.gmra.mrb[0].mxu0 %v421
      %v567 = vpop.f32.mrb[0].mxu0
      %v568 = vadd.f32 %v246, %v567
      %v569 = vpop.f32.mrb[0].mxu0
      %v570 = vpop.f32.mrb[0].mxu0
      %v571 = vadd.f32 %v246, %v570
      %v572 = vpop.f32.mrb[0].mxu0
      %573 = vmatprep.mubr.bf16.mxu0 0
      %574 = vmatmul.mubr.bf16.gmra.mrb[0].mxu0 %v424
      %v575 = vpop.f32.mrb[0].mxu0
      %v576 = vadd.f32 %v246, %v575
      %v577 = vpop.f32.mrb[0].mxu0
      %v578 = vpop.f32.mrb[0].mxu0
      %v579 = vadd.f32 %v246, %v578
      %v580 = vpop.f32.mrb[0].mxu0
      %581 = vmatprep.mubr.bf16.mxu0 0
      %582 = vmatmul.mubr.bf16.gmra.mrb[0].mxu0 %v427
      %v583 = vpop.f32.mrb[0].mxu0
      %v584 = vadd.f32 %v246, %v583
      %v585 = vpop.f32.mrb[0].mxu0
      %v586 = vpop.f32.mrb[0].mxu0
      %v587 = vadd.f32 %v246, %v586
      %v588 = vpop.f32.mrb[0].mxu0
      %589 = vmatprep.mubr.bf16.mxu0 0
      %590 = vmatmul.mubr.bf16.gmra.mrb[0].mxu0 %v430
      %v591 = vpop.f32.mrb[0].mxu0
      %v592 = vadd.f32 %v246, %v591
      %v593 = vpop.f32.mrb[0].mxu0
      %v594 = vpop.f32.mrb[0].mxu0
      %v595 = vadd.f32 %v246, %v594
      %v596 = vpop.f32.mrb[0].mxu0
      %597 = vmatprep.mubr.bf16.mxu0 0
      %598 = vmatmul.mubr.bf16.gmra.mrb[0].mxu0 %v433
      %v599 = vpop.f32.mrb[0].mxu0
      %v600 = vadd.f32 %v246, %v599
      %v601 = vpop.f32.mrb[0].mxu0
      %v602 = vpop.f32.mrb[0].mxu0
      %v603 = vadd.f32 %v246, %v602
      %v604 = vpop.f32.mrb[0].mxu0
      %605 = vmatprep.mubr.bf16.mxu0 0
      %606 = vmatmul.mubr.bf16.gmra.mrb[0].mxu0 %v436
      %v607 = vpop.f32.mrb[0].mxu0
      %v608 = vadd.f32 %v246, %v607
      %v609 = vpop.f32.mrb[0].mxu0
      %v610 = vpop.f32.mrb[0].mxu0
      %v611 = vadd.f32 %v246, %v610
      %v612 = vpop.f32.mrb[0].mxu0
      %613 = vmatprep.mubr.bf16.mxu0 0
      %614 = vmatmul.mubr.bf16.gmra.mrb[0].mxu0 %v439
      %v615 = vpop.f32.mrb[0].mxu0
      %v616 = vadd.f32 %v246, %v615
      %v617 = vpop.f32.mrb[0].mxu0
      %v618 = vpop.f32.mrb[0].mxu0
      %v619 = vadd.f32 %v246, %v618
      %v620 = vpop.f32.mrb[0].mxu0
      %621 = vmatprep.mubr.bf16.mxu0 0
      %622 = vmatmul.mubr.bf16.gmra.mrb[0].mxu0 %v442
      %v623 = vpop.f32.mrb[0].mxu0
      %v624 = vadd.f32 %v246, %v623
      %v625 = vpop.f32.mrb[0].mxu0
      %v626 = vpop.f32.mrb[0].mxu0
      %v627 = vadd.f32 %v246, %v626
      %v628 = vpop.f32.mrb[0].mxu0
      %629 = vmatprep.mubr.bf16.mxu0 0
      %630 = vmatmul.mubr.bf16.gmra.mrb[0].mxu0 %v445
      %v631 = vpop.f32.mrb[0].mxu0
      %v632 = vadd.f32 %v246, %v631
      %v633 = vpop.f32.mrb[0].mxu0
      %v634 = vpop.f32.mrb[0].mxu0
      %v635 = vadd.f32 %v246, %v634
      %v636 = vpop.f32.mrb[0].mxu0
      %637 = vmatprep.mubr.bf16.mxu0 0
      %638 = vmatmul.mubr.bf16.gmra.mrb[0].mxu0 %v448
      %v639 = vpop.f32.mrb[0].mxu0
      %v640 = vadd.f32 %v246, %v639
      %v641 = vpop.f32.mrb[0].mxu0
      %v642 = vpop.f32.mrb[0].mxu0
      %v643 = vadd.f32 %v246, %v642
      %v644 = vpop.f32.mrb[0].mxu0
      %645 = vmatprep.mubr.bf16.mxu0 0
      %646 = vmatmul.mubr.bf16.gmra.mrb[0].mxu0 %v451
      %v647 = vpop.f32.mrb[0].mxu0
      %v648 = vadd.f32 %v246, %v647
      %v649 = vpop.f32.mrb[0].mxu0
      %v650 = vpop.f32.mrb[0].mxu0
      %v651 = vadd.f32 %v246, %v650
      %v652 = vpop.f32.mrb[0].mxu0
      %653 = vmatprep.mubr.bf16.mxu0 0
      %654 = vmatmul.mubr.bf16.gmra.mrb[0].mxu0 %v454
      %v655 = vpop.f32.mrb[0].mxu0
      %v656 = vadd.f32 %v246, %v655
      %v657 = vpop.f32.mrb[0].mxu0
      %v658 = vpop.f32.mrb[0].mxu0
      %v659 = vadd.f32 %v246, %v658
      %v660 = vpop.f32.mrb[0].mxu0
      %661 = vmatprep.mubr.bf16.mxu0 0
      %662 = vmatmul.mubr.bf16.gmra.mrb[0].mxu0 %v457
      %v663 = vpop.f32.mrb[0].mxu0
      %v664 = vadd.f32 %v246, %v663
      %v665 = vpop.f32.mrb[0].mxu0
      %v666 = vpop.f32.mrb[0].mxu0
      %v667 = vadd.f32 %v246, %v666
      %v668 = vpop.f32.mrb[0].mxu0
      %669 = vmatprep.mubr.bf16.mxu0 0
      %670 = vmatmul.mubr.bf16.gmra.mrb[0].mxu0 %v460
      %v671 = vpop.f32.mrb[0].mxu0
      %v672 = vadd.f32 %v246, %v671
      %v673 = vpop.f32.mrb[0].mxu0
      %v674 = vpop.f32.mrb[0].mxu0
      %v675 = vadd.f32 %v246, %v674
      %v676 = vpop.f32.mrb[0].mxu0
      %677 = vmatprep.mubr.bf16.mxu0 0
      %678 = vmatmul.mubr.bf16.gmra.mrb[0].mxu0 %v463
      %v679 = vpop.f32.mrb[0].mxu0
      %v680 = vadd.f32 %v246, %v679
      %v681 = vpop.f32.mrb[0].mxu0
      %v682 = vpop.f32.mrb[0].mxu0
      %v683 = vadd.f32 %v246, %v682
      %v684 = vpop.f32.mrb[0].mxu0
      %685 = vmatprep.mubr.bf16.mxu0 0
      %686 = vmatmul.mubr.bf16.gmra.mrb[0].mxu0 %v466
      %v687 = vpop.f32.mrb[0].mxu0
      %v688 = vadd.f32 %v246, %v687
      %v689 = vpop.f32.mrb[0].mxu0
      %v690 = vpop.f32.mrb[0].mxu0
      %v691 = vadd.f32 %v246, %v690
      %v692 = vpop.f32.mrb[0].mxu0
      %693 = vmatprep.mubr.bf16.mxu0 0
      %694 = vmatmul.mubr.bf16.gmra.mrb[0].mxu0 %v469
      %v695 = vpop.f32.mrb[0].mxu0
      %v696 = vadd.f32 %v246, %v695
      %v697 = vpop.f32.mrb[0].mxu0
      %v698 = vpop.f32.mrb[0].mxu0
      %v699 = vadd.f32 %v246, %v698
      %v700 = vpop.f32.mrb[0].mxu0
      %701 = vmatprep.mubr.bf16.mxu0 0
      %702 = vmatmul.mubr.bf16.gmra.mrb[0].mxu0 %v472
      %v703 = vpop.f32.mrb[0].mxu0
      %v704 = vadd.f32 %v246, %v703
      %v705 = vpop.f32.mrb[0].mxu0
      %v706 = vpop.f32.mrb[0].mxu0
      %v707 = vadd.f32 %v246, %v706
      %v708 = vpop.f32.mrb[0].mxu0
      %709 = vmatprep.mubr.bf16.mxu0 0
      %710 = vmatmul.mubr.bf16.gmra.mrb[0].mxu0 %v475
      %v711 = vpop.f32.mrb[0].mxu0
      %v712 = vadd.f32 %v246, %v711
      %v713 = vpop.f32.mrb[0].mxu0
      %v714 = vpop.f32.mrb[0].mxu0
      %v715 = vadd.f32 %v246, %v714
      %v716 = vpop.f32.mrb[0].mxu0
      %717 = vmatprep.mubr.bf16.mxu0 0
      %718 = vmatmul.mubr.bf16.gmra.mrb[0].mxu0 %v478
      %v719 = vpop.f32.mrb[0].mxu0
      %v720 = vadd.f32 %v246, %v719
      %v721 = vpop.f32.mrb[0].mxu0
      %v722 = vpop.f32.mrb[0].mxu0
      %v723 = vadd.f32 %v246, %v722
      %v724 = vpop.f32.mrb[0].mxu0
      %725 = vmatprep.mubr.bf16.mxu0 0
      %726 = vmatmul.mubr.bf16.gmra.mrb[0].mxu0 %v481
      %v727 = vpop.f32.mrb[0].mxu0
      %v728 = vadd.f32 %v246, %v727
      %v729 = vpop.f32.mrb[0].mxu0
      %v730 = vpop.f32.mrb[0].mxu0
      %v731 = vadd.f32 %v246, %v730
      %v732 = vpop.f32.mrb[0].mxu0
      %733 = vmatprep.mubr.bf16.mxu0 0
      %734 = vmatmul.mubr.bf16.gmra.mrb[0].mxu0 %v484
      %v735 = vpop.f32.mrb[0].mxu0
      %v736 = vadd.f32 %v246, %v735
      %v737 = vpop.f32.mrb[0].mxu0
      %v738 = vpop.f32.mrb[0].mxu0
      %v739 = vadd.f32 %v246, %v738
      %v740 = vpop.f32.mrb[0].mxu0
      %741 = vmatprep.mubr.bf16.mxu0 0
      %742 = vmatmul.mubr.bf16.gmra.mrb[0].mxu0 %v487
      %v743 = vpop.f32.mrb[0].mxu0
      %v744 = vadd.f32 %v246, %v743
      %v745 = vpop.f32.mrb[0].mxu0
      %v746 = vpop.f32.mrb[0].mxu0
      %v747 = vadd.f32 %v246, %v746
      %v748 = vpop.f32.mrb[0].mxu0
      %749 = vmatprep.mubr.bf16.mxu0 0
      %750 = vmatmul.mubr.bf16.gmra.mrb[0].mxu0 %v490
      %v751 = vpop.f32.mrb[0].mxu0
      %v752 = vadd.f32 %v246, %v751
      %v753 = vpop.f32.mrb[0].mxu0
      %v754 = vpop.f32.mrb[0].mxu0
      %v755 = vadd.f32 %v246, %v754
      %v756 = vpop.f32.mrb[0].mxu0
      %757 = vmatprep.mubr.bf16.mxu0 0
      %758 = vmatmul.mubr.bf16.gmra.mrb[0].mxu0 %v493
      %v759 = vpop.f32.mrb[0].mxu0
      %v760 = vadd.f32 %v246, %v759
      %v761 = vpop.f32.mrb[0].mxu0
      %v762 = vpop.f32.mrb[0].mxu0
      %v763 = vadd.f32 %v246, %v762
      %v764 = vpop.f32.mrb[0].mxu0
      %765 = vmatprep.mubr.bf16.mxu0 0
      %766 = vmatmul.mubr.bf16.gmra.mrb[0].mxu0 %v496
      %v767 = vpop.f32.mrb[0].mxu0
      %v768 = vadd.f32 %v246, %v767
      %v769 = vpop.f32.mrb[0].mxu0
      %v770 = vpop.f32.mrb[0].mxu0
      %v771 = vadd.f32 %v246, %v770
      %v772 = vpop.f32.mrb[0].mxu0
      %773 = vmatprep.mubr.bf16.mxu0 0
      %774 = vmatmul.mubr.bf16.gmra.mrb[0].mxu0 %v499
      %v775 = vpop.f32.mrb[0].mxu0
      %v776 = vadd.f32 %v246, %v775
      %v777 = vpop.f32.mrb[0].mxu0
      %v778 = vpop.f32.mrb[0].mxu0
      %v779 = vadd.f32 %v246, %v778
      %v780 = vpop.f32.mrb[0].mxu0
      %781 = vmatprep.mubr.bf16.mxu0 0
      %782 = vmatmul.mubr.bf16.gmra.mrb[0].mxu0 %v502
      %v783 = vpop.f32.mrb[0].mxu0
      %v784 = vadd.f32 %v246, %v783
      %v785 = vpop.f32.mrb[0].mxu0
      %v786 = vpop.f32.mrb[0].mxu0
      %v787 = vadd.f32 %v246, %v786
      %v788 = vpop.f32.mrb[0].mxu0
      %789 = vmatprep.mubr.bf16.mxu0 0
      %790 = vmatmul.mubr.bf16.gmra.mrb[0].mxu0 %v505
      %v791 = vpop.f32.mrb[0].mxu0
      %v792 = vadd.f32 %v246, %v791
      %v793 = vpop.f32.mrb[0].mxu0
      %v794 = vpop.f32.mrb[0].mxu0
      %v795 = vadd.f32 %v246, %v794
      %v796 = vpop.f32.mrb[0].mxu0
      %797 = vmatprep.mubr.bf16.mxu0 0
      %798 = vmatmul.mubr.bf16.gmra.mrb[0].mxu0 %v508
      %v799 = vpop.f32.mrb[0].mxu0
      %v800 = vadd.f32 %v246, %v799
      %v801 = vpop.f32.mrb[0].mxu0
      %v802 = vpop.f32.mrb[0].mxu0
      %v803 = vadd.f32 %v246, %v802
      %v804 = vpop.f32.mrb[0].mxu0
      %805 = vdwg.mxu0
      %v806 = vmax.f32 %v552, 0.0
      %v807 = vmax.f32 %v555, 0.0
      %v808 = vmax.f32 %v560, 0.0
      %v809 = vmax.f32 %v563, 0.0
      %v810 = vmax.f32 %v568, 0.0
      %v811 = vmax.f32 %v571, 0.0
      %v812 = vmax.f32 %v576, 0.0
      %v813 = vmax.f32 %v579, 0.0
      %v814 = vmax.f32 %v584, 0.0
      %v815 = vmax.f32 %v587, 0.0
      %v816 = vmax.f32 %v592, 0.0
      %v817 = vmax.f32 %v595, 0.0
      %v818 = vmax.f32 %v600, 0.0
      %v819 = vmax.f32 %v603, 0.0
      %v820 = vmax.f32 %v608, 0.0
      %v821 = vmax.f32 %v611, 0.0
      %v822 = vmax.f32 %v616, 0.0
      %v823 = vmax.f32 %v619, 0.0
      %v824 = vmax.f32 %v624, 0.0
      %v825 = vmax.f32 %v627, 0.0
      %v826 = vmax.f32 %v632, 0.0
      %v827 = vmax.f32 %v635, 0.0
      %v828 = vmax.f32 %v640, 0.0
      %v829 = vmax.f32 %v643, 0.0
      %v830 = vmax.f32 %v648, 0.0
      %v831 = vmax.f32 %v651, 0.0
      %v832 = vmax.f32 %v656, 0.0
      %v833 = vmax.f32 %v659, 0.0
      %v834 = vmax.f32 %v664, 0.0
      %v835 = vmax.f32 %v667, 0.0
      %v836 = vmax.f32 %v672, 0.0
      %v837 = vmax.f32 %v675, 0.0
      %v838 = vmax.f32 %v680, 0.0
      %v839 = vmax.f32 %v683, 0.0
      %v840 = vmax.f32 %v688, 0.0
      %v841 = vmax.f32 %v691, 0.0
      %v842 = vmax.f32 %v696, 0.0
      %v843 = vmax.f32 %v699, 0.0
      %v844 = vmax.f32 %v704, 0.0
      %v845 = vmax.f32 %v707, 0.0
      %v846 = vmax.f32 %v712, 0.0
      %v847 = vmax.f32 %v715, 0.0
      %v848 = vmax.f32 %v720, 0.0
      %v849 = vmax.f32 %v723, 0.0
      %v850 = vmax.f32 %v728, 0.0
      %v851 = vmax.f32 %v731, 0.0
      %v852 = vmax.f32 %v736, 0.0
      %v853 = vmax.f32 %v739, 0.0
      %v854 = vmax.f32 %v744, 0.0
      %v855 = vmax.f32 %v747, 0.0
      %v856 = vmax.f32 %v752, 0.0
      %v857 = vmax.f32 %v755, 0.0
      %v858 = vmax.f32 %v760, 0.0
      %v859 = vmax.f32 %v763, 0.0
      %v860 = vmax.f32 %v768, 0.0
      %v861 = vmax.f32 %v771, 0.0
      %v862 = vmax.f32 %v776, 0.0
      %v863 = vmax.f32 %v779, 0.0
      %v864 = vmax.f32 %v784, 0.0
      %v865 = vmax.f32 %v787, 0.0
      %v866 = vmax.f32 %v792, 0.0
      %v867 = vmax.f32 %v795, 0.0
      %v868 = vmax.f32 %v800, 0.0
      %v869 = vmax.f32 %v803, 0.0
      %v870 = vpack.c.bf16 %v807, %v806
      %v871 = vpack.c.bf16 %v809, %v808
      %v872 = vpack.c.bf16 %v811, %v810
      %v873 = vpack.c.bf16 %v813, %v812
      %v874 = vpack.c.bf16 %v815, %v814
      %v875 = vpack.c.bf16 %v817, %v816
      %v876 = vpack.c.bf16 %v819, %v818
      %v877 = vpack.c.bf16 %v821, %v820
      %v878 = vpack.c.bf16 %v823, %v822
      %v879 = vpack.c.bf16 %v825, %v824
      %v880 = vpack.c.bf16 %v827, %v826
      %v881 = vpack.c.bf16 %v829, %v828
      %v882 = vpack.c.bf16 %v831, %v830
      %v883 = vpack.c.bf16 %v833, %v832
      %v884 = vpack.c.bf16 %v835, %v834
      %v885 = vpack.c.bf16 %v837, %v836
      %v886 = vpack.c.bf16 %v839, %v838
      %v887 = vpack.c.bf16 %v841, %v840
      %v888 = vpack.c.bf16 %v843, %v842
      %v889 = vpack.c.bf16 %v845, %v844
      %v890 = vpack.c.bf16 %v847, %v846
      %v891 = vpack.c.bf16 %v849, %v848
      %v892 = vpack.c.bf16 %v851, %v850
      %v893 = vpack.c.bf16 %v853, %v852
      %v894 = vpack.c.bf16 %v855, %v854
      %v895 = vpack.c.bf16 %v857, %v856
      %v896 = vpack.c.bf16 %v859, %v858
      %v897 = vpack.c.bf16 %v861, %v860
      %v898 = vpack.c.bf16 %v863, %v862
      %v899 = vpack.c.bf16 %v865, %v864
      %v900 = vpack.c.bf16 %v867, %v866
      %v901 = vpack.c.bf16 %v869, %v868
      %v934 = vunpack.c.l.b16 %v870
      %v935 = vunpack.c.h.b16 %v870
      %v936 = vunpack.c.l.b16 %v871
      %v937 = vunpack.c.h.b16 %v871
      %v938 = vunpack.c.l.b16 %v872
      %v939 = vunpack.c.h.b16 %v872
      %v940 = vunpack.c.l.b16 %v873
      %v941 = vunpack.c.h.b16 %v873
      %v942 = vunpack.c.l.b16 %v874
      %v943 = vunpack.c.h.b16 %v874
      %v944 = vunpack.c.l.b16 %v875
      %v945 = vunpack.c.h.b16 %v875
      %v946 = vunpack.c.l.b16 %v876
      %v947 = vunpack.c.h.b16 %v876
      %v948 = vunpack.c.l.b16 %v877
      %v949 = vunpack.c.h.b16 %v877
      %v950 = vunpack.c.l.b16 %v878
      %v951 = vunpack.c.h.b16 %v878
      %v952 = vunpack.c.l.b16 %v879
      %v953 = vunpack.c.h.b16 %v879
      %v954 = vunpack.c.l.b16 %v880
      %v955 = vunpack.c.h.b16 %v880
      %v956 = vunpack.c.l.b16 %v881
      %v957 = vunpack.c.h.b16 %v881
      %v958 = vunpack.c.l.b16 %v882
      %v959 = vunpack.c.h.b16 %v882
      %v960 = vunpack.c.l.b16 %v883
      %v961 = vunpack.c.h.b16 %v883
      %v962 = vunpack.c.l.b16 %v884
      %v963 = vunpack.c.h.b16 %v884
      %v964 = vunpack.c.l.b16 %v885
      %v965 = vunpack.c.h.b16 %v885
      %v966 = vunpack.c.l.b16 %v886
      %v967 = vunpack.c.h.b16 %v886
      %v968 = vunpack.c.l.b16 %v887
      %v969 = vunpack.c.h.b16 %v887
      %v970 = vunpack.c.l.b16 %v888
      %v971 = vunpack.c.h.b16 %v888
      %v972 = vunpack.c.l.b16 %v889
      %v973 = vunpack.c.h.b16 %v889
      %v974 = vunpack.c.l.b16 %v890
      %v975 = vunpack.c.h.b16 %v890
      %v976 = vunpack.c.l.b16 %v891
      %v977 = vunpack.c.h.b16 %v891
      %v978 = vunpack.c.l.b16 %v892
      %v979 = vunpack.c.h.b16 %v892
      %v980 = vunpack.c.l.b16 %v893
      %v981 = vunpack.c.h.b16 %v893
      %v982 = vunpack.c.l.b16 %v894
      %v983 = vunpack.c.h.b16 %v894
      %v984 = vunpack.c.l.b16 %v895
      %v985 = vunpack.c.h.b16 %v895
      %v986 = vunpack.c.l.b16 %v896
      %v987 = vunpack.c.h.b16 %v896
      %v988 = vunpack.c.l.b16 %v897
      %v989 = vunpack.c.h.b16 %v897
      %v990 = vunpack.c.l.b16 %v898
      %v991 = vunpack.c.h.b16 %v898
      %v992 = vunpack.c.l.b16 %v899
      %v993 = vunpack.c.h.b16 %v899
      %v994 = vunpack.c.l.b16 %v900
      %v995 = vunpack.c.h.b16 %v900
      %v996 = vunpack.c.l.b16 %v901
      %v997 = vunpack.c.h.b16 %v901
      %v998 = vpack.c.b16 %v934, %v934
      %v999 = vpack.c.b16 %v935, %v935
      %v1000 = vpack.c.b16 %v936, %v936
      %v1001 = vpack.c.b16 %v937, %v937
      %v1002 = vpack.c.b16 %v938, %v938
      %v1003 = vpack.c.b16 %v939, %v939
      %v1004 = vpack.c.b16 %v940, %v940
      %v1005 = vpack.c.b16 %v941, %v941
      %v1006 = vpack.c.b16 %v942, %v942
      %v1007 = vpack.c.b16 %v943, %v943
      %v1008 = vpack.c.b16 %v944, %v944
      %v1009 = vpack.c.b16 %v945, %v945
      %v1010 = vpack.c.b16 %v946, %v946
      %v1011 = vpack.c.b16 %v947, %v947
      %v1012 = vpack.c.b16 %v948, %v948
      %v1013 = vpack.c.b16 %v949, %v949
      %v1014 = vpack.c.b16 %v950, %v950
      %v1015 = vpack.c.b16 %v951, %v951
      %v1016 = vpack.c.b16 %v952, %v952
      %v1017 = vpack.c.b16 %v953, %v953
      %v1018 = vpack.c.b16 %v954, %v954
      %v1019 = vpack.c.b16 %v955, %v955
      %v1020 = vpack.c.b16 %v956, %v956
      %v1021 = vpack.c.b16 %v957, %v957
      %v1022 = vpack.c.b16 %v958, %v958
      %v1023 = vpack.c.b16 %v959, %v959
      %v1024 = vpack.c.b16 %v960, %v960
      %v1025 = vpack.c.b16 %v961, %v961
      %v1026 = vpack.c.b16 %v962, %v962
      %v1027 = vpack.c.b16 %v963, %v963
      %v1028 = vpack.c.b16 %v964, %v964
      %v1029 = vpack.c.b16 %v965, %v965
      %v1030 = vpack.c.b16 %v966, %v966
      %v1031 = vpack.c.b16 %v967, %v967
      %v1032 = vpack.c.b16 %v968, %v968
      %v1033 = vpack.c.b16 %v969, %v969
      %v1034 = vpack.c.b16 %v970, %v970
      %v1035 = vpack.c.b16 %v971, %v971
      %v1036 = vpack.c.b16 %v972, %v972
      %v1037 = vpack.c.b16 %v973, %v973
      %v1038 = vpack.c.b16 %v974, %v974
      %v1039 = vpack.c.b16 %v975, %v975
      %v1040 = vpack.c.b16 %v976, %v976
      %v1041 = vpack.c.b16 %v977, %v977
      %v1042 = vpack.c.b16 %v978, %v978
      %v1043 = vpack.c.b16 %v979, %v979
      %v1044 = vpack.c.b16 %v980, %v980
      %v1045 = vpack.c.b16 %v981, %v981
      %v1046 = vpack.c.b16 %v982, %v982
      %v1047 = vpack.c.b16 %v983, %v983
      %v1048 = vpack.c.b16 %v984, %v984
      %v1049 = vpack.c.b16 %v985, %v985
      %v1050 = vpack.c.b16 %v986, %v986
      %v1051 = vpack.c.b16 %v987, %v987
      %v1052 = vpack.c.b16 %v988, %v988
      %v1053 = vpack.c.b16 %v989, %v989
      %v1054 = vpack.c.b16 %v990, %v990
      %v1055 = vpack.c.b16 %v991, %v991
      %v1056 = vpack.c.b16 %v992, %v992
      %v1057 = vpack.c.b16 %v993, %v993
      %v1058 = vpack.c.b16 %v994, %v994
      %v1059 = vpack.c.b16 %v995, %v995
      %v1060 = vpack.c.b16 %v996, %v996
      %v1061 = vpack.c.b16 %v997, %v997
      %1126 = vst [vmem:[%s172] sm:$0xf] %v998
      %1127 = vst [vmem:[%s172 + $0x4] sm:$0xf] %v999
      %1128 = vst [vmem:[%s172 + $0x8] sm:$0xf] %v1000
      %1129 = vst [vmem:[%s172 + $0xc] sm:$0xf] %v1001
      %1130 = vst [vmem:[%s172 + $0x10] sm:$0xf] %v1002
      %1131 = vst [vmem:[%s172 + $0x14] sm:$0xf] %v1003
      %1132 = vst [vmem:[%s172 + $0x18] sm:$0xf] %v1004
      %1133 = vst [vmem:[%s172 + $0x1c] sm:$0xf] %v1005
      %1134 = vst [vmem:[%s172 + $0x20] sm:$0xf] %v1006
      %1135 = vst [vmem:[%s172 + $0x24] sm:$0xf] %v1007
      %1136 = vst [vmem:[%s172 + $0x28] sm:$0xf] %v1008
      %1137 = vst [vmem:[%s172 + $0x2c] sm:$0xf] %v1009
      %1138 = vst [vmem:[%s172 + $0x30] sm:$0xf] %v1010
      %1139 = vst [vmem:[%s172 + $0x34] sm:$0xf] %v1011
      %1140 = vst [vmem:[%s172 + $0x38] sm:$0xf] %v1012
      %1141 = vst [vmem:[%s172 + $0x3c] sm:$0xf] %v1013
      %1142 = vst [vmem:[%s172 + $0x40] sm:$0xf] %v1014
      %1143 = vst [vmem:[%s172 + $0x44] sm:$0xf] %v1015
      %1144 = vst [vmem:[%s172 + $0x48] sm:$0xf] %v1016
      %1145 = vst [vmem:[%s172 + $0x4c] sm:$0xf] %v1017
      %1146 = vst [vmem:[%s172 + $0x50] sm:$0xf] %v1018
      %1147 = vst [vmem:[%s172 + $0x54] sm:$0xf] %v1019
      %1148 = vst [vmem:[%s172 + $0x58] sm:$0xf] %v1020
      %1149 = vst [vmem:[%s172 + $0x5c] sm:$0xf] %v1021
      %1150 = vst [vmem:[%s172 + $0x60] sm:$0xf] %v1022
      %1151 = vst [vmem:[%s172 + $0x64] sm:$0xf] %v1023
      %1152 = vst [vmem:[%s172 + $0x68] sm:$0xf] %v1024
      %1153 = vst [vmem:[%s172 + $0x6c] sm:$0xf] %v1025
      %1154 = vst [vmem:[%s172 + $0x70] sm:$0xf] %v1026
      %1155 = vst [vmem:[%s172 + $0x74] sm:$0xf] %v1027
      %1156 = vst [vmem:[%s172 + $0x78] sm:$0xf] %v1028
      %1157 = vst [vmem:[%s172 + $0x7c] sm:$0xf] %v1029
      %1158 = vst [vmem:[%s172 + $0x80] sm:$0xf] %v1030
      %1159 = vst [vmem:[%s172 + $0x84] sm:$0xf] %v1031
      %1160 = vst [vmem:[%s172 + $0x88] sm:$0xf] %v1032
      %1161 = vst [vmem:[%s172 + $0x8c] sm:$0xf] %v1033
      %1162 = vst [vmem:[%s172 + $0x90] sm:$0xf] %v1034
      %1163 = vst [vmem:[%s172 + $0x94] sm:$0xf] %v1035
      %1164 = vst [vmem:[%s172 + $0x98] sm:$0xf] %v1036
      %1165 = vst [vmem:[%s172 + $0x9c] sm:$0xf] %v1037
      %1166 = vst [vmem:[%s172 + $0xa0] sm:$0xf] %v1038
      %1167 = vst [vmem:[%s172 + $0xa4] sm:$0xf] %v1039
      %1168 = vst [vmem:[%s172 + $0xa8] sm:$0xf] %v1040
      %1169 = vst [vmem:[%s172 + $0xac] sm:$0xf] %v1041
      %1170 = vst [vmem:[%s172 + $0xb0] sm:$0xf] %v1042
      %1171 = vst [vmem:[%s172 + $0xb4] sm:$0xf] %v1043
      %1172 = vst [vmem:[%s172 + $0xb8] sm:$0xf] %v1044
      %1173 = vst [vmem:[%s172 + $0xbc] sm:$0xf] %v1045
      %1174 = vst [vmem:[%s172 + $0xc0] sm:$0xf] %v1046
      %1175 = vst [vmem:[%s172 + $0xc4] sm:$0xf] %v1047
      %1176 = vst [vmem:[%s172 + $0xc8] sm:$0xf] %v1048
      %1177 = vst [vmem:[%s172 + $0xcc] sm:$0xf] %v1049
      %1178 = vst [vmem:[%s172 + $0xd0] sm:$0xf] %v1050
      %1179 = vst [vmem:[%s172 + $0xd4] sm:$0xf] %v1051
      %1180 = vst [vmem:[%s172 + $0xd8] sm:$0xf] %v1052
      %1181 = vst [vmem:[%s172 + $0xdc] sm:$0xf] %v1053
      %1182 = vst [vmem:[%s172 + $0xe0] sm:$0xf] %v1054
      %1183 = vst [vmem:[%s172 + $0xe4] sm:$0xf] %v1055
      %1184 = vst [vmem:[%s172 + $0xe8] sm:$0xf] %v1056
      %1185 = vst [vmem:[%s172 + $0xec] sm:$0xf] %v1057
      %1186 = vst [vmem:[%s172 + $0xf0] sm:$0xf] %v1058
      %1187 = vst [vmem:[%s172 + $0xf4] sm:$0xf] %v1059
      %1188 = vst [vmem:[%s172 + $0xf8] sm:$0xf] %v1060
      %1189 = vst [vmem:[%s172 + $0xfc] sm:$0xf] %v1061
      %s1190 = smul.u32 64, %s14
      %p1191 = scmp.lt.s32.totalorder %s1190, 255
      %s1192 = scalar_select %p1191, %s1190, 255
      %s1193 = smul.addr %s1192, 4
      %s1194 = scalar_lea.vmem %s3, %s1193
      // Predicated region
      $region33: #{forward_core.2} parent=31 // pred_check
        %p1195 = pneg %p100
      $region34: #{forward_core.2} parent=31 // pred_check_branch
        %1197 = sbr.rel (%p1195) target = $region36
      $region35: #{forward_core.2} parent=31 // pred_region
        %s1198 = smul.u32 64, %s14
      $region36: #{forward_core.2} parent=31 // pred_fallthru
        _
    $region32: #{forward_core.2} parent=5 // pred_fallthru
      _
    %p1199 = scmp.le.s32.totalorder 2, %s9
    // Predicated region
    $region37: #{forward_core.2} parent=5 // pred_check
      %p1200 = pneg %p1199
    $region38: #{forward_core.2} parent=5 // pred_check_branch
      %1202 = sbr.rel (%p1200) target = $region40
    $region39: #{forward_core.2} parent=5 // pred_region
      %s1203 = ssub.s32 %s9, 2
      // Predicated region
      $region41: #{forward_core.2} parent=39 // pred_check
        %p1204 = pneg %p106
      $region42: #{forward_core.2} parent=39 // pred_check_branch
        %1206 = sbr.rel (%p1204) target = $region44
      $region43: #{forward_core.2} parent=39 // pred_region
        %s1207 = smul.u32 64, %s15
        %p1208 = scmp.lt.s32.totalorder %s1207, 255
        %s1209 = scalar_select %p1208, %s1207, 255
        %s1210 = smul.addr %s1209, 4
        %s1211 = scalar_lea.vmem %s3, %s1210
      $region44: #{forward_core.2} parent=39 // pred_fallthru
        _
    $region40: #{forward_core.2} parent=5 // pred_fallthru
      _
  $region6: #{forward_core.2} parent=0 // loop_footer
    %s13 = sadd.s32 1, %s9
  $region7: #{forward_core.2} parent=0 // loop_footer_branch
    %8 = sbr.rel target = $region3
  $region8: #{forward_core.2} parent=0 // loop_exit
    _

</llo_original>
